<compile_context>
chip_gen: v7x
topology: tpu7x:2x2x1
jax: 0.10.0
libtpu: 0.0.40
codegen_flags: <defaults>
</compile_context>

<pallas_src>
import jax
import jax.numpy as jnp
from jax.experimental import pallas as pl
from jax.experimental.pallas import tpu as pltpu

LN_EPS = 1e-5


def _fused_patch_merging_kernel(x_ref, g_ref, b_ref, s0_ref, s1_ref,
                                m0_ref, m1_ref, o_ref):
    """LayerNorm + 2x2/stride-2 conv for one (batch, output-row-block) tile.

    x_ref : (1, C, 2*TH, W)  input rows feeding TH output rows (NCHW slice)
    g_ref : (1, W)  f32      LayerNorm gamma
    b_ref : (1, W)  f32      LayerNorm beta
    s0/s1 : (W, Wo) bf16     0/1 matrices gathering even / odd input columns (kx taps)
    m0/m1 : (2C, 2C) bf16    conv weight per kx tap, columns ordered (ky, c)
    o_ref : (1, 2C, TH, Wo)  output tile, NCHW
    """
    C = x_ref.shape[1]
    th2 = x_ref.shape[2]          # 2 * TH
    W = x_ref.shape[3]
    th = th2 // 2

    # ---- reorder rows to (h, c) so row pairs for one output row are contiguous ----
    xb = x_ref[0]                               # (C, 2TH, W)
    xt = pltpu.einshape("chw->hcw", xb)         # (2TH, C, W)   lane dim untouched
    x2 = xt.reshape(th2 * C, W).astype(jnp.float32)   # free merge (C % 8 == 0)

    # ---- LayerNorm over the lane (W) axis, f32 stats ----
    mean = jnp.mean(x2, axis=-1, keepdims=True)
    xc = x2 - mean
    var = jnp.mean(xc * xc, axis=-1, keepdims=True)
    xn = xc * jax.lax.rsqrt(var + LN_EPS)
    xn = (xn * g_ref[...] + b_ref[...]).astype(jnp.bfloat16)

    # ---- even / odd column taps via MXU selection matmuls (no lane-strided access) ----
    z0 = jnp.dot(xn, s0_ref[...], preferred_element_type=jnp.float32)  # (2TH*C, Wo)
    z1 = jnp.dot(xn, s1_ref[...], preferred_element_type=jnp.float32)
    z0 = z0.astype(jnp.bfloat16)   # exact: pure gather of bf16 values
    z1 = z1.astype(jnp.bfloat16)

    m0 = m0_ref[...]               # (2C, 2C) bf16
    m1 = m1_ref[...]

    # ---- per output row: contract the (ky, c) row pair against the conv weight ----
    for t in range(th):            # static trip count -> fully unrolled
        lo = 2 * t * C             # rows (2t, all c) then (2t+1, all c)
        p0 = z0[lo:lo + 2 * C, :]  # (2C, Wo)
        p1 = z1[lo:lo + 2 * C, :]
        acc = jnp.dot(m0, p0, preferred_element_type=jnp.float32)
        acc = acc + jnp.dot(m1, p1, preferred_element_type=jnp.float32)
        o_ref[0, :, t, :] = acc.astype(o_ref.dtype)


def _pick_row_tile(ho: int) -> int:
    # Output block second-to-last dim (TH) must be a multiple of 8 or the full extent.
    for cand in (32, 16, 8):
        if ho % cand == 0:
            return cand
    return ho


def patch_merging_forward(x, gamma, beta, w):
    """x: (B, C, H, W) NCHW; gamma/beta: (W,); w: (2C, C, 2, 2) OIHW -> (B, 2C, H//2, W//2)."""
    B, C, H, W = x.shape
    O = w.shape[0]
    if gamma.shape != (W,) or beta.shape != (W,):
        raise ValueError("nn.LayerNorm(dim) acts on the last (W) axis; requires W == dim.")
    if w.shape != (O, C, 2, 2):
        raise ValueError(f"unexpected conv weight shape {w.shape}")
    if H % 2 or W % 2:
        raise ValueError("H and W must be even for the 2x2/stride-2 reduction.")
    if C % 8:
        # TODO(synk): support C not a multiple of 8 (needs a padded in-kernel row merge).
        raise ValueError("channel dim must be a multiple of 8 for this kernel")

    Ho, Wo = H // 2, W // 2
    th = _pick_row_tile(Ho)

    # LayerNorm affine, kept resident across the whole grid.
    g2 = gamma.reshape(1, W).astype(jnp.float32)
    b2 = beta.reshape(1, W).astype(jnp.float32)

    # 0/1 selection matrices gathering even / odd input columns on the MXU.
    col = jnp.arange(W, dtype=jnp.int32)[:, None]
    sel = jnp.arange(Wo, dtype=jnp.int32)[None, :]
    s0 = (col == 2 * sel).astype(jnp.bfloat16)        # picks x[..., 0::2]
    s1 = (col == 2 * sel + 1).astype(jnp.bfloat16)    # picks x[..., 1::2]

    # Conv weight flattened per kx tap; columns ordered (ky, c) to match the kernel's
    # (row-pair, channel) operand layout.  Pre-cast to bf16 once, resident in VMEM.
    wk = jnp.transpose(w, (0, 2, 1, 3))               # (O, ky, C, kx)
    m0 = wk[..., 0].reshape(O, 2 * C).astype(jnp.bfloat16)
    m1 = wk[..., 1].reshape(O, 2 * C).astype(jnp.bfloat16)

    grid = (B, Ho // th)
    kernel = pl.pallas_call(
        _fused_patch_merging_kernel,
        out_shape=jax.ShapeDtypeStruct((B, O, Ho, Wo), x.dtype),
        grid_spec=pltpu.PrefetchScalarGridSpec(
            num_scalar_prefetch=0,
            grid=grid,
            in_specs=[
                # streamed activation tile: 2*th input rows of all C channels
                pl.BlockSpec((1, C, 2 * th, W), lambda b, h: (b, 0, h, 0)),
                # resident parameters (constant index_map -> DMA'd once, reused)
                pl.BlockSpec((1, W), lambda b, h: (0, 0)),
                pl.BlockSpec((1, W), lambda b, h: (0, 0)),
                pl.BlockSpec((W, Wo), lambda b, h: (0, 0)),
                pl.BlockSpec((W, Wo), lambda b, h: (0, 0)),
                pl.BlockSpec((O, 2 * C), lambda b, h: (0, 0)),
                pl.BlockSpec((O, 2 * C), lambda b, h: (0, 0)),
            ],
            out_specs=pl.BlockSpec((1, O, th, Wo), lambda b, h: (b, 0, h, 0)),
        ),
        compiler_params=pltpu.CompilerParams(
            dimension_semantics=("parallel", "parallel")),
    )
    return kernel(x, g2, b2, s0, s1, m0, m1)


def _reference(x, gamma, beta, w):
    # Pure-JAX reference reproducing the PyTorch forward exactly (f32).
    mean = x.mean(axis=-1, keepdims=True)
    var = ((x - mean) ** 2).mean(axis=-1, keepdims=True)
    xn = (x - mean) / jnp.sqrt(var + LN_EPS) * gamma + beta
    return jax.lax.conv_general_dilated(
        xn, w, window_strides=(2, 2), padding="VALID",
        dimension_numbers=("NCHW", "OIHW", "NCHW"))


if __name__ == "__main__":
    # Small shapes: dim=32, input_resolution=(48, 32), batch=2.
    # (W must equal dim for nn.LayerNorm(dim) to apply to the NCHW tensor.)
    B, dim, H, W = 2, 32, 48, 32
    key = jax.random.PRNGKey(0)
    kx, kw, kg, kb = jax.random.split(key, 4)

    x = jax.random.normal(kx, (B, dim, H, W), dtype=jnp.float32)
    gamma = 1.0 + 0.1 * jax.random.normal(kg, (dim,), dtype=jnp.float32)
    beta = 0.05 * jax.random.normal(kb, (dim,), dtype=jnp.float32)
    w = jax.random.normal(kw, (2 * dim, dim, 2, 2), dtype=jnp.float32) * 0.02

    fwd = jax.jit(patch_merging_forward)
    out = jax.block_until_ready(fwd(x, gamma, beta, w))

    ref = jax.block_until_ready(_reference(x, gamma, beta, w))
    assert out.shape == (B, 2 * dim, H // 2, W // 2), out.shape
    max_err = float(jnp.max(jnp.abs(out - ref)))
    assert jnp.allclose(out, ref, atol=2e-2, rtol=2e-2), max_err

    print("KERNEL_OK")
</pallas_src>

<mosaic_0001>
module attributes {stable_mosaic.version = 11 : i64} {
  func.func @_fused_patch_merging_kernel(%arg0: i32, %arg1: i32, %arg2: memref<1x32x16x32xf32, #tpu.memory_space<vmem>>, %arg3: memref<1x32xf32, #tpu.memory_space<vmem>>, %arg4: memref<1x32xf32, #tpu.memory_space<vmem>>, %arg5: memref<32x16xbf16, #tpu.memory_space<vmem>>, %arg6: memref<32x16xbf16, #tpu.memory_space<vmem>>, %arg7: memref<64x64xbf16, #tpu.memory_space<vmem>>, %arg8: memref<64x64xbf16, #tpu.memory_space<vmem>>, %arg9: memref<1x64x8x16xf32, #tpu.memory_space<vmem>>) attributes {dimension_semantics = [#tpu.dimension_semantics<parallel>, #tpu.dimension_semantics<parallel>], iteration_bounds = array<i64: 2, 3>, scalar_prefetch = 0 : i64, scratch_operands = 0 : i64, tpu.core_type = #tpu.core_type<tc>, window_params = [{transform_indices = @transform_0, window_bounds = array<i64: 1, 32, 16, 32>}, {pipeline_mode = #tpu.pipeline_mode<synchronous>, transform_indices = @transform_1, window_bounds = array<i64: 1, 32>}, {pipeline_mode = #tpu.pipeline_mode<synchronous>, transform_indices = @transform_2, window_bounds = array<i64: 1, 32>}, {pipeline_mode = #tpu.pipeline_mode<synchronous>, transform_indices = @transform_3, window_bounds = array<i64: 32, 16>}, {pipeline_mode = #tpu.pipeline_mode<synchronous>, transform_indices = @transform_4, window_bounds = array<i64: 32, 16>}, {pipeline_mode = #tpu.pipeline_mode<synchronous>, transform_indices = @transform_5, window_bounds = array<i64: 64, 64>}, {pipeline_mode = #tpu.pipeline_mode<synchronous>, transform_indices = @transform_6, window_bounds = array<i64: 64, 64>}, {transform_indices = @transform_7, window_bounds = array<i64: 1, 64, 8, 16>}]} {
    %c0 = arith.constant 0 : index
    %c0_0 = arith.constant 0 : index
    %c0_1 = arith.constant 0 : index
    %c0_2 = arith.constant 0 : index
    %0 = vector.load %arg2[%c0, %c0_0, %c0_1, %c0_2] : memref<1x32x16x32xf32, #tpu.memory_space<vmem>>, vector<1x32x16x32xf32>
    %1 = vector.shape_cast %0 : vector<1x32x16x32xf32> to vector<32x16x32xf32>
    %2 = tpu.transpose %1, [1, 0, 2] : vector<32x16x32xf32> -> vector<16x32x32xf32>
    %3 = vector.shape_cast %2 : vector<16x32x32xf32> to vector<512x32xf32>
    %cst = arith.constant dense<0.000000e+00> : vector<512xf32>
    %4 = vector.multi_reduction <add>, %3, %cst [1] : vector<512x32xf32> to vector<512xf32>
    %5 = vector.shape_cast %4 : vector<512xf32> to vector<512x1xf32>
    %cst_3 = arith.constant 3.200000e+01 : f32
    %6 = vector.broadcast %cst_3 : f32 to vector<512x1xf32>
    %7 = arith.divf %5, %6 : vector<512x1xf32>
    %8 = vector.broadcast %7 : vector<512x1xf32> to vector<512x32xf32>
    %9 = arith.subf %3, %8 : vector<512x32xf32>
    %10 = arith.mulf %9, %9 : vector<512x32xf32>
    %cst_4 = arith.constant dense<0.000000e+00> : vector<512xf32>
    %11 = vector.multi_reduction <add>, %10, %cst_4 [1] : vector<512x32xf32> to vector<512xf32>
    %12 = vector.shape_cast %11 : vector<512xf32> to vector<512x1xf32>
    %cst_5 = arith.constant 3.200000e+01 : f32
    %13 = vector.broadcast %cst_5 : f32 to vector<512x1xf32>
    %14 = arith.divf %12, %13 : vector<512x1xf32>
    %cst_6 = arith.constant 9.99999974E-6 : f32
    %15 = vector.broadcast %cst_6 : f32 to vector<512x1xf32>
    %16 = arith.addf %14, %15 : vector<512x1xf32>
    %17 = math.rsqrt %16 : vector<512x1xf32>
    %18 = vector.broadcast %17 : vector<512x1xf32> to vector<512x32xf32>
    %19 = arith.mulf %9, %18 : vector<512x32xf32>
    %c0_7 = arith.constant 0 : index
    %c0_8 = arith.constant 0 : index
    %20 = vector.load %arg3[%c0_7, %c0_8] : memref<1x32xf32, #tpu.memory_space<vmem>>, vector<1x32xf32>
    %21 = vector.broadcast %20 : vector<1x32xf32> to vector<512x32xf32>
    %22 = arith.mulf %19, %21 : vector<512x32xf32>
    %c0_9 = arith.constant 0 : index
    %c0_10 = arith.constant 0 : index
    %23 = vector.load %arg4[%c0_9, %c0_10] : memref<1x32xf32, #tpu.memory_space<vmem>>, vector<1x32xf32>
    %24 = vector.broadcast %23 : vector<1x32xf32> to vector<512x32xf32>
    %25 = arith.addf %22, %24 : vector<512x32xf32>
    %26 = arith.truncf %25 : vector<512x32xf32> to vector<512x32xbf16>
    %c0_11 = arith.constant 0 : index
    %c0_12 = arith.constant 0 : index
    %27 = vector.load %arg5[%c0_11, %c0_12] : memref<32x16xbf16, #tpu.memory_space<vmem>>, vector<32x16xbf16>
    %cst_13 = arith.constant dense<0.000000e+00> : vector<512x16xf32>
    %28 = tpu.matmul %26, %27, %cst_13 {dimension_numbers = #tpu.dot_dimension_numbers<[1], [0], [0], [1], [0, 0, 1, 1], [], []>} : vector<512x32xbf16>, vector<32x16xbf16>, vector<512x16xf32> -> vector<512x16xf32>
    %c0_14 = arith.constant 0 : index
    %c0_15 = arith.constant 0 : index
    %29 = vector.load %arg6[%c0_14, %c0_15] : memref<32x16xbf16, #tpu.memory_space<vmem>>, vector<32x16xbf16>
    %cst_16 = arith.constant dense<0.000000e+00> : vector<512x16xf32>
    %30 = tpu.matmul %26, %29, %cst_16 {dimension_numbers = #tpu.dot_dimension_numbers<[1], [0], [0], [1], [0, 0, 1, 1], [], []>} : vector<512x32xbf16>, vector<32x16xbf16>, vector<512x16xf32> -> vector<512x16xf32>
    %31 = arith.truncf %28 : vector<512x16xf32> to vector<512x16xbf16>
    %32 = arith.truncf %30 : vector<512x16xf32> to vector<512x16xbf16>
    %c0_17 = arith.constant 0 : index
    %c0_18 = arith.constant 0 : index
    %33 = vector.load %arg7[%c0_17, %c0_18] : memref<64x64xbf16, #tpu.memory_space<vmem>>, vector<64x64xbf16>
    %c0_19 = arith.constant 0 : index
    %c0_20 = arith.constant 0 : index
    %34 = vector.load %arg8[%c0_19, %c0_20] : memref<64x64xbf16, #tpu.memory_space<vmem>>, vector<64x64xbf16>
    %35 = vector.extract_strided_slice %31 {offsets = [0, 0], sizes = [64, 16], strides = [1, 1]} : vector<512x16xbf16> to vector<64x16xbf16>
    %36 = vector.extract_strided_slice %32 {offsets = [0, 0], sizes = [64, 16], strides = [1, 1]} : vector<512x16xbf16> to vector<64x16xbf16>
    %cst_21 = arith.constant dense<0.000000e+00> : vector<64x16xf32>
    %37 = tpu.matmul %33, %35, %cst_21 {dimension_numbers = #tpu.dot_dimension_numbers<[1], [0], [0], [1], [0, 0, 1, 1], [], []>} : vector<64x64xbf16>, vector<64x16xbf16>, vector<64x16xf32> -> vector<64x16xf32>
    %cst_22 = arith.constant dense<0.000000e+00> : vector<64x16xf32>
    %38 = tpu.matmul %34, %36, %cst_22 {dimension_numbers = #tpu.dot_dimension_numbers<[1], [0], [0], [1], [0, 0, 1, 1], [], []>} : vector<64x64xbf16>, vector<64x16xbf16>, vector<64x16xf32> -> vector<64x16xf32>
    %39 = arith.addf %37, %38 : vector<64x16xf32>
    %c0_23 = arith.constant 0 : index
    %c0_24 = arith.constant 0 : index
    %c0_25 = arith.constant 0 : index
    %c0_26 = arith.constant 0 : index
    %40 = vector.load %arg9[%c0_23, %c0_24, %c0_25, %c0_26] : memref<1x64x8x16xf32, #tpu.memory_space<vmem>>, vector<1x64x1x16xf32>
    %41 = vector.shape_cast %40 : vector<1x64x1x16xf32> to vector<64x16xf32>
    %42 = vector.shape_cast %39 : vector<64x16xf32> to vector<1x64x1x16xf32>
    tpu.vector_store %arg9[%c0_23, %c0_24, %c0_25, %c0_26], %42 {strides = array<i32>} : memref<1x64x8x16xf32, #tpu.memory_space<vmem>>, vector<1x64x1x16xf32>,
    %43 = vector.extract_strided_slice %31 {offsets = [64, 0], sizes = [64, 16], strides = [1, 1]} : vector<512x16xbf16> to vector<64x16xbf16>
    %44 = vector.extract_strided_slice %32 {offsets = [64, 0], sizes = [64, 16], strides = [1, 1]} : vector<512x16xbf16> to vector<64x16xbf16>
    %cst_27 = arith.constant dense<0.000000e+00> : vector<64x16xf32>
    %45 = tpu.matmul %33, %43, %cst_27 {dimension_numbers = #tpu.dot_dimension_numbers<[1], [0], [0], [1], [0, 0, 1, 1], [], []>} : vector<64x64xbf16>, vector<64x16xbf16>, vector<64x16xf32> -> vector<64x16xf32>
    %cst_28 = arith.constant dense<0.000000e+00> : vector<64x16xf32>
    %46 = tpu.matmul %34, %44, %cst_28 {dimension_numbers = #tpu.dot_dimension_numbers<[1], [0], [0], [1], [0, 0, 1, 1], [], []>} : vector<64x64xbf16>, vector<64x16xbf16>, vector<64x16xf32> -> vector<64x16xf32>
    %47 = arith.addf %45, %46 : vector<64x16xf32>
    %c0_29 = arith.constant 0 : index
    %c0_30 = arith.constant 0 : index
    %c1 = arith.constant 1 : index
    %c0_31 = arith.constant 0 : index
    %48 = vector.load %arg9[%c0_29, %c0_30, %c1, %c0_31] : memref<1x64x8x16xf32, #tpu.memory_space<vmem>>, vector<1x64x1x16xf32>
    %49 = vector.shape_cast %48 : vector<1x64x1x16xf32> to vector<64x16xf32>
    %50 = vector.shape_cast %47 : vector<64x16xf32> to vector<1x64x1x16xf32>
    tpu.vector_store %arg9[%c0_29, %c0_30, %c1, %c0_31], %50 {strides = array<i32>} : memref<1x64x8x16xf32, #tpu.memory_space<vmem>>, vector<1x64x1x16xf32>,
    %51 = vector.extract_strided_slice %31 {offsets = [128, 0], sizes = [64, 16], strides = [1, 1]} : vector<512x16xbf16> to vector<64x16xbf16>
    %52 = vector.extract_strided_slice %32 {offsets = [128, 0], sizes = [64, 16], strides = [1, 1]} : vector<512x16xbf16> to vector<64x16xbf16>
    %cst_32 = arith.constant dense<0.000000e+00> : vector<64x16xf32>
    %53 = tpu.matmul %33, %51, %cst_32 {dimension_numbers = #tpu.dot_dimension_numbers<[1], [0], [0], [1], [0, 0, 1, 1], [], []>} : vector<64x64xbf16>, vector<64x16xbf16>, vector<64x16xf32> -> vector<64x16xf32>
    %cst_33 = arith.constant dense<0.000000e+00> : vector<64x16xf32>
    %54 = tpu.matmul %34, %52, %cst_33 {dimension_numbers = #tpu.dot_dimension_numbers<[1], [0], [0], [1], [0, 0, 1, 1], [], []>} : vector<64x64xbf16>, vector<64x16xbf16>, vector<64x16xf32> -> vector<64x16xf32>
    %55 = arith.addf %53, %54 : vector<64x16xf32>
    %c0_34 = arith.constant 0 : index
    %c0_35 = arith.constant 0 : index
    %c2 = arith.constant 2 : index
    %c0_36 = arith.constant 0 : index
    %56 = vector.load %arg9[%c0_34, %c0_35, %c2, %c0_36] : memref<1x64x8x16xf32, #tpu.memory_space<vmem>>, vector<1x64x1x16xf32>
    %57 = vector.shape_cast %56 : vector<1x64x1x16xf32> to vector<64x16xf32>
    %58 = vector.shape_cast %55 : vector<64x16xf32> to vector<1x64x1x16xf32>
    tpu.vector_store %arg9[%c0_34, %c0_35, %c2, %c0_36], %58 {strides = array<i32>} : memref<1x64x8x16xf32, #tpu.memory_space<vmem>>, vector<1x64x1x16xf32>,
    %59 = vector.extract_strided_slice %31 {offsets = [192, 0], sizes = [64, 16], strides = [1, 1]} : vector<512x16xbf16> to vector<64x16xbf16>
    %60 = vector.extract_strided_slice %32 {offsets = [192, 0], sizes = [64, 16], strides = [1, 1]} : vector<512x16xbf16> to vector<64x16xbf16>
    %cst_37 = arith.constant dense<0.000000e+00> : vector<64x16xf32>
    %61 = tpu.matmul %33, %59, %cst_37 {dimension_numbers = #tpu.dot_dimension_numbers<[1], [0], [0], [1], [0, 0, 1, 1], [], []>} : vector<64x64xbf16>, vector<64x16xbf16>, vector<64x16xf32> -> vector<64x16xf32>
    %cst_38 = arith.constant dense<0.000000e+00> : vector<64x16xf32>
    %62 = tpu.matmul %34, %60, %cst_38 {dimension_numbers = #tpu.dot_dimension_numbers<[1], [0], [0], [1], [0, 0, 1, 1], [], []>} : vector<64x64xbf16>, vector<64x16xbf16>, vector<64x16xf32> -> vector<64x16xf32>
    %63 = arith.addf %61, %62 : vector<64x16xf32>
    %c0_39 = arith.constant 0 : index
    %c0_40 = arith.constant 0 : index
    %c3 = arith.constant 3 : index
    %c0_41 = arith.constant 0 : index
    %64 = vector.load %arg9[%c0_39, %c0_40, %c3, %c0_41] : memref<1x64x8x16xf32, #tpu.memory_space<vmem>>, vector<1x64x1x16xf32>
    %65 = vector.shape_cast %64 : vector<1x64x1x16xf32> to vector<64x16xf32>
    %66 = vector.shape_cast %63 : vector<64x16xf32> to vector<1x64x1x16xf32>
    tpu.vector_store %arg9[%c0_39, %c0_40, %c3, %c0_41], %66 {strides = array<i32>} : memref<1x64x8x16xf32, #tpu.memory_space<vmem>>, vector<1x64x1x16xf32>,
    %67 = vector.extract_strided_slice %31 {offsets = [256, 0], sizes = [64, 16], strides = [1, 1]} : vector<512x16xbf16> to vector<64x16xbf16>
    %68 = vector.extract_strided_slice %32 {offsets = [256, 0], sizes = [64, 16], strides = [1, 1]} : vector<512x16xbf16> to vector<64x16xbf16>
    %cst_42 = arith.constant dense<0.000000e+00> : vector<64x16xf32>
    %69 = tpu.matmul %33, %67, %cst_42 {dimension_numbers = #tpu.dot_dimension_numbers<[1], [0], [0], [1], [0, 0, 1, 1], [], []>} : vector<64x64xbf16>, vector<64x16xbf16>, vector<64x16xf32> -> vector<64x16xf32>
    %cst_43 = arith.constant dense<0.000000e+00> : vector<64x16xf32>
    %70 = tpu.matmul %34, %68, %cst_43 {dimension_numbers = #tpu.dot_dimension_numbers<[1], [0], [0], [1], [0, 0, 1, 1], [], []>} : vector<64x64xbf16>, vector<64x16xbf16>, vector<64x16xf32> -> vector<64x16xf32>
    %71 = arith.addf %69, %70 : vector<64x16xf32>
    %c0_44 = arith.constant 0 : index
    %c0_45 = arith.constant 0 : index
    %c4 = arith.constant 4 : index
    %c0_46 = arith.constant 0 : index
    %72 = vector.load %arg9[%c0_44, %c0_45, %c4, %c0_46] : memref<1x64x8x16xf32, #tpu.memory_space<vmem>>, vector<1x64x1x16xf32>
    %73 = vector.shape_cast %72 : vector<1x64x1x16xf32> to vector<64x16xf32>
    %74 = vector.shape_cast %71 : vector<64x16xf32> to vector<1x64x1x16xf32>
    tpu.vector_store %arg9[%c0_44, %c0_45, %c4, %c0_46], %74 {strides = array<i32>} : memref<1x64x8x16xf32, #tpu.memory_space<vmem>>, vector<1x64x1x16xf32>,
    %75 = vector.extract_strided_slice %31 {offsets = [320, 0], sizes = [64, 16], strides = [1, 1]} : vector<512x16xbf16> to vector<64x16xbf16>
    %76 = vector.extract_strided_slice %32 {offsets = [320, 0], sizes = [64, 16], strides = [1, 1]} : vector<512x16xbf16> to vector<64x16xbf16>
    %cst_47 = arith.constant dense<0.000000e+00> : vector<64x16xf32>
    %77 = tpu.matmul %33, %75, %cst_47 {dimension_numbers = #tpu.dot_dimension_numbers<[1], [0], [0], [1], [0, 0, 1, 1], [], []>} : vector<64x64xbf16>, vector<64x16xbf16>, vector<64x16xf32> -> vector<64x16xf32>
    %cst_48 = arith.constant dense<0.000000e+00> : vector<64x16xf32>
    %78 = tpu.matmul %34, %76, %cst_48 {dimension_numbers = #tpu.dot_dimension_numbers<[1], [0], [0], [1], [0, 0, 1, 1], [], []>} : vector<64x64xbf16>, vector<64x16xbf16>, vector<64x16xf32> -> vector<64x16xf32>
    %79 = arith.addf %77, %78 : vector<64x16xf32>
    %c0_49 = arith.constant 0 : index
    %c0_50 = arith.constant 0 : index
    %c5 = arith.constant 5 : index
    %c0_51 = arith.constant 0 : index
    %80 = vector.load %arg9[%c0_49, %c0_50, %c5, %c0_51] : memref<1x64x8x16xf32, #tpu.memory_space<vmem>>, vector<1x64x1x16xf32>
    %81 = vector.shape_cast %80 : vector<1x64x1x16xf32> to vector<64x16xf32>
    %82 = vector.shape_cast %79 : vector<64x16xf32> to vector<1x64x1x16xf32>
    tpu.vector_store %arg9[%c0_49, %c0_50, %c5, %c0_51], %82 {strides = array<i32>} : memref<1x64x8x16xf32, #tpu.memory_space<vmem>>, vector<1x64x1x16xf32>,
    %83 = vector.extract_strided_slice %31 {offsets = [384, 0], sizes = [64, 16], strides = [1, 1]} : vector<512x16xbf16> to vector<64x16xbf16>
    %84 = vector.extract_strided_slice %32 {offsets = [384, 0], sizes = [64, 16], strides = [1, 1]} : vector<512x16xbf16> to vector<64x16xbf16>
    %cst_52 = arith.constant dense<0.000000e+00> : vector<64x16xf32>
    %85 = tpu.matmul %33, %83, %cst_52 {dimension_numbers = #tpu.dot_dimension_numbers<[1], [0], [0], [1], [0, 0, 1, 1], [], []>} : vector<64x64xbf16>, vector<64x16xbf16>, vector<64x16xf32> -> vector<64x16xf32>
    %cst_53 = arith.constant dense<0.000000e+00> : vector<64x16xf32>
    %86 = tpu.matmul %34, %84, %cst_53 {dimension_numbers = #tpu.dot_dimension_numbers<[1], [0], [0], [1], [0, 0, 1, 1], [], []>} : vector<64x64xbf16>, vector<64x16xbf16>, vector<64x16xf32> -> vector<64x16xf32>
    %87 = arith.addf %85, %86 : vector<64x16xf32>
    %c0_54 = arith.constant 0 : index
    %c0_55 = arith.constant 0 : index
    %c6 = arith.constant 6 : index
    %c0_56 = arith.constant 0 : index
    %88 = vector.load %arg9[%c0_54, %c0_55, %c6, %c0_56] : memref<1x64x8x16xf32, #tpu.memory_space<vmem>>, vector<1x64x1x16xf32>
    %89 = vector.shape_cast %88 : vector<1x64x1x16xf32> to vector<64x16xf32>
    %90 = vector.shape_cast %87 : vector<64x16xf32> to vector<1x64x1x16xf32>
    tpu.vector_store %arg9[%c0_54, %c0_55, %c6, %c0_56], %90 {strides = array<i32>} : memref<1x64x8x16xf32, #tpu.memory_space<vmem>>, vector<1x64x1x16xf32>,
    %91 = vector.extract_strided_slice %31 {offsets = [448, 0], sizes = [64, 16], strides = [1, 1]} : vector<512x16xbf16> to vector<64x16xbf16>
    %92 = vector.extract_strided_slice %32 {offsets = [448, 0], sizes = [64, 16], strides = [1, 1]} : vector<512x16xbf16> to vector<64x16xbf16>
    %cst_57 = arith.constant dense<0.000000e+00> : vector<64x16xf32>
    %93 = tpu.matmul %33, %91, %cst_57 {dimension_numbers = #tpu.dot_dimension_numbers<[1], [0], [0], [1], [0, 0, 1, 1], [], []>} : vector<64x64xbf16>, vector<64x16xbf16>, vector<64x16xf32> -> vector<64x16xf32>
    %cst_58 = arith.constant dense<0.000000e+00> : vector<64x16xf32>
    %94 = tpu.matmul %34, %92, %cst_58 {dimension_numbers = #tpu.dot_dimension_numbers<[1], [0], [0], [1], [0, 0, 1, 1], [], []>} : vector<64x64xbf16>, vector<64x16xbf16>, vector<64x16xf32> -> vector<64x16xf32>
    %95 = arith.addf %93, %94 : vector<64x16xf32>
    %c0_59 = arith.constant 0 : index
    %c0_60 = arith.constant 0 : index
    %c7 = arith.constant 7 : index
    %c0_61 = arith.constant 0 : index
    %96 = vector.load %arg9[%c0_59, %c0_60, %c7, %c0_61] : memref<1x64x8x16xf32, #tpu.memory_space<vmem>>, vector<1x64x1x16xf32>
    %97 = vector.shape_cast %96 : vector<1x64x1x16xf32> to vector<64x16xf32>
    %98 = vector.shape_cast %95 : vector<64x16xf32> to vector<1x64x1x16xf32>
    tpu.vector_store %arg9[%c0_59, %c0_60, %c7, %c0_61], %98 {strides = array<i32>} : memref<1x64x8x16xf32, #tpu.memory_space<vmem>>, vector<1x64x1x16xf32>,
    return
  }
  func.func @transform_0(%arg0: i32, %arg1: i32) -> (i32, i32, i32, i32) {
    %c0_i32 = arith.constant 0 : i32
    %c0_i32_0 = arith.constant 0 : i32
    %c0_i32_1 = arith.constant 0 : i32
    return %arg0, %c0_i32, %arg1, %c0_i32_0 : i32, i32, i32, i32
  }
  func.func @transform_1(%arg0: i32, %arg1: i32) -> (i32, i32) {
    %c0_i32 = arith.constant 0 : i32
    %c0_i32_0 = arith.constant 0 : i32
    %c0_i32_1 = arith.constant 0 : i32
    return %c0_i32, %c0_i32_0 : i32, i32
  }
  func.func @transform_2(%arg0: i32, %arg1: i32) -> (i32, i32) {
    %c0_i32 = arith.constant 0 : i32
    %c0_i32_0 = arith.constant 0 : i32
    %c0_i32_1 = arith.constant 0 : i32
    return %c0_i32, %c0_i32_0 : i32, i32
  }
  func.func @transform_3(%arg0: i32, %arg1: i32) -> (i32, i32) {
    %c0_i32 = arith.constant 0 : i32
    %c0_i32_0 = arith.constant 0 : i32
    %c0_i32_1 = arith.constant 0 : i32
    return %c0_i32, %c0_i32_0 : i32, i32
  }
  func.func @transform_4(%arg0: i32, %arg1: i32) -> (i32, i32) {
    %c0_i32 = arith.constant 0 : i32
    %c0_i32_0 = arith.constant 0 : i32
    %c0_i32_1 = arith.constant 0 : i32
    return %c0_i32, %c0_i32_0 : i32, i32
  }
  func.func @transform_5(%arg0: i32, %arg1: i32) -> (i32, i32) {
    %c0_i32 = arith.constant 0 : i32
    %c0_i32_0 = arith.constant 0 : i32
    %c0_i32_1 = arith.constant 0 : i32
    return %c0_i32, %c0_i32_0 : i32, i32
  }
  func.func @transform_6(%arg0: i32, %arg1: i32) -> (i32, i32) {
    %c0_i32 = arith.constant 0 : i32
    %c0_i32_0 = arith.constant 0 : i32
    %c0_i32_1 = arith.constant 0 : i32
    return %c0_i32, %c0_i32_0 : i32, i32
  }
  func.func @transform_7(%arg0: i32, %arg1: i32) -> (i32, i32, i32, i32) {
    %c0_i32 = arith.constant 0 : i32
    %c0_i32_0 = arith.constant 0 : i32
    %c0_i32_1 = arith.constant 0 : i32
    return %arg0, %c0_i32, %arg1, %c0_i32_0 : i32, i32, i32, i32
  }
}

</mosaic_0001>

<llo_original>
// kernel: patch_merging_forward.1
$region0: #{patch_merging_forward.1}
  #allocation0 [shape = 'u32[]', space=smem, size = 0x4, offset = 0x4, fixed_abs, tag = 'smem constant byte address 0x4 - core index']
  #allocation1 [shape = 'u32[144,128]{1,0:T(1,128)}', space=vmem, size = 0x12000, scoped, tag = 'internal scratch']
  %s0 = inlined_call_operand.vmem [shape: f32[2,32,48,32], index: 0, kind: input, shape index: {}]
  %s1 = inlined_call_operand.vmem [shape: f32[1,32], index: 1, kind: input, shape index: {}]
  %s2 = inlined_call_operand.vmem [shape: f32[1,32], index: 2, kind: input, shape index: {}]
  %s3 = inlined_call_operand.vmem [shape: bf16[32,16], index: 3, kind: input, shape index: {}]
  %s4 = inlined_call_operand.vmem [shape: bf16[32,16], index: 4, kind: input, shape index: {}]
  %s5 = inlined_call_operand.vmem [shape: bf16[64,64], index: 5, kind: input, shape index: {}]
  %s6 = inlined_call_operand.vmem [shape: bf16[64,64], index: 6, kind: input, shape index: {}]
  %s7 = inlined_call_operand.vmem [shape: f32[2,64,24,16], index: 7, kind: output, shape index: {}]
  %s8 = sld [smem:[#allocation0]]
  $region133: #{patch_merging_forward.1} parent=0
    _
  %s10 = ssub.s32 1, %s8
  %s11 = scalar_select 0, %s10, %s8
  $region1: #{patch_merging_forward.1} parent=0
    #allocation2 [shape = 'u8[524288]{0}', space=vmem, size = 0x80000, scoped, tag = 'input window, operand 0']
    #allocation3 [shape = 'u8[524288]{0}', space=vmem, size = 0x80000, scoped, tag = 'output window, operand 0']
    loop: start=0, step=1, limit=8
    $region2: #{patch_merging_forward.1} parent=1 // loop_pre_header
      _
    $region3: #{patch_merging_forward.1} parent=1 // loop_header
      %s13 = sphi 0, %s17
      %p14 = scmp.ge.s32.totalorder %s13, 8
      %s20 = sphi 0, %s32
      %s21 = sphi 0, %s28
      %s22 = sphi 0, %s20
      %s23 = sphi 0, %s21
      %s24 = sphi 0, %s22
      %s25 = sphi 0, %s23
      %s37 = sphi 0, %s39
      %s40 = sphi 0, %s37
      %s41 = sphi 0, %s40
      %s57 = sphi 0, %s41
      %s61 = sphi 0, %s61
      %s63 = sphi 0, %s61
      %s64 = sphi 0, %s63
      %s78 = sphi 0, %s64
      %s82 = sphi 0, %s82
      %s84 = sphi 0, %s82
      %s85 = sphi 0, %s84
      %s99 = sphi 0, %s85
      %s103 = sphi 0, %s103
      %s105 = sphi 0, %s103
      %s106 = sphi 0, %s105
      %s120 = sphi 0, %s106
      %s124 = sphi 0, %s124
      %s126 = sphi 0, %s124
      %s127 = sphi 0, %s126
      %s141 = sphi 0, %s127
      %s145 = sphi 0, %s145
      %s147 = sphi 0, %s145
      %s148 = sphi 0, %s147
      %s162 = sphi 0, %s148
      %s166 = sphi 0, %s166
      %s168 = sphi 0, %s166
      %s169 = sphi 0, %s168
      %s183 = sphi 0, %s169
      %s191 = sphi 0, %s193
      %s194 = sphi 0, %s191
      %s195 = sphi 0, %s194
      %s211 = sphi 0, %s195
    $region4: #{patch_merging_forward.1} parent=1 // loop_header_branch
      %16 = sbr.rel (%p14) target = $region8
    $region5: #{patch_merging_forward.1} parent=1 // loop_body
      %s18 = ssub.s32 %s13, 1
      %s19 = ssub.s32 %s13, 2
      %s26 = sadd.s32 1, %s21
      %p27 = scmp.ge.s32.totalorder %s26, 3
      %s28 = scalar_select %p27, 0, %s26
      %s29 = sadd.s32 1, %s20
      %s30 = scalar_select %p27, %s29, %s20
      %p31 = scmp.ge.s32.totalorder %s30, 2
      %s32 = scalar_select %p31, 0, %s30
      %s33 = ssub.s32 %s20, %s32
      %s34 = ssub.s32 %s21, %s28
      %s35 = sor.u32 %s33, %s34
      %p36 = scmp.eq.s32.totalorder %s35, 0
      %s38 = sadd.s32 %s37, 1
      %s39 = scalar_select %p36, %s37, %s38
      %p42 = pneg %p36
      %p43 = scmp.eq.s32.totalorder %s13, 5
      %p44 = por %p42, %p43
      %p45 = scmp.ne.s32.totalorder %s37, %s40
      %p46 = scmp.eq.s32.totalorder %s13, 0
      %p47 = por %p45, %p46
      %p48 = scmp.ne.s32.totalorder %s37, %s40
      %p49 = scmp.eq.s32.totalorder %s18, 5
      %p50 = por %p48, %p49
      %p51 = scmp.ne.s32.totalorder %s40, %s41
      %p52 = scmp.eq.s32.totalorder %s18, 0
      %p53 = por %p51, %p52
      %p54 = scmp.ne.s32.totalorder %s40, %s41
      %p55 = scmp.eq.s32.totalorder %s19, 5
      %p56 = por %p54, %p55
      %p58 = scmp.ne.s32.totalorder %s41, %s57
      %p59 = scmp.eq.s32.totalorder %s19, 0
      %p60 = por %p58, %p59
      %s62 = sadd.s32 %s61, 1
      %p65 = scmp.eq.s32.totalorder %s13, 5
      %p66 = scmp.ne.s32.totalorder %s61, %s63
      %p67 = scmp.eq.s32.totalorder %s13, 0
      %p68 = por %p66, %p67
      %p69 = scmp.ne.s32.totalorder %s61, %s63
      %p70 = scmp.eq.s32.totalorder %s18, 5
      %p71 = por %p69, %p70
      %p72 = scmp.ne.s32.totalorder %s63, %s64
      %p73 = scmp.eq.s32.totalorder %s18, 0
      %p74 = por %p72, %p73
      %p75 = scmp.ne.s32.totalorder %s63, %s64
      %p76 = scmp.eq.s32.totalorder %s19, 5
      %p77 = por %p75, %p76
      %p79 = scmp.ne.s32.totalorder %s64, %s78
      %p80 = scmp.eq.s32.totalorder %s19, 0
      %p81 = por %p79, %p80
      %s83 = sadd.s32 %s82, 1
      %p86 = scmp.eq.s32.totalorder %s13, 5
      %p87 = scmp.ne.s32.totalorder %s82, %s84
      %p88 = scmp.eq.s32.totalorder %s13, 0
      %p89 = por %p87, %p88
      %p90 = scmp.ne.s32.totalorder %s82, %s84
      %p91 = scmp.eq.s32.totalorder %s18, 5
      %p92 = por %p90, %p91
      %p93 = scmp.ne.s32.totalorder %s84, %s85
      %p94 = scmp.eq.s32.totalorder %s18, 0
      %p95 = por %p93, %p94
      %p96 = scmp.ne.s32.totalorder %s84, %s85
      %p97 = scmp.eq.s32.totalorder %s19, 5
      %p98 = por %p96, %p97
      %p100 = scmp.ne.s32.totalorder %s85, %s99
      %p101 = scmp.eq.s32.totalorder %s19, 0
      %p102 = por %p100, %p101
      %s104 = sadd.s32 %s103, 1
      %p107 = scmp.eq.s32.totalorder %s13, 5
      %p108 = scmp.ne.s32.totalorder %s103, %s105
      %p109 = scmp.eq.s32.totalorder %s13, 0
      %p110 = por %p108, %p109
      %p111 = scmp.ne.s32.totalorder %s103, %s105
      %p112 = scmp.eq.s32.totalorder %s18, 5
      %p113 = por %p111, %p112
      %p114 = scmp.ne.s32.totalorder %s105, %s106
      %p115 = scmp.eq.s32.totalorder %s18, 0
      %p116 = por %p114, %p115
      %p117 = scmp.ne.s32.totalorder %s105, %s106
      %p118 = scmp.eq.s32.totalorder %s19, 5
      %p119 = por %p117, %p118
      %p121 = scmp.ne.s32.totalorder %s106, %s120
      %p122 = scmp.eq.s32.totalorder %s19, 0
      %p123 = por %p121, %p122
      %s125 = sadd.s32 %s124, 1
      %p128 = scmp.eq.s32.totalorder %s13, 5
      %p129 = scmp.ne.s32.totalorder %s124, %s126
      %p130 = scmp.eq.s32.totalorder %s13, 0
      %p131 = por %p129, %p130
      %p132 = scmp.ne.s32.totalorder %s124, %s126
      %p133 = scmp.eq.s32.totalorder %s18, 5
      %p134 = por %p132, %p133
      %p135 = scmp.ne.s32.totalorder %s126, %s127
      %p136 = scmp.eq.s32.totalorder %s18, 0
      %p137 = por %p135, %p136
      %p138 = scmp.ne.s32.totalorder %s126, %s127
      %p139 = scmp.eq.s32.totalorder %s19, 5
      %p140 = por %p138, %p139
      %p142 = scmp.ne.s32.totalorder %s127, %s141
      %p143 = scmp.eq.s32.totalorder %s19, 0
      %p144 = por %p142, %p143
      %s146 = sadd.s32 %s145, 1
      %p149 = scmp.eq.s32.totalorder %s13, 5
      %p150 = scmp.ne.s32.totalorder %s145, %s147
      %p151 = scmp.eq.s32.totalorder %s13, 0
      %p152 = por %p150, %p151
      %p153 = scmp.ne.s32.totalorder %s145, %s147
      %p154 = scmp.eq.s32.totalorder %s18, 5
      %p155 = por %p153, %p154
      %p156 = scmp.ne.s32.totalorder %s147, %s148
      %p157 = scmp.eq.s32.totalorder %s18, 0
      %p158 = por %p156, %p157
      %p159 = scmp.ne.s32.totalorder %s147, %s148
      %p160 = scmp.eq.s32.totalorder %s19, 5
      %p161 = por %p159, %p160
      %p163 = scmp.ne.s32.totalorder %s148, %s162
      %p164 = scmp.eq.s32.totalorder %s19, 0
      %p165 = por %p163, %p164
      %s167 = sadd.s32 %s166, 1
      %p170 = scmp.eq.s32.totalorder %s13, 5
      %p171 = scmp.ne.s32.totalorder %s166, %s168
      %p172 = scmp.eq.s32.totalorder %s13, 0
      %p173 = por %p171, %p172
      %p174 = scmp.ne.s32.totalorder %s166, %s168
      %p175 = scmp.eq.s32.totalorder %s18, 5
      %p176 = por %p174, %p175
      %p177 = scmp.ne.s32.totalorder %s168, %s169
      %p178 = scmp.eq.s32.totalorder %s18, 0
      %p179 = por %p177, %p178
      %p180 = scmp.ne.s32.totalorder %s168, %s169
      %p181 = scmp.eq.s32.totalorder %s19, 5
      %p182 = por %p180, %p181
      %p184 = scmp.ne.s32.totalorder %s169, %s183
      %p185 = scmp.eq.s32.totalorder %s19, 0
      %p186 = por %p184, %p185
      %s187 = ssub.s32 %s20, %s32
      %s188 = ssub.s32 %s21, %s28
      %s189 = sor.u32 %s187, %s188
      %p190 = scmp.eq.s32.totalorder %s189, 0
      %s192 = sadd.s32 %s191, 1
      %s193 = scalar_select %p190, %s191, %s192
      %p196 = pneg %p190
      %p197 = scmp.eq.s32.totalorder %s13, 5
      %p198 = por %p196, %p197
      %p199 = scmp.ne.s32.totalorder %s191, %s194
      %p200 = scmp.eq.s32.totalorder %s13, 0
      %p201 = por %p199, %p200
      %p202 = scmp.ne.s32.totalorder %s191, %s194
      %p203 = scmp.eq.s32.totalorder %s18, 5
      %p204 = por %p202, %p203
      %p205 = scmp.ne.s32.totalorder %s194, %s195
      %p206 = scmp.eq.s32.totalorder %s18, 0
      %p207 = por %p205, %p206
      %p208 = scmp.ne.s32.totalorder %s194, %s195
      %p209 = scmp.eq.s32.totalorder %s19, 5
      %p210 = por %p208, %p209
      %p212 = scmp.ne.s32.totalorder %s195, %s211
      %p213 = scmp.eq.s32.totalorder %s19, 0
      %p214 = por %p212, %p213
      %p215 = scmp.le.s32.totalorder 1, %s13
      %p216 = scmp.lt.s32.totalorder %s13, 7
      %p217 = pnand %p215, %p216
      %p218 = pneg %p217
      // Predicated region
      $region9: #{patch_merging_forward.1} parent=5 // pred_check
        _
      $region10: #{patch_merging_forward.1} parent=5 // pred_check_branch
        %220 = sbr.rel (%p217) target = $region12
      $region11: #{patch_merging_forward.1} parent=5 // pred_region
        %s221 = ssub.s32 %s13, 1
        // Predicated region
        $region13: #{patch_merging_forward.1} parent=11 // pred_check
          %p222 = pneg %p74
        $region14: #{patch_merging_forward.1} parent=11 // pred_check_branch
          %224 = sbr.rel (%p222) target = $region16
        $region15: #{patch_merging_forward.1} parent=11 // pred_region
          _
        $region16: #{patch_merging_forward.1} parent=11 // pred_fallthru
          _
        // Predicated region
        $region17: #{patch_merging_forward.1} parent=11 // pred_check
          %p225 = pneg %p95
        $region18: #{patch_merging_forward.1} parent=11 // pred_check_branch
          %227 = sbr.rel (%p225) target = $region20
        $region19: #{patch_merging_forward.1} parent=11 // pred_region
          _
        $region20: #{patch_merging_forward.1} parent=11 // pred_fallthru
          _
        // Predicated region
        $region21: #{patch_merging_forward.1} parent=11 // pred_check
          %p228 = pneg %p116
        $region22: #{patch_merging_forward.1} parent=11 // pred_check_branch
          %230 = sbr.rel (%p228) target = $region24
        $region23: #{patch_merging_forward.1} parent=11 // pred_region
          _
        $region24: #{patch_merging_forward.1} parent=11 // pred_fallthru
          _
        // Predicated region
        $region25: #{patch_merging_forward.1} parent=11 // pred_check
          %p231 = pneg %p137
        $region26: #{patch_merging_forward.1} parent=11 // pred_check_branch
          %233 = sbr.rel (%p231) target = $region28
        $region27: #{patch_merging_forward.1} parent=11 // pred_region
          _
        $region28: #{patch_merging_forward.1} parent=11 // pred_fallthru
          _
        // Predicated region
        $region29: #{patch_merging_forward.1} parent=11 // pred_check
          %p234 = pneg %p158
        $region30: #{patch_merging_forward.1} parent=11 // pred_check_branch
          %236 = sbr.rel (%p234) target = $region32
        $region31: #{patch_merging_forward.1} parent=11 // pred_region
          _
        $region32: #{patch_merging_forward.1} parent=11 // pred_fallthru
          _
        // Predicated region
        $region33: #{patch_merging_forward.1} parent=11 // pred_check
          %p237 = pneg %p179
        $region34: #{patch_merging_forward.1} parent=11 // pred_check_branch
          %239 = sbr.rel (%p237) target = $region36
        $region35: #{patch_merging_forward.1} parent=11 // pred_region
          _
        $region36: #{patch_merging_forward.1} parent=11 // pred_fallthru
          _
      $region12: #{patch_merging_forward.1} parent=5 // pred_fallthru
        _
      %p240 = scmp.lt.s32.totalorder %s13, 6
      // Predicated region
      $region37: #{patch_merging_forward.1} parent=5 // pred_check
        %p241 = pneg %p240
      $region38: #{patch_merging_forward.1} parent=5 // pred_check_branch
        %243 = sbr.rel (%p241) target = $region40
      $region39: #{patch_merging_forward.1} parent=5 // pred_region
        // Predicated region
        $region41: #{patch_merging_forward.1} parent=39 // pred_check
          %p244 = pneg %p47
        $region42: #{patch_merging_forward.1} parent=39 // pred_check_branch
          %246 = sbr.rel (%p244) target = $region44
        $region43: #{patch_merging_forward.1} parent=39 // pred_region
          %s247 = sand.u32 %s37, 1
          %s248 = sand.u32 %s37, 1
          %s249 = smul.addr %s248, 512
          %s250 = scalar_lea.vmem [#allocation2], %s249
          %s251 = smul.u32 2, %s21
          %s252 = smul.addr %s20, 192
          %s253 = sadd.s32 %s251, %s252
          %s254 = smul.addr %s253, 8
          %s255 = scalar_lea.vmem %s0, %s254
          // Predicated region
          $region45: #{patch_merging_forward.1} parent=43 // pred_check
            _
          $region46: #{patch_merging_forward.1} parent=43 // pred_check_branch
            %257 = sbr.rel (0) target = $region48
          $region47: #{patch_merging_forward.1} parent=43 // pred_region
            // Predicated region
            $region49: #{patch_merging_forward.1} parent=47 // pred_check
              _
            $region50: #{patch_merging_forward.1} parent=47 // pred_check_branch
              %259 = sbr.rel (0) target = $region52
            $region51: #{patch_merging_forward.1} parent=47 // pred_region
              // Predicated region
              $region64: #{patch_merging_forward.1} parent=51 // pred_check
                _
              $region65: #{patch_merging_forward.1} parent=51 // pred_check_branch
                %400 = sbr.rel (0) target = $region67
              $region66: #{patch_merging_forward.1} parent=51 // pred_region
                loop: start=0, step=1, limit=1
                $region68: #{patch_merging_forward.1} parent=66 // loop_pre_header
                  _
                $region69: #{patch_merging_forward.1} parent=66 // loop_header
                  %s402 = sphi 0, %s406
                  %p403 = scmp.ge.s32.totalorder %s402, 1
                  %s407 = sphi %s255, %s255
                  %s408 = sphi %s250, %s250
                $region70: #{patch_merging_forward.1} parent=66 // loop_header_branch
                  %405 = sbr.rel (%p403) target = $region74
                $region71: #{patch_merging_forward.1} parent=66 // loop_body
                  %v409 = vld [vmem:[%s407] sm:$0xff]
                  %410 = vst [vmem:[%s408] sm:$0xff] %v409
                  %v411 = vld [vmem:[%s407 + $0x8] sm:$0xff]
                  %412 = vst [vmem:[%s408 + $0x8] sm:$0xff] %v411
                  %v413 = vld [vmem:[%s407 + $0x30] sm:$0xff]
                  %414 = vst [vmem:[%s408 + $0x10] sm:$0xff] %v413
                  %v415 = vld [vmem:[%s407 + $0x38] sm:$0xff]
                  %416 = vst [vmem:[%s408 + $0x18] sm:$0xff] %v415
                  %v417 = vld [vmem:[%s407 + $0x60] sm:$0xff]
                  %418 = vst [vmem:[%s408 + $0x20] sm:$0xff] %v417
                  %v419 = vld [vmem:[%s407 + $0x68] sm:$0xff]
                  %420 = vst [vmem:[%s408 + $0x28] sm:$0xff] %v419
                  %v421 = vld [vmem:[%s407 + $0x90] sm:$0xff]
                  %422 = vst [vmem:[%s408 + $0x30] sm:$0xff] %v421
                  %v423 = vld [vmem:[%s407 + $0x98] sm:$0xff]
                  %424 = vst [vmem:[%s408 + $0x38] sm:$0xff] %v423
                  %v425 = vld [vmem:[%s407 + $0xc0] sm:$0xff]
                  %426 = vst [vmem:[%s408 + $0x40] sm:$0xff] %v425
                  %v427 = vld [vmem:[%s407 + $0xc8] sm:$0xff]
                  %428 = vst [vmem:[%s408 + $0x48] sm:$0xff] %v427
                  %v429 = vld [vmem:[%s407 + $0xf0] sm:$0xff]
                  %430 = vst [vmem:[%s408 + $0x50] sm:$0xff] %v429
                  %v431 = vld [vmem:[%s407 + $0xf8] sm:$0xff]
                  %432 = vst [vmem:[%s408 + $0x58] sm:$0xff] %v431
                  %v433 = vld [vmem:[%s407 + $0x120] sm:$0xff]
                  %434 = vst [vmem:[%s408 + $0x60] sm:$0xff] %v433
                  %v435 = vld [vmem:[%s407 + $0x128] sm:$0xff]
                  %436 = vst [vmem:[%s408 + $0x68] sm:$0xff] %v435
                  %v437 = vld [vmem:[%s407 + $0x150] sm:$0xff]
                  %438 = vst [vmem:[%s408 + $0x70] sm:$0xff] %v437
                  %v439 = vld [vmem:[%s407 + $0x158] sm:$0xff]
                  %440 = vst [vmem:[%s408 + $0x78] sm:$0xff] %v439
                  %v441 = vld [vmem:[%s407 + $0x180] sm:$0xff]
                  %442 = vst [vmem:[%s408 + $0x80] sm:$0xff] %v441
                  %v443 = vld [vmem:[%s407 + $0x188] sm:$0xff]
                  %444 = vst [vmem:[%s408 + $0x88] sm:$0xff] %v443
                  %v445 = vld [vmem:[%s407 + $0x1b0] sm:$0xff]
                  %446 = vst [vmem:[%s408 + $0x90] sm:$0xff] %v445
                  %v447 = vld [vmem:[%s407 + $0x1b8] sm:$0xff]
                  %448 = vst [vmem:[%s408 + $0x98] sm:$0xff] %v447
                  %v449 = vld [vmem:[%s407 + $0x1e0] sm:$0xff]
                  %450 = vst [vmem:[%s408 + $0xa0] sm:$0xff] %v449
                  %v451 = vld [vmem:[%s407 + $0x1e8] sm:$0xff]
                  %452 = vst [vmem:[%s408 + $0xa8] sm:$0xff] %v451
                  %v453 = vld [vmem:[%s407 + $0x210] sm:$0xff]
                  %454 = vst [vmem:[%s408 + $0xb0] sm:$0xff] %v453
                  %v455 = vld [vmem:[%s407 + $0x218] sm:$0xff]
                  %456 = vst [vmem:[%s408 + $0xb8] sm:$0xff] %v455
                  %v457 = vld [vmem:[%s407 + $0x240] sm:$0xff]
                  %458 = vst [vmem:[%s408 + $0xc0] sm:$0xff] %v457
                  %v459 = vld [vmem:[%s407 + $0x248] sm:$0xff]
                  %460 = vst [vmem:[%s408 + $0xc8] sm:$0xff] %v459
                  %v461 = vld [vmem:[%s407 + $0x270] sm:$0xff]
                  %462 = vst [vmem:[%s408 + $0xd0] sm:$0xff] %v461
                  %v463 = vld [vmem:[%s407 + $0x278] sm:$0xff]
                  %464 = vst [vmem:[%s408 + $0xd8] sm:$0xff] %v463
                  %v465 = vld [vmem:[%s407 + $0x2a0] sm:$0xff]
                  %466 = vst [vmem:[%s408 + $0xe0] sm:$0xff] %v465
                  %v467 = vld [vmem:[%s407 + $0x2a8] sm:$0xff]
                  %468 = vst [vmem:[%s408 + $0xe8] sm:$0xff] %v467
                  %v469 = vld [vmem:[%s407 + $0x2d0] sm:$0xff]
                  %470 = vst [vmem:[%s408 + $0xf0] sm:$0xff] %v469
                  %v471 = vld [vmem:[%s407 + $0x2d8] sm:$0xff]
                  %472 = vst [vmem:[%s408 + $0xf8] sm:$0xff] %v471
                  %v473 = vld [vmem:[%s407 + $0x300] sm:$0xff]
                  %474 = vst [vmem:[%s408 + $0x100] sm:$0xff] %v473
                  %v475 = vld [vmem:[%s407 + $0x308] sm:$0xff]
                  %476 = vst [vmem:[%s408 + $0x108] sm:$0xff] %v475
                  %v477 = vld [vmem:[%s407 + $0x330] sm:$0xff]
                  %478 = vst [vmem:[%s408 + $0x110] sm:$0xff] %v477
                  %v479 = vld [vmem:[%s407 + $0x338] sm:$0xff]
                  %480 = vst [vmem:[%s408 + $0x118] sm:$0xff] %v479
                  %v481 = vld [vmem:[%s407 + $0x360] sm:$0xff]
                  %482 = vst [vmem:[%s408 + $0x120] sm:$0xff] %v481
                  %v483 = vld [vmem:[%s407 + $0x368] sm:$0xff]
                  %484 = vst [vmem:[%s408 + $0x128] sm:$0xff] %v483
                  %v485 = vld [vmem:[%s407 + $0x390] sm:$0xff]
                  %486 = vst [vmem:[%s408 + $0x130] sm:$0xff] %v485
                  %v487 = vld [vmem:[%s407 + $0x398] sm:$0xff]
                  %488 = vst [vmem:[%s408 + $0x138] sm:$0xff] %v487
                  %v489 = vld [vmem:[%s407 + $0x3c0] sm:$0xff]
                  %490 = vst [vmem:[%s408 + $0x140] sm:$0xff] %v489
                  %v491 = vld [vmem:[%s407 + $0x3c8] sm:$0xff]
                  %492 = vst [vmem:[%s408 + $0x148] sm:$0xff] %v491
                  %v493 = vld [vmem:[%s407 + $0x3f0] sm:$0xff]
                  %494 = vst [vmem:[%s408 + $0x150] sm:$0xff] %v493
                  %v495 = vld [vmem:[%s407 + $0x3f8] sm:$0xff]
                  %496 = vst [vmem:[%s408 + $0x158] sm:$0xff] %v495
                  %v497 = vld [vmem:[%s407 + $0x420] sm:$0xff]
                  %498 = vst [vmem:[%s408 + $0x160] sm:$0xff] %v497
                  %v499 = vld [vmem:[%s407 + $0x428] sm:$0xff]
                  %500 = vst [vmem:[%s408 + $0x168] sm:$0xff] %v499
                  %v501 = vld [vmem:[%s407 + $0x450] sm:$0xff]
                  %502 = vst [vmem:[%s408 + $0x170] sm:$0xff] %v501
                  %v503 = vld [vmem:[%s407 + $0x458] sm:$0xff]
                  %504 = vst [vmem:[%s408 + $0x178] sm:$0xff] %v503
                  %v505 = vld [vmem:[%s407 + $0x480] sm:$0xff]
                  %506 = vst [vmem:[%s408 + $0x180] sm:$0xff] %v505
                  %v507 = vld [vmem:[%s407 + $0x488] sm:$0xff]
                  %508 = vst [vmem:[%s408 + $0x188] sm:$0xff] %v507
                  %v509 = vld [vmem:[%s407 + $0x4b0] sm:$0xff]
                  %510 = vst [vmem:[%s408 + $0x190] sm:$0xff] %v509
                  %v511 = vld [vmem:[%s407 + $0x4b8] sm:$0xff]
                  %512 = vst [vmem:[%s408 + $0x198] sm:$0xff] %v511
                  %v513 = vld [vmem:[%s407 + $0x4e0] sm:$0xff]
                  %514 = vst [vmem:[%s408 + $0x1a0] sm:$0xff] %v513
                  %v515 = vld [vmem:[%s407 + $0x4e8] sm:$0xff]
                  %516 = vst [vmem:[%s408 + $0x1a8] sm:$0xff] %v515
                  %v517 = vld [vmem:[%s407 + $0x510] sm:$0xff]
                  %518 = vst [vmem:[%s408 + $0x1b0] sm:$0xff] %v517
                  %v519 = vld [vmem:[%s407 + $0x518] sm:$0xff]
                  %520 = vst [vmem:[%s408 + $0x1b8] sm:$0xff] %v519
                  %v521 = vld [vmem:[%s407 + $0x540] sm:$0xff]
                  %522 = vst [vmem:[%s408 + $0x1c0] sm:$0xff] %v521
                  %v523 = vld [vmem:[%s407 + $0x548] sm:$0xff]
                  %524 = vst [vmem:[%s408 + $0x1c8] sm:$0xff] %v523
                  %v525 = vld [vmem:[%s407 + $0x570] sm:$0xff]
                  %526 = vst [vmem:[%s408 + $0x1d0] sm:$0xff] %v525
                  %v527 = vld [vmem:[%s407 + $0x578] sm:$0xff]
                  %528 = vst [vmem:[%s408 + $0x1d8] sm:$0xff] %v527
                  %v529 = vld [vmem:[%s407 + $0x5a0] sm:$0xff]
                  %530 = vst [vmem:[%s408 + $0x1e0] sm:$0xff] %v529
                  %v531 = vld [vmem:[%s407 + $0x5a8] sm:$0xff]
                  %532 = vst [vmem:[%s408 + $0x1e8] sm:$0xff] %v531
                  %v533 = vld [vmem:[%s407 + $0x5d0] sm:$0xff]
                  %534 = vst [vmem:[%s408 + $0x1f0] sm:$0xff] %v533
                  %v535 = vld [vmem:[%s407 + $0x5d8] sm:$0xff]
                  %536 = vst [vmem:[%s408 + $0x1f8] sm:$0xff] %v535
                $region72: #{patch_merging_forward.1} parent=66 // loop_footer
                  %s406 = sadd.s32 1, %s402
                $region73: #{patch_merging_forward.1} parent=66 // loop_footer_branch
                  %401 = sbr.rel target = $region69
                $region74: #{patch_merging_forward.1} parent=66 // loop_exit
                  _
              $region67: #{patch_merging_forward.1} parent=51 // pred_fallthru
                _
              // Predicated region
              $region75: #{patch_merging_forward.1} parent=51 // pred_check
                _
              $region76: #{patch_merging_forward.1} parent=51 // pred_check_branch
                %538 = sbr.rel target = $region78
              $region77: #{patch_merging_forward.1} parent=51 // pred_region
                _
              $region78: #{patch_merging_forward.1} parent=51 // pred_fallthru
                _
            $region52: #{patch_merging_forward.1} parent=47 // pred_fallthru
              _
            // Predicated region
            $region53: #{patch_merging_forward.1} parent=47 // pred_check
              _
            $region54: #{patch_merging_forward.1} parent=47 // pred_check_branch
              %261 = sbr.rel target = $region56
            $region55: #{patch_merging_forward.1} parent=47 // pred_region
              loop: start=0, step=1, limit=1
              $region57: #{patch_merging_forward.1} parent=55 // loop_pre_header
                _
              $region58: #{patch_merging_forward.1} parent=55 // loop_header
                %s264 = sphi 0, %s268
                %p265 = scmp.ge.s32.totalorder %s264, 1
                %s269 = sphi %s255, %s255
                %s270 = sphi %s250, %s250
              $region59: #{patch_merging_forward.1} parent=55 // loop_header_branch
                %267 = sbr.rel (%p265) target = $region63
              $region60: #{patch_merging_forward.1} parent=55 // loop_body
                %v271 = vld [vmem:[%s269] sm:$0xff]
                %272 = vst [vmem:[%s270] sm:$0xff] %v271
                %v273 = vld [vmem:[%s269 + $0x8] sm:$0xff]
                %274 = vst [vmem:[%s270 + $0x8] sm:$0xff] %v273
                %v275 = vld [vmem:[%s269 + $0x30] sm:$0xff]
                %276 = vst [vmem:[%s270 + $0x10] sm:$0xff] %v275
                %v277 = vld [vmem:[%s269 + $0x38] sm:$0xff]
                %278 = vst [vmem:[%s270 + $0x18] sm:$0xff] %v277
                %v279 = vld [vmem:[%s269 + $0x60] sm:$0xff]
                %280 = vst [vmem:[%s270 + $0x20] sm:$0xff] %v279
                %v281 = vld [vmem:[%s269 + $0x68] sm:$0xff]
                %282 = vst [vmem:[%s270 + $0x28] sm:$0xff] %v281
                %v283 = vld [vmem:[%s269 + $0x90] sm:$0xff]
                %284 = vst [vmem:[%s270 + $0x30] sm:$0xff] %v283
                %v285 = vld [vmem:[%s269 + $0x98] sm:$0xff]
                %286 = vst [vmem:[%s270 + $0x38] sm:$0xff] %v285
                %v287 = vld [vmem:[%s269 + $0xc0] sm:$0xff]
                %288 = vst [vmem:[%s270 + $0x40] sm:$0xff] %v287
                %v289 = vld [vmem:[%s269 + $0xc8] sm:$0xff]
                %290 = vst [vmem:[%s270 + $0x48] sm:$0xff] %v289
                %v291 = vld [vmem:[%s269 + $0xf0] sm:$0xff]
                %292 = vst [vmem:[%s270 + $0x50] sm:$0xff] %v291
                %v293 = vld [vmem:[%s269 + $0xf8] sm:$0xff]
                %294 = vst [vmem:[%s270 + $0x58] sm:$0xff] %v293
                %v295 = vld [vmem:[%s269 + $0x120] sm:$0xff]
                %296 = vst [vmem:[%s270 + $0x60] sm:$0xff] %v295
                %v297 = vld [vmem:[%s269 + $0x128] sm:$0xff]
                %298 = vst [vmem:[%s270 + $0x68] sm:$0xff] %v297
                %v299 = vld [vmem:[%s269 + $0x150] sm:$0xff]
                %300 = vst [vmem:[%s270 + $0x70] sm:$0xff] %v299
                %v301 = vld [vmem:[%s269 + $0x158] sm:$0xff]
                %302 = vst [vmem:[%s270 + $0x78] sm:$0xff] %v301
                %v303 = vld [vmem:[%s269 + $0x180] sm:$0xff]
                %304 = vst [vmem:[%s270 + $0x80] sm:$0xff] %v303
                %v305 = vld [vmem:[%s269 + $0x188] sm:$0xff]
                %306 = vst [vmem:[%s270 + $0x88] sm:$0xff] %v305
                %v307 = vld [vmem:[%s269 + $0x1b0] sm:$0xff]
                %308 = vst [vmem:[%s270 + $0x90] sm:$0xff] %v307
                %v309 = vld [vmem:[%s269 + $0x1b8] sm:$0xff]
                %310 = vst [vmem:[%s270 + $0x98] sm:$0xff] %v309
                %v311 = vld [vmem:[%s269 + $0x1e0] sm:$0xff]
                %312 = vst [vmem:[%s270 + $0xa0] sm:$0xff] %v311
                %v313 = vld [vmem:[%s269 + $0x1e8] sm:$0xff]
                %314 = vst [vmem:[%s270 + $0xa8] sm:$0xff] %v313
                %v315 = vld [vmem:[%s269 + $0x210] sm:$0xff]
                %316 = vst [vmem:[%s270 + $0xb0] sm:$0xff] %v315
                %v317 = vld [vmem:[%s269 + $0x218] sm:$0xff]
                %318 = vst [vmem:[%s270 + $0xb8] sm:$0xff] %v317
                %v319 = vld [vmem:[%s269 + $0x240] sm:$0xff]
                %320 = vst [vmem:[%s270 + $0xc0] sm:$0xff] %v319
                %v321 = vld [vmem:[%s269 + $0x248] sm:$0xff]
                %322 = vst [vmem:[%s270 + $0xc8] sm:$0xff] %v321
                %v323 = vld [vmem:[%s269 + $0x270] sm:$0xff]
                %324 = vst [vmem:[%s270 + $0xd0] sm:$0xff] %v323
                %v325 = vld [vmem:[%s269 + $0x278] sm:$0xff]
                %326 = vst [vmem:[%s270 + $0xd8] sm:$0xff] %v325
                %v327 = vld [vmem:[%s269 + $0x2a0] sm:$0xff]
                %328 = vst [vmem:[%s270 + $0xe0] sm:$0xff] %v327
                %v329 = vld [vmem:[%s269 + $0x2a8] sm:$0xff]
                %330 = vst [vmem:[%s270 + $0xe8] sm:$0xff] %v329
                %v331 = vld [vmem:[%s269 + $0x2d0] sm:$0xff]
                %332 = vst [vmem:[%s270 + $0xf0] sm:$0xff] %v331
                %v333 = vld [vmem:[%s269 + $0x2d8] sm:$0xff]
                %334 = vst [vmem:[%s270 + $0xf8] sm:$0xff] %v333
                %v335 = vld [vmem:[%s269 + $0x300] sm:$0xff]
                %336 = vst [vmem:[%s270 + $0x100] sm:$0xff] %v335
                %v337 = vld [vmem:[%s269 + $0x308] sm:$0xff]
                %338 = vst [vmem:[%s270 + $0x108] sm:$0xff] %v337
                %v339 = vld [vmem:[%s269 + $0x330] sm:$0xff]
                %340 = vst [vmem:[%s270 + $0x110] sm:$0xff] %v339
                %v341 = vld [vmem:[%s269 + $0x338] sm:$0xff]
                %342 = vst [vmem:[%s270 + $0x118] sm:$0xff] %v341
                %v343 = vld [vmem:[%s269 + $0x360] sm:$0xff]
                %344 = vst [vmem:[%s270 + $0x120] sm:$0xff] %v343
                %v345 = vld [vmem:[%s269 + $0x368] sm:$0xff]
                %346 = vst [vmem:[%s270 + $0x128] sm:$0xff] %v345
                %v347 = vld [vmem:[%s269 + $0x390] sm:$0xff]
                %348 = vst [vmem:[%s270 + $0x130] sm:$0xff] %v347
                %v349 = vld [vmem:[%s269 + $0x398] sm:$0xff]
                %350 = vst [vmem:[%s270 + $0x138] sm:$0xff] %v349
                %v351 = vld [vmem:[%s269 + $0x3c0] sm:$0xff]
                %352 = vst [vmem:[%s270 + $0x140] sm:$0xff] %v351
                %v353 = vld [vmem:[%s269 + $0x3c8] sm:$0xff]
                %354 = vst [vmem:[%s270 + $0x148] sm:$0xff] %v353
                %v355 = vld [vmem:[%s269 + $0x3f0] sm:$0xff]
                %356 = vst [vmem:[%s270 + $0x150] sm:$0xff] %v355
                %v357 = vld [vmem:[%s269 + $0x3f8] sm:$0xff]
                %358 = vst [vmem:[%s270 + $0x158] sm:$0xff] %v357
                %v359 = vld [vmem:[%s269 + $0x420] sm:$0xff]
                %360 = vst [vmem:[%s270 + $0x160] sm:$0xff] %v359
                %v361 = vld [vmem:[%s269 + $0x428] sm:$0xff]
                %362 = vst [vmem:[%s270 + $0x168] sm:$0xff] %v361
                %v363 = vld [vmem:[%s269 + $0x450] sm:$0xff]
                %364 = vst [vmem:[%s270 + $0x170] sm:$0xff] %v363
                %v365 = vld [vmem:[%s269 + $0x458] sm:$0xff]
                %366 = vst [vmem:[%s270 + $0x178] sm:$0xff] %v365
                %v367 = vld [vmem:[%s269 + $0x480] sm:$0xff]
                %368 = vst [vmem:[%s270 + $0x180] sm:$0xff] %v367
                %v369 = vld [vmem:[%s269 + $0x488] sm:$0xff]
                %370 = vst [vmem:[%s270 + $0x188] sm:$0xff] %v369
                %v371 = vld [vmem:[%s269 + $0x4b0] sm:$0xff]
                %372 = vst [vmem:[%s270 + $0x190] sm:$0xff] %v371
                %v373 = vld [vmem:[%s269 + $0x4b8] sm:$0xff]
                %374 = vst [vmem:[%s270 + $0x198] sm:$0xff] %v373
                %v375 = vld [vmem:[%s269 + $0x4e0] sm:$0xff]
                %376 = vst [vmem:[%s270 + $0x1a0] sm:$0xff] %v375
                %v377 = vld [vmem:[%s269 + $0x4e8] sm:$0xff]
                %378 = vst [vmem:[%s270 + $0x1a8] sm:$0xff] %v377
                %v379 = vld [vmem:[%s269 + $0x510] sm:$0xff]
                %380 = vst [vmem:[%s270 + $0x1b0] sm:$0xff] %v379
                %v381 = vld [vmem:[%s269 + $0x518] sm:$0xff]
                %382 = vst [vmem:[%s270 + $0x1b8] sm:$0xff] %v381
                %v383 = vld [vmem:[%s269 + $0x540] sm:$0xff]
                %384 = vst [vmem:[%s270 + $0x1c0] sm:$0xff] %v383
                %v385 = vld [vmem:[%s269 + $0x548] sm:$0xff]
                %386 = vst [vmem:[%s270 + $0x1c8] sm:$0xff] %v385
                %v387 = vld [vmem:[%s269 + $0x570] sm:$0xff]
                %388 = vst [vmem:[%s270 + $0x1d0] sm:$0xff] %v387
                %v389 = vld [vmem:[%s269 + $0x578] sm:$0xff]
                %390 = vst [vmem:[%s270 + $0x1d8] sm:$0xff] %v389
                %v391 = vld [vmem:[%s269 + $0x5a0] sm:$0xff]
                %392 = vst [vmem:[%s270 + $0x1e0] sm:$0xff] %v391
                %v393 = vld [vmem:[%s269 + $0x5a8] sm:$0xff]
                %394 = vst [vmem:[%s270 + $0x1e8] sm:$0xff] %v393
                %v395 = vld [vmem:[%s269 + $0x5d0] sm:$0xff]
                %396 = vst [vmem:[%s270 + $0x1f0] sm:$0xff] %v395
                %v397 = vld [vmem:[%s269 + $0x5d8] sm:$0xff]
                %398 = vst [vmem:[%s270 + $0x1f8] sm:$0xff] %v397
              $region61: #{patch_merging_forward.1} parent=55 // loop_footer
                %s268 = sadd.s32 1, %s264
              $region62: #{patch_merging_forward.1} parent=55 // loop_footer_branch
                %263 = sbr.rel target = $region58
              $region63: #{patch_merging_forward.1} parent=55 // loop_exit
                _
            $region56: #{patch_merging_forward.1} parent=47 // pred_fallthru
              _
          $region48: #{patch_merging_forward.1} parent=43 // pred_fallthru
            _
          %539 = vnop
        $region44: #{patch_merging_forward.1} parent=39 // pred_fallthru
          _
      $region40: #{patch_merging_forward.1} parent=5 // pred_fallthru
        _
      %p540 = scmp.le.s32.totalorder 1, %s13
      %p541 = scmp.lt.s32.totalorder %s13, 7
      %p542 = pnand %p540, %p541
      %p543 = pneg %p542
      // Predicated region
      $region79: #{patch_merging_forward.1} parent=5 // pred_check
        _
      $region80: #{patch_merging_forward.1} parent=5 // pred_check_branch
        %545 = sbr.rel (%p542) target = $region82
      $region81: #{patch_merging_forward.1} parent=5 // pred_region
        %s546 = ssub.s32 %s13, 1
        %s547 = sand.u32 %s40, 1
        %s548 = sand.u32 %s40, 1
        %s549 = smul.addr %s548, 512
        %s550 = scalar_lea.vmem [#allocation2], %s549
        // Predicated region
        $region83: #{patch_merging_forward.1} parent=81 // pred_check
          %p551 = pneg %p53
        $region84: #{patch_merging_forward.1} parent=81 // pred_check_branch
          %553 = sbr.rel (%p551) target = $region86
        $region85: #{patch_merging_forward.1} parent=81 // pred_region
          _
        $region86: #{patch_merging_forward.1} parent=81 // pred_fallthru
          _
        %s554 = sand.u32 %s40, 1
        %s555 = sand.u32 %s40, 1
        %s556 = smul.addr %s555, 512
        %s557 = scalar_lea.vmem [#allocation2], %s556
        %p558 = pneg %p53
        %p559 = pneg %p50
        %p560 = pneg %p74
        %p561 = pneg %p71
        %p562 = pneg %p95
        %p563 = pneg %p92
        %p564 = pneg %p116
        %p565 = pneg %p113
        %p566 = pneg %p137
        %p567 = pneg %p134
        %p568 = pneg %p158
        %p569 = pneg %p155
        %p570 = pneg %p179
        %p571 = pneg %p176
        %p572 = pneg %p207
        %p573 = pneg %p204
        %s574 = sand.u32 %s194, 1
        %s575 = sand.u32 %s194, 1
        %s576 = smul.addr %s575, 512
        %s577 = scalar_lea.vmem [#allocation3], %s576
        %s578 = smul.u32 2, %s23
        %v580 = vld [vmem:[%s550] sm:$0xff]
        %v581 = vld [vmem:[%s550 + $0x8] sm:$0xff]
        %v582 = vld [vmem:[%s550 + $0x10] sm:$0xff]
        %v583 = vld [vmem:[%s550 + $0x18] sm:$0xff]
        %v584 = vld [vmem:[%s550 + $0x20] sm:$0xff]
        %v585 = vld [vmem:[%s550 + $0x28] sm:$0xff]
        %v586 = vld [vmem:[%s550 + $0x30] sm:$0xff]
        %v587 = vld [vmem:[%s550 + $0x38] sm:$0xff]
        %v588 = vld [vmem:[%s550 + $0x40] sm:$0xff]
        %v589 = vld [vmem:[%s550 + $0x48] sm:$0xff]
        %v590 = vld [vmem:[%s550 + $0x50] sm:$0xff]
        %v591 = vld [vmem:[%s550 + $0x58] sm:$0xff]
        %v592 = vld [vmem:[%s550 + $0x60] sm:$0xff]
        %v593 = vld [vmem:[%s550 + $0x68] sm:$0xff]
        %v594 = vld [vmem:[%s550 + $0x70] sm:$0xff]
        %v595 = vld [vmem:[%s550 + $0x78] sm:$0xff]
        %v596 = vld [vmem:[%s550 + $0x80] sm:$0xff]
        %v597 = vld [vmem:[%s550 + $0x88] sm:$0xff]
        %v598 = vld [vmem:[%s550 + $0x90] sm:$0xff]
        %v599 = vld [vmem:[%s550 + $0x98] sm:$0xff]
        %v600 = vld [vmem:[%s550 + $0xa0] sm:$0xff]
        %v601 = vld [vmem:[%s550 + $0xa8] sm:$0xff]
        %v602 = vld [vmem:[%s550 + $0xb0] sm:$0xff]
        %v603 = vld [vmem:[%s550 + $0xb8] sm:$0xff]
        %v604 = vld [vmem:[%s550 + $0xc0] sm:$0xff]
        %v605 = vld [vmem:[%s550 + $0xc8] sm:$0xff]
        %v606 = vld [vmem:[%s550 + $0xd0] sm:$0xff]
        %v607 = vld [vmem:[%s550 + $0xd8] sm:$0xff]
        %v608 = vld [vmem:[%s550 + $0xe0] sm:$0xff]
        %v609 = vld [vmem:[%s550 + $0xe8] sm:$0xff]
        %v610 = vld [vmem:[%s550 + $0xf0] sm:$0xff]
        %v611 = vld [vmem:[%s550 + $0xf8] sm:$0xff]
        %v612 = vld [vmem:[%s550 + $0x100] sm:$0xff]
        %v613 = vld [vmem:[%s550 + $0x108] sm:$0xff]
        %v614 = vld [vmem:[%s550 + $0x110] sm:$0xff]
        %v615 = vld [vmem:[%s550 + $0x118] sm:$0xff]
        %v616 = vld [vmem:[%s550 + $0x120] sm:$0xff]
        %v617 = vld [vmem:[%s550 + $0x128] sm:$0xff]
        %v618 = vld [vmem:[%s550 + $0x130] sm:$0xff]
        %v619 = vld [vmem:[%s550 + $0x138] sm:$0xff]
        %v620 = vld [vmem:[%s550 + $0x140] sm:$0xff]
        %v621 = vld [vmem:[%s550 + $0x148] sm:$0xff]
        %v622 = vld [vmem:[%s550 + $0x150] sm:$0xff]
        %v623 = vld [vmem:[%s550 + $0x158] sm:$0xff]
        %v624 = vld [vmem:[%s550 + $0x160] sm:$0xff]
        %v625 = vld [vmem:[%s550 + $0x168] sm:$0xff]
        %v626 = vld [vmem:[%s550 + $0x170] sm:$0xff]
        %v627 = vld [vmem:[%s550 + $0x178] sm:$0xff]
        %v628 = vld [vmem:[%s550 + $0x180] sm:$0xff]
        %v629 = vld [vmem:[%s550 + $0x188] sm:$0xff]
        %v630 = vld [vmem:[%s550 + $0x190] sm:$0xff]
        %v631 = vld [vmem:[%s550 + $0x198] sm:$0xff]
        %v632 = vld [vmem:[%s550 + $0x1a0] sm:$0xff]
        %v633 = vld [vmem:[%s550 + $0x1a8] sm:$0xff]
        %v634 = vld [vmem:[%s550 + $0x1b0] sm:$0xff]
        %v635 = vld [vmem:[%s550 + $0x1b8] sm:$0xff]
        %v636 = vld [vmem:[%s550 + $0x1c0] sm:$0xff]
        %v637 = vld [vmem:[%s550 + $0x1c8] sm:$0xff]
        %v638 = vld [vmem:[%s550 + $0x1d0] sm:$0xff]
        %v639 = vld [vmem:[%s550 + $0x1d8] sm:$0xff]
        %v640 = vld [vmem:[%s550 + $0x1e0] sm:$0xff]
        %v641 = vld [vmem:[%s550 + $0x1e8] sm:$0xff]
        %v642 = vld [vmem:[%s550 + $0x1f0] sm:$0xff]
        %v643 = vld [vmem:[%s550 + $0x1f8] sm:$0xff]
        %v644 = vcombine.low %v580, %v584
        %v645 = vcombine.high %v580, %v584
        %v647 = vunpack.c.l.s4 1983009808
        %v648 = vunpack.c.0.s8 %v647
        %v649 = vlaneseq
        %v650 = vshrl.u32 %v649, 7
        %v651 = vsub.s32 %v648, %v650
        %v652 = vrot.slane %v644, %v651
        %v654 = vunpack.c.l.s4 1983009808
        %v655 = vunpack.c.0.s8 %v654
        %v656 = vlaneseq
        %v657 = vshrl.u32 %v656, 7
        %v658 = vsub.s32 %v655, %v657
        %v659 = vrot.slane %v645, %v658
        %v660 = vcombine.low %v582, %v586
        %v661 = vcombine.high %v582, %v586
        %v663 = vunpack.c.l.s4 1983009808
        %v664 = vunpack.c.0.s8 %v663
        %v665 = vlaneseq
        %v666 = vshrl.u32 %v665, 7
        %v667 = vsub.s32 %v664, %v666
        %v668 = vrot.slane %v660, %v667
        %v670 = vunpack.c.l.s4 1983009808
        %v671 = vunpack.c.0.s8 %v670
        %v672 = vlaneseq
        %v673 = vshrl.u32 %v672, 7
        %v674 = vsub.s32 %v671, %v673
        %v675 = vrot.slane %v661, %v674
        %v676 = vcombine.low %v588, %v592
        %v677 = vcombine.high %v588, %v592
        %v679 = vunpack.c.l.s4 1983009808
        %v680 = vunpack.c.0.s8 %v679
        %v681 = vlaneseq
        %v682 = vshrl.u32 %v681, 7
        %v683 = vsub.s32 %v680, %v682
        %v684 = vrot.slane %v676, %v683
        %v686 = vunpack.c.l.s4 1983009808
        %v687 = vunpack.c.0.s8 %v686
        %v688 = vlaneseq
        %v689 = vshrl.u32 %v688, 7
        %v690 = vsub.s32 %v687, %v689
        %v691 = vrot.slane %v677, %v690
        %v692 = vcombine.low %v590, %v594
        %v693 = vcombine.high %v590, %v594
        %v695 = vunpack.c.l.s4 1983009808
        %v696 = vunpack.c.0.s8 %v695
        %v697 = vlaneseq
        %v698 = vshrl.u32 %v697, 7
        %v699 = vsub.s32 %v696, %v698
        %v700 = vrot.slane %v692, %v699
        %v702 = vunpack.c.l.s4 1983009808
        %v703 = vunpack.c.0.s8 %v702
        %v704 = vlaneseq
        %v705 = vshrl.u32 %v704, 7
        %v706 = vsub.s32 %v703, %v705
        %v707 = vrot.slane %v693, %v706
        %v708 = vcombine.low %v652, %v668
        %v709 = vcombine.high %v652, %v668
        %v711 = vunpack.c.l.s4 1934713408
        %v712 = vunpack.c.0.s8 %v711
        %v713 = vlaneseq
        %v714 = vshrl.u32 %v713, 7
        %v715 = vsub.s32 %v712, %v714
        %v716 = vrot.slane %v708, %v715
        %v718 = vunpack.c.l.s4 1934713408
        %v719 = vunpack.c.0.s8 %v718
        %v720 = vlaneseq
        %v721 = vshrl.u32 %v720, 7
        %v722 = vsub.s32 %v719, %v721
        %v723 = vrot.slane %v709, %v722
        %v724 = vcombine.low %v659, %v675
        %v725 = vcombine.high %v659, %v675
        %v727 = vunpack.c.l.s4 1934713408
        %v728 = vunpack.c.0.s8 %v727
        %v729 = vlaneseq
        %v730 = vshrl.u32 %v729, 7
        %v731 = vsub.s32 %v728, %v730
        %v732 = vrot.slane %v724, %v731
        %v734 = vunpack.c.l.s4 1934713408
        %v735 = vunpack.c.0.s8 %v734
        %v736 = vlaneseq
        %v737 = vshrl.u32 %v736, 7
        %v738 = vsub.s32 %v735, %v737
        %v739 = vrot.slane %v725, %v738
        %v740 = vcombine.low %v684, %v700
        %v741 = vcombine.high %v684, %v700
        %v743 = vunpack.c.l.s4 1934713408
        %v744 = vunpack.c.0.s8 %v743
        %v745 = vlaneseq
        %v746 = vshrl.u32 %v745, 7
        %v747 = vsub.s32 %v744, %v746
        %v748 = vrot.slane %v740, %v747
        %v750 = vunpack.c.l.s4 1934713408
        %v751 = vunpack.c.0.s8 %v750
        %v752 = vlaneseq
        %v753 = vshrl.u32 %v752, 7
        %v754 = vsub.s32 %v751, %v753
        %v755 = vrot.slane %v741, %v754
        %v756 = vcombine.low %v691, %v707
        %v757 = vcombine.high %v691, %v707
        %v759 = vunpack.c.l.s4 1934713408
        %v760 = vunpack.c.0.s8 %v759
        %v761 = vlaneseq
        %v762 = vshrl.u32 %v761, 7
        %v763 = vsub.s32 %v760, %v762
        %v764 = vrot.slane %v756, %v763
        %v766 = vunpack.c.l.s4 1934713408
        %v767 = vunpack.c.0.s8 %v766
        %v768 = vlaneseq
        %v769 = vshrl.u32 %v768, 7
        %v770 = vsub.s32 %v767, %v769
        %v771 = vrot.slane %v757, %v770
        %v772 = vcombine.low %v716, %v748
        %v773 = vcombine.high %v716, %v748
        %v774 = vcombine.low %v723, %v755
        %v775 = vcombine.high %v723, %v755
        %v776 = vcombine.low %v732, %v764
        %v777 = vcombine.high %v732, %v764
        %v778 = vcombine.low %v739, %v771
        %v779 = vcombine.high %v739, %v771
        %v780 = vcombine.low %v596, %v600
        %v781 = vcombine.high %v596, %v600
        %v783 = vunpack.c.l.s4 1983009808
        %v784 = vunpack.c.0.s8 %v783
        %v785 = vlaneseq
        %v786 = vshrl.u32 %v785, 7
        %v787 = vsub.s32 %v784, %v786
        %v788 = vrot.slane %v780, %v787
        %v790 = vunpack.c.l.s4 1983009808
        %v791 = vunpack.c.0.s8 %v790
        %v792 = vlaneseq
        %v793 = vshrl.u32 %v792, 7
        %v794 = vsub.s32 %v791, %v793
        %v795 = vrot.slane %v781, %v794
        %v796 = vcombine.low %v598, %v602
        %v797 = vcombine.high %v598, %v602
        %v799 = vunpack.c.l.s4 1983009808
        %v800 = vunpack.c.0.s8 %v799
        %v801 = vlaneseq
        %v802 = vshrl.u32 %v801, 7
        %v803 = vsub.s32 %v800, %v802
        %v804 = vrot.slane %v796, %v803
        %v806 = vunpack.c.l.s4 1983009808
        %v807 = vunpack.c.0.s8 %v806
        %v808 = vlaneseq
        %v809 = vshrl.u32 %v808, 7
        %v810 = vsub.s32 %v807, %v809
        %v811 = vrot.slane %v797, %v810
        %v812 = vcombine.low %v604, %v608
        %v813 = vcombine.high %v604, %v608
        %v815 = vunpack.c.l.s4 1983009808
        %v816 = vunpack.c.0.s8 %v815
        %v817 = vlaneseq
        %v818 = vshrl.u32 %v817, 7
        %v819 = vsub.s32 %v816, %v818
        %v820 = vrot.slane %v812, %v819
        %v822 = vunpack.c.l.s4 1983009808
        %v823 = vunpack.c.0.s8 %v822
        %v824 = vlaneseq
        %v825 = vshrl.u32 %v824, 7
        %v826 = vsub.s32 %v823, %v825
        %v827 = vrot.slane %v813, %v826
        %v828 = vcombine.low %v606, %v610
        %v829 = vcombine.high %v606, %v610
        %v831 = vunpack.c.l.s4 1983009808
        %v832 = vunpack.c.0.s8 %v831
        %v833 = vlaneseq
        %v834 = vshrl.u32 %v833, 7
        %v835 = vsub.s32 %v832, %v834
        %v836 = vrot.slane %v828, %v835
        %v838 = vunpack.c.l.s4 1983009808
        %v839 = vunpack.c.0.s8 %v838
        %v840 = vlaneseq
        %v841 = vshrl.u32 %v840, 7
        %v842 = vsub.s32 %v839, %v841
        %v843 = vrot.slane %v829, %v842
        %v844 = vcombine.low %v788, %v804
        %v845 = vcombine.high %v788, %v804
        %v847 = vunpack.c.l.s4 1934713408
        %v848 = vunpack.c.0.s8 %v847
        %v849 = vlaneseq
        %v850 = vshrl.u32 %v849, 7
        %v851 = vsub.s32 %v848, %v850
        %v852 = vrot.slane %v844, %v851
        %v854 = vunpack.c.l.s4 1934713408
        %v855 = vunpack.c.0.s8 %v854
        %v856 = vlaneseq
        %v857 = vshrl.u32 %v856, 7
        %v858 = vsub.s32 %v855, %v857
        %v859 = vrot.slane %v845, %v858
        %v860 = vcombine.low %v795, %v811
        %v861 = vcombine.high %v795, %v811
        %v863 = vunpack.c.l.s4 1934713408
        %v864 = vunpack.c.0.s8 %v863
        %v865 = vlaneseq
        %v866 = vshrl.u32 %v865, 7
        %v867 = vsub.s32 %v864, %v866
        %v868 = vrot.slane %v860, %v867
        %v870 = vunpack.c.l.s4 1934713408
        %v871 = vunpack.c.0.s8 %v870
        %v872 = vlaneseq
        %v873 = vshrl.u32 %v872, 7
        %v874 = vsub.s32 %v871, %v873
        %v875 = vrot.slane %v861, %v874
        %v876 = vcombine.low %v820, %v836
        %v877 = vcombine.high %v820, %v836
        %v879 = vunpack.c.l.s4 1934713408
        %v880 = vunpack.c.0.s8 %v879
        %v881 = vlaneseq
        %v882 = vshrl.u32 %v881, 7
        %v883 = vsub.s32 %v880, %v882
        %v884 = vrot.slane %v876, %v883
        %v886 = vunpack.c.l.s4 1934713408
        %v887 = vunpack.c.0.s8 %v886
        %v888 = vlaneseq
        %v889 = vshrl.u32 %v888, 7
        %v890 = vsub.s32 %v887, %v889
        %v891 = vrot.slane %v877, %v890
        %v892 = vcombine.low %v827, %v843
        %v893 = vcombine.high %v827, %v843
        %v895 = vunpack.c.l.s4 1934713408
        %v896 = vunpack.c.0.s8 %v895
        %v897 = vlaneseq
        %v898 = vshrl.u32 %v897, 7
        %v899 = vsub.s32 %v896, %v898
        %v900 = vrot.slane %v892, %v899
        %v902 = vunpack.c.l.s4 1934713408
        %v903 = vunpack.c.0.s8 %v902
        %v904 = vlaneseq
        %v905 = vshrl.u32 %v904, 7
        %v906 = vsub.s32 %v903, %v905
        %v907 = vrot.slane %v893, %v906
        %v908 = vcombine.low %v852, %v884
        %v909 = vcombine.high %v852, %v884
        %v910 = vcombine.low %v859, %v891
        %v911 = vcombine.high %v859, %v891
        %v912 = vcombine.low %v868, %v900
        %v913 = vcombine.high %v868, %v900
        %v914 = vcombine.low %v875, %v907
        %v915 = vcombine.high %v875, %v907
        %v916 = vcombine.low %v612, %v616
        %v917 = vcombine.high %v612, %v616
        %v919 = vunpack.c.l.s4 1983009808
        %v920 = vunpack.c.0.s8 %v919
        %v921 = vlaneseq
        %v922 = vshrl.u32 %v921, 7
        %v923 = vsub.s32 %v920, %v922
        %v924 = vrot.slane %v916, %v923
        %v926 = vunpack.c.l.s4 1983009808
        %v927 = vunpack.c.0.s8 %v926
        %v928 = vlaneseq
        %v929 = vshrl.u32 %v928, 7
        %v930 = vsub.s32 %v927, %v929
        %v931 = vrot.slane %v917, %v930
        %v932 = vcombine.low %v614, %v618
        %v933 = vcombine.high %v614, %v618
        %v935 = vunpack.c.l.s4 1983009808
        %v936 = vunpack.c.0.s8 %v935
        %v937 = vlaneseq
        %v938 = vshrl.u32 %v937, 7
        %v939 = vsub.s32 %v936, %v938
        %v940 = vrot.slane %v932, %v939
        %v942 = vunpack.c.l.s4 1983009808
        %v943 = vunpack.c.0.s8 %v942
        %v944 = vlaneseq
        %v945 = vshrl.u32 %v944, 7
        %v946 = vsub.s32 %v943, %v945
        %v947 = vrot.slane %v933, %v946
        %v948 = vcombine.low %v620, %v624
        %v949 = vcombine.high %v620, %v624
        %v951 = vunpack.c.l.s4 1983009808
        %v952 = vunpack.c.0.s8 %v951
        %v953 = vlaneseq
        %v954 = vshrl.u32 %v953, 7
        %v955 = vsub.s32 %v952, %v954
        %v956 = vrot.slane %v948, %v955
        %v958 = vunpack.c.l.s4 1983009808
        %v959 = vunpack.c.0.s8 %v958
        %v960 = vlaneseq
        %v961 = vshrl.u32 %v960, 7
        %v962 = vsub.s32 %v959, %v961
        %v963 = vrot.slane %v949, %v962
        %v964 = vcombine.low %v622, %v626
        %v965 = vcombine.high %v622, %v626
        %v967 = vunpack.c.l.s4 1983009808
        %v968 = vunpack.c.0.s8 %v967
        %v969 = vlaneseq
        %v970 = vshrl.u32 %v969, 7
        %v971 = vsub.s32 %v968, %v970
        %v972 = vrot.slane %v964, %v971
        %v974 = vunpack.c.l.s4 1983009808
        %v975 = vunpack.c.0.s8 %v974
        %v976 = vlaneseq
        %v977 = vshrl.u32 %v976, 7
        %v978 = vsub.s32 %v975, %v977
        %v979 = vrot.slane %v965, %v978
        %v980 = vcombine.low %v924, %v940
        %v981 = vcombine.high %v924, %v940
        %v983 = vunpack.c.l.s4 1934713408
        %v984 = vunpack.c.0.s8 %v983
        %v985 = vlaneseq
        %v986 = vshrl.u32 %v985, 7
        %v987 = vsub.s32 %v984, %v986
        %v988 = vrot.slane %v980, %v987
        %v990 = vunpack.c.l.s4 1934713408
        %v991 = vunpack.c.0.s8 %v990
        %v992 = vlaneseq
        %v993 = vshrl.u32 %v992, 7
        %v994 = vsub.s32 %v991, %v993
        %v995 = vrot.slane %v981, %v994
        %v996 = vcombine.low %v931, %v947
        %v997 = vcombine.high %v931, %v947
        %v999 = vunpack.c.l.s4 1934713408
        %v1000 = vunpack.c.0.s8 %v999
        %v1001 = vlaneseq
        %v1002 = vshrl.u32 %v1001, 7
        %v1003 = vsub.s32 %v1000, %v1002
        %v1004 = vrot.slane %v996, %v1003
        %v1006 = vunpack.c.l.s4 1934713408
        %v1007 = vunpack.c.0.s8 %v1006
        %v1008 = vlaneseq
        %v1009 = vshrl.u32 %v1008, 7
        %v1010 = vsub.s32 %v1007, %v1009
        %v1011 = vrot.slane %v997, %v1010
        %v1012 = vcombine.low %v956, %v972
        %v1013 = vcombine.high %v956, %v972
        %v1015 = vunpack.c.l.s4 1934713408
        %v1016 = vunpack.c.0.s8 %v1015
        %v1017 = vlaneseq
        %v1018 = vshrl.u32 %v1017, 7
        %v1019 = vsub.s32 %v1016, %v1018
        %v1020 = vrot.slane %v1012, %v1019
        %v1022 = vunpack.c.l.s4 1934713408
        %v1023 = vunpack.c.0.s8 %v1022
        %v1024 = vlaneseq
        %v1025 = vshrl.u32 %v1024, 7
        %v1026 = vsub.s32 %v1023, %v1025
        %v1027 = vrot.slane %v1013, %v1026
        %v1028 = vcombine.low %v963, %v979
        %v1029 = vcombine.high %v963, %v979
        %v1031 = vunpack.c.l.s4 1934713408
        %v1032 = vunpack.c.0.s8 %v1031
        %v1033 = vlaneseq
        %v1034 = vshrl.u32 %v1033, 7
        %v1035 = vsub.s32 %v1032, %v1034
        %v1036 = vrot.slane %v1028, %v1035
        %v1038 = vunpack.c.l.s4 1934713408
        %v1039 = vunpack.c.0.s8 %v1038
        %v1040 = vlaneseq
        %v1041 = vshrl.u32 %v1040, 7
        %v1042 = vsub.s32 %v1039, %v1041
        %v1043 = vrot.slane %v1029, %v1042
        %v1044 = vcombine.low %v988, %v1020
        %v1045 = vcombine.high %v988, %v1020
        %v1046 = vcombine.low %v995, %v1027
        %v1047 = vcombine.high %v995, %v1027
        %v1048 = vcombine.low %v1004, %v1036
        %v1049 = vcombine.high %v1004, %v1036
        %v1050 = vcombine.low %v1011, %v1043
        %v1051 = vcombine.high %v1011, %v1043
        %v1052 = vcombine.low %v628, %v632
        %v1053 = vcombine.high %v628, %v632
        %v1055 = vunpack.c.l.s4 1983009808
        %v1056 = vunpack.c.0.s8 %v1055
        %v1057 = vlaneseq
        %v1058 = vshrl.u32 %v1057, 7
        %v1059 = vsub.s32 %v1056, %v1058
        %v1060 = vrot.slane %v1052, %v1059
        %v1062 = vunpack.c.l.s4 1983009808
        %v1063 = vunpack.c.0.s8 %v1062
        %v1064 = vlaneseq
        %v1065 = vshrl.u32 %v1064, 7
        %v1066 = vsub.s32 %v1063, %v1065
        %v1067 = vrot.slane %v1053, %v1066
        %v1068 = vcombine.low %v630, %v634
        %v1069 = vcombine.high %v630, %v634
        %v1071 = vunpack.c.l.s4 1983009808
        %v1072 = vunpack.c.0.s8 %v1071
        %v1073 = vlaneseq
        %v1074 = vshrl.u32 %v1073, 7
        %v1075 = vsub.s32 %v1072, %v1074
        %v1076 = vrot.slane %v1068, %v1075
        %v1078 = vunpack.c.l.s4 1983009808
        %v1079 = vunpack.c.0.s8 %v1078
        %v1080 = vlaneseq
        %v1081 = vshrl.u32 %v1080, 7
        %v1082 = vsub.s32 %v1079, %v1081
        %v1083 = vrot.slane %v1069, %v1082
        %v1084 = vcombine.low %v636, %v640
        %v1085 = vcombine.high %v636, %v640
        %v1087 = vunpack.c.l.s4 1983009808
        %v1088 = vunpack.c.0.s8 %v1087
        %v1089 = vlaneseq
        %v1090 = vshrl.u32 %v1089, 7
        %v1091 = vsub.s32 %v1088, %v1090
        %v1092 = vrot.slane %v1084, %v1091
        %v1094 = vunpack.c.l.s4 1983009808
        %v1095 = vunpack.c.0.s8 %v1094
        %v1096 = vlaneseq
        %v1097 = vshrl.u32 %v1096, 7
        %v1098 = vsub.s32 %v1095, %v1097
        %v1099 = vrot.slane %v1085, %v1098
        %v1100 = vcombine.low %v638, %v642
        %v1101 = vcombine.high %v638, %v642
        %v1103 = vunpack.c.l.s4 1983009808
        %v1104 = vunpack.c.0.s8 %v1103
        %v1105 = vlaneseq
        %v1106 = vshrl.u32 %v1105, 7
        %v1107 = vsub.s32 %v1104, %v1106
        %v1108 = vrot.slane %v1100, %v1107
        %v1110 = vunpack.c.l.s4 1983009808
        %v1111 = vunpack.c.0.s8 %v1110
        %v1112 = vlaneseq
        %v1113 = vshrl.u32 %v1112, 7
        %v1114 = vsub.s32 %v1111, %v1113
        %v1115 = vrot.slane %v1101, %v1114
        %v1116 = vcombine.low %v1060, %v1076
        %v1117 = vcombine.high %v1060, %v1076
        %v1119 = vunpack.c.l.s4 1934713408
        %v1120 = vunpack.c.0.s8 %v1119
        %v1121 = vlaneseq
        %v1122 = vshrl.u32 %v1121, 7
        %v1123 = vsub.s32 %v1120, %v1122
        %v1124 = vrot.slane %v1116, %v1123
        %v1126 = vunpack.c.l.s4 1934713408
        %v1127 = vunpack.c.0.s8 %v1126
        %v1128 = vlaneseq
        %v1129 = vshrl.u32 %v1128, 7
        %v1130 = vsub.s32 %v1127, %v1129
        %v1131 = vrot.slane %v1117, %v1130
        %v1132 = vcombine.low %v1067, %v1083
        %v1133 = vcombine.high %v1067, %v1083
        %v1135 = vunpack.c.l.s4 1934713408
        %v1136 = vunpack.c.0.s8 %v1135
        %v1137 = vlaneseq
        %v1138 = vshrl.u32 %v1137, 7
        %v1139 = vsub.s32 %v1136, %v1138
        %v1140 = vrot.slane %v1132, %v1139
        %v1142 = vunpack.c.l.s4 1934713408
        %v1143 = vunpack.c.0.s8 %v1142
        %v1144 = vlaneseq
        %v1145 = vshrl.u32 %v1144, 7
        %v1146 = vsub.s32 %v1143, %v1145
        %v1147 = vrot.slane %v1133, %v1146
        %v1148 = vcombine.low %v1092, %v1108
        %v1149 = vcombine.high %v1092, %v1108
        %v1151 = vunpack.c.l.s4 1934713408
        %v1152 = vunpack.c.0.s8 %v1151
        %v1153 = vlaneseq
        %v1154 = vshrl.u32 %v1153, 7
        %v1155 = vsub.s32 %v1152, %v1154
        %v1156 = vrot.slane %v1148, %v1155
        %v1158 = vunpack.c.l.s4 1934713408
        %v1159 = vunpack.c.0.s8 %v1158
        %v1160 = vlaneseq
        %v1161 = vshrl.u32 %v1160, 7
        %v1162 = vsub.s32 %v1159, %v1161
        %v1163 = vrot.slane %v1149, %v1162
        %v1164 = vcombine.low %v1099, %v1115
        %v1165 = vcombine.high %v1099, %v1115
        %v1167 = vunpack.c.l.s4 1934713408
        %v1168 = vunpack.c.0.s8 %v1167
        %v1169 = vlaneseq
        %v1170 = vshrl.u32 %v1169, 7
        %v1171 = vsub.s32 %v1168, %v1170
        %v1172 = vrot.slane %v1164, %v1171
        %v1174 = vunpack.c.l.s4 1934713408
        %v1175 = vunpack.c.0.s8 %v1174
        %v1176 = vlaneseq
        %v1177 = vshrl.u32 %v1176, 7
        %v1178 = vsub.s32 %v1175, %v1177
        %v1179 = vrot.slane %v1165, %v1178
        %v1180 = vcombine.low %v1124, %v1156
        %v1181 = vcombine.high %v1124, %v1156
        %v1182 = vcombine.low %v1131, %v1163
        %v1183 = vcombine.high %v1131, %v1163
        %v1184 = vcombine.low %v1140, %v1172
        %v1185 = vcombine.high %v1140, %v1172
        %v1186 = vcombine.low %v1147, %v1179
        %v1187 = vcombine.high %v1147, %v1179
        %v1188 = vcombine.low %v581, %v585
        %v1189 = vcombine.high %v581, %v585
        %v1191 = vunpack.c.l.s4 1983009808
        %v1192 = vunpack.c.0.s8 %v1191
        %v1193 = vlaneseq
        %v1194 = vshrl.u32 %v1193, 7
        %v1195 = vsub.s32 %v1192, %v1194
        %v1196 = vrot.slane %v1188, %v1195
        %v1198 = vunpack.c.l.s4 1983009808
        %v1199 = vunpack.c.0.s8 %v1198
        %v1200 = vlaneseq
        %v1201 = vshrl.u32 %v1200, 7
        %v1202 = vsub.s32 %v1199, %v1201
        %v1203 = vrot.slane %v1189, %v1202
        %v1204 = vcombine.low %v583, %v587
        %v1205 = vcombine.high %v583, %v587
        %v1207 = vunpack.c.l.s4 1983009808
        %v1208 = vunpack.c.0.s8 %v1207
        %v1209 = vlaneseq
        %v1210 = vshrl.u32 %v1209, 7
        %v1211 = vsub.s32 %v1208, %v1210
        %v1212 = vrot.slane %v1204, %v1211
        %v1214 = vunpack.c.l.s4 1983009808
        %v1215 = vunpack.c.0.s8 %v1214
        %v1216 = vlaneseq
        %v1217 = vshrl.u32 %v1216, 7
        %v1218 = vsub.s32 %v1215, %v1217
        %v1219 = vrot.slane %v1205, %v1218
        %v1220 = vcombine.low %v589, %v593
        %v1221 = vcombine.high %v589, %v593
        %v1223 = vunpack.c.l.s4 1983009808
        %v1224 = vunpack.c.0.s8 %v1223
        %v1225 = vlaneseq
        %v1226 = vshrl.u32 %v1225, 7
        %v1227 = vsub.s32 %v1224, %v1226
        %v1228 = vrot.slane %v1220, %v1227
        %v1230 = vunpack.c.l.s4 1983009808
        %v1231 = vunpack.c.0.s8 %v1230
        %v1232 = vlaneseq
        %v1233 = vshrl.u32 %v1232, 7
        %v1234 = vsub.s32 %v1231, %v1233
        %v1235 = vrot.slane %v1221, %v1234
        %v1236 = vcombine.low %v591, %v595
        %v1237 = vcombine.high %v591, %v595
        %v1239 = vunpack.c.l.s4 1983009808
        %v1240 = vunpack.c.0.s8 %v1239
        %v1241 = vlaneseq
        %v1242 = vshrl.u32 %v1241, 7
        %v1243 = vsub.s32 %v1240, %v1242
        %v1244 = vrot.slane %v1236, %v1243
        %v1246 = vunpack.c.l.s4 1983009808
        %v1247 = vunpack.c.0.s8 %v1246
        %v1248 = vlaneseq
        %v1249 = vshrl.u32 %v1248, 7
        %v1250 = vsub.s32 %v1247, %v1249
        %v1251 = vrot.slane %v1237, %v1250
        %v1252 = vcombine.low %v1196, %v1212
        %v1253 = vcombine.high %v1196, %v1212
        %v1255 = vunpack.c.l.s4 1934713408
        %v1256 = vunpack.c.0.s8 %v1255
        %v1257 = vlaneseq
        %v1258 = vshrl.u32 %v1257, 7
        %v1259 = vsub.s32 %v1256, %v1258
        %v1260 = vrot.slane %v1252, %v1259
        %v1262 = vunpack.c.l.s4 1934713408
        %v1263 = vunpack.c.0.s8 %v1262
        %v1264 = vlaneseq
        %v1265 = vshrl.u32 %v1264, 7
        %v1266 = vsub.s32 %v1263, %v1265
        %v1267 = vrot.slane %v1253, %v1266
        %v1268 = vcombine.low %v1203, %v1219
        %v1269 = vcombine.high %v1203, %v1219
        %v1271 = vunpack.c.l.s4 1934713408
        %v1272 = vunpack.c.0.s8 %v1271
        %v1273 = vlaneseq
        %v1274 = vshrl.u32 %v1273, 7
        %v1275 = vsub.s32 %v1272, %v1274
        %v1276 = vrot.slane %v1268, %v1275
        %v1278 = vunpack.c.l.s4 1934713408
        %v1279 = vunpack.c.0.s8 %v1278
        %v1280 = vlaneseq
        %v1281 = vshrl.u32 %v1280, 7
        %v1282 = vsub.s32 %v1279, %v1281
        %v1283 = vrot.slane %v1269, %v1282
        %v1284 = vcombine.low %v1228, %v1244
        %v1285 = vcombine.high %v1228, %v1244
        %v1287 = vunpack.c.l.s4 1934713408
        %v1288 = vunpack.c.0.s8 %v1287
        %v1289 = vlaneseq
        %v1290 = vshrl.u32 %v1289, 7
        %v1291 = vsub.s32 %v1288, %v1290
        %v1292 = vrot.slane %v1284, %v1291
        %v1294 = vunpack.c.l.s4 1934713408
        %v1295 = vunpack.c.0.s8 %v1294
        %v1296 = vlaneseq
        %v1297 = vshrl.u32 %v1296, 7
        %v1298 = vsub.s32 %v1295, %v1297
        %v1299 = vrot.slane %v1285, %v1298
        %v1300 = vcombine.low %v1235, %v1251
        %v1301 = vcombine.high %v1235, %v1251
        %v1303 = vunpack.c.l.s4 1934713408
        %v1304 = vunpack.c.0.s8 %v1303
        %v1305 = vlaneseq
        %v1306 = vshrl.u32 %v1305, 7
        %v1307 = vsub.s32 %v1304, %v1306
        %v1308 = vrot.slane %v1300, %v1307
        %v1310 = vunpack.c.l.s4 1934713408
        %v1311 = vunpack.c.0.s8 %v1310
        %v1312 = vlaneseq
        %v1313 = vshrl.u32 %v1312, 7
        %v1314 = vsub.s32 %v1311, %v1313
        %v1315 = vrot.slane %v1301, %v1314
        %v1316 = vcombine.low %v1260, %v1292
        %v1317 = vcombine.high %v1260, %v1292
        %v1318 = vcombine.low %v1267, %v1299
        %v1319 = vcombine.high %v1267, %v1299
        %v1320 = vcombine.low %v1276, %v1308
        %v1321 = vcombine.high %v1276, %v1308
        %v1322 = vcombine.low %v1283, %v1315
        %v1323 = vcombine.high %v1283, %v1315
        %v1324 = vcombine.low %v597, %v601
        %v1325 = vcombine.high %v597, %v601
        %v1327 = vunpack.c.l.s4 1983009808
        %v1328 = vunpack.c.0.s8 %v1327
        %v1329 = vlaneseq
        %v1330 = vshrl.u32 %v1329, 7
        %v1331 = vsub.s32 %v1328, %v1330
        %v1332 = vrot.slane %v1324, %v1331
        %v1334 = vunpack.c.l.s4 1983009808
        %v1335 = vunpack.c.0.s8 %v1334
        %v1336 = vlaneseq
        %v1337 = vshrl.u32 %v1336, 7
        %v1338 = vsub.s32 %v1335, %v1337
        %v1339 = vrot.slane %v1325, %v1338
        %v1340 = vcombine.low %v599, %v603
        %v1341 = vcombine.high %v599, %v603
        %v1343 = vunpack.c.l.s4 1983009808
        %v1344 = vunpack.c.0.s8 %v1343
        %v1345 = vlaneseq
        %v1346 = vshrl.u32 %v1345, 7
        %v1347 = vsub.s32 %v1344, %v1346
        %v1348 = vrot.slane %v1340, %v1347
        %v1350 = vunpack.c.l.s4 1983009808
        %v1351 = vunpack.c.0.s8 %v1350
        %v1352 = vlaneseq
        %v1353 = vshrl.u32 %v1352, 7
        %v1354 = vsub.s32 %v1351, %v1353
        %v1355 = vrot.slane %v1341, %v1354
        %v1356 = vcombine.low %v605, %v609
        %v1357 = vcombine.high %v605, %v609
        %v1359 = vunpack.c.l.s4 1983009808
        %v1360 = vunpack.c.0.s8 %v1359
        %v1361 = vlaneseq
        %v1362 = vshrl.u32 %v1361, 7
        %v1363 = vsub.s32 %v1360, %v1362
        %v1364 = vrot.slane %v1356, %v1363
        %v1366 = vunpack.c.l.s4 1983009808
        %v1367 = vunpack.c.0.s8 %v1366
        %v1368 = vlaneseq
        %v1369 = vshrl.u32 %v1368, 7
        %v1370 = vsub.s32 %v1367, %v1369
        %v1371 = vrot.slane %v1357, %v1370
        %v1372 = vcombine.low %v607, %v611
        %v1373 = vcombine.high %v607, %v611
        %v1375 = vunpack.c.l.s4 1983009808
        %v1376 = vunpack.c.0.s8 %v1375
        %v1377 = vlaneseq
        %v1378 = vshrl.u32 %v1377, 7
        %v1379 = vsub.s32 %v1376, %v1378
        %v1380 = vrot.slane %v1372, %v1379
        %v1382 = vunpack.c.l.s4 1983009808
        %v1383 = vunpack.c.0.s8 %v1382
        %v1384 = vlaneseq
        %v1385 = vshrl.u32 %v1384, 7
        %v1386 = vsub.s32 %v1383, %v1385
        %v1387 = vrot.slane %v1373, %v1386
        %v1388 = vcombine.low %v1332, %v1348
        %v1389 = vcombine.high %v1332, %v1348
        %v1391 = vunpack.c.l.s4 1934713408
        %v1392 = vunpack.c.0.s8 %v1391
        %v1393 = vlaneseq
        %v1394 = vshrl.u32 %v1393, 7
        %v1395 = vsub.s32 %v1392, %v1394
        %v1396 = vrot.slane %v1388, %v1395
        %v1398 = vunpack.c.l.s4 1934713408
        %v1399 = vunpack.c.0.s8 %v1398
        %v1400 = vlaneseq
        %v1401 = vshrl.u32 %v1400, 7
        %v1402 = vsub.s32 %v1399, %v1401
        %v1403 = vrot.slane %v1389, %v1402
        %v1404 = vcombine.low %v1339, %v1355
        %v1405 = vcombine.high %v1339, %v1355
        %v1407 = vunpack.c.l.s4 1934713408
        %v1408 = vunpack.c.0.s8 %v1407
        %v1409 = vlaneseq
        %v1410 = vshrl.u32 %v1409, 7
        %v1411 = vsub.s32 %v1408, %v1410
        %v1412 = vrot.slane %v1404, %v1411
        %v1414 = vunpack.c.l.s4 1934713408
        %v1415 = vunpack.c.0.s8 %v1414
        %v1416 = vlaneseq
        %v1417 = vshrl.u32 %v1416, 7
        %v1418 = vsub.s32 %v1415, %v1417
        %v1419 = vrot.slane %v1405, %v1418
        %v1420 = vcombine.low %v1364, %v1380
        %v1421 = vcombine.high %v1364, %v1380
        %v1423 = vunpack.c.l.s4 1934713408
        %v1424 = vunpack.c.0.s8 %v1423
        %v1425 = vlaneseq
        %v1426 = vshrl.u32 %v1425, 7
        %v1427 = vsub.s32 %v1424, %v1426
        %v1428 = vrot.slane %v1420, %v1427
        %v1430 = vunpack.c.l.s4 1934713408
        %v1431 = vunpack.c.0.s8 %v1430
        %v1432 = vlaneseq
        %v1433 = vshrl.u32 %v1432, 7
        %v1434 = vsub.s32 %v1431, %v1433
        %v1435 = vrot.slane %v1421, %v1434
        %v1436 = vcombine.low %v1371, %v1387
        %v1437 = vcombine.high %v1371, %v1387
        %v1439 = vunpack.c.l.s4 1934713408
        %v1440 = vunpack.c.0.s8 %v1439
        %v1441 = vlaneseq
        %v1442 = vshrl.u32 %v1441, 7
        %v1443 = vsub.s32 %v1440, %v1442
        %v1444 = vrot.slane %v1436, %v1443
        %v1446 = vunpack.c.l.s4 1934713408
        %v1447 = vunpack.c.0.s8 %v1446
        %v1448 = vlaneseq
        %v1449 = vshrl.u32 %v1448, 7
        %v1450 = vsub.s32 %v1447, %v1449
        %v1451 = vrot.slane %v1437, %v1450
        %v1452 = vcombine.low %v1396, %v1428
        %v1453 = vcombine.high %v1396, %v1428
        %v1454 = vcombine.low %v1403, %v1435
        %v1455 = vcombine.high %v1403, %v1435
        %v1456 = vcombine.low %v1412, %v1444
        %v1457 = vcombine.high %v1412, %v1444
        %v1458 = vcombine.low %v1419, %v1451
        %v1459 = vcombine.high %v1419, %v1451
        %v1460 = vcombine.low %v613, %v617
        %v1461 = vcombine.high %v613, %v617
        %v1463 = vunpack.c.l.s4 1983009808
        %v1464 = vunpack.c.0.s8 %v1463
        %v1465 = vlaneseq
        %v1466 = vshrl.u32 %v1465, 7
        %v1467 = vsub.s32 %v1464, %v1466
        %v1468 = vrot.slane %v1460, %v1467
        %v1470 = vunpack.c.l.s4 1983009808
        %v1471 = vunpack.c.0.s8 %v1470
        %v1472 = vlaneseq
        %v1473 = vshrl.u32 %v1472, 7
        %v1474 = vsub.s32 %v1471, %v1473
        %v1475 = vrot.slane %v1461, %v1474
        %v1476 = vcombine.low %v615, %v619
        %v1477 = vcombine.high %v615, %v619
        %v1479 = vunpack.c.l.s4 1983009808
        %v1480 = vunpack.c.0.s8 %v1479
        %v1481 = vlaneseq
        %v1482 = vshrl.u32 %v1481, 7
        %v1483 = vsub.s32 %v1480, %v1482
        %v1484 = vrot.slane %v1476, %v1483
        %v1486 = vunpack.c.l.s4 1983009808
        %v1487 = vunpack.c.0.s8 %v1486
        %v1488 = vlaneseq
        %v1489 = vshrl.u32 %v1488, 7
        %v1490 = vsub.s32 %v1487, %v1489
        %v1491 = vrot.slane %v1477, %v1490
        %v1492 = vcombine.low %v621, %v625
        %v1493 = vcombine.high %v621, %v625
        %v1495 = vunpack.c.l.s4 1983009808
        %v1496 = vunpack.c.0.s8 %v1495
        %v1497 = vlaneseq
        %v1498 = vshrl.u32 %v1497, 7
        %v1499 = vsub.s32 %v1496, %v1498
        %v1500 = vrot.slane %v1492, %v1499
        %v1502 = vunpack.c.l.s4 1983009808
        %v1503 = vunpack.c.0.s8 %v1502
        %v1504 = vlaneseq
        %v1505 = vshrl.u32 %v1504, 7
        %v1506 = vsub.s32 %v1503, %v1505
        %v1507 = vrot.slane %v1493, %v1506
        %v1508 = vcombine.low %v623, %v627
        %v1509 = vcombine.high %v623, %v627
        %v1511 = vunpack.c.l.s4 1983009808
        %v1512 = vunpack.c.0.s8 %v1511
        %v1513 = vlaneseq
        %v1514 = vshrl.u32 %v1513, 7
        %v1515 = vsub.s32 %v1512, %v1514
        %v1516 = vrot.slane %v1508, %v1515
        %v1518 = vunpack.c.l.s4 1983009808
        %v1519 = vunpack.c.0.s8 %v1518
        %v1520 = vlaneseq
        %v1521 = vshrl.u32 %v1520, 7
        %v1522 = vsub.s32 %v1519, %v1521
        %v1523 = vrot.slane %v1509, %v1522
        %v1524 = vcombine.low %v1468, %v1484
        %v1525 = vcombine.high %v1468, %v1484
        %v1527 = vunpack.c.l.s4 1934713408
        %v1528 = vunpack.c.0.s8 %v1527
        %v1529 = vlaneseq
        %v1530 = vshrl.u32 %v1529, 7
        %v1531 = vsub.s32 %v1528, %v1530
        %v1532 = vrot.slane %v1524, %v1531
        %v1534 = vunpack.c.l.s4 1934713408
        %v1535 = vunpack.c.0.s8 %v1534
        %v1536 = vlaneseq
        %v1537 = vshrl.u32 %v1536, 7
        %v1538 = vsub.s32 %v1535, %v1537
        %v1539 = vrot.slane %v1525, %v1538
        %v1540 = vcombine.low %v1475, %v1491
        %v1541 = vcombine.high %v1475, %v1491
        %v1543 = vunpack.c.l.s4 1934713408
        %v1544 = vunpack.c.0.s8 %v1543
        %v1545 = vlaneseq
        %v1546 = vshrl.u32 %v1545, 7
        %v1547 = vsub.s32 %v1544, %v1546
        %v1548 = vrot.slane %v1540, %v1547
        %v1550 = vunpack.c.l.s4 1934713408
        %v1551 = vunpack.c.0.s8 %v1550
        %v1552 = vlaneseq
        %v1553 = vshrl.u32 %v1552, 7
        %v1554 = vsub.s32 %v1551, %v1553
        %v1555 = vrot.slane %v1541, %v1554
        %v1556 = vcombine.low %v1500, %v1516
        %v1557 = vcombine.high %v1500, %v1516
        %v1559 = vunpack.c.l.s4 1934713408
        %v1560 = vunpack.c.0.s8 %v1559
        %v1561 = vlaneseq
        %v1562 = vshrl.u32 %v1561, 7
        %v1563 = vsub.s32 %v1560, %v1562
        %v1564 = vrot.slane %v1556, %v1563
        %v1566 = vunpack.c.l.s4 1934713408
        %v1567 = vunpack.c.0.s8 %v1566
        %v1568 = vlaneseq
        %v1569 = vshrl.u32 %v1568, 7
        %v1570 = vsub.s32 %v1567, %v1569
        %v1571 = vrot.slane %v1557, %v1570
        %v1572 = vcombine.low %v1507, %v1523
        %v1573 = vcombine.high %v1507, %v1523
        %v1575 = vunpack.c.l.s4 1934713408
        %v1576 = vunpack.c.0.s8 %v1575
        %v1577 = vlaneseq
        %v1578 = vshrl.u32 %v1577, 7
        %v1579 = vsub.s32 %v1576, %v1578
        %v1580 = vrot.slane %v1572, %v1579
        %v1582 = vunpack.c.l.s4 1934713408
        %v1583 = vunpack.c.0.s8 %v1582
        %v1584 = vlaneseq
        %v1585 = vshrl.u32 %v1584, 7
        %v1586 = vsub.s32 %v1583, %v1585
        %v1587 = vrot.slane %v1573, %v1586
        %v1588 = vcombine.low %v1532, %v1564
        %v1589 = vcombine.high %v1532, %v1564
        %v1590 = vcombine.low %v1539, %v1571
        %v1591 = vcombine.high %v1539, %v1571
        %v1592 = vcombine.low %v1548, %v1580
        %v1593 = vcombine.high %v1548, %v1580
        %v1594 = vcombine.low %v1555, %v1587
        %v1595 = vcombine.high %v1555, %v1587
        %v1596 = vcombine.low %v629, %v633
        %v1597 = vcombine.high %v629, %v633
        %v1599 = vunpack.c.l.s4 1983009808
        %v1600 = vunpack.c.0.s8 %v1599
        %v1601 = vlaneseq
        %v1602 = vshrl.u32 %v1601, 7
        %v1603 = vsub.s32 %v1600, %v1602
        %v1604 = vrot.slane %v1596, %v1603
        %v1606 = vunpack.c.l.s4 1983009808
        %v1607 = vunpack.c.0.s8 %v1606
        %v1608 = vlaneseq
        %v1609 = vshrl.u32 %v1608, 7
        %v1610 = vsub.s32 %v1607, %v1609
        %v1611 = vrot.slane %v1597, %v1610
        %v1612 = vcombine.low %v631, %v635
        %v1613 = vcombine.high %v631, %v635
        %v1615 = vunpack.c.l.s4 1983009808
        %v1616 = vunpack.c.0.s8 %v1615
        %v1617 = vlaneseq
        %v1618 = vshrl.u32 %v1617, 7
        %v1619 = vsub.s32 %v1616, %v1618
        %v1620 = vrot.slane %v1612, %v1619
        %v1622 = vunpack.c.l.s4 1983009808
        %v1623 = vunpack.c.0.s8 %v1622
        %v1624 = vlaneseq
        %v1625 = vshrl.u32 %v1624, 7
        %v1626 = vsub.s32 %v1623, %v1625
        %v1627 = vrot.slane %v1613, %v1626
        %v1628 = vcombine.low %v637, %v641
        %v1629 = vcombine.high %v637, %v641
        %v1631 = vunpack.c.l.s4 1983009808
        %v1632 = vunpack.c.0.s8 %v1631
        %v1633 = vlaneseq
        %v1634 = vshrl.u32 %v1633, 7
        %v1635 = vsub.s32 %v1632, %v1634
        %v1636 = vrot.slane %v1628, %v1635
        %v1638 = vunpack.c.l.s4 1983009808
        %v1639 = vunpack.c.0.s8 %v1638
        %v1640 = vlaneseq
        %v1641 = vshrl.u32 %v1640, 7
        %v1642 = vsub.s32 %v1639, %v1641
        %v1643 = vrot.slane %v1629, %v1642
        %v1644 = vcombine.low %v639, %v643
        %v1645 = vcombine.high %v639, %v643
        %v1647 = vunpack.c.l.s4 1983009808
        %v1648 = vunpack.c.0.s8 %v1647
        %v1649 = vlaneseq
        %v1650 = vshrl.u32 %v1649, 7
        %v1651 = vsub.s32 %v1648, %v1650
        %v1652 = vrot.slane %v1644, %v1651
        %v1654 = vunpack.c.l.s4 1983009808
        %v1655 = vunpack.c.0.s8 %v1654
        %v1656 = vlaneseq
        %v1657 = vshrl.u32 %v1656, 7
        %v1658 = vsub.s32 %v1655, %v1657
        %v1659 = vrot.slane %v1645, %v1658
        %v1660 = vcombine.low %v1604, %v1620
        %v1661 = vcombine.high %v1604, %v1620
        %v1663 = vunpack.c.l.s4 1934713408
        %v1664 = vunpack.c.0.s8 %v1663
        %v1665 = vlaneseq
        %v1666 = vshrl.u32 %v1665, 7
        %v1667 = vsub.s32 %v1664, %v1666
        %v1668 = vrot.slane %v1660, %v1667
        %v1670 = vunpack.c.l.s4 1934713408
        %v1671 = vunpack.c.0.s8 %v1670
        %v1672 = vlaneseq
        %v1673 = vshrl.u32 %v1672, 7
        %v1674 = vsub.s32 %v1671, %v1673
        %v1675 = vrot.slane %v1661, %v1674
        %v1676 = vcombine.low %v1611, %v1627
        %v1677 = vcombine.high %v1611, %v1627
        %v1679 = vunpack.c.l.s4 1934713408
        %v1680 = vunpack.c.0.s8 %v1679
        %v1681 = vlaneseq
        %v1682 = vshrl.u32 %v1681, 7
        %v1683 = vsub.s32 %v1680, %v1682
        %v1684 = vrot.slane %v1676, %v1683
        %v1686 = vunpack.c.l.s4 1934713408
        %v1687 = vunpack.c.0.s8 %v1686
        %v1688 = vlaneseq
        %v1689 = vshrl.u32 %v1688, 7
        %v1690 = vsub.s32 %v1687, %v1689
        %v1691 = vrot.slane %v1677, %v1690
        %v1692 = vcombine.low %v1636, %v1652
        %v1693 = vcombine.high %v1636, %v1652
        %v1695 = vunpack.c.l.s4 1934713408
        %v1696 = vunpack.c.0.s8 %v1695
        %v1697 = vlaneseq
        %v1698 = vshrl.u32 %v1697, 7
        %v1699 = vsub.s32 %v1696, %v1698
        %v1700 = vrot.slane %v1692, %v1699
        %v1702 = vunpack.c.l.s4 1934713408
        %v1703 = vunpack.c.0.s8 %v1702
        %v1704 = vlaneseq
        %v1705 = vshrl.u32 %v1704, 7
        %v1706 = vsub.s32 %v1703, %v1705
        %v1707 = vrot.slane %v1693, %v1706
        %v1708 = vcombine.low %v1643, %v1659
        %v1709 = vcombine.high %v1643, %v1659
        %v1711 = vunpack.c.l.s4 1934713408
        %v1712 = vunpack.c.0.s8 %v1711
        %v1713 = vlaneseq
        %v1714 = vshrl.u32 %v1713, 7
        %v1715 = vsub.s32 %v1712, %v1714
        %v1716 = vrot.slane %v1708, %v1715
        %v1718 = vunpack.c.l.s4 1934713408
        %v1719 = vunpack.c.0.s8 %v1718
        %v1720 = vlaneseq
        %v1721 = vshrl.u32 %v1720, 7
        %v1722 = vsub.s32 %v1719, %v1721
        %v1723 = vrot.slane %v1709, %v1722
        %v1724 = vcombine.low %v1668, %v1700
        %v1725 = vcombine.high %v1668, %v1700
        %v1726 = vcombine.low %v1675, %v1707
        %v1727 = vcombine.high %v1675, %v1707
        %v1728 = vcombine.low %v1684, %v1716
        %v1729 = vcombine.high %v1684, %v1716
        %v1730 = vcombine.low %v1691, %v1723
        %v1731 = vcombine.high %v1691, %v1723
        %vm1732 = vcmask 261120
        %v1733 = vsel %vm1732, %v772, 0.0
        %1734 = vadd.xlane.f32.xlu0 %v1733
        %v1735 = vpop.xlane.xlu0 %1734
        %v1736 = vsel %vm1732, %v908, 0.0
        %1737 = vadd.xlane.f32.xlu0 %v1736
        %v1738 = vpop.xlane.xlu0 %1737
        %v1739 = vsel %vm1732, %v1044, 0.0
        %1740 = vadd.xlane.f32.xlu0 %v1739
        %v1741 = vpop.xlane.xlu0 %1740
        %v1742 = vsel %vm1732, %v1180, 0.0
        %1743 = vadd.xlane.f32.xlu0 %v1742
        %v1744 = vpop.xlane.xlu0 %1743
        %v1745 = vsel %vm1732, %v773, 0.0
        %1746 = vadd.xlane.f32.xlu0 %v1745
        %v1747 = vpop.xlane.xlu0 %1746
        %v1748 = vsel %vm1732, %v909, 0.0
        %1749 = vadd.xlane.f32.xlu0 %v1748
        %v1750 = vpop.xlane.xlu0 %1749
        %v1751 = vsel %vm1732, %v1045, 0.0
        %1752 = vadd.xlane.f32.xlu0 %v1751
        %v1753 = vpop.xlane.xlu0 %1752
        %v1754 = vsel %vm1732, %v1181, 0.0
        %1755 = vadd.xlane.f32.xlu0 %v1754
        %v1756 = vpop.xlane.xlu0 %1755
        %v1757 = vsel %vm1732, %v774, 0.0
        %1758 = vadd.xlane.f32.xlu0 %v1757
        %v1759 = vpop.xlane.xlu0 %1758
        %v1760 = vsel %vm1732, %v910, 0.0
        %1761 = vadd.xlane.f32.xlu0 %v1760
        %v1762 = vpop.xlane.xlu0 %1761
        %v1763 = vsel %vm1732, %v1046, 0.0
        %1764 = vadd.xlane.f32.xlu0 %v1763
        %v1765 = vpop.xlane.xlu0 %1764
        %v1766 = vsel %vm1732, %v1182, 0.0
        %1767 = vadd.xlane.f32.xlu0 %v1766
        %v1768 = vpop.xlane.xlu0 %1767
        %v1769 = vsel %vm1732, %v775, 0.0
        %1770 = vadd.xlane.f32.xlu0 %v1769
        %v1771 = vpop.xlane.xlu0 %1770
        %v1772 = vsel %vm1732, %v911, 0.0
        %1773 = vadd.xlane.f32.xlu0 %v1772
        %v1774 = vpop.xlane.xlu0 %1773
        %v1775 = vsel %vm1732, %v1047, 0.0
        %1776 = vadd.xlane.f32.xlu0 %v1775
        %v1777 = vpop.xlane.xlu0 %1776
        %v1778 = vsel %vm1732, %v1183, 0.0
        %1779 = vadd.xlane.f32.xlu0 %v1778
        %v1780 = vpop.xlane.xlu0 %1779
        %v1781 = vsel %vm1732, %v776, 0.0
        %1782 = vadd.xlane.f32.xlu0 %v1781
        %v1783 = vpop.xlane.xlu0 %1782
        %v1784 = vsel %vm1732, %v912, 0.0
        %1785 = vadd.xlane.f32.xlu0 %v1784
        %v1786 = vpop.xlane.xlu0 %1785
        %v1787 = vsel %vm1732, %v1048, 0.0
        %1788 = vadd.xlane.f32.xlu0 %v1787
        %v1789 = vpop.xlane.xlu0 %1788
        %v1790 = vsel %vm1732, %v1184, 0.0
        %1791 = vadd.xlane.f32.xlu0 %v1790
        %v1792 = vpop.xlane.xlu0 %1791
        %v1793 = vsel %vm1732, %v777, 0.0
        %1794 = vadd.xlane.f32.xlu0 %v1793
        %v1795 = vpop.xlane.xlu0 %1794
        %v1796 = vsel %vm1732, %v913, 0.0
        %1797 = vadd.xlane.f32.xlu0 %v1796
        %v1798 = vpop.xlane.xlu0 %1797
        %v1799 = vsel %vm1732, %v1049, 0.0
        %1800 = vadd.xlane.f32.xlu0 %v1799
        %v1801 = vpop.xlane.xlu0 %1800
        %v1802 = vsel %vm1732, %v1185, 0.0
        %1803 = vadd.xlane.f32.xlu0 %v1802
        %v1804 = vpop.xlane.xlu0 %1803
        %v1805 = vsel %vm1732, %v778, 0.0
        %1806 = vadd.xlane.f32.xlu0 %v1805
        %v1807 = vpop.xlane.xlu0 %1806
        %v1808 = vsel %vm1732, %v914, 0.0
        %1809 = vadd.xlane.f32.xlu0 %v1808
        %v1810 = vpop.xlane.xlu0 %1809
        %v1811 = vsel %vm1732, %v1050, 0.0
        %1812 = vadd.xlane.f32.xlu0 %v1811
        %v1813 = vpop.xlane.xlu0 %1812
        %v1814 = vsel %vm1732, %v1186, 0.0
        %1815 = vadd.xlane.f32.xlu0 %v1814
        %v1816 = vpop.xlane.xlu0 %1815
        %v1817 = vsel %vm1732, %v779, 0.0
        %1818 = vadd.xlane.f32.xlu0 %v1817
        %v1819 = vpop.xlane.xlu0 %1818
        %v1820 = vsel %vm1732, %v915, 0.0
        %1821 = vadd.xlane.f32.xlu0 %v1820
        %v1822 = vpop.xlane.xlu0 %1821
        %v1823 = vsel %vm1732, %v1051, 0.0
        %1824 = vadd.xlane.f32.xlu0 %v1823
        %v1825 = vpop.xlane.xlu0 %1824
        %v1826 = vsel %vm1732, %v1187, 0.0
        %1827 = vadd.xlane.f32.xlu0 %v1826
        %v1828 = vpop.xlane.xlu0 %1827
        %v1829 = vsel %vm1732, %v1316, 0.0
        %1830 = vadd.xlane.f32.xlu0 %v1829
        %v1831 = vpop.xlane.xlu0 %1830
        %v1832 = vsel %vm1732, %v1452, 0.0
        %1833 = vadd.xlane.f32.xlu0 %v1832
        %v1834 = vpop.xlane.xlu0 %1833
        %v1835 = vsel %vm1732, %v1588, 0.0
        %1836 = vadd.xlane.f32.xlu0 %v1835
        %v1837 = vpop.xlane.xlu0 %1836
        %v1838 = vsel %vm1732, %v1724, 0.0
        %1839 = vadd.xlane.f32.xlu0 %v1838
        %v1840 = vpop.xlane.xlu0 %1839
        %v1841 = vsel %vm1732, %v1317, 0.0
        %1842 = vadd.xlane.f32.xlu0 %v1841
        %v1843 = vpop.xlane.xlu0 %1842
        %v1844 = vsel %vm1732, %v1453, 0.0
        %1845 = vadd.xlane.f32.xlu0 %v1844
        %v1846 = vpop.xlane.xlu0 %1845
        %v1847 = vsel %vm1732, %v1589, 0.0
        %1848 = vadd.xlane.f32.xlu0 %v1847
        %v1849 = vpop.xlane.xlu0 %1848
        %v1850 = vsel %vm1732, %v1725, 0.0
        %1851 = vadd.xlane.f32.xlu0 %v1850
        %v1852 = vpop.xlane.xlu0 %1851
        %v1853 = vsel %vm1732, %v1318, 0.0
        %1854 = vadd.xlane.f32.xlu0 %v1853
        %v1855 = vpop.xlane.xlu0 %1854
        %v1856 = vsel %vm1732, %v1454, 0.0
        %1857 = vadd.xlane.f32.xlu0 %v1856
        %v1858 = vpop.xlane.xlu0 %1857
        %v1859 = vsel %vm1732, %v1590, 0.0
        %1860 = vadd.xlane.f32.xlu0 %v1859
        %v1861 = vpop.xlane.xlu0 %1860
        %v1862 = vsel %vm1732, %v1726, 0.0
        %1863 = vadd.xlane.f32.xlu0 %v1862
        %v1864 = vpop.xlane.xlu0 %1863
        %v1865 = vsel %vm1732, %v1319, 0.0
        %1866 = vadd.xlane.f32.xlu0 %v1865
        %v1867 = vpop.xlane.xlu0 %1866
        %v1868 = vsel %vm1732, %v1455, 0.0
        %1869 = vadd.xlane.f32.xlu0 %v1868
        %v1870 = vpop.xlane.xlu0 %1869
        %v1871 = vsel %vm1732, %v1591, 0.0
        %1872 = vadd.xlane.f32.xlu0 %v1871
        %v1873 = vpop.xlane.xlu0 %1872
        %v1874 = vsel %vm1732, %v1727, 0.0
        %1875 = vadd.xlane.f32.xlu0 %v1874
        %v1876 = vpop.xlane.xlu0 %1875
        %v1877 = vsel %vm1732, %v1320, 0.0
        %1878 = vadd.xlane.f32.xlu0 %v1877
        %v1879 = vpop.xlane.xlu0 %1878
        %v1880 = vsel %vm1732, %v1456, 0.0
        %1881 = vadd.xlane.f32.xlu0 %v1880
        %v1882 = vpop.xlane.xlu0 %1881
        %v1883 = vsel %vm1732, %v1592, 0.0
        %1884 = vadd.xlane.f32.xlu0 %v1883
        %v1885 = vpop.xlane.xlu0 %1884
        %v1886 = vsel %vm1732, %v1728, 0.0
        %1887 = vadd.xlane.f32.xlu0 %v1886
        %v1888 = vpop.xlane.xlu0 %1887
        %v1889 = vsel %vm1732, %v1321, 0.0
        %1890 = vadd.xlane.f32.xlu0 %v1889
        %v1891 = vpop.xlane.xlu0 %1890
        %v1892 = vsel %vm1732, %v1457, 0.0
        %1893 = vadd.xlane.f32.xlu0 %v1892
        %v1894 = vpop.xlane.xlu0 %1893
        %v1895 = vsel %vm1732, %v1593, 0.0
        %1896 = vadd.xlane.f32.xlu0 %v1895
        %v1897 = vpop.xlane.xlu0 %1896
        %v1898 = vsel %vm1732, %v1729, 0.0
        %1899 = vadd.xlane.f32.xlu0 %v1898
        %v1900 = vpop.xlane.xlu0 %1899
        %v1901 = vsel %vm1732, %v1322, 0.0
        %1902 = vadd.xlane.f32.xlu0 %v1901
        %v1903 = vpop.xlane.xlu0 %1902
        %v1904 = vsel %vm1732, %v1458, 0.0
        %1905 = vadd.xlane.f32.xlu0 %v1904
        %v1906 = vpop.xlane.xlu0 %1905
        %v1907 = vsel %vm1732, %v1594, 0.0
        %1908 = vadd.xlane.f32.xlu0 %v1907
        %v1909 = vpop.xlane.xlu0 %1908
        %v1910 = vsel %vm1732, %v1730, 0.0
        %1911 = vadd.xlane.f32.xlu0 %v1910
        %v1912 = vpop.xlane.xlu0 %1911
        %v1913 = vsel %vm1732, %v1323, 0.0
        %1914 = vadd.xlane.f32.xlu0 %v1913
        %v1915 = vpop.xlane.xlu0 %1914
        %v1916 = vsel %vm1732, %v1459, 0.0
        %1917 = vadd.xlane.f32.xlu0 %v1916
        %v1918 = vpop.xlane.xlu0 %1917
        %v1919 = vsel %vm1732, %v1595, 0.0
        %1920 = vadd.xlane.f32.xlu0 %v1919
        %v1921 = vpop.xlane.xlu0 %1920
        %v1922 = vsel %vm1732, %v1731, 0.0
        %1923 = vadd.xlane.f32.xlu0 %v1922
        %v1924 = vpop.xlane.xlu0 %1923
        %v1925 = vrcp.pop 32.0
        %v1926 = vmul.f32 %v1735, %v1925
        %v1927 = vmul.f32 %v1738, %v1925
        %v1928 = vmul.f32 %v1741, %v1925
        %v1929 = vmul.f32 %v1744, %v1925
        %v1930 = vmul.f32 %v1747, %v1925
        %v1931 = vmul.f32 %v1750, %v1925
        %v1932 = vmul.f32 %v1753, %v1925
        %v1933 = vmul.f32 %v1756, %v1925
        %v1934 = vmul.f32 %v1759, %v1925
        %v1935 = vmul.f32 %v1762, %v1925
        %v1936 = vmul.f32 %v1765, %v1925
        %v1937 = vmul.f32 %v1768, %v1925
        %v1938 = vmul.f32 %v1771, %v1925
        %v1939 = vmul.f32 %v1774, %v1925
        %v1940 = vmul.f32 %v1777, %v1925
        %v1941 = vmul.f32 %v1780, %v1925
        %v1942 = vmul.f32 %v1783, %v1925
        %v1943 = vmul.f32 %v1786, %v1925
        %v1944 = vmul.f32 %v1789, %v1925
        %v1945 = vmul.f32 %v1792, %v1925
        %v1946 = vmul.f32 %v1795, %v1925
        %v1947 = vmul.f32 %v1798, %v1925
        %v1948 = vmul.f32 %v1801, %v1925
        %v1949 = vmul.f32 %v1804, %v1925
        %v1950 = vmul.f32 %v1807, %v1925
        %v1951 = vmul.f32 %v1810, %v1925
        %v1952 = vmul.f32 %v1813, %v1925
        %v1953 = vmul.f32 %v1816, %v1925
        %v1954 = vmul.f32 %v1819, %v1925
        %v1955 = vmul.f32 %v1822, %v1925
        %v1956 = vmul.f32 %v1825, %v1925
        %v1957 = vmul.f32 %v1828, %v1925
        %v1958 = vmul.f32 %v1831, %v1925
        %v1959 = vmul.f32 %v1834, %v1925
        %v1960 = vmul.f32 %v1837, %v1925
        %v1961 = vmul.f32 %v1840, %v1925
        %v1962 = vmul.f32 %v1843, %v1925
        %v1963 = vmul.f32 %v1846, %v1925
        %v1964 = vmul.f32 %v1849, %v1925
        %v1965 = vmul.f32 %v1852, %v1925
        %v1966 = vmul.f32 %v1855, %v1925
        %v1967 = vmul.f32 %v1858, %v1925
        %v1968 = vmul.f32 %v1861, %v1925
        %v1969 = vmul.f32 %v1864, %v1925
        %v1970 = vmul.f32 %v1867, %v1925
        %v1971 = vmul.f32 %v1870, %v1925
        %v1972 = vmul.f32 %v1873, %v1925
        %v1973 = vmul.f32 %v1876, %v1925
        %v1974 = vmul.f32 %v1879, %v1925
        %v1975 = vmul.f32 %v1882, %v1925
        %v1976 = vmul.f32 %v1885, %v1925
        %v1977 = vmul.f32 %v1888, %v1925
        %v1978 = vmul.f32 %v1891, %v1925
        %v1979 = vmul.f32 %v1894, %v1925
        %v1980 = vmul.f32 %v1897, %v1925
        %v1981 = vmul.f32 %v1900, %v1925
        %v1982 = vmul.f32 %v1903, %v1925
        %v1983 = vmul.f32 %v1906, %v1925
        %v1984 = vmul.f32 %v1909, %v1925
        %v1985 = vmul.f32 %v1912, %v1925
        %v1986 = vmul.f32 %v1915, %v1925
        %v1987 = vmul.f32 %v1918, %v1925
        %v1988 = vmul.f32 %v1921, %v1925
        %v1989 = vmul.f32 %v1924, %v1925
        %v1990 = vsub.f32 %v772, %v1926
        %v1991 = vsub.f32 %v908, %v1927
        %v1992 = vsub.f32 %v1044, %v1928
        %v1993 = vsub.f32 %v1180, %v1929
        %v1994 = vsub.f32 %v773, %v1930
        %v1995 = vsub.f32 %v909, %v1931
        %v1996 = vsub.f32 %v1045, %v1932
        %v1997 = vsub.f32 %v1181, %v1933
        %v1998 = vsub.f32 %v774, %v1934
        %v1999 = vsub.f32 %v910, %v1935
        %v2000 = vsub.f32 %v1046, %v1936
        %v2001 = vsub.f32 %v1182, %v1937
        %v2002 = vsub.f32 %v775, %v1938
        %v2003 = vsub.f32 %v911, %v1939
        %v2004 = vsub.f32 %v1047, %v1940
        %v2005 = vsub.f32 %v1183, %v1941
        %v2006 = vsub.f32 %v776, %v1942
        %v2007 = vsub.f32 %v912, %v1943
        %v2008 = vsub.f32 %v1048, %v1944
        %v2009 = vsub.f32 %v1184, %v1945
        %v2010 = vsub.f32 %v777, %v1946
        %v2011 = vsub.f32 %v913, %v1947
        %v2012 = vsub.f32 %v1049, %v1948
        %v2013 = vsub.f32 %v1185, %v1949
        %v2014 = vsub.f32 %v778, %v1950
        %v2015 = vsub.f32 %v914, %v1951
        %v2016 = vsub.f32 %v1050, %v1952
        %v2017 = vsub.f32 %v1186, %v1953
        %v2018 = vsub.f32 %v779, %v1954
        %v2019 = vsub.f32 %v915, %v1955
        %v2020 = vsub.f32 %v1051, %v1956
        %v2021 = vsub.f32 %v1187, %v1957
        %v2022 = vsub.f32 %v1316, %v1958
        %v2023 = vsub.f32 %v1452, %v1959
        %v2024 = vsub.f32 %v1588, %v1960
        %v2025 = vsub.f32 %v1724, %v1961
        %v2026 = vsub.f32 %v1317, %v1962
        %v2027 = vsub.f32 %v1453, %v1963
        %v2028 = vsub.f32 %v1589, %v1964
        %v2029 = vsub.f32 %v1725, %v1965
        %v2030 = vsub.f32 %v1318, %v1966
        %v2031 = vsub.f32 %v1454, %v1967
        %v2032 = vsub.f32 %v1590, %v1968
        %v2033 = vsub.f32 %v1726, %v1969
        %v2034 = vsub.f32 %v1319, %v1970
        %v2035 = vsub.f32 %v1455, %v1971
        %v2036 = vsub.f32 %v1591, %v1972
        %v2037 = vsub.f32 %v1727, %v1973
        %v2038 = vsub.f32 %v1320, %v1974
        %v2039 = vsub.f32 %v1456, %v1975
        %v2040 = vsub.f32 %v1592, %v1976
        %v2041 = vsub.f32 %v1728, %v1977
        %v2042 = vsub.f32 %v1321, %v1978
        %v2043 = vsub.f32 %v1457, %v1979
        %v2044 = vsub.f32 %v1593, %v1980
        %v2045 = vsub.f32 %v1729, %v1981
        %v2046 = vsub.f32 %v1322, %v1982
        %v2047 = vsub.f32 %v1458, %v1983
        %v2048 = vsub.f32 %v1594, %v1984
        %v2049 = vsub.f32 %v1730, %v1985
        %v2050 = vsub.f32 %v1323, %v1986
        %v2051 = vsub.f32 %v1459, %v1987
        %v2052 = vsub.f32 %v1595, %v1988
        %v2053 = vsub.f32 %v1731, %v1989
        %v2054 = vmul.f32 %v1990, %v1990
        %v2055 = vmul.f32 %v1991, %v1991
        %v2056 = vmul.f32 %v1992, %v1992
        %v2057 = vmul.f32 %v1993, %v1993
        %v2058 = vmul.f32 %v1994, %v1994
        %v2059 = vmul.f32 %v1995, %v1995
        %v2060 = vmul.f32 %v1996, %v1996
        %v2061 = vmul.f32 %v1997, %v1997
        %v2062 = vmul.f32 %v1998, %v1998
        %v2063 = vmul.f32 %v1999, %v1999
        %v2064 = vmul.f32 %v2000, %v2000
        %v2065 = vmul.f32 %v2001, %v2001
        %v2066 = vmul.f32 %v2002, %v2002
        %v2067 = vmul.f32 %v2003, %v2003
        %v2068 = vmul.f32 %v2004, %v2004
        %v2069 = vmul.f32 %v2005, %v2005
        %v2070 = vmul.f32 %v2006, %v2006
        %v2071 = vmul.f32 %v2007, %v2007
        %v2072 = vmul.f32 %v2008, %v2008
        %v2073 = vmul.f32 %v2009, %v2009
        %v2074 = vmul.f32 %v2010, %v2010
        %v2075 = vmul.f32 %v2011, %v2011
        %v2076 = vmul.f32 %v2012, %v2012
        %v2077 = vmul.f32 %v2013, %v2013
        %v2078 = vmul.f32 %v2014, %v2014
        %v2079 = vmul.f32 %v2015, %v2015
        %v2080 = vmul.f32 %v2016, %v2016
        %v2081 = vmul.f32 %v2017, %v2017
        %v2082 = vmul.f32 %v2018, %v2018
        %v2083 = vmul.f32 %v2019, %v2019
        %v2084 = vmul.f32 %v2020, %v2020
        %v2085 = vmul.f32 %v2021, %v2021
        %v2086 = vmul.f32 %v2022, %v2022
        %v2087 = vmul.f32 %v2023, %v2023
        %v2088 = vmul.f32 %v2024, %v2024
        %v2089 = vmul.f32 %v2025, %v2025
        %v2090 = vmul.f32 %v2026, %v2026
        %v2091 = vmul.f32 %v2027, %v2027
        %v2092 = vmul.f32 %v2028, %v2028
        %v2093 = vmul.f32 %v2029, %v2029
        %v2094 = vmul.f32 %v2030, %v2030
        %v2095 = vmul.f32 %v2031, %v2031
        %v2096 = vmul.f32 %v2032, %v2032
        %v2097 = vmul.f32 %v2033, %v2033
        %v2098 = vmul.f32 %v2034, %v2034
        %v2099 = vmul.f32 %v2035, %v2035
        %v2100 = vmul.f32 %v2036, %v2036
        %v2101 = vmul.f32 %v2037, %v2037
        %v2102 = vmul.f32 %v2038, %v2038
        %v2103 = vmul.f32 %v2039, %v2039
        %v2104 = vmul.f32 %v2040, %v2040
        %v2105 = vmul.f32 %v2041, %v2041
        %v2106 = vmul.f32 %v2042, %v2042
        %v2107 = vmul.f32 %v2043, %v2043
        %v2108 = vmul.f32 %v2044, %v2044
        %v2109 = vmul.f32 %v2045, %v2045
        %v2110 = vmul.f32 %v2046, %v2046
        %v2111 = vmul.f32 %v2047, %v2047
        %v2112 = vmul.f32 %v2048, %v2048
        %v2113 = vmul.f32 %v2049, %v2049
        %v2114 = vmul.f32 %v2050, %v2050
        %v2115 = vmul.f32 %v2051, %v2051
        %v2116 = vmul.f32 %v2052, %v2052
        %v2117 = vmul.f32 %v2053, %v2053
        %v2118 = vsel %vm1732, %v2054, 0.0
        %2119 = vadd.xlane.f32.xlu0 %v2118
        %v2120 = vpop.xlane.xlu0 %2119
        %v2121 = vsel %vm1732, %v2055, 0.0
        %2122 = vadd.xlane.f32.xlu0 %v2121
        %v2123 = vpop.xlane.xlu0 %2122
        %v2124 = vsel %vm1732, %v2056, 0.0
        %2125 = vadd.xlane.f32.xlu0 %v2124
        %v2126 = vpop.xlane.xlu0 %2125
        %v2127 = vsel %vm1732, %v2057, 0.0
        %2128 = vadd.xlane.f32.xlu0 %v2127
        %v2129 = vpop.xlane.xlu0 %2128
        %v2130 = vsel %vm1732, %v2058, 0.0
        %2131 = vadd.xlane.f32.xlu0 %v2130
        %v2132 = vpop.xlane.xlu0 %2131
        %v2133 = vsel %vm1732, %v2059, 0.0
        %2134 = vadd.xlane.f32.xlu0 %v2133
        %v2135 = vpop.xlane.xlu0 %2134
        %v2136 = vsel %vm1732, %v2060, 0.0
        %2137 = vadd.xlane.f32.xlu0 %v2136
        %v2138 = vpop.xlane.xlu0 %2137
        %v2139 = vsel %vm1732, %v2061, 0.0
        %2140 = vadd.xlane.f32.xlu0 %v2139
        %v2141 = vpop.xlane.xlu0 %2140
        %v2142 = vsel %vm1732, %v2062, 0.0
        %2143 = vadd.xlane.f32.xlu0 %v2142
        %v2144 = vpop.xlane.xlu0 %2143
        %v2145 = vsel %vm1732, %v2063, 0.0
        %2146 = vadd.xlane.f32.xlu0 %v2145
        %v2147 = vpop.xlane.xlu0 %2146
        %v2148 = vsel %vm1732, %v2064, 0.0
        %2149 = vadd.xlane.f32.xlu0 %v2148
        %v2150 = vpop.xlane.xlu0 %2149
        %v2151 = vsel %vm1732, %v2065, 0.0
        %2152 = vadd.xlane.f32.xlu0 %v2151
        %v2153 = vpop.xlane.xlu0 %2152
        %v2154 = vsel %vm1732, %v2066, 0.0
        %2155 = vadd.xlane.f32.xlu0 %v2154
        %v2156 = vpop.xlane.xlu0 %2155
        %v2157 = vsel %vm1732, %v2067, 0.0
        %2158 = vadd.xlane.f32.xlu0 %v2157
        %v2159 = vpop.xlane.xlu0 %2158
        %v2160 = vsel %vm1732, %v2068, 0.0
        %2161 = vadd.xlane.f32.xlu0 %v2160
        %v2162 = vpop.xlane.xlu0 %2161
        %v2163 = vsel %vm1732, %v2069, 0.0
        %2164 = vadd.xlane.f32.xlu0 %v2163
        %v2165 = vpop.xlane.xlu0 %2164
        %v2166 = vsel %vm1732, %v2070, 0.0
        %2167 = vadd.xlane.f32.xlu0 %v2166
        %v2168 = vpop.xlane.xlu0 %2167
        %v2169 = vsel %vm1732, %v2071, 0.0
        %2170 = vadd.xlane.f32.xlu0 %v2169
        %v2171 = vpop.xlane.xlu0 %2170
        %v2172 = vsel %vm1732, %v2072, 0.0
        %2173 = vadd.xlane.f32.xlu0 %v2172
        %v2174 = vpop.xlane.xlu0 %2173
        %v2175 = vsel %vm1732, %v2073, 0.0
        %2176 = vadd.xlane.f32.xlu0 %v2175
        %v2177 = vpop.xlane.xlu0 %2176
        %v2178 = vsel %vm1732, %v2074, 0.0
        %2179 = vadd.xlane.f32.xlu0 %v2178
        %v2180 = vpop.xlane.xlu0 %2179
        %v2181 = vsel %vm1732, %v2075, 0.0
        %2182 = vadd.xlane.f32.xlu0 %v2181
        %v2183 = vpop.xlane.xlu0 %2182
        %v2184 = vsel %vm1732, %v2076, 0.0
        %2185 = vadd.xlane.f32.xlu0 %v2184
        %v2186 = vpop.xlane.xlu0 %2185
        %v2187 = vsel %vm1732, %v2077, 0.0
        %2188 = vadd.xlane.f32.xlu0 %v2187
        %v2189 = vpop.xlane.xlu0 %2188
        %v2190 = vsel %vm1732, %v2078, 0.0
        %2191 = vadd.xlane.f32.xlu0 %v2190
        %v2192 = vpop.xlane.xlu0 %2191
        %v2193 = vsel %vm1732, %v2079, 0.0
        %2194 = vadd.xlane.f32.xlu0 %v2193
        %v2195 = vpop.xlane.xlu0 %2194
        %v2196 = vsel %vm1732, %v2080, 0.0
        %2197 = vadd.xlane.f32.xlu0 %v2196
        %v2198 = vpop.xlane.xlu0 %2197
        %v2199 = vsel %vm1732, %v2081, 0.0
        %2200 = vadd.xlane.f32.xlu0 %v2199
        %v2201 = vpop.xlane.xlu0 %2200
        %v2202 = vsel %vm1732, %v2082, 0.0
        %2203 = vadd.xlane.f32.xlu0 %v2202
        %v2204 = vpop.xlane.xlu0 %2203
        %v2205 = vsel %vm1732, %v2083, 0.0
        %2206 = vadd.xlane.f32.xlu0 %v2205
        %v2207 = vpop.xlane.xlu0 %2206
        %v2208 = vsel %vm1732, %v2084, 0.0
        %2209 = vadd.xlane.f32.xlu0 %v2208
        %v2210 = vpop.xlane.xlu0 %2209
        %v2211 = vsel %vm1732, %v2085, 0.0
        %2212 = vadd.xlane.f32.xlu0 %v2211
        %v2213 = vpop.xlane.xlu0 %2212
        %v2214 = vsel %vm1732, %v2086, 0.0
        %2215 = vadd.xlane.f32.xlu0 %v2214
        %v2216 = vpop.xlane.xlu0 %2215
        %v2217 = vsel %vm1732, %v2087, 0.0
        %2218 = vadd.xlane.f32.xlu0 %v2217
        %v2219 = vpop.xlane.xlu0 %2218
        %v2220 = vsel %vm1732, %v2088, 0.0
        %2221 = vadd.xlane.f32.xlu0 %v2220
        %v2222 = vpop.xlane.xlu0 %2221
        %v2223 = vsel %vm1732, %v2089, 0.0
        %2224 = vadd.xlane.f32.xlu0 %v2223
        %v2225 = vpop.xlane.xlu0 %2224
        %v2226 = vsel %vm1732, %v2090, 0.0
        %2227 = vadd.xlane.f32.xlu0 %v2226
        %v2228 = vpop.xlane.xlu0 %2227
        %v2229 = vsel %vm1732, %v2091, 0.0
        %2230 = vadd.xlane.f32.xlu0 %v2229
        %v2231 = vpop.xlane.xlu0 %2230
        %v2232 = vsel %vm1732, %v2092, 0.0
        %2233 = vadd.xlane.f32.xlu0 %v2232
        %v2234 = vpop.xlane.xlu0 %2233
        %v2235 = vsel %vm1732, %v2093, 0.0
        %2236 = vadd.xlane.f32.xlu0 %v2235
        %v2237 = vpop.xlane.xlu0 %2236
        %v2238 = vsel %vm1732, %v2094, 0.0
        %2239 = vadd.xlane.f32.xlu0 %v2238
        %v2240 = vpop.xlane.xlu0 %2239
        %v2241 = vsel %vm1732, %v2095, 0.0
        %2242 = vadd.xlane.f32.xlu0 %v2241
        %v2243 = vpop.xlane.xlu0 %2242
        %v2244 = vsel %vm1732, %v2096, 0.0
        %2245 = vadd.xlane.f32.xlu0 %v2244
        %v2246 = vpop.xlane.xlu0 %2245
        %v2247 = vsel %vm1732, %v2097, 0.0
        %2248 = vadd.xlane.f32.xlu0 %v2247
        %v2249 = vpop.xlane.xlu0 %2248
        %v2250 = vsel %vm1732, %v2098, 0.0
        %2251 = vadd.xlane.f32.xlu0 %v2250
        %v2252 = vpop.xlane.xlu0 %2251
        %v2253 = vsel %vm1732, %v2099, 0.0
        %2254 = vadd.xlane.f32.xlu0 %v2253
        %v2255 = vpop.xlane.xlu0 %2254
        %v2256 = vsel %vm1732, %v2100, 0.0
        %2257 = vadd.xlane.f32.xlu0 %v2256
        %v2258 = vpop.xlane.xlu0 %2257
        %v2259 = vsel %vm1732, %v2101, 0.0
        %2260 = vadd.xlane.f32.xlu0 %v2259
        %v2261 = vpop.xlane.xlu0 %2260
        %v2262 = vsel %vm1732, %v2102, 0.0
        %2263 = vadd.xlane.f32.xlu0 %v2262
        %v2264 = vpop.xlane.xlu0 %2263
        %v2265 = vsel %vm1732, %v2103, 0.0
        %2266 = vadd.xlane.f32.xlu0 %v2265
        %v2267 = vpop.xlane.xlu0 %2266
        %v2268 = vsel %vm1732, %v2104, 0.0
        %2269 = vadd.xlane.f32.xlu0 %v2268
        %v2270 = vpop.xlane.xlu0 %2269
        %v2271 = vsel %vm1732, %v2105, 0.0
        %2272 = vadd.xlane.f32.xlu0 %v2271
        %v2273 = vpop.xlane.xlu0 %2272
        %v2274 = vsel %vm1732, %v2106, 0.0
        %2275 = vadd.xlane.f32.xlu0 %v2274
        %v2276 = vpop.xlane.xlu0 %2275
        %v2277 = vsel %vm1732, %v2107, 0.0
        %2278 = vadd.xlane.f32.xlu0 %v2277
        %v2279 = vpop.xlane.xlu0 %2278
        %v2280 = vsel %vm1732, %v2108, 0.0
        %2281 = vadd.xlane.f32.xlu0 %v2280
        %v2282 = vpop.xlane.xlu0 %2281
        %v2283 = vsel %vm1732, %v2109, 0.0
        %2284 = vadd.xlane.f32.xlu0 %v2283
        %v2285 = vpop.xlane.xlu0 %2284
        %v2286 = vsel %vm1732, %v2110, 0.0
        %2287 = vadd.xlane.f32.xlu0 %v2286
        %v2288 = vpop.xlane.xlu0 %2287
        %v2289 = vsel %vm1732, %v2111, 0.0
        %2290 = vadd.xlane.f32.xlu0 %v2289
        %v2291 = vpop.xlane.xlu0 %2290
        %v2292 = vsel %vm1732, %v2112, 0.0
        %2293 = vadd.xlane.f32.xlu0 %v2292
        %v2294 = vpop.xlane.xlu0 %2293
        %v2295 = vsel %vm1732, %v2113, 0.0
        %2296 = vadd.xlane.f32.xlu0 %v2295
        %v2297 = vpop.xlane.xlu0 %2296
        %v2298 = vsel %vm1732, %v2114, 0.0
        %2299 = vadd.xlane.f32.xlu0 %v2298
        %v2300 = vpop.xlane.xlu0 %2299
        %v2301 = vsel %vm1732, %v2115, 0.0
        %2302 = vadd.xlane.f32.xlu0 %v2301
        %v2303 = vpop.xlane.xlu0 %2302
        %v2304 = vsel %vm1732, %v2116, 0.0
        %2305 = vadd.xlane.f32.xlu0 %v2304
        %v2306 = vpop.xlane.xlu0 %2305
        %v2307 = vsel %vm1732, %v2117, 0.0
        %2308 = vadd.xlane.f32.xlu0 %v2307
        %v2309 = vpop.xlane.xlu0 %2308
        %v2310 = vmul.f32 %v2120, %v1925
        %v2311 = vmul.f32 %v2123, %v1925
        %v2312 = vmul.f32 %v2126, %v1925
        %v2313 = vmul.f32 %v2129, %v1925
        %v2314 = vmul.f32 %v2132, %v1925
        %v2315 = vmul.f32 %v2135, %v1925
        %v2316 = vmul.f32 %v2138, %v1925
        %v2317 = vmul.f32 %v2141, %v1925
        %v2318 = vmul.f32 %v2144, %v1925
        %v2319 = vmul.f32 %v2147, %v1925
        %v2320 = vmul.f32 %v2150, %v1925
        %v2321 = vmul.f32 %v2153, %v1925
        %v2322 = vmul.f32 %v2156, %v1925
        %v2323 = vmul.f32 %v2159, %v1925
        %v2324 = vmul.f32 %v2162, %v1925
        %v2325 = vmul.f32 %v2165, %v1925
        %v2326 = vmul.f32 %v2168, %v1925
        %v2327 = vmul.f32 %v2171, %v1925
        %v2328 = vmul.f32 %v2174, %v1925
        %v2329 = vmul.f32 %v2177, %v1925
        %v2330 = vmul.f32 %v2180, %v1925
        %v2331 = vmul.f32 %v2183, %v1925
        %v2332 = vmul.f32 %v2186, %v1925
        %v2333 = vmul.f32 %v2189, %v1925
        %v2334 = vmul.f32 %v2192, %v1925
        %v2335 = vmul.f32 %v2195, %v1925
        %v2336 = vmul.f32 %v2198, %v1925
        %v2337 = vmul.f32 %v2201, %v1925
        %v2338 = vmul.f32 %v2204, %v1925
        %v2339 = vmul.f32 %v2207, %v1925
        %v2340 = vmul.f32 %v2210, %v1925
        %v2341 = vmul.f32 %v2213, %v1925
        %v2342 = vmul.f32 %v2216, %v1925
        %v2343 = vmul.f32 %v2219, %v1925
        %v2344 = vmul.f32 %v2222, %v1925
        %v2345 = vmul.f32 %v2225, %v1925
        %v2346 = vmul.f32 %v2228, %v1925
        %v2347 = vmul.f32 %v2231, %v1925
        %v2348 = vmul.f32 %v2234, %v1925
        %v2349 = vmul.f32 %v2237, %v1925
        %v2350 = vmul.f32 %v2240, %v1925
        %v2351 = vmul.f32 %v2243, %v1925
        %v2352 = vmul.f32 %v2246, %v1925
        %v2353 = vmul.f32 %v2249, %v1925
        %v2354 = vmul.f32 %v2252, %v1925
        %v2355 = vmul.f32 %v2255, %v1925
        %v2356 = vmul.f32 %v2258, %v1925
        %v2357 = vmul.f32 %v2261, %v1925
        %v2358 = vmul.f32 %v2264, %v1925
        %v2359 = vmul.f32 %v2267, %v1925
        %v2360 = vmul.f32 %v2270, %v1925
        %v2361 = vmul.f32 %v2273, %v1925
        %v2362 = vmul.f32 %v2276, %v1925
        %v2363 = vmul.f32 %v2279, %v1925
        %v2364 = vmul.f32 %v2282, %v1925
        %v2365 = vmul.f32 %v2285, %v1925
        %v2366 = vmul.f32 %v2288, %v1925
        %v2367 = vmul.f32 %v2291, %v1925
        %v2368 = vmul.f32 %v2294, %v1925
        %v2369 = vmul.f32 %v2297, %v1925
        %v2370 = vmul.f32 %v2300, %v1925
        %v2371 = vmul.f32 %v2303, %v1925
        %v2372 = vmul.f32 %v2306, %v1925
        %v2373 = vmul.f32 %v2309, %v1925
        %v2374 = vadd.f32 %v2310, 1e-05
        %v2375 = vadd.f32 %v2311, 1e-05
        %v2376 = vadd.f32 %v2312, 1e-05
        %v2377 = vadd.f32 %v2313, 1e-05
        %v2378 = vadd.f32 %v2314, 1e-05
        %v2379 = vadd.f32 %v2315, 1e-05
        %v2380 = vadd.f32 %v2316, 1e-05
        %v2381 = vadd.f32 %v2317, 1e-05
        %v2382 = vadd.f32 %v2318, 1e-05
        %v2383 = vadd.f32 %v2319, 1e-05
        %v2384 = vadd.f32 %v2320, 1e-05
        %v2385 = vadd.f32 %v2321, 1e-05
        %v2386 = vadd.f32 %v2322, 1e-05
        %v2387 = vadd.f32 %v2323, 1e-05
        %v2388 = vadd.f32 %v2324, 1e-05
        %v2389 = vadd.f32 %v2325, 1e-05
        %v2390 = vadd.f32 %v2326, 1e-05
        %v2391 = vadd.f32 %v2327, 1e-05
        %v2392 = vadd.f32 %v2328, 1e-05
        %v2393 = vadd.f32 %v2329, 1e-05
        %v2394 = vadd.f32 %v2330, 1e-05
        %v2395 = vadd.f32 %v2331, 1e-05
        %v2396 = vadd.f32 %v2332, 1e-05
        %v2397 = vadd.f32 %v2333, 1e-05
        %v2398 = vadd.f32 %v2334, 1e-05
        %v2399 = vadd.f32 %v2335, 1e-05
        %v2400 = vadd.f32 %v2336, 1e-05
        %v2401 = vadd.f32 %v2337, 1e-05
        %v2402 = vadd.f32 %v2338, 1e-05
        %v2403 = vadd.f32 %v2339, 1e-05
        %v2404 = vadd.f32 %v2340, 1e-05
        %v2405 = vadd.f32 %v2341, 1e-05
        %v2406 = vadd.f32 %v2342, 1e-05
        %v2407 = vadd.f32 %v2343, 1e-05
        %v2408 = vadd.f32 %v2344, 1e-05
        %v2409 = vadd.f32 %v2345, 1e-05
        %v2410 = vadd.f32 %v2346, 1e-05
        %v2411 = vadd.f32 %v2347, 1e-05
        %v2412 = vadd.f32 %v2348, 1e-05
        %v2413 = vadd.f32 %v2349, 1e-05
        %v2414 = vadd.f32 %v2350, 1e-05
        %v2415 = vadd.f32 %v2351, 1e-05
        %v2416 = vadd.f32 %v2352, 1e-05
        %v2417 = vadd.f32 %v2353, 1e-05
        %v2418 = vadd.f32 %v2354, 1e-05
        %v2419 = vadd.f32 %v2355, 1e-05
        %v2420 = vadd.f32 %v2356, 1e-05
        %v2421 = vadd.f32 %v2357, 1e-05
        %v2422 = vadd.f32 %v2358, 1e-05
        %v2423 = vadd.f32 %v2359, 1e-05
        %v2424 = vadd.f32 %v2360, 1e-05
        %v2425 = vadd.f32 %v2361, 1e-05
        %v2426 = vadd.f32 %v2362, 1e-05
        %v2427 = vadd.f32 %v2363, 1e-05
        %v2428 = vadd.f32 %v2364, 1e-05
        %v2429 = vadd.f32 %v2365, 1e-05
        %v2430 = vadd.f32 %v2366, 1e-05
        %v2431 = vadd.f32 %v2367, 1e-05
        %v2432 = vadd.f32 %v2368, 1e-05
        %v2433 = vadd.f32 %v2369, 1e-05
        %v2434 = vadd.f32 %v2370, 1e-05
        %v2435 = vadd.f32 %v2371, 1e-05
        %v2436 = vadd.f32 %v2372, 1e-05
        %v2437 = vadd.f32 %v2373, 1e-05
        %v2438 = vrsqrt.pop %v2374
        %v2439 = vrsqrt.pop %v2375
        %v2440 = vrsqrt.pop %v2376
        %v2441 = vrsqrt.pop %v2377
        %v2442 = vrsqrt.pop %v2378
        %v2443 = vrsqrt.pop %v2379
        %v2444 = vrsqrt.pop %v2380
        %v2445 = vrsqrt.pop %v2381
        %v2446 = vrsqrt.pop %v2382
        %v2447 = vrsqrt.pop %v2383
        %v2448 = vrsqrt.pop %v2384
        %v2449 = vrsqrt.pop %v2385
        %v2450 = vrsqrt.pop %v2386
        %v2451 = vrsqrt.pop %v2387
        %v2452 = vrsqrt.pop %v2388
        %v2453 = vrsqrt.pop %v2389
        %v2454 = vrsqrt.pop %v2390
        %v2455 = vrsqrt.pop %v2391
        %v2456 = vrsqrt.pop %v2392
        %v2457 = vrsqrt.pop %v2393
        %v2458 = vrsqrt.pop %v2394
        %v2459 = vrsqrt.pop %v2395
        %v2460 = vrsqrt.pop %v2396
        %v2461 = vrsqrt.pop %v2397
        %v2462 = vrsqrt.pop %v2398
        %v2463 = vrsqrt.pop %v2399
        %v2464 = vrsqrt.pop %v2400
        %v2465 = vrsqrt.pop %v2401
        %v2466 = vrsqrt.pop %v2402
        %v2467 = vrsqrt.pop %v2403
        %v2468 = vrsqrt.pop %v2404
        %v2469 = vrsqrt.pop %v2405
        %v2470 = vrsqrt.pop %v2406
        %v2471 = vrsqrt.pop %v2407
        %v2472 = vrsqrt.pop %v2408
        %v2473 = vrsqrt.pop %v2409
        %v2474 = vrsqrt.pop %v2410
        %v2475 = vrsqrt.pop %v2411
        %v2476 = vrsqrt.pop %v2412
        %v2477 = vrsqrt.pop %v2413
        %v2478 = vrsqrt.pop %v2414
        %v2479 = vrsqrt.pop %v2415
        %v2480 = vrsqrt.pop %v2416
        %v2481 = vrsqrt.pop %v2417
        %v2482 = vrsqrt.pop %v2418
        %v2483 = vrsqrt.pop %v2419
        %v2484 = vrsqrt.pop %v2420
        %v2485 = vrsqrt.pop %v2421
        %v2486 = vrsqrt.pop %v2422
        %v2487 = vrsqrt.pop %v2423
        %v2488 = vrsqrt.pop %v2424
        %v2489 = vrsqrt.pop %v2425
        %v2490 = vrsqrt.pop %v2426
        %v2491 = vrsqrt.pop %v2427
        %v2492 = vrsqrt.pop %v2428
        %v2493 = vrsqrt.pop %v2429
        %v2494 = vrsqrt.pop %v2430
        %v2495 = vrsqrt.pop %v2431
        %v2496 = vrsqrt.pop %v2432
        %v2497 = vrsqrt.pop %v2433
        %v2498 = vrsqrt.pop %v2434
        %v2499 = vrsqrt.pop %v2435
        %v2500 = vrsqrt.pop %v2436
        %v2501 = vrsqrt.pop %v2437
        %v2502 = vmul.f32 %v1990, %v2438
        %v2503 = vmul.f32 %v1991, %v2439
        %v2504 = vmul.f32 %v1992, %v2440
        %v2505 = vmul.f32 %v1993, %v2441
        %v2506 = vmul.f32 %v1994, %v2442
        %v2507 = vmul.f32 %v1995, %v2443
        %v2508 = vmul.f32 %v1996, %v2444
        %v2509 = vmul.f32 %v1997, %v2445
        %v2510 = vmul.f32 %v1998, %v2446
        %v2511 = vmul.f32 %v1999, %v2447
        %v2512 = vmul.f32 %v2000, %v2448
        %v2513 = vmul.f32 %v2001, %v2449
        %v2514 = vmul.f32 %v2002, %v2450
        %v2515 = vmul.f32 %v2003, %v2451
        %v2516 = vmul.f32 %v2004, %v2452
        %v2517 = vmul.f32 %v2005, %v2453
        %v2518 = vmul.f32 %v2006, %v2454
        %v2519 = vmul.f32 %v2007, %v2455
        %v2520 = vmul.f32 %v2008, %v2456
        %v2521 = vmul.f32 %v2009, %v2457
        %v2522 = vmul.f32 %v2010, %v2458
        %v2523 = vmul.f32 %v2011, %v2459
        %v2524 = vmul.f32 %v2012, %v2460
        %v2525 = vmul.f32 %v2013, %v2461
        %v2526 = vmul.f32 %v2014, %v2462
        %v2527 = vmul.f32 %v2015, %v2463
        %v2528 = vmul.f32 %v2016, %v2464
        %v2529 = vmul.f32 %v2017, %v2465
        %v2530 = vmul.f32 %v2018, %v2466
        %v2531 = vmul.f32 %v2019, %v2467
        %v2532 = vmul.f32 %v2020, %v2468
        %v2533 = vmul.f32 %v2021, %v2469
        %v2534 = vmul.f32 %v2022, %v2470
        %v2535 = vmul.f32 %v2023, %v2471
        %v2536 = vmul.f32 %v2024, %v2472
        %v2537 = vmul.f32 %v2025, %v2473
        %v2538 = vmul.f32 %v2026, %v2474
        %v2539 = vmul.f32 %v2027, %v2475
        %v2540 = vmul.f32 %v2028, %v2476
        %v2541 = vmul.f32 %v2029, %v2477
        %v2542 = vmul.f32 %v2030, %v2478
        %v2543 = vmul.f32 %v2031, %v2479
        %v2544 = vmul.f32 %v2032, %v2480
        %v2545 = vmul.f32 %v2033, %v2481
        %v2546 = vmul.f32 %v2034, %v2482
        %v2547 = vmul.f32 %v2035, %v2483
        %v2548 = vmul.f32 %v2036, %v2484
        %v2549 = vmul.f32 %v2037, %v2485
        %v2550 = vmul.f32 %v2038, %v2486
        %v2551 = vmul.f32 %v2039, %v2487
        %v2552 = vmul.f32 %v2040, %v2488
        %v2553 = vmul.f32 %v2041, %v2489
        %v2554 = vmul.f32 %v2042, %v2490
        %v2555 = vmul.f32 %v2043, %v2491
        %v2556 = vmul.f32 %v2044, %v2492
        %v2557 = vmul.f32 %v2045, %v2493
        %v2558 = vmul.f32 %v2046, %v2494
        %v2559 = vmul.f32 %v2047, %v2495
        %v2560 = vmul.f32 %v2048, %v2496
        %v2561 = vmul.f32 %v2049, %v2497
        %v2562 = vmul.f32 %v2050, %v2498
        %v2563 = vmul.f32 %v2051, %v2499
        %v2564 = vmul.f32 %v2052, %v2500
        %v2565 = vmul.f32 %v2053, %v2501
        %v2566 = vld [vmem:[%s1] sm:$0x1]
        %v2568 = vlaneseq
        %v2569 = vshrl.u32 %v2568, 7
        %v2570 = vsub.s32 0, %v2569
        %v2571 = vrot.slane %v2566, %v2570
        %v2573 = vmul.f32 %v2502, %v2571
        %v2574 = vmul.f32 %v2503, %v2571
        %v2575 = vmul.f32 %v2504, %v2571
        %v2576 = vmul.f32 %v2505, %v2571
        %v2577 = vmul.f32 %v2506, %v2571
        %v2578 = vmul.f32 %v2507, %v2571
        %v2579 = vmul.f32 %v2508, %v2571
        %v2580 = vmul.f32 %v2509, %v2571
        %v2581 = vmul.f32 %v2510, %v2571
        %v2582 = vmul.f32 %v2511, %v2571
        %v2583 = vmul.f32 %v2512, %v2571
        %v2584 = vmul.f32 %v2513, %v2571
        %v2585 = vmul.f32 %v2514, %v2571
        %v2586 = vmul.f32 %v2515, %v2571
        %v2587 = vmul.f32 %v2516, %v2571
        %v2588 = vmul.f32 %v2517, %v2571
        %v2589 = vmul.f32 %v2518, %v2571
        %v2590 = vmul.f32 %v2519, %v2571
        %v2591 = vmul.f32 %v2520, %v2571
        %v2592 = vmul.f32 %v2521, %v2571
        %v2593 = vmul.f32 %v2522, %v2571
        %v2594 = vmul.f32 %v2523, %v2571
        %v2595 = vmul.f32 %v2524, %v2571
        %v2596 = vmul.f32 %v2525, %v2571
        %v2597 = vmul.f32 %v2526, %v2571
        %v2598 = vmul.f32 %v2527, %v2571
        %v2599 = vmul.f32 %v2528, %v2571
        %v2600 = vmul.f32 %v2529, %v2571
        %v2601 = vmul.f32 %v2530, %v2571
        %v2602 = vmul.f32 %v2531, %v2571
        %v2603 = vmul.f32 %v2532, %v2571
        %v2604 = vmul.f32 %v2533, %v2571
        %v2605 = vmul.f32 %v2534, %v2571
        %v2606 = vmul.f32 %v2535, %v2571
        %v2607 = vmul.f32 %v2536, %v2571
        %v2608 = vmul.f32 %v2537, %v2571
        %v2609 = vmul.f32 %v2538, %v2571
        %v2610 = vmul.f32 %v2539, %v2571
        %v2611 = vmul.f32 %v2540, %v2571
        %v2612 = vmul.f32 %v2541, %v2571
        %v2613 = vmul.f32 %v2542, %v2571
        %v2614 = vmul.f32 %v2543, %v2571
        %v2615 = vmul.f32 %v2544, %v2571
        %v2616 = vmul.f32 %v2545, %v2571
        %v2617 = vmul.f32 %v2546, %v2571
        %v2618 = vmul.f32 %v2547, %v2571
        %v2619 = vmul.f32 %v2548, %v2571
        %v2620 = vmul.f32 %v2549, %v2571
        %v2621 = vmul.f32 %v2550, %v2571
        %v2622 = vmul.f32 %v2551, %v2571
        %v2623 = vmul.f32 %v2552, %v2571
        %v2624 = vmul.f32 %v2553, %v2571
        %v2625 = vmul.f32 %v2554, %v2571
        %v2626 = vmul.f32 %v2555, %v2571
        %v2627 = vmul.f32 %v2556, %v2571
        %v2628 = vmul.f32 %v2557, %v2571
        %v2629 = vmul.f32 %v2558, %v2571
        %v2630 = vmul.f32 %v2559, %v2571
        %v2631 = vmul.f32 %v2560, %v2571
        %v2632 = vmul.f32 %v2561, %v2571
        %v2633 = vmul.f32 %v2562, %v2571
        %v2634 = vmul.f32 %v2563, %v2571
        %v2635 = vmul.f32 %v2564, %v2571
        %v2636 = vmul.f32 %v2565, %v2571
        %v2637 = vld [vmem:[%s2] sm:$0x1]
        %v2639 = vlaneseq
        %v2640 = vshrl.u32 %v2639, 7
        %v2641 = vsub.s32 0, %v2640
        %v2642 = vrot.slane %v2637, %v2641
        %v2644 = vadd.f32 %v2573, %v2642
        %v2645 = vadd.f32 %v2574, %v2642
        %v2646 = vadd.f32 %v2575, %v2642
        %v2647 = vadd.f32 %v2576, %v2642
        %v2648 = vadd.f32 %v2577, %v2642
        %v2649 = vadd.f32 %v2578, %v2642
        %v2650 = vadd.f32 %v2579, %v2642
        %v2651 = vadd.f32 %v2580, %v2642
        %v2652 = vadd.f32 %v2581, %v2642
        %v2653 = vadd.f32 %v2582, %v2642
        %v2654 = vadd.f32 %v2583, %v2642
        %v2655 = vadd.f32 %v2584, %v2642
        %v2656 = vadd.f32 %v2585, %v2642
        %v2657 = vadd.f32 %v2586, %v2642
        %v2658 = vadd.f32 %v2587, %v2642
        %v2659 = vadd.f32 %v2588, %v2642
        %v2660 = vadd.f32 %v2589, %v2642
        %v2661 = vadd.f32 %v2590, %v2642
        %v2662 = vadd.f32 %v2591, %v2642
        %v2663 = vadd.f32 %v2592, %v2642
        %v2664 = vadd.f32 %v2593, %v2642
        %v2665 = vadd.f32 %v2594, %v2642
        %v2666 = vadd.f32 %v2595, %v2642
        %v2667 = vadd.f32 %v2596, %v2642
        %v2668 = vadd.f32 %v2597, %v2642
        %v2669 = vadd.f32 %v2598, %v2642
        %v2670 = vadd.f32 %v2599, %v2642
        %v2671 = vadd.f32 %v2600, %v2642
        %v2672 = vadd.f32 %v2601, %v2642
        %v2673 = vadd.f32 %v2602, %v2642
        %v2674 = vadd.f32 %v2603, %v2642
        %v2675 = vadd.f32 %v2604, %v2642
        %v2676 = vadd.f32 %v2605, %v2642
        %v2677 = vadd.f32 %v2606, %v2642
        %v2678 = vadd.f32 %v2607, %v2642
        %v2679 = vadd.f32 %v2608, %v2642
        %v2680 = vadd.f32 %v2609, %v2642
        %v2681 = vadd.f32 %v2610, %v2642
        %v2682 = vadd.f32 %v2611, %v2642
        %v2683 = vadd.f32 %v2612, %v2642
        %v2684 = vadd.f32 %v2613, %v2642
        %v2685 = vadd.f32 %v2614, %v2642
        %v2686 = vadd.f32 %v2615, %v2642
        %v2687 = vadd.f32 %v2616, %v2642
        %v2688 = vadd.f32 %v2617, %v2642
        %v2689 = vadd.f32 %v2618, %v2642
        %v2690 = vadd.f32 %v2619, %v2642
        %v2691 = vadd.f32 %v2620, %v2642
        %v2692 = vadd.f32 %v2621, %v2642
        %v2693 = vadd.f32 %v2622, %v2642
        %v2694 = vadd.f32 %v2623, %v2642
        %v2695 = vadd.f32 %v2624, %v2642
        %v2696 = vadd.f32 %v2625, %v2642
        %v2697 = vadd.f32 %v2626, %v2642
        %v2698 = vadd.f32 %v2627, %v2642
        %v2699 = vadd.f32 %v2628, %v2642
        %v2700 = vadd.f32 %v2629, %v2642
        %v2701 = vadd.f32 %v2630, %v2642
        %v2702 = vadd.f32 %v2631, %v2642
        %v2703 = vadd.f32 %v2632, %v2642
        %v2704 = vadd.f32 %v2633, %v2642
        %v2705 = vadd.f32 %v2634, %v2642
        %v2706 = vadd.f32 %v2635, %v2642
        %v2707 = vadd.f32 %v2636, %v2642
        %v2708 = vpack.c.bf16 %v2645, %v2644
        %v2709 = vpack.c.bf16 %v2647, %v2646
        %v2710 = vpack.c.bf16 %v2649, %v2648
        %v2711 = vpack.c.bf16 %v2651, %v2650
        %v2712 = vpack.c.bf16 %v2653, %v2652
        %v2713 = vpack.c.bf16 %v2655, %v2654
        %v2714 = vpack.c.bf16 %v2657, %v2656
        %v2715 = vpack.c.bf16 %v2659, %v2658
        %v2716 = vpack.c.bf16 %v2661, %v2660
        %v2717 = vpack.c.bf16 %v2663, %v2662
        %v2718 = vpack.c.bf16 %v2665, %v2664
        %v2719 = vpack.c.bf16 %v2667, %v2666
        %v2720 = vpack.c.bf16 %v2669, %v2668
        %v2721 = vpack.c.bf16 %v2671, %v2670
        %v2722 = vpack.c.bf16 %v2673, %v2672
        %v2723 = vpack.c.bf16 %v2675, %v2674
        %v2724 = vpack.c.bf16 %v2677, %v2676
        %v2725 = vpack.c.bf16 %v2679, %v2678
        %v2726 = vpack.c.bf16 %v2681, %v2680
        %v2727 = vpack.c.bf16 %v2683, %v2682
        %v2728 = vpack.c.bf16 %v2685, %v2684
        %v2729 = vpack.c.bf16 %v2687, %v2686
        %v2730 = vpack.c.bf16 %v2689, %v2688
        %v2731 = vpack.c.bf16 %v2691, %v2690
        %v2732 = vpack.c.bf16 %v2693, %v2692
        %v2733 = vpack.c.bf16 %v2695, %v2694
        %v2734 = vpack.c.bf16 %v2697, %v2696
        %v2735 = vpack.c.bf16 %v2699, %v2698
        %v2736 = vpack.c.bf16 %v2701, %v2700
        %v2737 = vpack.c.bf16 %v2703, %v2702
        %v2738 = vpack.c.bf16 %v2705, %v2704
        %v2739 = vpack.c.bf16 %v2707, %v2706
        %v2740 = vld [vmem:[%s3] sm:$0xf]
        %v2741 = vld [vmem:[%s3 + $0x4] sm:$0xf]
        %v2742 = vld [vmem:[%s3 + $0x8] sm:$0xf]
        %v2743 = vld [vmem:[%s3 + $0xc] sm:$0xf]
        %v2748 = vunpack.c.l.b16 %v2740
        %v2749 = vunpack.c.l.b16 %v2741
        %v2750 = vunpack.c.l.b16 %v2742
        %v2751 = vunpack.c.l.b16 %v2743
        %v2752 = vpack.c.b16 %v2749, %v2748
        %v2753 = vpack.c.b16 %v2751, %v2750
        %v2757 = vsel %vm1732, %v2708, 0
        %v2760 = vsel %vm1732, %v2709, 0
        %v2763 = vsel %vm1732, %v2710, 0
        %v2766 = vsel %vm1732, %v2711, 0
        %v2769 = vsel %vm1732, %v2712, 0
        %v2772 = vsel %vm1732, %v2713, 0
        %v2775 = vsel %vm1732, %v2714, 0
        %v2778 = vsel %vm1732, %v2715, 0
        %v2781 = vsel %vm1732, %v2716, 0
        %v2784 = vsel %vm1732, %v2717, 0
        %v2787 = vsel %vm1732, %v2718, 0
        %v2790 = vsel %vm1732, %v2719, 0
        %v2793 = vsel %vm1732, %v2720, 0
        %v2796 = vsel %vm1732, %v2721, 0
        %v2799 = vsel %vm1732, %v2722, 0
        %v2802 = vsel %vm1732, %v2723, 0
        %v2805 = vsel %vm1732, %v2724, 0
        %v2808 = vsel %vm1732, %v2725, 0
        %v2811 = vsel %vm1732, %v2726, 0
        %v2814 = vsel %vm1732, %v2727, 0
        %v2817 = vsel %vm1732, %v2728, 0
        %v2820 = vsel %vm1732, %v2729, 0
        %v2823 = vsel %vm1732, %v2730, 0
        %v2826 = vsel %vm1732, %v2731, 0
        %v2829 = vsel %vm1732, %v2732, 0
        %v2832 = vsel %vm1732, %v2733, 0
        %v2835 = vsel %vm1732, %v2734, 0
        %v2838 = vsel %vm1732, %v2735, 0
        %v2841 = vsel %vm1732, %v2736, 0
        %v2844 = vsel %vm1732, %v2737, 0
        %v2847 = vsel %vm1732, %v2738, 0
        %v2850 = vsel %vm1732, %v2739, 0
        %2852 = vmatprep.subr.bf16.mxu0 0
        %2853 = vmatpush1.bf16.msra.mxu0 %v2752
        %2854 = vmatprep.subr.bf16.mxu0 0
        %2855 = vmatpush1.bf16.msra.mxu0 %v2753
        %2856 = vmatprep.subr.bf16.mxu0 0
        %2857 = vmatpush1.bf16.msra.mxu0 0
        %2858 = vmatprep.subr.bf16.mxu0 0
        %2859 = vmatpush1.bf16.msra.mxu0 0
        %2860 = vmatprep.subr.bf16.mxu0 0
        %2861 = vmatpush1.bf16.msra.mxu0 0
        %2862 = vmatprep.subr.bf16.mxu0 0
        %2863 = vmatpush1.bf16.msra.mxu0 0
        %2864 = vmatprep.subr.bf16.mxu0 0
        %2865 = vmatpush1.bf16.msra.mxu0 0
        %2866 = vmatprep.subr.bf16.mxu0 0
        %2867 = vmatpush1.bf16.msra.mxu0 0
        %2868 = vmatprep.subr.bf16.mxu0 0
        %2869 = vmatpush1.bf16.msra.mxu0 0
        %2870 = vmatprep.subr.bf16.mxu0 0
        %2871 = vmatpush1.bf16.msra.mxu0 0
        %2872 = vmatprep.subr.bf16.mxu0 0
        %2873 = vmatpush1.bf16.msra.mxu0 0
        %2874 = vmatprep.subr.bf16.mxu0 0
        %2875 = vmatpush1.bf16.msra.mxu0 0
        %2876 = vmatprep.subr.bf16.mxu0 0
        %2877 = vmatpush1.bf16.msra.mxu0 0
        %2878 = vmatprep.subr.bf16.mxu0 0
        %2879 = vmatpush1.bf16.msra.mxu0 0
        %2880 = vmatprep.subr.bf16.mxu0 0
        %2881 = vmatpush1.bf16.msra.mxu0 0
        %2882 = vmatprep.subr.bf16.mxu0 0
        %2883 = vmatpush1.bf16.msra.mxu0 0
        %2884 = vmatprep.mubr.bf16.mxu0 0
        %2885 = vmatmul.mubr.bf16.gmra.mrb[0].mxu0 %v2757
        %v2886 = vpop.f32.mrb[0].mxu0
        %v2887 = vadd.f32 0.0, %v2886
        %v2888 = vpop.f32.mrb[0].mxu0
        %v2889 = vpop.f32.mrb[0].mxu0
        %v2890 = vadd.f32 0.0, %v2889
        %v2891 = vpop.f32.mrb[0].mxu0
        %2892 = vmatprep.mubr.bf16.mxu0 0
        %2893 = vmatmul.mubr.bf16.gmra.mrb[0].mxu0 %v2760
        %v2894 = vpop.f32.mrb[0].mxu0
        %v2895 = vadd.f32 0.0, %v2894
        %v2896 = vpop.f32.mrb[0].mxu0
        %v2897 = vpop.f32.mrb[0].mxu0
        %v2898 = vadd.f32 0.0, %v2897
        %v2899 = vpop.f32.mrb[0].mxu0
        %2900 = vmatprep.mubr.bf16.mxu0 0
        %2901 = vmatmul.mubr.bf16.gmra.mrb[0].mxu0 %v2763
        %v2902 = vpop.f32.mrb[0].mxu0
        %v2903 = vadd.f32 0.0, %v2902
        %v2904 = vpop.f32.mrb[0].mxu0
        %v2905 = vpop.f32.mrb[0].mxu0
        %v2906 = vadd.f32 0.0, %v2905
        %v2907 = vpop.f32.mrb[0].mxu0
        %2908 = vmatprep.mubr.bf16.mxu0 0
        %2909 = vmatmul.mubr.bf16.gmra.mrb[0].mxu0 %v2766
        %v2910 = vpop.f32.mrb[0].mxu0
        %v2911 = vadd.f32 0.0, %v2910
        %v2912 = vpop.f32.mrb[0].mxu0
        %v2913 = vpop.f32.mrb[0].mxu0
        %v2914 = vadd.f32 0.0, %v2913
        %v2915 = vpop.f32.mrb[0].mxu0
        %2916 = vmatprep.mubr.bf16.mxu0 0
        %2917 = vmatmul.mubr.bf16.gmra.mrb[0].mxu0 %v2769
        %v2918 = vpop.f32.mrb[0].mxu0
        %v2919 = vadd.f32 0.0, %v2918
        %v2920 = vpop.f32.mrb[0].mxu0
        %v2921 = vpop.f32.mrb[0].mxu0
        %v2922 = vadd.f32 0.0, %v2921
        %v2923 = vpop.f32.mrb[0].mxu0
        %2924 = vmatprep.mubr.bf16.mxu0 0
        %2925 = vmatmul.mubr.bf16.gmra.mrb[0].mxu0 %v2772
        %v2926 = vpop.f32.mrb[0].mxu0
        %v2927 = vadd.f32 0.0, %v2926
        %v2928 = vpop.f32.mrb[0].mxu0
        %v2929 = vpop.f32.mrb[0].mxu0
        %v2930 = vadd.f32 0.0, %v2929
        %v2931 = vpop.f32.mrb[0].mxu0
        %2932 = vmatprep.mubr.bf16.mxu0 0
        %2933 = vmatmul.mubr.bf16.gmra.mrb[0].mxu0 %v2775
        %v2934 = vpop.f32.mrb[0].mxu0
        %v2935 = vadd.f32 0.0, %v2934
        %v2936 = vpop.f32.mrb[0].mxu0
        %v2937 = vpop.f32.mrb[0].mxu0
        %v2938 = vadd.f32 0.0, %v2937
        %v2939 = vpop.f32.mrb[0].mxu0
        %2940 = vmatprep.mubr.bf16.mxu0 0
        %2941 = vmatmul.mubr.bf16.gmra.mrb[0].mxu0 %v2778
        %v2942 = vpop.f32.mrb[0].mxu0
        %v2943 = vadd.f32 0.0, %v2942
        %v2944 = vpop.f32.mrb[0].mxu0
        %v2945 = vpop.f32.mrb[0].mxu0
        %v2946 = vadd.f32 0.0, %v2945
        %v2947 = vpop.f32.mrb[0].mxu0
        %2948 = vmatprep.mubr.bf16.mxu0 0
        %2949 = vmatmul.mubr.bf16.gmra.mrb[0].mxu0 %v2781
        %v2950 = vpop.f32.mrb[0].mxu0
        %v2951 = vadd.f32 0.0, %v2950
        %v2952 = vpop.f32.mrb[0].mxu0
        %v2953 = vpop.f32.mrb[0].mxu0
        %v2954 = vadd.f32 0.0, %v2953
        %v2955 = vpop.f32.mrb[0].mxu0
        %2956 = vmatprep.mubr.bf16.mxu0 0
        %2957 = vmatmul.mubr.bf16.gmra.mrb[0].mxu0 %v2784
        %v2958 = vpop.f32.mrb[0].mxu0
        %v2959 = vadd.f32 0.0, %v2958
        %v2960 = vpop.f32.mrb[0].mxu0
        %v2961 = vpop.f32.mrb[0].mxu0
        %v2962 = vadd.f32 0.0, %v2961
        %v2963 = vpop.f32.mrb[0].mxu0
        %2964 = vmatprep.mubr.bf16.mxu0 0
        %2965 = vmatmul.mubr.bf16.gmra.mrb[0].mxu0 %v2787
        %v2966 = vpop.f32.mrb[0].mxu0
        %v2967 = vadd.f32 0.0, %v2966
        %v2968 = vpop.f32.mrb[0].mxu0
        %v2969 = vpop.f32.mrb[0].mxu0
        %v2970 = vadd.f32 0.0, %v2969
        %v2971 = vpop.f32.mrb[0].mxu0
        %2972 = vmatprep.mubr.bf16.mxu0 0
        %2973 = vmatmul.mubr.bf16.gmra.mrb[0].mxu0 %v2790
        %v2974 = vpop.f32.mrb[0].mxu0
        %v2975 = vadd.f32 0.0, %v2974
        %v2976 = vpop.f32.mrb[0].mxu0
        %v2977 = vpop.f32.mrb[0].mxu0
        %v2978 = vadd.f32 0.0, %v2977
        %v2979 = vpop.f32.mrb[0].mxu0
        %2980 = vmatprep.mubr.bf16.mxu0 0
        %2981 = vmatmul.mubr.bf16.gmra.mrb[0].mxu0 %v2793
        %v2982 = vpop.f32.mrb[0].mxu0
        %v2983 = vadd.f32 0.0, %v2982
        %v2984 = vpop.f32.mrb[0].mxu0
        %v2985 = vpop.f32.mrb[0].mxu0
        %v2986 = vadd.f32 0.0, %v2985
        %v2987 = vpop.f32.mrb[0].mxu0
        %2988 = vmatprep.mubr.bf16.mxu0 0
        %2989 = vmatmul.mubr.bf16.gmra.mrb[0].mxu0 %v2796
        %v2990 = vpop.f32.mrb[0].mxu0
        %v2991 = vadd.f32 0.0, %v2990
        %v2992 = vpop.f32.mrb[0].mxu0
        %v2993 = vpop.f32.mrb[0].mxu0
        %v2994 = vadd.f32 0.0, %v2993
        %v2995 = vpop.f32.mrb[0].mxu0
        %2996 = vmatprep.mubr.bf16.mxu0 0
        %2997 = vmatmul.mubr.bf16.gmra.mrb[0].mxu0 %v2799
        %v2998 = vpop.f32.mrb[0].mxu0
        %v2999 = vadd.f32 0.0, %v2998
        %v3000 = vpop.f32.mrb[0].mxu0
        %v3001 = vpop.f32.mrb[0].mxu0
        %v3002 = vadd.f32 0.0, %v3001
        %v3003 = vpop.f32.mrb[0].mxu0
        %3004 = vmatprep.mubr.bf16.mxu0 0
        %3005 = vmatmul.mubr.bf16.gmra.mrb[0].mxu0 %v2802
        %v3006 = vpop.f32.mrb[0].mxu0
        %v3007 = vadd.f32 0.0, %v3006
        %v3008 = vpop.f32.mrb[0].mxu0
        %v3009 = vpop.f32.mrb[0].mxu0
        %v3010 = vadd.f32 0.0, %v3009
        %v3011 = vpop.f32.mrb[0].mxu0
        %3012 = vmatprep.mubr.bf16.mxu0 0
        %3013 = vmatmul.mubr.bf16.gmra.mrb[0].mxu0 %v2805
        %v3014 = vpop.f32.mrb[0].mxu0
        %v3015 = vadd.f32 0.0, %v3014
        %v3016 = vpop.f32.mrb[0].mxu0
        %v3017 = vpop.f32.mrb[0].mxu0
        %v3018 = vadd.f32 0.0, %v3017
        %v3019 = vpop.f32.mrb[0].mxu0
        %3020 = vmatprep.mubr.bf16.mxu0 0
        %3021 = vmatmul.mubr.bf16.gmra.mrb[0].mxu0 %v2808
        %v3022 = vpop.f32.mrb[0].mxu0
        %v3023 = vadd.f32 0.0, %v3022
        %v3024 = vpop.f32.mrb[0].mxu0
        %v3025 = vpop.f32.mrb[0].mxu0
        %v3026 = vadd.f32 0.0, %v3025
        %v3027 = vpop.f32.mrb[0].mxu0
        %3028 = vmatprep.mubr.bf16.mxu0 0
        %3029 = vmatmul.mubr.bf16.gmra.mrb[0].mxu0 %v2811
        %v3030 = vpop.f32.mrb[0].mxu0
        %v3031 = vadd.f32 0.0, %v3030
        %v3032 = vpop.f32.mrb[0].mxu0
        %v3033 = vpop.f32.mrb[0].mxu0
        %v3034 = vadd.f32 0.0, %v3033
        %v3035 = vpop.f32.mrb[0].mxu0
        %3036 = vmatprep.mubr.bf16.mxu0 0
        %3037 = vmatmul.mubr.bf16.gmra.mrb[0].mxu0 %v2814
        %v3038 = vpop.f32.mrb[0].mxu0
        %v3039 = vadd.f32 0.0, %v3038
        %v3040 = vpop.f32.mrb[0].mxu0
        %v3041 = vpop.f32.mrb[0].mxu0
        %v3042 = vadd.f32 0.0, %v3041
        %v3043 = vpop.f32.mrb[0].mxu0
        %3044 = vmatprep.mubr.bf16.mxu0 0
        %3045 = vmatmul.mubr.bf16.gmra.mrb[0].mxu0 %v2817
        %v3046 = vpop.f32.mrb[0].mxu0
        %v3047 = vadd.f32 0.0, %v3046
        %v3048 = vpop.f32.mrb[0].mxu0
        %v3049 = vpop.f32.mrb[0].mxu0
        %v3050 = vadd.f32 0.0, %v3049
        %v3051 = vpop.f32.mrb[0].mxu0
        %3052 = vmatprep.mubr.bf16.mxu0 0
        %3053 = vmatmul.mubr.bf16.gmra.mrb[0].mxu0 %v2820
        %v3054 = vpop.f32.mrb[0].mxu0
        %v3055 = vadd.f32 0.0, %v3054
        %v3056 = vpop.f32.mrb[0].mxu0
        %v3057 = vpop.f32.mrb[0].mxu0
        %v3058 = vadd.f32 0.0, %v3057
        %v3059 = vpop.f32.mrb[0].mxu0
        %3060 = vmatprep.mubr.bf16.mxu0 0
        %3061 = vmatmul.mubr.bf16.gmra.mrb[0].mxu0 %v2823
        %v3062 = vpop.f32.mrb[0].mxu0
        %v3063 = vadd.f32 0.0, %v3062
        %v3064 = vpop.f32.mrb[0].mxu0
        %v3065 = vpop.f32.mrb[0].mxu0
        %v3066 = vadd.f32 0.0, %v3065
        %v3067 = vpop.f32.mrb[0].mxu0
        %3068 = vmatprep.mubr.bf16.mxu0 0
        %3069 = vmatmul.mubr.bf16.gmra.mrb[0].mxu0 %v2826
        %v3070 = vpop.f32.mrb[0].mxu0
        %v3071 = vadd.f32 0.0, %v3070
        %v3072 = vpop.f32.mrb[0].mxu0
        %v3073 = vpop.f32.mrb[0].mxu0
        %v3074 = vadd.f32 0.0, %v3073
        %v3075 = vpop.f32.mrb[0].mxu0
        %3076 = vmatprep.mubr.bf16.mxu0 0
        %3077 = vmatmul.mubr.bf16.gmra.mrb[0].mxu0 %v2829
        %v3078 = vpop.f32.mrb[0].mxu0
        %v3079 = vadd.f32 0.0, %v3078
        %v3080 = vpop.f32.mrb[0].mxu0
        %v3081 = vpop.f32.mrb[0].mxu0
        %v3082 = vadd.f32 0.0, %v3081
        %v3083 = vpop.f32.mrb[0].mxu0
        %3084 = vmatprep.mubr.bf16.mxu0 0
        %3085 = vmatmul.mubr.bf16.gmra.mrb[0].mxu0 %v2832
        %v3086 = vpop.f32.mrb[0].mxu0
        %v3087 = vadd.f32 0.0, %v3086
        %v3088 = vpop.f32.mrb[0].mxu0
        %v3089 = vpop.f32.mrb[0].mxu0
        %v3090 = vadd.f32 0.0, %v3089
        %v3091 = vpop.f32.mrb[0].mxu0
        %3092 = vmatprep.mubr.bf16.mxu0 0
        %3093 = vmatmul.mubr.bf16.gmra.mrb[0].mxu0 %v2835
        %v3094 = vpop.f32.mrb[0].mxu0
        %v3095 = vadd.f32 0.0, %v3094
        %v3096 = vpop.f32.mrb[0].mxu0
        %v3097 = vpop.f32.mrb[0].mxu0
        %v3098 = vadd.f32 0.0, %v3097
        %v3099 = vpop.f32.mrb[0].mxu0
        %3100 = vmatprep.mubr.bf16.mxu0 0
        %3101 = vmatmul.mubr.bf16.gmra.mrb[0].mxu0 %v2838
        %v3102 = vpop.f32.mrb[0].mxu0
        %v3103 = vadd.f32 0.0, %v3102
        %v3104 = vpop.f32.mrb[0].mxu0
        %v3105 = vpop.f32.mrb[0].mxu0
        %v3106 = vadd.f32 0.0, %v3105
        %v3107 = vpop.f32.mrb[0].mxu0
        %3108 = vmatprep.mubr.bf16.mxu0 0
        %3109 = vmatmul.mubr.bf16.gmra.mrb[0].mxu0 %v2841
        %v3110 = vpop.f32.mrb[0].mxu0
        %v3111 = vadd.f32 0.0, %v3110
        %v3112 = vpop.f32.mrb[0].mxu0
        %v3113 = vpop.f32.mrb[0].mxu0
        %v3114 = vadd.f32 0.0, %v3113
        %v3115 = vpop.f32.mrb[0].mxu0
        %3116 = vmatprep.mubr.bf16.mxu0 0
        %3117 = vmatmul.mubr.bf16.gmra.mrb[0].mxu0 %v2844
        %v3118 = vpop.f32.mrb[0].mxu0
        %v3119 = vadd.f32 0.0, %v3118
        %v3120 = vpop.f32.mrb[0].mxu0
        %v3121 = vpop.f32.mrb[0].mxu0
        %v3122 = vadd.f32 0.0, %v3121
        %v3123 = vpop.f32.mrb[0].mxu0
        %3124 = vmatprep.mubr.bf16.mxu0 0
        %3125 = vmatmul.mubr.bf16.gmra.mrb[0].mxu0 %v2847
        %v3126 = vpop.f32.mrb[0].mxu0
        %v3127 = vadd.f32 0.0, %v3126
        %v3128 = vpop.f32.mrb[0].mxu0
        %v3129 = vpop.f32.mrb[0].mxu0
        %v3130 = vadd.f32 0.0, %v3129
        %v3131 = vpop.f32.mrb[0].mxu0
        %3132 = vmatprep.mubr.bf16.mxu0 0
        %3133 = vmatmul.mubr.bf16.gmra.mrb[0].mxu0 %v2850
        %v3134 = vpop.f32.mrb[0].mxu0
        %v3135 = vadd.f32 0.0, %v3134
        %v3136 = vpop.f32.mrb[0].mxu0
        %v3137 = vpop.f32.mrb[0].mxu0
        %v3138 = vadd.f32 0.0, %v3137
        %v3139 = vpop.f32.mrb[0].mxu0
        %3140 = vdwg.mxu0
        %v3141 = vld [vmem:[%s4] sm:$0xf]
        %v3142 = vld [vmem:[%s4 + $0x4] sm:$0xf]
        %v3143 = vld [vmem:[%s4 + $0x8] sm:$0xf]
        %v3144 = vld [vmem:[%s4 + $0xc] sm:$0xf]
        %v3149 = vunpack.c.l.b16 %v3141
        %v3150 = vunpack.c.l.b16 %v3142
        %v3151 = vunpack.c.l.b16 %v3143
        %v3152 = vunpack.c.l.b16 %v3144
        %v3153 = vpack.c.b16 %v3150, %v3149
        %v3154 = vpack.c.b16 %v3152, %v3151
        %3157 = vmatprep.subr.bf16.mxu0 0
        %3158 = vmatpush1.bf16.msra.mxu0 %v3153
        %3159 = vmatprep.subr.bf16.mxu0 0
        %3160 = vmatpush1.bf16.msra.mxu0 %v3154
        %3161 = vmatprep.subr.bf16.mxu0 0
        %3162 = vmatpush1.bf16.msra.mxu0 0
        %3163 = vmatprep.subr.bf16.mxu0 0
        %3164 = vmatpush1.bf16.msra.mxu0 0
        %3165 = vmatprep.subr.bf16.mxu0 0
        %3166 = vmatpush1.bf16.msra.mxu0 0
        %3167 = vmatprep.subr.bf16.mxu0 0
        %3168 = vmatpush1.bf16.msra.mxu0 0
        %3169 = vmatprep.subr.bf16.mxu0 0
        %3170 = vmatpush1.bf16.msra.mxu0 0
        %3171 = vmatprep.subr.bf16.mxu0 0
        %3172 = vmatpush1.bf16.msra.mxu0 0
        %3173 = vmatprep.subr.bf16.mxu0 0
        %3174 = vmatpush1.bf16.msra.mxu0 0
        %3175 = vmatprep.subr.bf16.mxu0 0
        %3176 = vmatpush1.bf16.msra.mxu0 0
        %3177 = vmatprep.subr.bf16.mxu0 0
        %3178 = vmatpush1.bf16.msra.mxu0 0
        %3179 = vmatprep.subr.bf16.mxu0 0
        %3180 = vmatpush1.bf16.msra.mxu0 0
        %3181 = vmatprep.subr.bf16.mxu0 0
        %3182 = vmatpush1.bf16.msra.mxu0 0
        %3183 = vmatprep.subr.bf16.mxu0 0
        %3184 = vmatpush1.bf16.msra.mxu0 0
        %3185 = vmatprep.subr.bf16.mxu0 0
        %3186 = vmatpush1.bf16.msra.mxu0 0
        %3187 = vmatprep.subr.bf16.mxu0 0
        %3188 = vmatpush1.bf16.msra.mxu0 0
        %3189 = vmatprep.mubr.bf16.mxu0 0
        %3190 = vmatmul.mubr.bf16.gmra.mrb[0].mxu0 %v2757
        %v3191 = vpop.f32.mrb[0].mxu0
        %v3192 = vadd.f32 0.0, %v3191
        %v3193 = vpop.f32.mrb[0].mxu0
        %v3194 = vpop.f32.mrb[0].mxu0
        %v3195 = vadd.f32 0.0, %v3194
        %v3196 = vpop.f32.mrb[0].mxu0
        %3197 = vmatprep.mubr.bf16.mxu0 0
        %3198 = vmatmul.mubr.bf16.gmra.mrb[0].mxu0 %v2760
        %v3199 = vpop.f32.mrb[0].mxu0
        %v3200 = vadd.f32 0.0, %v3199
        %v3201 = vpop.f32.mrb[0].mxu0
        %v3202 = vpop.f32.mrb[0].mxu0
        %v3203 = vadd.f32 0.0, %v3202
        %v3204 = vpop.f32.mrb[0].mxu0
        %3205 = vmatprep.mubr.bf16.mxu0 0
        %3206 = vmatmul.mubr.bf16.gmra.mrb[0].mxu0 %v2763
        %v3207 = vpop.f32.mrb[0].mxu0
        %v3208 = vadd.f32 0.0, %v3207
        %v3209 = vpop.f32.mrb[0].mxu0
        %v3210 = vpop.f32.mrb[0].mxu0
        %v3211 = vadd.f32 0.0, %v3210
        %v3212 = vpop.f32.mrb[0].mxu0
        %3213 = vmatprep.mubr.bf16.mxu0 0
        %3214 = vmatmul.mubr.bf16.gmra.mrb[0].mxu0 %v2766
        %v3215 = vpop.f32.mrb[0].mxu0
        %v3216 = vadd.f32 0.0, %v3215
        %v3217 = vpop.f32.mrb[0].mxu0
        %v3218 = vpop.f32.mrb[0].mxu0
        %v3219 = vadd.f32 0.0, %v3218
        %v3220 = vpop.f32.mrb[0].mxu0
        %3221 = vmatprep.mubr.bf16.mxu0 0
        %3222 = vmatmul.mubr.bf16.gmra.mrb[0].mxu0 %v2769
        %v3223 = vpop.f32.mrb[0].mxu0
        %v3224 = vadd.f32 0.0, %v3223
        %v3225 = vpop.f32.mrb[0].mxu0
        %v3226 = vpop.f32.mrb[0].mxu0
        %v3227 = vadd.f32 0.0, %v3226
        %v3228 = vpop.f32.mrb[0].mxu0
        %3229 = vmatprep.mubr.bf16.mxu0 0
        %3230 = vmatmul.mubr.bf16.gmra.mrb[0].mxu0 %v2772
        %v3231 = vpop.f32.mrb[0].mxu0
        %v3232 = vadd.f32 0.0, %v3231
        %v3233 = vpop.f32.mrb[0].mxu0
        %v3234 = vpop.f32.mrb[0].mxu0
        %v3235 = vadd.f32 0.0, %v3234
        %v3236 = vpop.f32.mrb[0].mxu0
        %3237 = vmatprep.mubr.bf16.mxu0 0
        %3238 = vmatmul.mubr.bf16.gmra.mrb[0].mxu0 %v2775
        %v3239 = vpop.f32.mrb[0].mxu0
        %v3240 = vadd.f32 0.0, %v3239
        %v3241 = vpop.f32.mrb[0].mxu0
        %v3242 = vpop.f32.mrb[0].mxu0
        %v3243 = vadd.f32 0.0, %v3242
        %v3244 = vpop.f32.mrb[0].mxu0
        %3245 = vmatprep.mubr.bf16.mxu0 0
        %3246 = vmatmul.mubr.bf16.gmra.mrb[0].mxu0 %v2778
        %v3247 = vpop.f32.mrb[0].mxu0
        %v3248 = vadd.f32 0.0, %v3247
        %v3249 = vpop.f32.mrb[0].mxu0
        %v3250 = vpop.f32.mrb[0].mxu0
        %v3251 = vadd.f32 0.0, %v3250
        %v3252 = vpop.f32.mrb[0].mxu0
        %3253 = vmatprep.mubr.bf16.mxu0 0
        %3254 = vmatmul.mubr.bf16.gmra.mrb[0].mxu0 %v2781
        %v3255 = vpop.f32.mrb[0].mxu0
        %v3256 = vadd.f32 0.0, %v3255
        %v3257 = vpop.f32.mrb[0].mxu0
        %v3258 = vpop.f32.mrb[0].mxu0
        %v3259 = vadd.f32 0.0, %v3258
        %v3260 = vpop.f32.mrb[0].mxu0
        %3261 = vmatprep.mubr.bf16.mxu0 0
        %3262 = vmatmul.mubr.bf16.gmra.mrb[0].mxu0 %v2784
        %v3263 = vpop.f32.mrb[0].mxu0
        %v3264 = vadd.f32 0.0, %v3263
        %v3265 = vpop.f32.mrb[0].mxu0
        %v3266 = vpop.f32.mrb[0].mxu0
        %v3267 = vadd.f32 0.0, %v3266
        %v3268 = vpop.f32.mrb[0].mxu0
        %3269 = vmatprep.mubr.bf16.mxu0 0
        %3270 = vmatmul.mubr.bf16.gmra.mrb[0].mxu0 %v2787
        %v3271 = vpop.f32.mrb[0].mxu0
        %v3272 = vadd.f32 0.0, %v3271
        %v3273 = vpop.f32.mrb[0].mxu0
        %v3274 = vpop.f32.mrb[0].mxu0
        %v3275 = vadd.f32 0.0, %v3274
        %v3276 = vpop.f32.mrb[0].mxu0
        %3277 = vmatprep.mubr.bf16.mxu0 0
        %3278 = vmatmul.mubr.bf16.gmra.mrb[0].mxu0 %v2790
        %v3279 = vpop.f32.mrb[0].mxu0
        %v3280 = vadd.f32 0.0, %v3279
        %v3281 = vpop.f32.mrb[0].mxu0
        %v3282 = vpop.f32.mrb[0].mxu0
        %v3283 = vadd.f32 0.0, %v3282
        %v3284 = vpop.f32.mrb[0].mxu0
        %3285 = vmatprep.mubr.bf16.mxu0 0
        %3286 = vmatmul.mubr.bf16.gmra.mrb[0].mxu0 %v2793
        %v3287 = vpop.f32.mrb[0].mxu0
        %v3288 = vadd.f32 0.0, %v3287
        %v3289 = vpop.f32.mrb[0].mxu0
        %v3290 = vpop.f32.mrb[0].mxu0
        %v3291 = vadd.f32 0.0, %v3290
        %v3292 = vpop.f32.mrb[0].mxu0
        %3293 = vmatprep.mubr.bf16.mxu0 0
        %3294 = vmatmul.mubr.bf16.gmra.mrb[0].mxu0 %v2796
        %v3295 = vpop.f32.mrb[0].mxu0
        %v3296 = vadd.f32 0.0, %v3295
        %v3297 = vpop.f32.mrb[0].mxu0
        %v3298 = vpop.f32.mrb[0].mxu0
        %v3299 = vadd.f32 0.0, %v3298
        %v3300 = vpop.f32.mrb[0].mxu0
        %3301 = vmatprep.mubr.bf16.mxu0 0
        %3302 = vmatmul.mubr.bf16.gmra.mrb[0].mxu0 %v2799
        %v3303 = vpop.f32.mrb[0].mxu0
        %v3304 = vadd.f32 0.0, %v3303
        %v3305 = vpop.f32.mrb[0].mxu0
        %v3306 = vpop.f32.mrb[0].mxu0
        %v3307 = vadd.f32 0.0, %v3306
        %v3308 = vpop.f32.mrb[0].mxu0
        %3309 = vmatprep.mubr.bf16.mxu0 0
        %3310 = vmatmul.mubr.bf16.gmra.mrb[0].mxu0 %v2802
        %v3311 = vpop.f32.mrb[0].mxu0
        %v3312 = vadd.f32 0.0, %v3311
        %v3313 = vpop.f32.mrb[0].mxu0
        %v3314 = vpop.f32.mrb[0].mxu0
        %v3315 = vadd.f32 0.0, %v3314
        %v3316 = vpop.f32.mrb[0].mxu0
        %3317 = vmatprep.mubr.bf16.mxu0 0
        %3318 = vmatmul.mubr.bf16.gmra.mrb[0].mxu0 %v2805
        %v3319 = vpop.f32.mrb[0].mxu0
        %v3320 = vadd.f32 0.0, %v3319
        %v3321 = vpop.f32.mrb[0].mxu0
        %v3322 = vpop.f32.mrb[0].mxu0
        %v3323 = vadd.f32 0.0, %v3322
        %v3324 = vpop.f32.mrb[0].mxu0
        %3325 = vmatprep.mubr.bf16.mxu0 0
        %3326 = vmatmul.mubr.bf16.gmra.mrb[0].mxu0 %v2808
        %v3327 = vpop.f32.mrb[0].mxu0
        %v3328 = vadd.f32 0.0, %v3327
        %v3329 = vpop.f32.mrb[0].mxu0
        %v3330 = vpop.f32.mrb[0].mxu0
        %v3331 = vadd.f32 0.0, %v3330
        %v3332 = vpop.f32.mrb[0].mxu0
        %3333 = vmatprep.mubr.bf16.mxu0 0
        %3334 = vmatmul.mubr.bf16.gmra.mrb[0].mxu0 %v2811
        %v3335 = vpop.f32.mrb[0].mxu0
        %v3336 = vadd.f32 0.0, %v3335
        %v3337 = vpop.f32.mrb[0].mxu0
        %v3338 = vpop.f32.mrb[0].mxu0
        %v3339 = vadd.f32 0.0, %v3338
        %v3340 = vpop.f32.mrb[0].mxu0
        %3341 = vmatprep.mubr.bf16.mxu0 0
        %3342 = vmatmul.mubr.bf16.gmra.mrb[0].mxu0 %v2814
        %v3343 = vpop.f32.mrb[0].mxu0
        %v3344 = vadd.f32 0.0, %v3343
        %v3345 = vpop.f32.mrb[0].mxu0
        %v3346 = vpop.f32.mrb[0].mxu0
        %v3347 = vadd.f32 0.0, %v3346
        %v3348 = vpop.f32.mrb[0].mxu0
        %3349 = vmatprep.mubr.bf16.mxu0 0
        %3350 = vmatmul.mubr.bf16.gmra.mrb[0].mxu0 %v2817
        %v3351 = vpop.f32.mrb[0].mxu0
        %v3352 = vadd.f32 0.0, %v3351
        %v3353 = vpop.f32.mrb[0].mxu0
        %v3354 = vpop.f32.mrb[0].mxu0
        %v3355 = vadd.f32 0.0, %v3354
        %v3356 = vpop.f32.mrb[0].mxu0
        %3357 = vmatprep.mubr.bf16.mxu0 0
        %3358 = vmatmul.mubr.bf16.gmra.mrb[0].mxu0 %v2820
        %v3359 = vpop.f32.mrb[0].mxu0
        %v3360 = vadd.f32 0.0, %v3359
        %v3361 = vpop.f32.mrb[0].mxu0
        %v3362 = vpop.f32.mrb[0].mxu0
        %v3363 = vadd.f32 0.0, %v3362
        %v3364 = vpop.f32.mrb[0].mxu0
        %3365 = vmatprep.mubr.bf16.mxu0 0
        %3366 = vmatmul.mubr.bf16.gmra.mrb[0].mxu0 %v2823
        %v3367 = vpop.f32.mrb[0].mxu0
        %v3368 = vadd.f32 0.0, %v3367
        %v3369 = vpop.f32.mrb[0].mxu0
        %v3370 = vpop.f32.mrb[0].mxu0
        %v3371 = vadd.f32 0.0, %v3370
        %v3372 = vpop.f32.mrb[0].mxu0
        %3373 = vmatprep.mubr.bf16.mxu0 0
        %3374 = vmatmul.mubr.bf16.gmra.mrb[0].mxu0 %v2826
        %v3375 = vpop.f32.mrb[0].mxu0
        %v3376 = vadd.f32 0.0, %v3375
        %v3377 = vpop.f32.mrb[0].mxu0
        %v3378 = vpop.f32.mrb[0].mxu0
        %v3379 = vadd.f32 0.0, %v3378
        %v3380 = vpop.f32.mrb[0].mxu0
        %3381 = vmatprep.mubr.bf16.mxu0 0
        %3382 = vmatmul.mubr.bf16.gmra.mrb[0].mxu0 %v2829
        %v3383 = vpop.f32.mrb[0].mxu0
        %v3384 = vadd.f32 0.0, %v3383
        %v3385 = vpop.f32.mrb[0].mxu0
        %v3386 = vpop.f32.mrb[0].mxu0
        %v3387 = vadd.f32 0.0, %v3386
        %v3388 = vpop.f32.mrb[0].mxu0
        %3389 = vmatprep.mubr.bf16.mxu0 0
        %3390 = vmatmul.mubr.bf16.gmra.mrb[0].mxu0 %v2832
        %v3391 = vpop.f32.mrb[0].mxu0
        %v3392 = vadd.f32 0.0, %v3391
        %v3393 = vpop.f32.mrb[0].mxu0
        %v3394 = vpop.f32.mrb[0].mxu0
        %v3395 = vadd.f32 0.0, %v3394
        %v3396 = vpop.f32.mrb[0].mxu0
        %3397 = vmatprep.mubr.bf16.mxu0 0
        %3398 = vmatmul.mubr.bf16.gmra.mrb[0].mxu0 %v2835
        %v3399 = vpop.f32.mrb[0].mxu0
        %v3400 = vadd.f32 0.0, %v3399
        %v3401 = vpop.f32.mrb[0].mxu0
        %v3402 = vpop.f32.mrb[0].mxu0
        %v3403 = vadd.f32 0.0, %v3402
        %v3404 = vpop.f32.mrb[0].mxu0
        %3405 = vmatprep.mubr.bf16.mxu0 0
        %3406 = vmatmul.mubr.bf16.gmra.mrb[0].mxu0 %v2838
        %v3407 = vpop.f32.mrb[0].mxu0
        %v3408 = vadd.f32 0.0, %v3407
        %v3409 = vpop.f32.mrb[0].mxu0
        %v3410 = vpop.f32.mrb[0].mxu0
        %v3411 = vadd.f32 0.0, %v3410
        %v3412 = vpop.f32.mrb[0].mxu0
        %3413 = vmatprep.mubr.bf16.mxu0 0
        %3414 = vmatmul.mubr.bf16.gmra.mrb[0].mxu0 %v2841
        %v3415 = vpop.f32.mrb[0].mxu0
        %v3416 = vadd.f32 0.0, %v3415
        %v3417 = vpop.f32.mrb[0].mxu0
        %v3418 = vpop.f32.mrb[0].mxu0
        %v3419 = vadd.f32 0.0, %v3418
        %v3420 = vpop.f32.mrb[0].mxu0
        %3421 = vmatprep.mubr.bf16.mxu0 0
        %3422 = vmatmul.mubr.bf16.gmra.mrb[0].mxu0 %v2844
        %v3423 = vpop.f32.mrb[0].mxu0
        %v3424 = vadd.f32 0.0, %v3423
        %v3425 = vpop.f32.mrb[0].mxu0
        %v3426 = vpop.f32.mrb[0].mxu0
        %v3427 = vadd.f32 0.0, %v3426
        %v3428 = vpop.f32.mrb[0].mxu0
        %3429 = vmatprep.mubr.bf16.mxu0 0
        %3430 = vmatmul.mubr.bf16.gmra.mrb[0].mxu0 %v2847
        %v3431 = vpop.f32.mrb[0].mxu0
        %v3432 = vadd.f32 0.0, %v3431
        %v3433 = vpop.f32.mrb[0].mxu0
        %v3434 = vpop.f32.mrb[0].mxu0
        %v3435 = vadd.f32 0.0, %v3434
        %v3436 = vpop.f32.mrb[0].mxu0
        %3437 = vmatprep.mubr.bf16.mxu0 0
        %3438 = vmatmul.mubr.bf16.gmra.mrb[0].mxu0 %v2850
        %v3439 = vpop.f32.mrb[0].mxu0
        %v3440 = vadd.f32 0.0, %v3439
        %v3441 = vpop.f32.mrb[0].mxu0
        %v3442 = vpop.f32.mrb[0].mxu0
        %v3443 = vadd.f32 0.0, %v3442
        %v3444 = vpop.f32.mrb[0].mxu0
        %3445 = vdwg.mxu0
        %v3446 = vpack.c.bf16 %v2890, %v2887
        %v3447 = vpack.c.bf16 %v2898, %v2895
        %v3448 = vpack.c.bf16 %v2906, %v2903
        %v3449 = vpack.c.bf16 %v2914, %v2911
        %v3450 = vpack.c.bf16 %v2922, %v2919
        %v3451 = vpack.c.bf16 %v2930, %v2927
        %v3452 = vpack.c.bf16 %v2938, %v2935
        %v3453 = vpack.c.bf16 %v2946, %v2943
        %v3454 = vpack.c.bf16 %v2954, %v2951
        %v3455 = vpack.c.bf16 %v2962, %v2959
        %v3456 = vpack.c.bf16 %v2970, %v2967
        %v3457 = vpack.c.bf16 %v2978, %v2975
        %v3458 = vpack.c.bf16 %v2986, %v2983
        %v3459 = vpack.c.bf16 %v2994, %v2991
        %v3460 = vpack.c.bf16 %v3002, %v2999
        %v3461 = vpack.c.bf16 %v3010, %v3007
        %v3462 = vpack.c.bf16 %v3018, %v3015
        %v3463 = vpack.c.bf16 %v3026, %v3023
        %v3464 = vpack.c.bf16 %v3034, %v3031
        %v3465 = vpack.c.bf16 %v3042, %v3039
        %v3466 = vpack.c.bf16 %v3050, %v3047
        %v3467 = vpack.c.bf16 %v3058, %v3055
        %v3468 = vpack.c.bf16 %v3066, %v3063
        %v3469 = vpack.c.bf16 %v3074, %v3071
        %v3470 = vpack.c.bf16 %v3082, %v3079
        %v3471 = vpack.c.bf16 %v3090, %v3087
        %v3472 = vpack.c.bf16 %v3098, %v3095
        %v3473 = vpack.c.bf16 %v3106, %v3103
        %v3474 = vpack.c.bf16 %v3114, %v3111
        %v3475 = vpack.c.bf16 %v3122, %v3119
        %v3476 = vpack.c.bf16 %v3130, %v3127
        %v3477 = vpack.c.bf16 %v3138, %v3135
        %v3478 = vpack.c.bf16 %v3195, %v3192
        %v3479 = vpack.c.bf16 %v3203, %v3200
        %v3480 = vpack.c.bf16 %v3211, %v3208
        %v3481 = vpack.c.bf16 %v3219, %v3216
        %v3482 = vpack.c.bf16 %v3227, %v3224
        %v3483 = vpack.c.bf16 %v3235, %v3232
        %v3484 = vpack.c.bf16 %v3243, %v3240
        %v3485 = vpack.c.bf16 %v3251, %v3248
        %v3486 = vpack.c.bf16 %v3259, %v3256
        %v3487 = vpack.c.bf16 %v3267, %v3264
        %v3488 = vpack.c.bf16 %v3275, %v3272
        %v3489 = vpack.c.bf16 %v3283, %v3280
        %v3490 = vpack.c.bf16 %v3291, %v3288
        %v3491 = vpack.c.bf16 %v3299, %v3296
        %v3492 = vpack.c.bf16 %v3307, %v3304
        %v3493 = vpack.c.bf16 %v3315, %v3312
        %v3494 = vpack.c.bf16 %v3323, %v3320
        %v3495 = vpack.c.bf16 %v3331, %v3328
        %v3496 = vpack.c.bf16 %v3339, %v3336
        %v3497 = vpack.c.bf16 %v3347, %v3344
        %v3498 = vpack.c.bf16 %v3355, %v3352
        %v3499 = vpack.c.bf16 %v3363, %v3360
        %v3500 = vpack.c.bf16 %v3371, %v3368
        %v3501 = vpack.c.bf16 %v3379, %v3376
        %v3502 = vpack.c.bf16 %v3387, %v3384
        %v3503 = vpack.c.bf16 %v3395, %v3392
        %v3504 = vpack.c.bf16 %v3403, %v3400
        %v3505 = vpack.c.bf16 %v3411, %v3408
        %v3506 = vpack.c.bf16 %v3419, %v3416
        %v3507 = vpack.c.bf16 %v3427, %v3424
        %v3508 = vpack.c.bf16 %v3435, %v3432
        %v3509 = vpack.c.bf16 %v3443, %v3440
        %v3510 = vld [vmem:[%s5] sm:$0xf]
        %v3511 = vld [vmem:[%s5 + $0x4] sm:$0xf]
        %v3512 = vld [vmem:[%s5 + $0x8] sm:$0xf]
        %v3513 = vld [vmem:[%s5 + $0xc] sm:$0xf]
        %v3514 = vld [vmem:[%s5 + $0x10] sm:$0xf]
        %v3515 = vld [vmem:[%s5 + $0x14] sm:$0xf]
        %v3516 = vld [vmem:[%s5 + $0x18] sm:$0xf]
        %v3517 = vld [vmem:[%s5 + $0x1c] sm:$0xf]
        %v3518 = vld [vmem:[%s6] sm:$0xf]
        %v3519 = vld [vmem:[%s6 + $0x4] sm:$0xf]
        %v3520 = vld [vmem:[%s6 + $0x8] sm:$0xf]
        %v3521 = vld [vmem:[%s6 + $0xc] sm:$0xf]
        %v3522 = vld [vmem:[%s6 + $0x10] sm:$0xf]
        %v3523 = vld [vmem:[%s6 + $0x14] sm:$0xf]
        %v3524 = vld [vmem:[%s6 + $0x18] sm:$0xf]
        %v3525 = vld [vmem:[%s6 + $0x1c] sm:$0xf]
        %v3534 = vunpack.c.l.b16 %v3518
        %v3535 = vunpack.c.l.b16 %v3519
        %v3536 = vunpack.c.l.b16 %v3520
        %v3537 = vunpack.c.l.b16 %v3521
        %v3538 = vunpack.c.l.b16 %v3522
        %v3539 = vunpack.c.l.b16 %v3523
        %v3540 = vunpack.c.l.b16 %v3524
        %v3541 = vunpack.c.l.b16 %v3525
        %v3542 = vpack.c.b16 %v3535, %v3534
        %v3543 = vpack.c.b16 %v3537, %v3536
        %v3544 = vpack.c.b16 %v3539, %v3538
        %v3545 = vpack.c.b16 %v3541, %v3540
        %vm3546 = vcmask 523264
        %v3548 = vsel %vm3546, %v3542, 0
        %v3551 = vsel %vm3546, %v3543, 0
        %v3554 = vsel %vm3546, %v3544, 0
        %v3557 = vsel %vm3546, %v3545, 0
        %3559 = vmatprep.subr.bf16.mxu0 0
        %3560 = vmatpush1.bf16.msra.mxu0 %v3478
        %3561 = vmatprep.subr.bf16.mxu0 0
        %3562 = vmatpush1.bf16.msra.mxu0 %v3479
        %3563 = vmatprep.subr.bf16.mxu0 0
        %3564 = vmatpush1.bf16.msra.mxu0 %v3480
        %3565 = vmatprep.subr.bf16.mxu0 0
        %3566 = vmatpush1.bf16.msra.mxu0 %v3481
        %3567 = vmatprep.subr.bf16.mxu0 0
        %3568 = vmatpush1.bf16.msra.mxu0 0
        %3569 = vmatprep.subr.bf16.mxu0 0
        %3570 = vmatpush1.bf16.msra.mxu0 0
        %3571 = vmatprep.subr.bf16.mxu0 0
        %3572 = vmatpush1.bf16.msra.mxu0 0
        %3573 = vmatprep.subr.bf16.mxu0 0
        %3574 = vmatpush1.bf16.msra.mxu0 0
        %3575 = vmatprep.subr.bf16.mxu0 0
        %3576 = vmatpush1.bf16.msra.mxu0 0
        %3577 = vmatprep.subr.bf16.mxu0 0
        %3578 = vmatpush1.bf16.msra.mxu0 0
        %3579 = vmatprep.subr.bf16.mxu0 0
        %3580 = vmatpush1.bf16.msra.mxu0 0
        %3581 = vmatprep.subr.bf16.mxu0 0
        %3582 = vmatpush1.bf16.msra.mxu0 0
        %3583 = vmatprep.subr.bf16.mxu0 0
        %3584 = vmatpush1.bf16.msra.mxu0 0
        %3585 = vmatprep.subr.bf16.mxu0 0
        %3586 = vmatpush1.bf16.msra.mxu0 0
        %3587 = vmatprep.subr.bf16.mxu0 0
        %3588 = vmatpush1.bf16.msra.mxu0 0
        %3589 = vmatprep.subr.bf16.mxu0 0
        %3590 = vmatpush1.bf16.msra.mxu0 0
        %3591 = vmatprep.mubr.bf16.mxu0 0
        %3592 = vmatmul.mubr.bf16.gmra.mrb[0].mxu0 %v3548
        %v3593 = vpop.f32.mrb[0].mxu0
        %v3594 = vadd.f32 0.0, %v3593
        %v3595 = vpop.f32.mrb[0].mxu0
        %v3596 = vpop.f32.mrb[0].mxu0
        %v3597 = vadd.f32 0.0, %v3596
        %v3598 = vpop.f32.mrb[0].mxu0
        %3599 = vmatprep.mubr.bf16.mxu0 0
        %3600 = vmatmul.mubr.bf16.gmra.mrb[0].mxu0 %v3551
        %v3601 = vpop.f32.mrb[0].mxu0
        %v3602 = vadd.f32 0.0, %v3601
        %v3603 = vpop.f32.mrb[0].mxu0
        %v3604 = vpop.f32.mrb[0].mxu0
        %v3605 = vadd.f32 0.0, %v3604
        %v3606 = vpop.f32.mrb[0].mxu0
        %3607 = vmatprep.mubr.bf16.mxu0 0
        %3608 = vmatmul.mubr.bf16.gmra.mrb[0].mxu0 %v3554
        %v3609 = vpop.f32.mrb[0].mxu0
        %v3610 = vadd.f32 0.0, %v3609
        %v3611 = vpop.f32.mrb[0].mxu0
        %v3612 = vpop.f32.mrb[0].mxu0
        %v3613 = vadd.f32 0.0, %v3612
        %v3614 = vpop.f32.mrb[0].mxu0
        %3615 = vmatprep.mubr.bf16.mxu0 0
        %3616 = vmatmul.mubr.bf16.gmra.mrb[0].mxu0 %v3557
        %v3617 = vpop.f32.mrb[0].mxu0
        %v3618 = vadd.f32 0.0, %v3617
        %v3619 = vpop.f32.mrb[0].mxu0
        %v3620 = vpop.f32.mrb[0].mxu0
        %v3621 = vadd.f32 0.0, %v3620
        %v3622 = vpop.f32.mrb[0].mxu0
        %3623 = vdwg.mxu0
        %v3632 = vunpack.c.l.b16 %v3510
        %v3633 = vunpack.c.l.b16 %v3511
        %v3634 = vunpack.c.l.b16 %v3512
        %v3635 = vunpack.c.l.b16 %v3513
        %v3636 = vunpack.c.l.b16 %v3514
        %v3637 = vunpack.c.l.b16 %v3515
        %v3638 = vunpack.c.l.b16 %v3516
        %v3639 = vunpack.c.l.b16 %v3517
        %v3640 = vpack.c.b16 %v3633, %v3632
        %v3641 = vpack.c.b16 %v3635, %v3634
        %v3642 = vpack.c.b16 %v3637, %v3636
        %v3643 = vpack.c.b16 %v3639, %v3638
        %v3645 = vsel %vm3546, %v3640, 0
        %v3648 = vsel %vm3546, %v3641, 0
        %v3651 = vsel %vm3546, %v3642, 0
        %v3654 = vsel %vm3546, %v3643, 0
        %3656 = vmatprep.subr.bf16.mxu0 0
        %3657 = vmatpush1.bf16.msra.mxu0 %v3446
        %3658 = vmatprep.subr.bf16.mxu0 0
        %3659 = vmatpush1.bf16.msra.mxu0 %v3447
        %3660 = vmatprep.subr.bf16.mxu0 0
        %3661 = vmatpush1.bf16.msra.mxu0 %v3448
        %3662 = vmatprep.subr.bf16.mxu0 0
        %3663 = vmatpush1.bf16.msra.mxu0 %v3449
        %3664 = vmatprep.subr.bf16.mxu0 0
        %3665 = vmatpush1.bf16.msra.mxu0 0
        %3666 = vmatprep.subr.bf16.mxu0 0
        %3667 = vmatpush1.bf16.msra.mxu0 0
        %3668 = vmatprep.subr.bf16.mxu0 0
        %3669 = vmatpush1.bf16.msra.mxu0 0
        %3670 = vmatprep.subr.bf16.mxu0 0
        %3671 = vmatpush1.bf16.msra.mxu0 0
        %3672 = vmatprep.subr.bf16.mxu0 0
        %3673 = vmatpush1.bf16.msra.mxu0 0
        %3674 = vmatprep.subr.bf16.mxu0 0
        %3675 = vmatpush1.bf16.msra.mxu0 0
        %3676 = vmatprep.subr.bf16.mxu0 0
        %3677 = vmatpush1.bf16.msra.mxu0 0
        %3678 = vmatprep.subr.bf16.mxu0 0
        %3679 = vmatpush1.bf16.msra.mxu0 0
        %3680 = vmatprep.subr.bf16.mxu0 0
        %3681 = vmatpush1.bf16.msra.mxu0 0
        %3682 = vmatprep.subr.bf16.mxu0 0
        %3683 = vmatpush1.bf16.msra.mxu0 0
        %3684 = vmatprep.subr.bf16.mxu0 0
        %3685 = vmatpush1.bf16.msra.mxu0 0
        %3686 = vmatprep.subr.bf16.mxu0 0
        %3687 = vmatpush1.bf16.msra.mxu0 0
        %3688 = vmatprep.mubr.bf16.mxu0 0
        %3689 = vmatmul.mubr.bf16.gmra.mrb[0].mxu0 %v3645
        %v3690 = vpop.f32.mrb[0].mxu0
        %v3691 = vadd.f32 %v3594, %v3690
        %v3692 = vpop.f32.mrb[0].mxu0
        %v3693 = vpop.f32.mrb[0].mxu0
        %v3694 = vadd.f32 %v3597, %v3693
        %v3695 = vpop.f32.mrb[0].mxu0
        %3696 = vmatprep.mubr.bf16.mxu0 0
        %3697 = vmatmul.mubr.bf16.gmra.mrb[0].mxu0 %v3648
        %v3698 = vpop.f32.mrb[0].mxu0
        %v3699 = vadd.f32 %v3602, %v3698
        %v3700 = vpop.f32.mrb[0].mxu0
        %v3701 = vpop.f32.mrb[0].mxu0
        %v3702 = vadd.f32 %v3605, %v3701
        %v3703 = vpop.f32.mrb[0].mxu0
        %3704 = vmatprep.mubr.bf16.mxu0 0
        %3705 = vmatmul.mubr.bf16.gmra.mrb[0].mxu0 %v3651
        %v3706 = vpop.f32.mrb[0].mxu0
        %v3707 = vadd.f32 %v3610, %v3706
        %v3708 = vpop.f32.mrb[0].mxu0
        %v3709 = vpop.f32.mrb[0].mxu0
        %v3710 = vadd.f32 %v3613, %v3709
        %v3711 = vpop.f32.mrb[0].mxu0
        %3712 = vmatprep.mubr.bf16.mxu0 0
        %3713 = vmatmul.mubr.bf16.gmra.mrb[0].mxu0 %v3654
        %v3714 = vpop.f32.mrb[0].mxu0
        %v3715 = vadd.f32 %v3618, %v3714
        %v3716 = vpop.f32.mrb[0].mxu0
        %v3717 = vpop.f32.mrb[0].mxu0
        %v3718 = vadd.f32 %v3621, %v3717
        %v3719 = vpop.f32.mrb[0].mxu0
        %3720 = vdwg.mxu0
        %v3729 = vcombine.high %v3691, %v3691
        %v3731 = vunpack.c.l.s4 1966171168
        %v3732 = vunpack.c.0.s8 %v3731
        %v3733 = vlaneseq
        %v3734 = vshrl.u32 %v3733, 7
        %v3735 = vsub.s32 %v3732, %v3734
        %v3736 = vrot.slane %v3691, %v3735
        %v3738 = vunpack.c.l.s4 1966171168
        %v3739 = vunpack.c.0.s8 %v3738
        %v3740 = vlaneseq
        %v3741 = vshrl.u32 %v3740, 7
        %v3742 = vsub.s32 %v3739, %v3741
        %v3743 = vrot.slane %v3729, %v3742
        %v3744 = vcombine.high %v3736, %v3736
        %v3745 = vcombine.high %v3743, %v3743
        %v3747 = vunpack.c.l.s4 1966171168
        %v3748 = vunpack.c.0.s8 %v3747
        %v3749 = vlaneseq
        %v3750 = vshrl.u32 %v3749, 7
        %v3751 = vsub.s32 %v3748, %v3750
        %v3752 = vrot.slane %v3736, %v3751
        %v3754 = vunpack.c.l.s4 1966171168
        %v3755 = vunpack.c.0.s8 %v3754
        %v3756 = vlaneseq
        %v3757 = vshrl.u32 %v3756, 7
        %v3758 = vsub.s32 %v3755, %v3757
        %v3759 = vrot.slane %v3743, %v3758
        %v3761 = vunpack.c.l.s4 1966171168
        %v3762 = vunpack.c.0.s8 %v3761
        %v3763 = vlaneseq
        %v3764 = vshrl.u32 %v3763, 7
        %v3765 = vsub.s32 %v3762, %v3764
        %v3766 = vrot.slane %v3744, %v3765
        %v3768 = vunpack.c.l.s4 1966171168
        %v3769 = vunpack.c.0.s8 %v3768
        %v3770 = vlaneseq
        %v3771 = vshrl.u32 %v3770, 7
        %v3772 = vsub.s32 %v3769, %v3771
        %v3773 = vrot.slane %v3745, %v3772
        %v3774 = vcombine.high %v3752, %v3752
        %v3775 = vcombine.high %v3759, %v3759
        %v3776 = vcombine.high %v3766, %v3766
        %v3777 = vcombine.high %v3773, %v3773
        %v3778 = vcombine.high %v3694, %v3694
        %v3780 = vunpack.c.l.s4 1966171168
        %v3781 = vunpack.c.0.s8 %v3780
        %v3782 = vlaneseq
        %v3783 = vshrl.u32 %v3782, 7
        %v3784 = vsub.s32 %v3781, %v3783
        %v3785 = vrot.slane %v3694, %v3784
        %v3787 = vunpack.c.l.s4 1966171168
        %v3788 = vunpack.c.0.s8 %v3787
        %v3789 = vlaneseq
        %v3790 = vshrl.u32 %v3789, 7
        %v3791 = vsub.s32 %v3788, %v3790
        %v3792 = vrot.slane %v3778, %v3791
        %v3793 = vcombine.high %v3785, %v3785
        %v3794 = vcombine.high %v3792, %v3792
        %v3796 = vunpack.c.l.s4 1966171168
        %v3797 = vunpack.c.0.s8 %v3796
        %v3798 = vlaneseq
        %v3799 = vshrl.u32 %v3798, 7
        %v3800 = vsub.s32 %v3797, %v3799
        %v3801 = vrot.slane %v3785, %v3800
        %v3803 = vunpack.c.l.s4 1966171168
        %v3804 = vunpack.c.0.s8 %v3803
        %v3805 = vlaneseq
        %v3806 = vshrl.u32 %v3805, 7
        %v3807 = vsub.s32 %v3804, %v3806
        %v3808 = vrot.slane %v3792, %v3807
        %v3810 = vunpack.c.l.s4 1966171168
        %v3811 = vunpack.c.0.s8 %v3810
        %v3812 = vlaneseq
        %v3813 = vshrl.u32 %v3812, 7
        %v3814 = vsub.s32 %v3811, %v3813
        %v3815 = vrot.slane %v3793, %v3814
        %v3817 = vunpack.c.l.s4 1966171168
        %v3818 = vunpack.c.0.s8 %v3817
        %v3819 = vlaneseq
        %v3820 = vshrl.u32 %v3819, 7
        %v3821 = vsub.s32 %v3818, %v3820
        %v3822 = vrot.slane %v3794, %v3821
        %v3823 = vcombine.high %v3801, %v3801
        %v3824 = vcombine.high %v3808, %v3808
        %v3825 = vcombine.high %v3815, %v3815
        %v3826 = vcombine.high %v3822, %v3822
        %v3827 = vcombine.high %v3699, %v3699
        %v3829 = vunpack.c.l.s4 1966171168
        %v3830 = vunpack.c.0.s8 %v3829
        %v3831 = vlaneseq
        %v3832 = vshrl.u32 %v3831, 7
        %v3833 = vsub.s32 %v3830, %v3832
        %v3834 = vrot.slane %v3699, %v3833
        %v3836 = vunpack.c.l.s4 1966171168
        %v3837 = vunpack.c.0.s8 %v3836
        %v3838 = vlaneseq
        %v3839 = vshrl.u32 %v3838, 7
        %v3840 = vsub.s32 %v3837, %v3839
        %v3841 = vrot.slane %v3827, %v3840
        %v3842 = vcombine.high %v3834, %v3834
        %v3843 = vcombine.high %v3841, %v3841
        %v3845 = vunpack.c.l.s4 1966171168
        %v3846 = vunpack.c.0.s8 %v3845
        %v3847 = vlaneseq
        %v3848 = vshrl.u32 %v3847, 7
        %v3849 = vsub.s32 %v3846, %v3848
        %v3850 = vrot.slane %v3834, %v3849
        %v3852 = vunpack.c.l.s4 1966171168
        %v3853 = vunpack.c.0.s8 %v3852
        %v3854 = vlaneseq
        %v3855 = vshrl.u32 %v3854, 7
        %v3856 = vsub.s32 %v3853, %v3855
        %v3857 = vrot.slane %v3841, %v3856
        %v3859 = vunpack.c.l.s4 1966171168
        %v3860 = vunpack.c.0.s8 %v3859
        %v3861 = vlaneseq
        %v3862 = vshrl.u32 %v3861, 7
        %v3863 = vsub.s32 %v3860, %v3862
        %v3864 = vrot.slane %v3842, %v3863
        %v3866 = vunpack.c.l.s4 1966171168
        %v3867 = vunpack.c.0.s8 %v3866
        %v3868 = vlaneseq
        %v3869 = vshrl.u32 %v3868, 7
        %v3870 = vsub.s32 %v3867, %v3869
        %v3871 = vrot.slane %v3843, %v3870
        %v3872 = vcombine.high %v3850, %v3850
        %v3873 = vcombine.high %v3857, %v3857
        %v3874 = vcombine.high %v3864, %v3864
        %v3875 = vcombine.high %v3871, %v3871
        %v3876 = vcombine.high %v3702, %v3702
        %v3878 = vunpack.c.l.s4 1966171168
        %v3879 = vunpack.c.0.s8 %v3878
        %v3880 = vlaneseq
        %v3881 = vshrl.u32 %v3880, 7
        %v3882 = vsub.s32 %v3879, %v3881
        %v3883 = vrot.slane %v3702, %v3882
        %v3885 = vunpack.c.l.s4 1966171168
        %v3886 = vunpack.c.0.s8 %v3885
        %v3887 = vlaneseq
        %v3888 = vshrl.u32 %v3887, 7
        %v3889 = vsub.s32 %v3886, %v3888
        %v3890 = vrot.slane %v3876, %v3889
        %v3891 = vcombine.high %v3883, %v3883
        %v3892 = vcombine.high %v3890, %v3890
        %v3894 = vunpack.c.l.s4 1966171168
        %v3895 = vunpack.c.0.s8 %v3894
        %v3896 = vlaneseq
        %v3897 = vshrl.u32 %v3896, 7
        %v3898 = vsub.s32 %v3895, %v3897
        %v3899 = vrot.slane %v3883, %v3898
        %v3901 = vunpack.c.l.s4 1966171168
        %v3902 = vunpack.c.0.s8 %v3901
        %v3903 = vlaneseq
        %v3904 = vshrl.u32 %v3903, 7
        %v3905 = vsub.s32 %v3902, %v3904
        %v3906 = vrot.slane %v3890, %v3905
        %v3908 = vunpack.c.l.s4 1966171168
        %v3909 = vunpack.c.0.s8 %v3908
        %v3910 = vlaneseq
        %v3911 = vshrl.u32 %v3910, 7
        %v3912 = vsub.s32 %v3909, %v3911
        %v3913 = vrot.slane %v3891, %v3912
        %v3915 = vunpack.c.l.s4 1966171168
        %v3916 = vunpack.c.0.s8 %v3915
        %v3917 = vlaneseq
        %v3918 = vshrl.u32 %v3917, 7
        %v3919 = vsub.s32 %v3916, %v3918
        %v3920 = vrot.slane %v3892, %v3919
        %v3921 = vcombine.high %v3899, %v3899
        %v3922 = vcombine.high %v3906, %v3906
        %v3923 = vcombine.high %v3913, %v3913
        %v3924 = vcombine.high %v3920, %v3920
        %v3925 = vcombine.high %v3707, %v3707
        %v3927 = vunpack.c.l.s4 1966171168
        %v3928 = vunpack.c.0.s8 %v3927
        %v3929 = vlaneseq
        %v3930 = vshrl.u32 %v3929, 7
        %v3931 = vsub.s32 %v3928, %v3930
        %v3932 = vrot.slane %v3707, %v3931
        %v3934 = vunpack.c.l.s4 1966171168
        %v3935 = vunpack.c.0.s8 %v3934
        %v3936 = vlaneseq
        %v3937 = vshrl.u32 %v3936, 7
        %v3938 = vsub.s32 %v3935, %v3937
        %v3939 = vrot.slane %v3925, %v3938
        %v3940 = vcombine.high %v3932, %v3932
        %v3941 = vcombine.high %v3939, %v3939
        %v3943 = vunpack.c.l.s4 1966171168
        %v3944 = vunpack.c.0.s8 %v3943
        %v3945 = vlaneseq
        %v3946 = vshrl.u32 %v3945, 7
        %v3947 = vsub.s32 %v3944, %v3946
        %v3948 = vrot.slane %v3932, %v3947
        %v3950 = vunpack.c.l.s4 1966171168
        %v3951 = vunpack.c.0.s8 %v3950
        %v3952 = vlaneseq
        %v3953 = vshrl.u32 %v3952, 7
        %v3954 = vsub.s32 %v3951, %v3953
        %v3955 = vrot.slane %v3939, %v3954
        %v3957 = vunpack.c.l.s4 1966171168
        %v3958 = vunpack.c.0.s8 %v3957
        %v3959 = vlaneseq
        %v3960 = vshrl.u32 %v3959, 7
        %v3961 = vsub.s32 %v3958, %v3960
        %v3962 = vrot.slane %v3940, %v3961
        %v3964 = vunpack.c.l.s4 1966171168
        %v3965 = vunpack.c.0.s8 %v3964
        %v3966 = vlaneseq
        %v3967 = vshrl.u32 %v3966, 7
        %v3968 = vsub.s32 %v3965, %v3967
        %v3969 = vrot.slane %v3941, %v3968
        %v3970 = vcombine.high %v3948, %v3948
        %v3971 = vcombine.high %v3955, %v3955
        %v3972 = vcombine.high %v3962, %v3962
        %v3973 = vcombine.high %v3969, %v3969
        %v3974 = vcombine.high %v3710, %v3710
        %v3976 = vunpack.c.l.s4 1966171168
        %v3977 = vunpack.c.0.s8 %v3976
        %v3978 = vlaneseq
        %v3979 = vshrl.u32 %v3978, 7
        %v3980 = vsub.s32 %v3977, %v3979
        %v3981 = vrot.slane %v3710, %v3980
        %v3983 = vunpack.c.l.s4 1966171168
        %v3984 = vunpack.c.0.s8 %v3983
        %v3985 = vlaneseq
        %v3986 = vshrl.u32 %v3985, 7
        %v3987 = vsub.s32 %v3984, %v3986
        %v3988 = vrot.slane %v3974, %v3987
        %v3989 = vcombine.high %v3981, %v3981
        %v3990 = vcombine.high %v3988, %v3988
        %v3992 = vunpack.c.l.s4 1966171168
        %v3993 = vunpack.c.0.s8 %v3992
        %v3994 = vlaneseq
        %v3995 = vshrl.u32 %v3994, 7
        %v3996 = vsub.s32 %v3993, %v3995
        %v3997 = vrot.slane %v3981, %v3996
        %v3999 = vunpack.c.l.s4 1966171168
        %v4000 = vunpack.c.0.s8 %v3999
        %v4001 = vlaneseq
        %v4002 = vshrl.u32 %v4001, 7
        %v4003 = vsub.s32 %v4000, %v4002
        %v4004 = vrot.slane %v3988, %v4003
        %v4006 = vunpack.c.l.s4 1966171168
        %v4007 = vunpack.c.0.s8 %v4006
        %v4008 = vlaneseq
        %v4009 = vshrl.u32 %v4008, 7
        %v4010 = vsub.s32 %v4007, %v4009
        %v4011 = vrot.slane %v3989, %v4010
        %v4013 = vunpack.c.l.s4 1966171168
        %v4014 = vunpack.c.0.s8 %v4013
        %v4015 = vlaneseq
        %v4016 = vshrl.u32 %v4015, 7
        %v4017 = vsub.s32 %v4014, %v4016
        %v4018 = vrot.slane %v3990, %v4017
        %v4019 = vcombine.high %v3997, %v3997
        %v4020 = vcombine.high %v4004, %v4004
        %v4021 = vcombine.high %v4011, %v4011
        %v4022 = vcombine.high %v4018, %v4018
        %v4023 = vcombine.high %v3715, %v3715
        %v4025 = vunpack.c.l.s4 1966171168
        %v4026 = vunpack.c.0.s8 %v4025
        %v4027 = vlaneseq
        %v4028 = vshrl.u32 %v4027, 7
        %v4029 = vsub.s32 %v4026, %v4028
        %v4030 = vrot.slane %v3715, %v4029
        %v4032 = vunpack.c.l.s4 1966171168
        %v4033 = vunpack.c.0.s8 %v4032
        %v4034 = vlaneseq
        %v4035 = vshrl.u32 %v4034, 7
        %v4036 = vsub.s32 %v4033, %v4035
        %v4037 = vrot.slane %v4023, %v4036
        %v4038 = vcombine.high %v4030, %v4030
        %v4039 = vcombine.high %v4037, %v4037
        %v4041 = vunpack.c.l.s4 1966171168
        %v4042 = vunpack.c.0.s8 %v4041
        %v4043 = vlaneseq
        %v4044 = vshrl.u32 %v4043, 7
        %v4045 = vsub.s32 %v4042, %v4044
        %v4046 = vrot.slane %v4030, %v4045
        %v4048 = vunpack.c.l.s4 1966171168
        %v4049 = vunpack.c.0.s8 %v4048
        %v4050 = vlaneseq
        %v4051 = vshrl.u32 %v4050, 7
        %v4052 = vsub.s32 %v4049, %v4051
        %v4053 = vrot.slane %v4037, %v4052
        %v4055 = vunpack.c.l.s4 1966171168
        %v4056 = vunpack.c.0.s8 %v4055
        %v4057 = vlaneseq
        %v4058 = vshrl.u32 %v4057, 7
        %v4059 = vsub.s32 %v4056, %v4058
        %v4060 = vrot.slane %v4038, %v4059
        %v4062 = vunpack.c.l.s4 1966171168
        %v4063 = vunpack.c.0.s8 %v4062
        %v4064 = vlaneseq
        %v4065 = vshrl.u32 %v4064, 7
        %v4066 = vsub.s32 %v4063, %v4065
        %v4067 = vrot.slane %v4039, %v4066
        %v4068 = vcombine.high %v4046, %v4046
        %v4069 = vcombine.high %v4053, %v4053
        %v4070 = vcombine.high %v4060, %v4060
        %v4071 = vcombine.high %v4067, %v4067
        %v4072 = vcombine.high %v3718, %v3718
        %v4074 = vunpack.c.l.s4 1966171168
        %v4075 = vunpack.c.0.s8 %v4074
        %v4076 = vlaneseq
        %v4077 = vshrl.u32 %v4076, 7
        %v4078 = vsub.s32 %v4075, %v4077
        %v4079 = vrot.slane %v3718, %v4078
        %v4081 = vunpack.c.l.s4 1966171168
        %v4082 = vunpack.c.0.s8 %v4081
        %v4083 = vlaneseq
        %v4084 = vshrl.u32 %v4083, 7
        %v4085 = vsub.s32 %v4082, %v4084
        %v4086 = vrot.slane %v4072, %v4085
        %v4087 = vcombine.high %v4079, %v4079
        %v4088 = vcombine.high %v4086, %v4086
        %v4090 = vunpack.c.l.s4 1966171168
        %v4091 = vunpack.c.0.s8 %v4090
        %v4092 = vlaneseq
        %v4093 = vshrl.u32 %v4092, 7
        %v4094 = vsub.s32 %v4091, %v4093
        %v4095 = vrot.slane %v4079, %v4094
        %v4097 = vunpack.c.l.s4 1966171168
        %v4098 = vunpack.c.0.s8 %v4097
        %v4099 = vlaneseq
        %v4100 = vshrl.u32 %v4099, 7
        %v4101 = vsub.s32 %v4098, %v4100
        %v4102 = vrot.slane %v4086, %v4101
        %v4104 = vunpack.c.l.s4 1966171168
        %v4105 = vunpack.c.0.s8 %v4104
        %v4106 = vlaneseq
        %v4107 = vshrl.u32 %v4106, 7
        %v4108 = vsub.s32 %v4105, %v4107
        %v4109 = vrot.slane %v4087, %v4108
        %v4111 = vunpack.c.l.s4 1966171168
        %v4112 = vunpack.c.0.s8 %v4111
        %v4113 = vlaneseq
        %v4114 = vshrl.u32 %v4113, 7
        %v4115 = vsub.s32 %v4112, %v4114
        %v4116 = vrot.slane %v4088, %v4115
        %v4117 = vcombine.high %v4095, %v4095
        %v4118 = vcombine.high %v4102, %v4102
        %v4119 = vcombine.high %v4109, %v4109
        %v4120 = vcombine.high %v4116, %v4116
        %vm4185 = vcmask 122880
        %4186 = vst.msk [vmem:[%s577] sm:$0x1] %vm4185, %v3752
        %4187 = vst.msk [vmem:[%s577 + $0x8] sm:$0x1] %vm4185, %v3766
        %4188 = vst.msk [vmem:[%s577 + $0x10] sm:$0x1] %vm4185, %v3774
        %4189 = vst.msk [vmem:[%s577 + $0x18] sm:$0x1] %vm4185, %v3776
        %4190 = vst.msk [vmem:[%s577 + $0x20] sm:$0x1] %vm4185, %v3759
        %4191 = vst.msk [vmem:[%s577 + $0x28] sm:$0x1] %vm4185, %v3773
        %4192 = vst.msk [vmem:[%s577 + $0x30] sm:$0x1] %vm4185, %v3775
        %4193 = vst.msk [vmem:[%s577 + $0x38] sm:$0x1] %vm4185, %v3777
        %4194 = vst.msk [vmem:[%s577 + $0x40] sm:$0x1] %vm4185, %v3801
        %4195 = vst.msk [vmem:[%s577 + $0x48] sm:$0x1] %vm4185, %v3815
        %4196 = vst.msk [vmem:[%s577 + $0x50] sm:$0x1] %vm4185, %v3823
        %4197 = vst.msk [vmem:[%s577 + $0x58] sm:$0x1] %vm4185, %v3825
        %4198 = vst.msk [vmem:[%s577 + $0x60] sm:$0x1] %vm4185, %v3808
        %4199 = vst.msk [vmem:[%s577 + $0x68] sm:$0x1] %vm4185, %v3822
        %4200 = vst.msk [vmem:[%s577 + $0x70] sm:$0x1] %vm4185, %v3824
        %4201 = vst.msk [vmem:[%s577 + $0x78] sm:$0x1] %vm4185, %v3826
        %4202 = vst.msk [vmem:[%s577 + $0x80] sm:$0x1] %vm4185, %v3850
        %4203 = vst.msk [vmem:[%s577 + $0x88] sm:$0x1] %vm4185, %v3864
        %4204 = vst.msk [vmem:[%s577 + $0x90] sm:$0x1] %vm4185, %v3872
        %4205 = vst.msk [vmem:[%s577 + $0x98] sm:$0x1] %vm4185, %v3874
        %4206 = vst.msk [vmem:[%s577 + $0xa0] sm:$0x1] %vm4185, %v3857
        %4207 = vst.msk [vmem:[%s577 + $0xa8] sm:$0x1] %vm4185, %v3871
        %4208 = vst.msk [vmem:[%s577 + $0xb0] sm:$0x1] %vm4185, %v3873
        %4209 = vst.msk [vmem:[%s577 + $0xb8] sm:$0x1] %vm4185, %v3875
        %4210 = vst.msk [vmem:[%s577 + $0xc0] sm:$0x1] %vm4185, %v3899
        %4211 = vst.msk [vmem:[%s577 + $0xc8] sm:$0x1] %vm4185, %v3913
        %4212 = vst.msk [vmem:[%s577 + $0xd0] sm:$0x1] %vm4185, %v3921
        %4213 = vst.msk [vmem:[%s577 + $0xd8] sm:$0x1] %vm4185, %v3923
        %4214 = vst.msk [vmem:[%s577 + $0xe0] sm:$0x1] %vm4185, %v3906
        %4215 = vst.msk [vmem:[%s577 + $0xe8] sm:$0x1] %vm4185, %v3920
        %4216 = vst.msk [vmem:[%s577 + $0xf0] sm:$0x1] %vm4185, %v3922
        %4217 = vst.msk [vmem:[%s577 + $0xf8] sm:$0x1] %vm4185, %v3924
        %4218 = vst.msk [vmem:[%s577 + $0x100] sm:$0x1] %vm4185, %v3948
        %4219 = vst.msk [vmem:[%s577 + $0x108] sm:$0x1] %vm4185, %v3962
        %4220 = vst.msk [vmem:[%s577 + $0x110] sm:$0x1] %vm4185, %v3970
        %4221 = vst.msk [vmem:[%s577 + $0x118] sm:$0x1] %vm4185, %v3972
        %4222 = vst.msk [vmem:[%s577 + $0x120] sm:$0x1] %vm4185, %v3955
        %4223 = vst.msk [vmem:[%s577 + $0x128] sm:$0x1] %vm4185, %v3969
        %4224 = vst.msk [vmem:[%s577 + $0x130] sm:$0x1] %vm4185, %v3971
        %4225 = vst.msk [vmem:[%s577 + $0x138] sm:$0x1] %vm4185, %v3973
        %4226 = vst.msk [vmem:[%s577 + $0x140] sm:$0x1] %vm4185, %v3997
        %4227 = vst.msk [vmem:[%s577 + $0x148] sm:$0x1] %vm4185, %v4011
        %4228 = vst.msk [vmem:[%s577 + $0x150] sm:$0x1] %vm4185, %v4019
        %4229 = vst.msk [vmem:[%s577 + $0x158] sm:$0x1] %vm4185, %v4021
        %4230 = vst.msk [vmem:[%s577 + $0x160] sm:$0x1] %vm4185, %v4004
        %4231 = vst.msk [vmem:[%s577 + $0x168] sm:$0x1] %vm4185, %v4018
        %4232 = vst.msk [vmem:[%s577 + $0x170] sm:$0x1] %vm4185, %v4020
        %4233 = vst.msk [vmem:[%s577 + $0x178] sm:$0x1] %vm4185, %v4022
        %4234 = vst.msk [vmem:[%s577 + $0x180] sm:$0x1] %vm4185, %v4046
        %4235 = vst.msk [vmem:[%s577 + $0x188] sm:$0x1] %vm4185, %v4060
        %4236 = vst.msk [vmem:[%s577 + $0x190] sm:$0x1] %vm4185, %v4068
        %4237 = vst.msk [vmem:[%s577 + $0x198] sm:$0x1] %vm4185, %v4070
        %4238 = vst.msk [vmem:[%s577 + $0x1a0] sm:$0x1] %vm4185, %v4053
        %4239 = vst.msk [vmem:[%s577 + $0x1a8] sm:$0x1] %vm4185, %v4067
        %4240 = vst.msk [vmem:[%s577 + $0x1b0] sm:$0x1] %vm4185, %v4069
        %4241 = vst.msk [vmem:[%s577 + $0x1b8] sm:$0x1] %vm4185, %v4071
        %4242 = vst.msk [vmem:[%s577 + $0x1c0] sm:$0x1] %vm4185, %v4095
        %4243 = vst.msk [vmem:[%s577 + $0x1c8] sm:$0x1] %vm4185, %v4109
        %4244 = vst.msk [vmem:[%s577 + $0x1d0] sm:$0x1] %vm4185, %v4117
        %4245 = vst.msk [vmem:[%s577 + $0x1d8] sm:$0x1] %vm4185, %v4119
        %4246 = vst.msk [vmem:[%s577 + $0x1e0] sm:$0x1] %vm4185, %v4102
        %4247 = vst.msk [vmem:[%s577 + $0x1e8] sm:$0x1] %vm4185, %v4116
        %4248 = vst.msk [vmem:[%s577 + $0x1f0] sm:$0x1] %vm4185, %v4118
        %4249 = vst.msk [vmem:[%s577 + $0x1f8] sm:$0x1] %vm4185, %v4120
        %4250 = vmatprep.subr.bf16.mxu0 0
        %4251 = vmatpush1.bf16.msra.mxu0 %v3482
        %4252 = vmatprep.subr.bf16.mxu0 0
        %4253 = vmatpush1.bf16.msra.mxu0 %v3483
        %4254 = vmatprep.subr.bf16.mxu0 0
        %4255 = vmatpush1.bf16.msra.mxu0 %v3484
        %4256 = vmatprep.subr.bf16.mxu0 0
        %4257 = vmatpush1.bf16.msra.mxu0 %v3485
        %4258 = vmatprep.subr.bf16.mxu0 0
        %4259 = vmatpush1.bf16.msra.mxu0 0
        %4260 = vmatprep.subr.bf16.mxu0 0
        %4261 = vmatpush1.bf16.msra.mxu0 0
        %4262 = vmatprep.subr.bf16.mxu0 0
        %4263 = vmatpush1.bf16.msra.mxu0 0
        %4264 = vmatprep.subr.bf16.mxu0 0
        %4265 = vmatpush1.bf16.msra.mxu0 0
        %4266 = vmatprep.subr.bf16.mxu0 0
        %4267 = vmatpush1.bf16.msra.mxu0 0
        %4268 = vmatprep.subr.bf16.mxu0 0
        %4269 = vmatpush1.bf16.msra.mxu0 0
        %4270 = vmatprep.subr.bf16.mxu0 0
        %4271 = vmatpush1.bf16.msra.mxu0 0
        %4272 = vmatprep.subr.bf16.mxu0 0
        %4273 = vmatpush1.bf16.msra.mxu0 0
        %4274 = vmatprep.subr.bf16.mxu0 0
        %4275 = vmatpush1.bf16.msra.mxu0 0
        %4276 = vmatprep.subr.bf16.mxu0 0
        %4277 = vmatpush1.bf16.msra.mxu0 0
        %4278 = vmatprep.subr.bf16.mxu0 0
        %4279 = vmatpush1.bf16.msra.mxu0 0
        %4280 = vmatprep.subr.bf16.mxu0 0
        %4281 = vmatpush1.bf16.msra.mxu0 0
        %4282 = vmatprep.mubr.bf16.mxu0 0
        %4283 = vmatmul.mubr.bf16.gmra.mrb[0].mxu0 %v3548
        %v4284 = vpop.f32.mrb[0].mxu0
        %v4285 = vadd.f32 0.0, %v4284
        %v4286 = vpop.f32.mrb[0].mxu0
        %v4287 = vpop.f32.mrb[0].mxu0
        %v4288 = vadd.f32 0.0, %v4287
        %v4289 = vpop.f32.mrb[0].mxu0
        %4290 = vmatprep.mubr.bf16.mxu0 0
        %4291 = vmatmul.mubr.bf16.gmra.mrb[0].mxu0 %v3551
        %v4292 = vpop.f32.mrb[0].mxu0
        %v4293 = vadd.f32 0.0, %v4292
        %v4294 = vpop.f32.mrb[0].mxu0
        %v4295 = vpop.f32.mrb[0].mxu0
        %v4296 = vadd.f32 0.0, %v4295
        %v4297 = vpop.f32.mrb[0].mxu0
        %4298 = vmatprep.mubr.bf16.mxu0 0
        %4299 = vmatmul.mubr.bf16.gmra.mrb[0].mxu0 %v3554
        %v4300 = vpop.f32.mrb[0].mxu0
        %v4301 = vadd.f32 0.0, %v4300
        %v4302 = vpop.f32.mrb[0].mxu0
        %v4303 = vpop.f32.mrb[0].mxu0
        %v4304 = vadd.f32 0.0, %v4303
        %v4305 = vpop.f32.mrb[0].mxu0
        %4306 = vmatprep.mubr.bf16.mxu0 0
        %4307 = vmatmul.mubr.bf16.gmra.mrb[0].mxu0 %v3557
        %v4308 = vpop.f32.mrb[0].mxu0
        %v4309 = vadd.f32 0.0, %v4308
        %v4310 = vpop.f32.mrb[0].mxu0
        %v4311 = vpop.f32.mrb[0].mxu0
        %v4312 = vadd.f32 0.0, %v4311
        %v4313 = vpop.f32.mrb[0].mxu0
        %4314 = vdwg.mxu0
        %4315 = vmatprep.subr.bf16.mxu0 0
        %4316 = vmatpush1.bf16.msra.mxu0 %v3450
        %4317 = vmatprep.subr.bf16.mxu0 0
        %4318 = vmatpush1.bf16.msra.mxu0 %v3451
        %4319 = vmatprep.subr.bf16.mxu0 0
        %4320 = vmatpush1.bf16.msra.mxu0 %v3452
        %4321 = vmatprep.subr.bf16.mxu0 0
        %4322 = vmatpush1.bf16.msra.mxu0 %v3453
        %4323 = vmatprep.subr.bf16.mxu0 0
        %4324 = vmatpush1.bf16.msra.mxu0 0
        %4325 = vmatprep.subr.bf16.mxu0 0
        %4326 = vmatpush1.bf16.msra.mxu0 0
        %4327 = vmatprep.subr.bf16.mxu0 0
        %4328 = vmatpush1.bf16.msra.mxu0 0
        %4329 = vmatprep.subr.bf16.mxu0 0
        %4330 = vmatpush1.bf16.msra.mxu0 0
        %4331 = vmatprep.subr.bf16.mxu0 0
        %4332 = vmatpush1.bf16.msra.mxu0 0
        %4333 = vmatprep.subr.bf16.mxu0 0
        %4334 = vmatpush1.bf16.msra.mxu0 0
        %4335 = vmatprep.subr.bf16.mxu0 0
        %4336 = vmatpush1.bf16.msra.mxu0 0
        %4337 = vmatprep.subr.bf16.mxu0 0
        %4338 = vmatpush1.bf16.msra.mxu0 0
        %4339 = vmatprep.subr.bf16.mxu0 0
        %4340 = vmatpush1.bf16.msra.mxu0 0
        %4341 = vmatprep.subr.bf16.mxu0 0
        %4342 = vmatpush1.bf16.msra.mxu0 0
        %4343 = vmatprep.subr.bf16.mxu0 0
        %4344 = vmatpush1.bf16.msra.mxu0 0
        %4345 = vmatprep.subr.bf16.mxu0 0
        %4346 = vmatpush1.bf16.msra.mxu0 0
        %4347 = vmatprep.mubr.bf16.mxu0 0
        %4348 = vmatmul.mubr.bf16.gmra.mrb[0].mxu0 %v3645
        %v4349 = vpop.f32.mrb[0].mxu0
        %v4350 = vadd.f32 %v4285, %v4349
        %v4351 = vpop.f32.mrb[0].mxu0
        %v4352 = vpop.f32.mrb[0].mxu0
        %v4353 = vadd.f32 %v4288, %v4352
        %v4354 = vpop.f32.mrb[0].mxu0
        %4355 = vmatprep.mubr.bf16.mxu0 0
        %4356 = vmatmul.mubr.bf16.gmra.mrb[0].mxu0 %v3648
        %v4357 = vpop.f32.mrb[0].mxu0
        %v4358 = vadd.f32 %v4293, %v4357
        %v4359 = vpop.f32.mrb[0].mxu0
        %v4360 = vpop.f32.mrb[0].mxu0
        %v4361 = vadd.f32 %v4296, %v4360
        %v4362 = vpop.f32.mrb[0].mxu0
        %4363 = vmatprep.mubr.bf16.mxu0 0
        %4364 = vmatmul.mubr.bf16.gmra.mrb[0].mxu0 %v3651
        %v4365 = vpop.f32.mrb[0].mxu0
        %v4366 = vadd.f32 %v4301, %v4365
        %v4367 = vpop.f32.mrb[0].mxu0
        %v4368 = vpop.f32.mrb[0].mxu0
        %v4369 = vadd.f32 %v4304, %v4368
        %v4370 = vpop.f32.mrb[0].mxu0
        %4371 = vmatprep.mubr.bf16.mxu0 0
        %4372 = vmatmul.mubr.bf16.gmra.mrb[0].mxu0 %v3654
        %v4373 = vpop.f32.mrb[0].mxu0
        %v4374 = vadd.f32 %v4309, %v4373
        %v4375 = vpop.f32.mrb[0].mxu0
        %v4376 = vpop.f32.mrb[0].mxu0
        %v4377 = vadd.f32 %v4312, %v4376
        %v4378 = vpop.f32.mrb[0].mxu0
        %4379 = vdwg.mxu0
        %v4388 = vcombine.high %v4350, %v4350
        %v4390 = vunpack.c.l.s4 1966171168
        %v4391 = vunpack.c.0.s8 %v4390
        %v4392 = vlaneseq
        %v4393 = vshrl.u32 %v4392, 7
        %v4394 = vsub.s32 %v4391, %v4393
        %v4395 = vrot.slane %v4350, %v4394
        %v4397 = vunpack.c.l.s4 1966171168
        %v4398 = vunpack.c.0.s8 %v4397
        %v4399 = vlaneseq
        %v4400 = vshrl.u32 %v4399, 7
        %v4401 = vsub.s32 %v4398, %v4400
        %v4402 = vrot.slane %v4388, %v4401
        %v4403 = vcombine.high %v4395, %v4395
        %v4404 = vcombine.high %v4402, %v4402
        %v4406 = vunpack.c.l.s4 1966171168
        %v4407 = vunpack.c.0.s8 %v4406
        %v4408 = vlaneseq
        %v4409 = vshrl.u32 %v4408, 7
        %v4410 = vsub.s32 %v4407, %v4409
        %v4411 = vrot.slane %v4395, %v4410
        %v4413 = vunpack.c.l.s4 1966171168
        %v4414 = vunpack.c.0.s8 %v4413
        %v4415 = vlaneseq
        %v4416 = vshrl.u32 %v4415, 7
        %v4417 = vsub.s32 %v4414, %v4416
        %v4418 = vrot.slane %v4402, %v4417
        %v4420 = vunpack.c.l.s4 1966171168
        %v4421 = vunpack.c.0.s8 %v4420
        %v4422 = vlaneseq
        %v4423 = vshrl.u32 %v4422, 7
        %v4424 = vsub.s32 %v4421, %v4423
        %v4425 = vrot.slane %v4403, %v4424
        %v4427 = vunpack.c.l.s4 1966171168
        %v4428 = vunpack.c.0.s8 %v4427
        %v4429 = vlaneseq
        %v4430 = vshrl.u32 %v4429, 7
        %v4431 = vsub.s32 %v4428, %v4430
        %v4432 = vrot.slane %v4404, %v4431
        %v4433 = vcombine.high %v4411, %v4411
        %v4434 = vcombine.high %v4418, %v4418
        %v4435 = vcombine.high %v4425, %v4425
        %v4436 = vcombine.high %v4432, %v4432
        %v4437 = vcombine.high %v4353, %v4353
        %v4439 = vunpack.c.l.s4 1966171168
        %v4440 = vunpack.c.0.s8 %v4439
        %v4441 = vlaneseq
        %v4442 = vshrl.u32 %v4441, 7
        %v4443 = vsub.s32 %v4440, %v4442
        %v4444 = vrot.slane %v4353, %v4443
        %v4446 = vunpack.c.l.s4 1966171168
        %v4447 = vunpack.c.0.s8 %v4446
        %v4448 = vlaneseq
        %v4449 = vshrl.u32 %v4448, 7
        %v4450 = vsub.s32 %v4447, %v4449
        %v4451 = vrot.slane %v4437, %v4450
        %v4452 = vcombine.high %v4444, %v4444
        %v4453 = vcombine.high %v4451, %v4451
        %v4455 = vunpack.c.l.s4 1966171168
        %v4456 = vunpack.c.0.s8 %v4455
        %v4457 = vlaneseq
        %v4458 = vshrl.u32 %v4457, 7
        %v4459 = vsub.s32 %v4456, %v4458
        %v4460 = vrot.slane %v4444, %v4459
        %v4462 = vunpack.c.l.s4 1966171168
        %v4463 = vunpack.c.0.s8 %v4462
        %v4464 = vlaneseq
        %v4465 = vshrl.u32 %v4464, 7
        %v4466 = vsub.s32 %v4463, %v4465
        %v4467 = vrot.slane %v4451, %v4466
        %v4469 = vunpack.c.l.s4 1966171168
        %v4470 = vunpack.c.0.s8 %v4469
        %v4471 = vlaneseq
        %v4472 = vshrl.u32 %v4471, 7
        %v4473 = vsub.s32 %v4470, %v4472
        %v4474 = vrot.slane %v4452, %v4473
        %v4476 = vunpack.c.l.s4 1966171168
        %v4477 = vunpack.c.0.s8 %v4476
        %v4478 = vlaneseq
        %v4479 = vshrl.u32 %v4478, 7
        %v4480 = vsub.s32 %v4477, %v4479
        %v4481 = vrot.slane %v4453, %v4480
        %v4482 = vcombine.high %v4460, %v4460
        %v4483 = vcombine.high %v4467, %v4467
        %v4484 = vcombine.high %v4474, %v4474
        %v4485 = vcombine.high %v4481, %v4481
        %v4486 = vcombine.high %v4358, %v4358
        %v4488 = vunpack.c.l.s4 1966171168
        %v4489 = vunpack.c.0.s8 %v4488
        %v4490 = vlaneseq
        %v4491 = vshrl.u32 %v4490, 7
        %v4492 = vsub.s32 %v4489, %v4491
        %v4493 = vrot.slane %v4358, %v4492
        %v4495 = vunpack.c.l.s4 1966171168
        %v4496 = vunpack.c.0.s8 %v4495
        %v4497 = vlaneseq
        %v4498 = vshrl.u32 %v4497, 7
        %v4499 = vsub.s32 %v4496, %v4498
        %v4500 = vrot.slane %v4486, %v4499
        %v4501 = vcombine.high %v4493, %v4493
        %v4502 = vcombine.high %v4500, %v4500
        %v4504 = vunpack.c.l.s4 1966171168
        %v4505 = vunpack.c.0.s8 %v4504
        %v4506 = vlaneseq
        %v4507 = vshrl.u32 %v4506, 7
        %v4508 = vsub.s32 %v4505, %v4507
        %v4509 = vrot.slane %v4493, %v4508
        %v4511 = vunpack.c.l.s4 1966171168
        %v4512 = vunpack.c.0.s8 %v4511
        %v4513 = vlaneseq
        %v4514 = vshrl.u32 %v4513, 7
        %v4515 = vsub.s32 %v4512, %v4514
        %v4516 = vrot.slane %v4500, %v4515
        %v4518 = vunpack.c.l.s4 1966171168
        %v4519 = vunpack.c.0.s8 %v4518
        %v4520 = vlaneseq
        %v4521 = vshrl.u32 %v4520, 7
        %v4522 = vsub.s32 %v4519, %v4521
        %v4523 = vrot.slane %v4501, %v4522
        %v4525 = vunpack.c.l.s4 1966171168
        %v4526 = vunpack.c.0.s8 %v4525
        %v4527 = vlaneseq
        %v4528 = vshrl.u32 %v4527, 7
        %v4529 = vsub.s32 %v4526, %v4528
        %v4530 = vrot.slane %v4502, %v4529
        %v4531 = vcombine.high %v4509, %v4509
        %v4532 = vcombine.high %v4516, %v4516
        %v4533 = vcombine.high %v4523, %v4523
        %v4534 = vcombine.high %v4530, %v4530
        %v4535 = vcombine.high %v4361, %v4361
        %v4537 = vunpack.c.l.s4 1966171168
        %v4538 = vunpack.c.0.s8 %v4537
        %v4539 = vlaneseq
        %v4540 = vshrl.u32 %v4539, 7
        %v4541 = vsub.s32 %v4538, %v4540
        %v4542 = vrot.slane %v4361, %v4541
        %v4544 = vunpack.c.l.s4 1966171168
        %v4545 = vunpack.c.0.s8 %v4544
        %v4546 = vlaneseq
        %v4547 = vshrl.u32 %v4546, 7
        %v4548 = vsub.s32 %v4545, %v4547
        %v4549 = vrot.slane %v4535, %v4548
        %v4550 = vcombine.high %v4542, %v4542
        %v4551 = vcombine.high %v4549, %v4549
        %v4553 = vunpack.c.l.s4 1966171168
        %v4554 = vunpack.c.0.s8 %v4553
        %v4555 = vlaneseq
        %v4556 = vshrl.u32 %v4555, 7
        %v4557 = vsub.s32 %v4554, %v4556
        %v4558 = vrot.slane %v4542, %v4557
        %v4560 = vunpack.c.l.s4 1966171168
        %v4561 = vunpack.c.0.s8 %v4560
        %v4562 = vlaneseq
        %v4563 = vshrl.u32 %v4562, 7
        %v4564 = vsub.s32 %v4561, %v4563
        %v4565 = vrot.slane %v4549, %v4564
        %v4567 = vunpack.c.l.s4 1966171168
        %v4568 = vunpack.c.0.s8 %v4567
        %v4569 = vlaneseq
        %v4570 = vshrl.u32 %v4569, 7
        %v4571 = vsub.s32 %v4568, %v4570
        %v4572 = vrot.slane %v4550, %v4571
        %v4574 = vunpack.c.l.s4 1966171168
        %v4575 = vunpack.c.0.s8 %v4574
        %v4576 = vlaneseq
        %v4577 = vshrl.u32 %v4576, 7
        %v4578 = vsub.s32 %v4575, %v4577
        %v4579 = vrot.slane %v4551, %v4578
        %v4580 = vcombine.high %v4558, %v4558
        %v4581 = vcombine.high %v4565, %v4565
        %v4582 = vcombine.high %v4572, %v4572
        %v4583 = vcombine.high %v4579, %v4579
        %v4584 = vcombine.high %v4366, %v4366
        %v4586 = vunpack.c.l.s4 1966171168
        %v4587 = vunpack.c.0.s8 %v4586
        %v4588 = vlaneseq
        %v4589 = vshrl.u32 %v4588, 7
        %v4590 = vsub.s32 %v4587, %v4589
        %v4591 = vrot.slane %v4366, %v4590
        %v4593 = vunpack.c.l.s4 1966171168
        %v4594 = vunpack.c.0.s8 %v4593
        %v4595 = vlaneseq
        %v4596 = vshrl.u32 %v4595, 7
        %v4597 = vsub.s32 %v4594, %v4596
        %v4598 = vrot.slane %v4584, %v4597
        %v4599 = vcombine.high %v4591, %v4591
        %v4600 = vcombine.high %v4598, %v4598
        %v4602 = vunpack.c.l.s4 1966171168
        %v4603 = vunpack.c.0.s8 %v4602
        %v4604 = vlaneseq
        %v4605 = vshrl.u32 %v4604, 7
        %v4606 = vsub.s32 %v4603, %v4605
        %v4607 = vrot.slane %v4591, %v4606
        %v4609 = vunpack.c.l.s4 1966171168
        %v4610 = vunpack.c.0.s8 %v4609
        %v4611 = vlaneseq
        %v4612 = vshrl.u32 %v4611, 7
        %v4613 = vsub.s32 %v4610, %v4612
        %v4614 = vrot.slane %v4598, %v4613
        %v4616 = vunpack.c.l.s4 1966171168
        %v4617 = vunpack.c.0.s8 %v4616
        %v4618 = vlaneseq
        %v4619 = vshrl.u32 %v4618, 7
        %v4620 = vsub.s32 %v4617, %v4619
        %v4621 = vrot.slane %v4599, %v4620
        %v4623 = vunpack.c.l.s4 1966171168
        %v4624 = vunpack.c.0.s8 %v4623
        %v4625 = vlaneseq
        %v4626 = vshrl.u32 %v4625, 7
        %v4627 = vsub.s32 %v4624, %v4626
        %v4628 = vrot.slane %v4600, %v4627
        %v4629 = vcombine.high %v4607, %v4607
        %v4630 = vcombine.high %v4614, %v4614
        %v4631 = vcombine.high %v4621, %v4621
        %v4632 = vcombine.high %v4628, %v4628
        %v4633 = vcombine.high %v4369, %v4369
        %v4635 = vunpack.c.l.s4 1966171168
        %v4636 = vunpack.c.0.s8 %v4635
        %v4637 = vlaneseq
        %v4638 = vshrl.u32 %v4637, 7
        %v4639 = vsub.s32 %v4636, %v4638
        %v4640 = vrot.slane %v4369, %v4639
        %v4642 = vunpack.c.l.s4 1966171168
        %v4643 = vunpack.c.0.s8 %v4642
        %v4644 = vlaneseq
        %v4645 = vshrl.u32 %v4644, 7
        %v4646 = vsub.s32 %v4643, %v4645
        %v4647 = vrot.slane %v4633, %v4646
        %v4648 = vcombine.high %v4640, %v4640
        %v4649 = vcombine.high %v4647, %v4647
        %v4651 = vunpack.c.l.s4 1966171168
        %v4652 = vunpack.c.0.s8 %v4651
        %v4653 = vlaneseq
        %v4654 = vshrl.u32 %v4653, 7
        %v4655 = vsub.s32 %v4652, %v4654
        %v4656 = vrot.slane %v4640, %v4655
        %v4658 = vunpack.c.l.s4 1966171168
        %v4659 = vunpack.c.0.s8 %v4658
        %v4660 = vlaneseq
        %v4661 = vshrl.u32 %v4660, 7
        %v4662 = vsub.s32 %v4659, %v4661
        %v4663 = vrot.slane %v4647, %v4662
        %v4665 = vunpack.c.l.s4 1966171168
        %v4666 = vunpack.c.0.s8 %v4665
        %v4667 = vlaneseq
        %v4668 = vshrl.u32 %v4667, 7
        %v4669 = vsub.s32 %v4666, %v4668
        %v4670 = vrot.slane %v4648, %v4669
        %v4672 = vunpack.c.l.s4 1966171168
        %v4673 = vunpack.c.0.s8 %v4672
        %v4674 = vlaneseq
        %v4675 = vshrl.u32 %v4674, 7
        %v4676 = vsub.s32 %v4673, %v4675
        %v4677 = vrot.slane %v4649, %v4676
        %v4678 = vcombine.high %v4656, %v4656
        %v4679 = vcombine.high %v4663, %v4663
        %v4680 = vcombine.high %v4670, %v4670
        %v4681 = vcombine.high %v4677, %v4677
        %v4682 = vcombine.high %v4374, %v4374
        %v4684 = vunpack.c.l.s4 1966171168
        %v4685 = vunpack.c.0.s8 %v4684
        %v4686 = vlaneseq
        %v4687 = vshrl.u32 %v4686, 7
        %v4688 = vsub.s32 %v4685, %v4687
        %v4689 = vrot.slane %v4374, %v4688
        %v4691 = vunpack.c.l.s4 1966171168
        %v4692 = vunpack.c.0.s8 %v4691
        %v4693 = vlaneseq
        %v4694 = vshrl.u32 %v4693, 7
        %v4695 = vsub.s32 %v4692, %v4694
        %v4696 = vrot.slane %v4682, %v4695
        %v4697 = vcombine.high %v4689, %v4689
        %v4698 = vcombine.high %v4696, %v4696
        %v4700 = vunpack.c.l.s4 1966171168
        %v4701 = vunpack.c.0.s8 %v4700
        %v4702 = vlaneseq
        %v4703 = vshrl.u32 %v4702, 7
        %v4704 = vsub.s32 %v4701, %v4703
        %v4705 = vrot.slane %v4689, %v4704
        %v4707 = vunpack.c.l.s4 1966171168
        %v4708 = vunpack.c.0.s8 %v4707
        %v4709 = vlaneseq
        %v4710 = vshrl.u32 %v4709, 7
        %v4711 = vsub.s32 %v4708, %v4710
        %v4712 = vrot.slane %v4696, %v4711
        %v4714 = vunpack.c.l.s4 1966171168
        %v4715 = vunpack.c.0.s8 %v4714
        %v4716 = vlaneseq
        %v4717 = vshrl.u32 %v4716, 7
        %v4718 = vsub.s32 %v4715, %v4717
        %v4719 = vrot.slane %v4697, %v4718
        %v4721 = vunpack.c.l.s4 1966171168
        %v4722 = vunpack.c.0.s8 %v4721
        %v4723 = vlaneseq
        %v4724 = vshrl.u32 %v4723, 7
        %v4725 = vsub.s32 %v4722, %v4724
        %v4726 = vrot.slane %v4698, %v4725
        %v4727 = vcombine.high %v4705, %v4705
        %v4728 = vcombine.high %v4712, %v4712
        %v4729 = vcombine.high %v4719, %v4719
        %v4730 = vcombine.high %v4726, %v4726
        %v4731 = vcombine.high %v4377, %v4377
        %v4733 = vunpack.c.l.s4 1966171168
        %v4734 = vunpack.c.0.s8 %v4733
        %v4735 = vlaneseq
        %v4736 = vshrl.u32 %v4735, 7
        %v4737 = vsub.s32 %v4734, %v4736
        %v4738 = vrot.slane %v4377, %v4737
        %v4740 = vunpack.c.l.s4 1966171168
        %v4741 = vunpack.c.0.s8 %v4740
        %v4742 = vlaneseq
        %v4743 = vshrl.u32 %v4742, 7
        %v4744 = vsub.s32 %v4741, %v4743
        %v4745 = vrot.slane %v4731, %v4744
        %v4746 = vcombine.high %v4738, %v4738
        %v4747 = vcombine.high %v4745, %v4745
        %v4749 = vunpack.c.l.s4 1966171168
        %v4750 = vunpack.c.0.s8 %v4749
        %v4751 = vlaneseq
        %v4752 = vshrl.u32 %v4751, 7
        %v4753 = vsub.s32 %v4750, %v4752
        %v4754 = vrot.slane %v4738, %v4753
        %v4756 = vunpack.c.l.s4 1966171168
        %v4757 = vunpack.c.0.s8 %v4756
        %v4758 = vlaneseq
        %v4759 = vshrl.u32 %v4758, 7
        %v4760 = vsub.s32 %v4757, %v4759
        %v4761 = vrot.slane %v4745, %v4760
        %v4763 = vunpack.c.l.s4 1966171168
        %v4764 = vunpack.c.0.s8 %v4763
        %v4765 = vlaneseq
        %v4766 = vshrl.u32 %v4765, 7
        %v4767 = vsub.s32 %v4764, %v4766
        %v4768 = vrot.slane %v4746, %v4767
        %v4770 = vunpack.c.l.s4 1966171168
        %v4771 = vunpack.c.0.s8 %v4770
        %v4772 = vlaneseq
        %v4773 = vshrl.u32 %v4772, 7
        %v4774 = vsub.s32 %v4771, %v4773
        %v4775 = vrot.slane %v4747, %v4774
        %v4776 = vcombine.high %v4754, %v4754
        %v4777 = vcombine.high %v4761, %v4761
        %v4778 = vcombine.high %v4768, %v4768
        %v4779 = vcombine.high %v4775, %v4775
        %4844 = vst.msk [vmem:[%s577 + $0x1] sm:$0x1] %vm4185, %v4411
        %4845 = vst.msk [vmem:[%s577 + $0x9] sm:$0x1] %vm4185, %v4425
        %4846 = vst.msk [vmem:[%s577 + $0x11] sm:$0x1] %vm4185, %v4433
        %4847 = vst.msk [vmem:[%s577 + $0x19] sm:$0x1] %vm4185, %v4435
        %4848 = vst.msk [vmem:[%s577 + $0x21] sm:$0x1] %vm4185, %v4418
        %4849 = vst.msk [vmem:[%s577 + $0x29] sm:$0x1] %vm4185, %v4432
        %4850 = vst.msk [vmem:[%s577 + $0x31] sm:$0x1] %vm4185, %v4434
        %4851 = vst.msk [vmem:[%s577 + $0x39] sm:$0x1] %vm4185, %v4436
        %4852 = vst.msk [vmem:[%s577 + $0x41] sm:$0x1] %vm4185, %v4460
        %4853 = vst.msk [vmem:[%s577 + $0x49] sm:$0x1] %vm4185, %v4474
        %4854 = vst.msk [vmem:[%s577 + $0x51] sm:$0x1] %vm4185, %v4482
        %4855 = vst.msk [vmem:[%s577 + $0x59] sm:$0x1] %vm4185, %v4484
        %4856 = vst.msk [vmem:[%s577 + $0x61] sm:$0x1] %vm4185, %v4467
        %4857 = vst.msk [vmem:[%s577 + $0x69] sm:$0x1] %vm4185, %v4481
        %4858 = vst.msk [vmem:[%s577 + $0x71] sm:$0x1] %vm4185, %v4483
        %4859 = vst.msk [vmem:[%s577 + $0x79] sm:$0x1] %vm4185, %v4485
        %4860 = vst.msk [vmem:[%s577 + $0x81] sm:$0x1] %vm4185, %v4509
        %4861 = vst.msk [vmem:[%s577 + $0x89] sm:$0x1] %vm4185, %v4523
        %4862 = vst.msk [vmem:[%s577 + $0x91] sm:$0x1] %vm4185, %v4531
        %4863 = vst.msk [vmem:[%s577 + $0x99] sm:$0x1] %vm4185, %v4533
        %4864 = vst.msk [vmem:[%s577 + $0xa1] sm:$0x1] %vm4185, %v4516
        %4865 = vst.msk [vmem:[%s577 + $0xa9] sm:$0x1] %vm4185, %v4530
        %4866 = vst.msk [vmem:[%s577 + $0xb1] sm:$0x1] %vm4185, %v4532
        %4867 = vst.msk [vmem:[%s577 + $0xb9] sm:$0x1] %vm4185, %v4534
        %4868 = vst.msk [vmem:[%s577 + $0xc1] sm:$0x1] %vm4185, %v4558
        %4869 = vst.msk [vmem:[%s577 + $0xc9] sm:$0x1] %vm4185, %v4572
        %4870 = vst.msk [vmem:[%s577 + $0xd1] sm:$0x1] %vm4185, %v4580
        %4871 = vst.msk [vmem:[%s577 + $0xd9] sm:$0x1] %vm4185, %v4582
        %4872 = vst.msk [vmem:[%s577 + $0xe1] sm:$0x1] %vm4185, %v4565
        %4873 = vst.msk [vmem:[%s577 + $0xe9] sm:$0x1] %vm4185, %v4579
        %4874 = vst.msk [vmem:[%s577 + $0xf1] sm:$0x1] %vm4185, %v4581
        %4875 = vst.msk [vmem:[%s577 + $0xf9] sm:$0x1] %vm4185, %v4583
        %4876 = vst.msk [vmem:[%s577 + $0x101] sm:$0x1] %vm4185, %v4607
        %4877 = vst.msk [vmem:[%s577 + $0x109] sm:$0x1] %vm4185, %v4621
        %4878 = vst.msk [vmem:[%s577 + $0x111] sm:$0x1] %vm4185, %v4629
        %4879 = vst.msk [vmem:[%s577 + $0x119] sm:$0x1] %vm4185, %v4631
        %4880 = vst.msk [vmem:[%s577 + $0x121] sm:$0x1] %vm4185, %v4614
        %4881 = vst.msk [vmem:[%s577 + $0x129] sm:$0x1] %vm4185, %v4628
        %4882 = vst.msk [vmem:[%s577 + $0x131] sm:$0x1] %vm4185, %v4630
        %4883 = vst.msk [vmem:[%s577 + $0x139] sm:$0x1] %vm4185, %v4632
        %4884 = vst.msk [vmem:[%s577 + $0x141] sm:$0x1] %vm4185, %v4656
        %4885 = vst.msk [vmem:[%s577 + $0x149] sm:$0x1] %vm4185, %v4670
        %4886 = vst.msk [vmem:[%s577 + $0x151] sm:$0x1] %vm4185, %v4678
        %4887 = vst.msk [vmem:[%s577 + $0x159] sm:$0x1] %vm4185, %v4680
        %4888 = vst.msk [vmem:[%s577 + $0x161] sm:$0x1] %vm4185, %v4663
        %4889 = vst.msk [vmem:[%s577 + $0x169] sm:$0x1] %vm4185, %v4677
        %4890 = vst.msk [vmem:[%s577 + $0x171] sm:$0x1] %vm4185, %v4679
        %4891 = vst.msk [vmem:[%s577 + $0x179] sm:$0x1] %vm4185, %v4681
        %4892 = vst.msk [vmem:[%s577 + $0x181] sm:$0x1] %vm4185, %v4705
        %4893 = vst.msk [vmem:[%s577 + $0x189] sm:$0x1] %vm4185, %v4719
        %4894 = vst.msk [vmem:[%s577 + $0x191] sm:$0x1] %vm4185, %v4727
        %4895 = vst.msk [vmem:[%s577 + $0x199] sm:$0x1] %vm4185, %v4729
        %4896 = vst.msk [vmem:[%s577 + $0x1a1] sm:$0x1] %vm4185, %v4712
        %4897 = vst.msk [vmem:[%s577 + $0x1a9] sm:$0x1] %vm4185, %v4726
        %4898 = vst.msk [vmem:[%s577 + $0x1b1] sm:$0x1] %vm4185, %v4728
        %4899 = vst.msk [vmem:[%s577 + $0x1b9] sm:$0x1] %vm4185, %v4730
        %4900 = vst.msk [vmem:[%s577 + $0x1c1] sm:$0x1] %vm4185, %v4754
        %4901 = vst.msk [vmem:[%s577 + $0x1c9] sm:$0x1] %vm4185, %v4768
        %4902 = vst.msk [vmem:[%s577 + $0x1d1] sm:$0x1] %vm4185, %v4776
        %4903 = vst.msk [vmem:[%s577 + $0x1d9] sm:$0x1] %vm4185, %v4778
        %4904 = vst.msk [vmem:[%s577 + $0x1e1] sm:$0x1] %vm4185, %v4761
        %4905 = vst.msk [vmem:[%s577 + $0x1e9] sm:$0x1] %vm4185, %v4775
        %4906 = vst.msk [vmem:[%s577 + $0x1f1] sm:$0x1] %vm4185, %v4777
        %4907 = vst.msk [vmem:[%s577 + $0x1f9] sm:$0x1] %vm4185, %v4779
        %4908 = vmatprep.subr.bf16.mxu0 0
        %4909 = vmatpush1.bf16.msra.mxu0 %v3486
        %4910 = vmatprep.subr.bf16.mxu0 0
        %4911 = vmatpush1.bf16.msra.mxu0 %v3487
        %4912 = vmatprep.subr.bf16.mxu0 0
        %4913 = vmatpush1.bf16.msra.mxu0 %v3488
        %4914 = vmatprep.subr.bf16.mxu0 0
        %4915 = vmatpush1.bf16.msra.mxu0 %v3489
        %4916 = vmatprep.subr.bf16.mxu0 0
        %4917 = vmatpush1.bf16.msra.mxu0 0
        %4918 = vmatprep.subr.bf16.mxu0 0
        %4919 = vmatpush1.bf16.msra.mxu0 0
        %4920 = vmatprep.subr.bf16.mxu0 0
        %4921 = vmatpush1.bf16.msra.mxu0 0
        %4922 = vmatprep.subr.bf16.mxu0 0
        %4923 = vmatpush1.bf16.msra.mxu0 0
        %4924 = vmatprep.subr.bf16.mxu0 0
        %4925 = vmatpush1.bf16.msra.mxu0 0
        %4926 = vmatprep.subr.bf16.mxu0 0
        %4927 = vmatpush1.bf16.msra.mxu0 0
        %4928 = vmatprep.subr.bf16.mxu0 0
        %4929 = vmatpush1.bf16.msra.mxu0 0
        %4930 = vmatprep.subr.bf16.mxu0 0
        %4931 = vmatpush1.bf16.msra.mxu0 0
        %4932 = vmatprep.subr.bf16.mxu0 0
        %4933 = vmatpush1.bf16.msra.mxu0 0
        %4934 = vmatprep.subr.bf16.mxu0 0
        %4935 = vmatpush1.bf16.msra.mxu0 0
        %4936 = vmatprep.subr.bf16.mxu0 0
        %4937 = vmatpush1.bf16.msra.mxu0 0
        %4938 = vmatprep.subr.bf16.mxu0 0
        %4939 = vmatpush1.bf16.msra.mxu0 0
        %4940 = vmatprep.mubr.bf16.mxu0 0
        %4941 = vmatmul.mubr.bf16.gmra.mrb[0].mxu0 %v3548
        %v4942 = vpop.f32.mrb[0].mxu0
        %v4943 = vadd.f32 0.0, %v4942
        %v4944 = vpop.f32.mrb[0].mxu0
        %v4945 = vpop.f32.mrb[0].mxu0
        %v4946 = vadd.f32 0.0, %v4945
        %v4947 = vpop.f32.mrb[0].mxu0
        %4948 = vmatprep.mubr.bf16.mxu0 0
        %4949 = vmatmul.mubr.bf16.gmra.mrb[0].mxu0 %v3551
        %v4950 = vpop.f32.mrb[0].mxu0
        %v4951 = vadd.f32 0.0, %v4950
        %v4952 = vpop.f32.mrb[0].mxu0
        %v4953 = vpop.f32.mrb[0].mxu0
        %v4954 = vadd.f32 0.0, %v4953
        %v4955 = vpop.f32.mrb[0].mxu0
        %4956 = vmatprep.mubr.bf16.mxu0 0
        %4957 = vmatmul.mubr.bf16.gmra.mrb[0].mxu0 %v3554
        %v4958 = vpop.f32.mrb[0].mxu0
        %v4959 = vadd.f32 0.0, %v4958
        %v4960 = vpop.f32.mrb[0].mxu0
        %v4961 = vpop.f32.mrb[0].mxu0
        %v4962 = vadd.f32 0.0, %v4961
        %v4963 = vpop.f32.mrb[0].mxu0
        %4964 = vmatprep.mubr.bf16.mxu0 0
        %4965 = vmatmul.mubr.bf16.gmra.mrb[0].mxu0 %v3557
        %v4966 = vpop.f32.mrb[0].mxu0
        %v4967 = vadd.f32 0.0, %v4966
        %v4968 = vpop.f32.mrb[0].mxu0
        %v4969 = vpop.f32.mrb[0].mxu0
        %v4970 = vadd.f32 0.0, %v4969
        %v4971 = vpop.f32.mrb[0].mxu0
        %4972 = vdwg.mxu0
        %4973 = vmatprep.subr.bf16.mxu0 0
        %4974 = vmatpush1.bf16.msra.mxu0 %v3454
        %4975 = vmatprep.subr.bf16.mxu0 0
        %4976 = vmatpush1.bf16.msra.mxu0 %v3455
        %4977 = vmatprep.subr.bf16.mxu0 0
        %4978 = vmatpush1.bf16.msra.mxu0 %v3456
        %4979 = vmatprep.subr.bf16.mxu0 0
        %4980 = vmatpush1.bf16.msra.mxu0 %v3457
        %4981 = vmatprep.subr.bf16.mxu0 0
        %4982 = vmatpush1.bf16.msra.mxu0 0
        %4983 = vmatprep.subr.bf16.mxu0 0
        %4984 = vmatpush1.bf16.msra.mxu0 0
        %4985 = vmatprep.subr.bf16.mxu0 0
        %4986 = vmatpush1.bf16.msra.mxu0 0
        %4987 = vmatprep.subr.bf16.mxu0 0
        %4988 = vmatpush1.bf16.msra.mxu0 0
        %4989 = vmatprep.subr.bf16.mxu0 0
        %4990 = vmatpush1.bf16.msra.mxu0 0
        %4991 = vmatprep.subr.bf16.mxu0 0
        %4992 = vmatpush1.bf16.msra.mxu0 0
        %4993 = vmatprep.subr.bf16.mxu0 0
        %4994 = vmatpush1.bf16.msra.mxu0 0
        %4995 = vmatprep.subr.bf16.mxu0 0
        %4996 = vmatpush1.bf16.msra.mxu0 0
        %4997 = vmatprep.subr.bf16.mxu0 0
        %4998 = vmatpush1.bf16.msra.mxu0 0
        %4999 = vmatprep.subr.bf16.mxu0 0
        %5000 = vmatpush1.bf16.msra.mxu0 0
        %5001 = vmatprep.subr.bf16.mxu0 0
        %5002 = vmatpush1.bf16.msra.mxu0 0
        %5003 = vmatprep.subr.bf16.mxu0 0
        %5004 = vmatpush1.bf16.msra.mxu0 0
        %5005 = vmatprep.mubr.bf16.mxu0 0
        %5006 = vmatmul.mubr.bf16.gmra.mrb[0].mxu0 %v3645
        %v5007 = vpop.f32.mrb[0].mxu0
        %v5008 = vadd.f32 %v4943, %v5007
        %v5009 = vpop.f32.mrb[0].mxu0
        %v5010 = vpop.f32.mrb[0].mxu0
        %v5011 = vadd.f32 %v4946, %v5010
        %v5012 = vpop.f32.mrb[0].mxu0
        %5013 = vmatprep.mubr.bf16.mxu0 0
        %5014 = vmatmul.mubr.bf16.gmra.mrb[0].mxu0 %v3648
        %v5015 = vpop.f32.mrb[0].mxu0
        %v5016 = vadd.f32 %v4951, %v5015
        %v5017 = vpop.f32.mrb[0].mxu0
        %v5018 = vpop.f32.mrb[0].mxu0
        %v5019 = vadd.f32 %v4954, %v5018
        %v5020 = vpop.f32.mrb[0].mxu0
        %5021 = vmatprep.mubr.bf16.mxu0 0
        %5022 = vmatmul.mubr.bf16.gmra.mrb[0].mxu0 %v3651
        %v5023 = vpop.f32.mrb[0].mxu0
        %v5024 = vadd.f32 %v4959, %v5023
        %v5025 = vpop.f32.mrb[0].mxu0
        %v5026 = vpop.f32.mrb[0].mxu0
        %v5027 = vadd.f32 %v4962, %v5026
        %v5028 = vpop.f32.mrb[0].mxu0
        %5029 = vmatprep.mubr.bf16.mxu0 0
        %5030 = vmatmul.mubr.bf16.gmra.mrb[0].mxu0 %v3654
        %v5031 = vpop.f32.mrb[0].mxu0
        %v5032 = vadd.f32 %v4967, %v5031
        %v5033 = vpop.f32.mrb[0].mxu0
        %v5034 = vpop.f32.mrb[0].mxu0
        %v5035 = vadd.f32 %v4970, %v5034
        %v5036 = vpop.f32.mrb[0].mxu0
        %5037 = vdwg.mxu0
        %v5046 = vcombine.high %v5008, %v5008
        %v5048 = vunpack.c.l.s4 1966171168
        %v5049 = vunpack.c.0.s8 %v5048
        %v5050 = vlaneseq
        %v5051 = vshrl.u32 %v5050, 7
        %v5052 = vsub.s32 %v5049, %v5051
        %v5053 = vrot.slane %v5008, %v5052
        %v5055 = vunpack.c.l.s4 1966171168
        %v5056 = vunpack.c.0.s8 %v5055
        %v5057 = vlaneseq
        %v5058 = vshrl.u32 %v5057, 7
        %v5059 = vsub.s32 %v5056, %v5058
        %v5060 = vrot.slane %v5046, %v5059
        %v5061 = vcombine.high %v5053, %v5053
        %v5062 = vcombine.high %v5060, %v5060
        %v5064 = vunpack.c.l.s4 1966171168
        %v5065 = vunpack.c.0.s8 %v5064
        %v5066 = vlaneseq
        %v5067 = vshrl.u32 %v5066, 7
        %v5068 = vsub.s32 %v5065, %v5067
        %v5069 = vrot.slane %v5053, %v5068
        %v5071 = vunpack.c.l.s4 1966171168
        %v5072 = vunpack.c.0.s8 %v5071
        %v5073 = vlaneseq
        %v5074 = vshrl.u32 %v5073, 7
        %v5075 = vsub.s32 %v5072, %v5074
        %v5076 = vrot.slane %v5060, %v5075
        %v5078 = vunpack.c.l.s4 1966171168
        %v5079 = vunpack.c.0.s8 %v5078
        %v5080 = vlaneseq
        %v5081 = vshrl.u32 %v5080, 7
        %v5082 = vsub.s32 %v5079, %v5081
        %v5083 = vrot.slane %v5061, %v5082
        %v5085 = vunpack.c.l.s4 1966171168
        %v5086 = vunpack.c.0.s8 %v5085
        %v5087 = vlaneseq
        %v5088 = vshrl.u32 %v5087, 7
        %v5089 = vsub.s32 %v5086, %v5088
        %v5090 = vrot.slane %v5062, %v5089
        %v5091 = vcombine.high %v5069, %v5069
        %v5092 = vcombine.high %v5076, %v5076
        %v5093 = vcombine.high %v5083, %v5083
        %v5094 = vcombine.high %v5090, %v5090
        %v5095 = vcombine.high %v5011, %v5011
        %v5097 = vunpack.c.l.s4 1966171168
        %v5098 = vunpack.c.0.s8 %v5097
        %v5099 = vlaneseq
        %v5100 = vshrl.u32 %v5099, 7
        %v5101 = vsub.s32 %v5098, %v5100
        %v5102 = vrot.slane %v5011, %v5101
        %v5104 = vunpack.c.l.s4 1966171168
        %v5105 = vunpack.c.0.s8 %v5104
        %v5106 = vlaneseq
        %v5107 = vshrl.u32 %v5106, 7
        %v5108 = vsub.s32 %v5105, %v5107
        %v5109 = vrot.slane %v5095, %v5108
        %v5110 = vcombine.high %v5102, %v5102
        %v5111 = vcombine.high %v5109, %v5109
        %v5113 = vunpack.c.l.s4 1966171168
        %v5114 = vunpack.c.0.s8 %v5113
        %v5115 = vlaneseq
        %v5116 = vshrl.u32 %v5115, 7
        %v5117 = vsub.s32 %v5114, %v5116
        %v5118 = vrot.slane %v5102, %v5117
        %v5120 = vunpack.c.l.s4 1966171168
        %v5121 = vunpack.c.0.s8 %v5120
        %v5122 = vlaneseq
        %v5123 = vshrl.u32 %v5122, 7
        %v5124 = vsub.s32 %v5121, %v5123
        %v5125 = vrot.slane %v5109, %v5124
        %v5127 = vunpack.c.l.s4 1966171168
        %v5128 = vunpack.c.0.s8 %v5127
        %v5129 = vlaneseq
        %v5130 = vshrl.u32 %v5129, 7
        %v5131 = vsub.s32 %v5128, %v5130
        %v5132 = vrot.slane %v5110, %v5131
        %v5134 = vunpack.c.l.s4 1966171168
        %v5135 = vunpack.c.0.s8 %v5134
        %v5136 = vlaneseq
        %v5137 = vshrl.u32 %v5136, 7
        %v5138 = vsub.s32 %v5135, %v5137
        %v5139 = vrot.slane %v5111, %v5138
        %v5140 = vcombine.high %v5118, %v5118
        %v5141 = vcombine.high %v5125, %v5125
        %v5142 = vcombine.high %v5132, %v5132
        %v5143 = vcombine.high %v5139, %v5139
        %v5144 = vcombine.high %v5016, %v5016
        %v5146 = vunpack.c.l.s4 1966171168
        %v5147 = vunpack.c.0.s8 %v5146
        %v5148 = vlaneseq
        %v5149 = vshrl.u32 %v5148, 7
        %v5150 = vsub.s32 %v5147, %v5149
        %v5151 = vrot.slane %v5016, %v5150
        %v5153 = vunpack.c.l.s4 1966171168
        %v5154 = vunpack.c.0.s8 %v5153
        %v5155 = vlaneseq
        %v5156 = vshrl.u32 %v5155, 7
        %v5157 = vsub.s32 %v5154, %v5156
        %v5158 = vrot.slane %v5144, %v5157
        %v5159 = vcombine.high %v5151, %v5151
        %v5160 = vcombine.high %v5158, %v5158
        %v5162 = vunpack.c.l.s4 1966171168
        %v5163 = vunpack.c.0.s8 %v5162
        %v5164 = vlaneseq
        %v5165 = vshrl.u32 %v5164, 7
        %v5166 = vsub.s32 %v5163, %v5165
        %v5167 = vrot.slane %v5151, %v5166
        %v5169 = vunpack.c.l.s4 1966171168
        %v5170 = vunpack.c.0.s8 %v5169
        %v5171 = vlaneseq
        %v5172 = vshrl.u32 %v5171, 7
        %v5173 = vsub.s32 %v5170, %v5172
        %v5174 = vrot.slane %v5158, %v5173
        %v5176 = vunpack.c.l.s4 1966171168
        %v5177 = vunpack.c.0.s8 %v5176
        %v5178 = vlaneseq
        %v5179 = vshrl.u32 %v5178, 7
        %v5180 = vsub.s32 %v5177, %v5179
        %v5181 = vrot.slane %v5159, %v5180
        %v5183 = vunpack.c.l.s4 1966171168
        %v5184 = vunpack.c.0.s8 %v5183
        %v5185 = vlaneseq
        %v5186 = vshrl.u32 %v5185, 7
        %v5187 = vsub.s32 %v5184, %v5186
        %v5188 = vrot.slane %v5160, %v5187
        %v5189 = vcombine.high %v5167, %v5167
        %v5190 = vcombine.high %v5174, %v5174
        %v5191 = vcombine.high %v5181, %v5181
        %v5192 = vcombine.high %v5188, %v5188
        %v5193 = vcombine.high %v5019, %v5019
        %v5195 = vunpack.c.l.s4 1966171168
        %v5196 = vunpack.c.0.s8 %v5195
        %v5197 = vlaneseq
        %v5198 = vshrl.u32 %v5197, 7
        %v5199 = vsub.s32 %v5196, %v5198
        %v5200 = vrot.slane %v5019, %v5199
        %v5202 = vunpack.c.l.s4 1966171168
        %v5203 = vunpack.c.0.s8 %v5202
        %v5204 = vlaneseq
        %v5205 = vshrl.u32 %v5204, 7
        %v5206 = vsub.s32 %v5203, %v5205
        %v5207 = vrot.slane %v5193, %v5206
        %v5208 = vcombine.high %v5200, %v5200
        %v5209 = vcombine.high %v5207, %v5207
        %v5211 = vunpack.c.l.s4 1966171168
        %v5212 = vunpack.c.0.s8 %v5211
        %v5213 = vlaneseq
        %v5214 = vshrl.u32 %v5213, 7
        %v5215 = vsub.s32 %v5212, %v5214
        %v5216 = vrot.slane %v5200, %v5215
        %v5218 = vunpack.c.l.s4 1966171168
        %v5219 = vunpack.c.0.s8 %v5218
        %v5220 = vlaneseq
        %v5221 = vshrl.u32 %v5220, 7
        %v5222 = vsub.s32 %v5219, %v5221
        %v5223 = vrot.slane %v5207, %v5222
        %v5225 = vunpack.c.l.s4 1966171168
        %v5226 = vunpack.c.0.s8 %v5225
        %v5227 = vlaneseq
        %v5228 = vshrl.u32 %v5227, 7
        %v5229 = vsub.s32 %v5226, %v5228
        %v5230 = vrot.slane %v5208, %v5229
        %v5232 = vunpack.c.l.s4 1966171168
        %v5233 = vunpack.c.0.s8 %v5232
        %v5234 = vlaneseq
        %v5235 = vshrl.u32 %v5234, 7
        %v5236 = vsub.s32 %v5233, %v5235
        %v5237 = vrot.slane %v5209, %v5236
        %v5238 = vcombine.high %v5216, %v5216
        %v5239 = vcombine.high %v5223, %v5223
        %v5240 = vcombine.high %v5230, %v5230
        %v5241 = vcombine.high %v5237, %v5237
        %v5242 = vcombine.high %v5024, %v5024
        %v5244 = vunpack.c.l.s4 1966171168
        %v5245 = vunpack.c.0.s8 %v5244
        %v5246 = vlaneseq
        %v5247 = vshrl.u32 %v5246, 7
        %v5248 = vsub.s32 %v5245, %v5247
        %v5249 = vrot.slane %v5024, %v5248
        %v5251 = vunpack.c.l.s4 1966171168
        %v5252 = vunpack.c.0.s8 %v5251
        %v5253 = vlaneseq
        %v5254 = vshrl.u32 %v5253, 7
        %v5255 = vsub.s32 %v5252, %v5254
        %v5256 = vrot.slane %v5242, %v5255
        %v5257 = vcombine.high %v5249, %v5249
        %v5258 = vcombine.high %v5256, %v5256
        %v5260 = vunpack.c.l.s4 1966171168
        %v5261 = vunpack.c.0.s8 %v5260
        %v5262 = vlaneseq
        %v5263 = vshrl.u32 %v5262, 7
        %v5264 = vsub.s32 %v5261, %v5263
        %v5265 = vrot.slane %v5249, %v5264
        %v5267 = vunpack.c.l.s4 1966171168
        %v5268 = vunpack.c.0.s8 %v5267
        %v5269 = vlaneseq
        %v5270 = vshrl.u32 %v5269, 7
        %v5271 = vsub.s32 %v5268, %v5270
        %v5272 = vrot.slane %v5256, %v5271
        %v5274 = vunpack.c.l.s4 1966171168
        %v5275 = vunpack.c.0.s8 %v5274
        %v5276 = vlaneseq
        %v5277 = vshrl.u32 %v5276, 7
        %v5278 = vsub.s32 %v5275, %v5277
        %v5279 = vrot.slane %v5257, %v5278
        %v5281 = vunpack.c.l.s4 1966171168
        %v5282 = vunpack.c.0.s8 %v5281
        %v5283 = vlaneseq
        %v5284 = vshrl.u32 %v5283, 7
        %v5285 = vsub.s32 %v5282, %v5284
        %v5286 = vrot.slane %v5258, %v5285
        %v5287 = vcombine.high %v5265, %v5265
        %v5288 = vcombine.high %v5272, %v5272
        %v5289 = vcombine.high %v5279, %v5279
        %v5290 = vcombine.high %v5286, %v5286
        %v5291 = vcombine.high %v5027, %v5027
        %v5293 = vunpack.c.l.s4 1966171168
        %v5294 = vunpack.c.0.s8 %v5293
        %v5295 = vlaneseq
        %v5296 = vshrl.u32 %v5295, 7
        %v5297 = vsub.s32 %v5294, %v5296
        %v5298 = vrot.slane %v5027, %v5297
        %v5300 = vunpack.c.l.s4 1966171168
        %v5301 = vunpack.c.0.s8 %v5300
        %v5302 = vlaneseq
        %v5303 = vshrl.u32 %v5302, 7
        %v5304 = vsub.s32 %v5301, %v5303
        %v5305 = vrot.slane %v5291, %v5304
        %v5306 = vcombine.high %v5298, %v5298
        %v5307 = vcombine.high %v5305, %v5305
        %v5309 = vunpack.c.l.s4 1966171168
        %v5310 = vunpack.c.0.s8 %v5309
        %v5311 = vlaneseq
        %v5312 = vshrl.u32 %v5311, 7
        %v5313 = vsub.s32 %v5310, %v5312
        %v5314 = vrot.slane %v5298, %v5313
        %v5316 = vunpack.c.l.s4 1966171168
        %v5317 = vunpack.c.0.s8 %v5316
        %v5318 = vlaneseq
        %v5319 = vshrl.u32 %v5318, 7
        %v5320 = vsub.s32 %v5317, %v5319
        %v5321 = vrot.slane %v5305, %v5320
        %v5323 = vunpack.c.l.s4 1966171168
        %v5324 = vunpack.c.0.s8 %v5323
        %v5325 = vlaneseq
        %v5326 = vshrl.u32 %v5325, 7
        %v5327 = vsub.s32 %v5324, %v5326
        %v5328 = vrot.slane %v5306, %v5327
        %v5330 = vunpack.c.l.s4 1966171168
        %v5331 = vunpack.c.0.s8 %v5330
        %v5332 = vlaneseq
        %v5333 = vshrl.u32 %v5332, 7
        %v5334 = vsub.s32 %v5331, %v5333
        %v5335 = vrot.slane %v5307, %v5334
        %v5336 = vcombine.high %v5314, %v5314
        %v5337 = vcombine.high %v5321, %v5321
        %v5338 = vcombine.high %v5328, %v5328
        %v5339 = vcombine.high %v5335, %v5335
        %v5340 = vcombine.high %v5032, %v5032
        %v5342 = vunpack.c.l.s4 1966171168
        %v5343 = vunpack.c.0.s8 %v5342
        %v5344 = vlaneseq
        %v5345 = vshrl.u32 %v5344, 7
        %v5346 = vsub.s32 %v5343, %v5345
        %v5347 = vrot.slane %v5032, %v5346
        %v5349 = vunpack.c.l.s4 1966171168
        %v5350 = vunpack.c.0.s8 %v5349
        %v5351 = vlaneseq
        %v5352 = vshrl.u32 %v5351, 7
        %v5353 = vsub.s32 %v5350, %v5352
        %v5354 = vrot.slane %v5340, %v5353
        %v5355 = vcombine.high %v5347, %v5347
        %v5356 = vcombine.high %v5354, %v5354
        %v5358 = vunpack.c.l.s4 1966171168
        %v5359 = vunpack.c.0.s8 %v5358
        %v5360 = vlaneseq
        %v5361 = vshrl.u32 %v5360, 7
        %v5362 = vsub.s32 %v5359, %v5361
        %v5363 = vrot.slane %v5347, %v5362
        %v5365 = vunpack.c.l.s4 1966171168
        %v5366 = vunpack.c.0.s8 %v5365
        %v5367 = vlaneseq
        %v5368 = vshrl.u32 %v5367, 7
        %v5369 = vsub.s32 %v5366, %v5368
        %v5370 = vrot.slane %v5354, %v5369
        %v5372 = vunpack.c.l.s4 1966171168
        %v5373 = vunpack.c.0.s8 %v5372
        %v5374 = vlaneseq
        %v5375 = vshrl.u32 %v5374, 7
        %v5376 = vsub.s32 %v5373, %v5375
        %v5377 = vrot.slane %v5355, %v5376
        %v5379 = vunpack.c.l.s4 1966171168
        %v5380 = vunpack.c.0.s8 %v5379
        %v5381 = vlaneseq
        %v5382 = vshrl.u32 %v5381, 7
        %v5383 = vsub.s32 %v5380, %v5382
        %v5384 = vrot.slane %v5356, %v5383
        %v5385 = vcombine.high %v5363, %v5363
        %v5386 = vcombine.high %v5370, %v5370
        %v5387 = vcombine.high %v5377, %v5377
        %v5388 = vcombine.high %v5384, %v5384
        %v5389 = vcombine.high %v5035, %v5035
        %v5391 = vunpack.c.l.s4 1966171168
        %v5392 = vunpack.c.0.s8 %v5391
        %v5393 = vlaneseq
        %v5394 = vshrl.u32 %v5393, 7
        %v5395 = vsub.s32 %v5392, %v5394
        %v5396 = vrot.slane %v5035, %v5395
        %v5398 = vunpack.c.l.s4 1966171168
        %v5399 = vunpack.c.0.s8 %v5398
        %v5400 = vlaneseq
        %v5401 = vshrl.u32 %v5400, 7
        %v5402 = vsub.s32 %v5399, %v5401
        %v5403 = vrot.slane %v5389, %v5402
        %v5404 = vcombine.high %v5396, %v5396
        %v5405 = vcombine.high %v5403, %v5403
        %v5407 = vunpack.c.l.s4 1966171168
        %v5408 = vunpack.c.0.s8 %v5407
        %v5409 = vlaneseq
        %v5410 = vshrl.u32 %v5409, 7
        %v5411 = vsub.s32 %v5408, %v5410
        %v5412 = vrot.slane %v5396, %v5411
        %v5414 = vunpack.c.l.s4 1966171168
        %v5415 = vunpack.c.0.s8 %v5414
        %v5416 = vlaneseq
        %v5417 = vshrl.u32 %v5416, 7
        %v5418 = vsub.s32 %v5415, %v5417
        %v5419 = vrot.slane %v5403, %v5418
        %v5421 = vunpack.c.l.s4 1966171168
        %v5422 = vunpack.c.0.s8 %v5421
        %v5423 = vlaneseq
        %v5424 = vshrl.u32 %v5423, 7
        %v5425 = vsub.s32 %v5422, %v5424
        %v5426 = vrot.slane %v5404, %v5425
        %v5428 = vunpack.c.l.s4 1966171168
        %v5429 = vunpack.c.0.s8 %v5428
        %v5430 = vlaneseq
        %v5431 = vshrl.u32 %v5430, 7
        %v5432 = vsub.s32 %v5429, %v5431
        %v5433 = vrot.slane %v5405, %v5432
        %v5434 = vcombine.high %v5412, %v5412
        %v5435 = vcombine.high %v5419, %v5419
        %v5436 = vcombine.high %v5426, %v5426
        %v5437 = vcombine.high %v5433, %v5433
        %5502 = vst.msk [vmem:[%s577 + $0x2] sm:$0x1] %vm4185, %v5069
        %5503 = vst.msk [vmem:[%s577 + $0xa] sm:$0x1] %vm4185, %v5083
        %5504 = vst.msk [vmem:[%s577 + $0x12] sm:$0x1] %vm4185, %v5091
        %5505 = vst.msk [vmem:[%s577 + $0x1a] sm:$0x1] %vm4185, %v5093
        %5506 = vst.msk [vmem:[%s577 + $0x22] sm:$0x1] %vm4185, %v5076
        %5507 = vst.msk [vmem:[%s577 + $0x2a] sm:$0x1] %vm4185, %v5090
        %5508 = vst.msk [vmem:[%s577 + $0x32] sm:$0x1] %vm4185, %v5092
        %5509 = vst.msk [vmem:[%s577 + $0x3a] sm:$0x1] %vm4185, %v5094
        %5510 = vst.msk [vmem:[%s577 + $0x42] sm:$0x1] %vm4185, %v5118
        %5511 = vst.msk [vmem:[%s577 + $0x4a] sm:$0x1] %vm4185, %v5132
        %5512 = vst.msk [vmem:[%s577 + $0x52] sm:$0x1] %vm4185, %v5140
        %5513 = vst.msk [vmem:[%s577 + $0x5a] sm:$0x1] %vm4185, %v5142
        %5514 = vst.msk [vmem:[%s577 + $0x62] sm:$0x1] %vm4185, %v5125
        %5515 = vst.msk [vmem:[%s577 + $0x6a] sm:$0x1] %vm4185, %v5139
        %5516 = vst.msk [vmem:[%s577 + $0x72] sm:$0x1] %vm4185, %v5141
        %5517 = vst.msk [vmem:[%s577 + $0x7a] sm:$0x1] %vm4185, %v5143
        %5518 = vst.msk [vmem:[%s577 + $0x82] sm:$0x1] %vm4185, %v5167
        %5519 = vst.msk [vmem:[%s577 + $0x8a] sm:$0x1] %vm4185, %v5181
        %5520 = vst.msk [vmem:[%s577 + $0x92] sm:$0x1] %vm4185, %v5189
        %5521 = vst.msk [vmem:[%s577 + $0x9a] sm:$0x1] %vm4185, %v5191
        %5522 = vst.msk [vmem:[%s577 + $0xa2] sm:$0x1] %vm4185, %v5174
        %5523 = vst.msk [vmem:[%s577 + $0xaa] sm:$0x1] %vm4185, %v5188
        %5524 = vst.msk [vmem:[%s577 + $0xb2] sm:$0x1] %vm4185, %v5190
        %5525 = vst.msk [vmem:[%s577 + $0xba] sm:$0x1] %vm4185, %v5192
        %5526 = vst.msk [vmem:[%s577 + $0xc2] sm:$0x1] %vm4185, %v5216
        %5527 = vst.msk [vmem:[%s577 + $0xca] sm:$0x1] %vm4185, %v5230
        %5528 = vst.msk [vmem:[%s577 + $0xd2] sm:$0x1] %vm4185, %v5238
        %5529 = vst.msk [vmem:[%s577 + $0xda] sm:$0x1] %vm4185, %v5240
        %5530 = vst.msk [vmem:[%s577 + $0xe2] sm:$0x1] %vm4185, %v5223
        %5531 = vst.msk [vmem:[%s577 + $0xea] sm:$0x1] %vm4185, %v5237
        %5532 = vst.msk [vmem:[%s577 + $0xf2] sm:$0x1] %vm4185, %v5239
        %5533 = vst.msk [vmem:[%s577 + $0xfa] sm:$0x1] %vm4185, %v5241
        %5534 = vst.msk [vmem:[%s577 + $0x102] sm:$0x1] %vm4185, %v5265
        %5535 = vst.msk [vmem:[%s577 + $0x10a] sm:$0x1] %vm4185, %v5279
        %5536 = vst.msk [vmem:[%s577 + $0x112] sm:$0x1] %vm4185, %v5287
        %5537 = vst.msk [vmem:[%s577 + $0x11a] sm:$0x1] %vm4185, %v5289
        %5538 = vst.msk [vmem:[%s577 + $0x122] sm:$0x1] %vm4185, %v5272
        %5539 = vst.msk [vmem:[%s577 + $0x12a] sm:$0x1] %vm4185, %v5286
        %5540 = vst.msk [vmem:[%s577 + $0x132] sm:$0x1] %vm4185, %v5288
        %5541 = vst.msk [vmem:[%s577 + $0x13a] sm:$0x1] %vm4185, %v5290
        %5542 = vst.msk [vmem:[%s577 + $0x142] sm:$0x1] %vm4185, %v5314
        %5543 = vst.msk [vmem:[%s577 + $0x14a] sm:$0x1] %vm4185, %v5328
        %5544 = vst.msk [vmem:[%s577 + $0x152] sm:$0x1] %vm4185, %v5336
        %5545 = vst.msk [vmem:[%s577 + $0x15a] sm:$0x1] %vm4185, %v5338
        %5546 = vst.msk [vmem:[%s577 + $0x162] sm:$0x1] %vm4185, %v5321
        %5547 = vst.msk [vmem:[%s577 + $0x16a] sm:$0x1] %vm4185, %v5335
        %5548 = vst.msk [vmem:[%s577 + $0x172] sm:$0x1] %vm4185, %v5337
        %5549 = vst.msk [vmem:[%s577 + $0x17a] sm:$0x1] %vm4185, %v5339
        %5550 = vst.msk [vmem:[%s577 + $0x182] sm:$0x1] %vm4185, %v5363
        %5551 = vst.msk [vmem:[%s577 + $0x18a] sm:$0x1] %vm4185, %v5377
        %5552 = vst.msk [vmem:[%s577 + $0x192] sm:$0x1] %vm4185, %v5385
        %5553 = vst.msk [vmem:[%s577 + $0x19a] sm:$0x1] %vm4185, %v5387
        %5554 = vst.msk [vmem:[%s577 + $0x1a2] sm:$0x1] %vm4185, %v5370
        %5555 = vst.msk [vmem:[%s577 + $0x1aa] sm:$0x1] %vm4185, %v5384
        %5556 = vst.msk [vmem:[%s577 + $0x1b2] sm:$0x1] %vm4185, %v5386
        %5557 = vst.msk [vmem:[%s577 + $0x1ba] sm:$0x1] %vm4185, %v5388
        %5558 = vst.msk [vmem:[%s577 + $0x1c2] sm:$0x1] %vm4185, %v5412
        %5559 = vst.msk [vmem:[%s577 + $0x1ca] sm:$0x1] %vm4185, %v5426
        %5560 = vst.msk [vmem:[%s577 + $0x1d2] sm:$0x1] %vm4185, %v5434
        %5561 = vst.msk [vmem:[%s577 + $0x1da] sm:$0x1] %vm4185, %v5436
        %5562 = vst.msk [vmem:[%s577 + $0x1e2] sm:$0x1] %vm4185, %v5419
        %5563 = vst.msk [vmem:[%s577 + $0x1ea] sm:$0x1] %vm4185, %v5433
        %5564 = vst.msk [vmem:[%s577 + $0x1f2] sm:$0x1] %vm4185, %v5435
        %5565 = vst.msk [vmem:[%s577 + $0x1fa] sm:$0x1] %vm4185, %v5437
        %5566 = vmatprep.subr.bf16.mxu0 0
        %5567 = vmatpush1.bf16.msra.mxu0 %v3490
        %5568 = vmatprep.subr.bf16.mxu0 0
        %5569 = vmatpush1.bf16.msra.mxu0 %v3491
        %5570 = vmatprep.subr.bf16.mxu0 0
        %5571 = vmatpush1.bf16.msra.mxu0 %v3492
        %5572 = vmatprep.subr.bf16.mxu0 0
        %5573 = vmatpush1.bf16.msra.mxu0 %v3493
        %5574 = vmatprep.subr.bf16.mxu0 0
        %5575 = vmatpush1.bf16.msra.mxu0 0
        %5576 = vmatprep.subr.bf16.mxu0 0
        %5577 = vmatpush1.bf16.msra.mxu0 0
        %5578 = vmatprep.subr.bf16.mxu0 0
        %5579 = vmatpush1.bf16.msra.mxu0 0
        %5580 = vmatprep.subr.bf16.mxu0 0
        %5581 = vmatpush1.bf16.msra.mxu0 0
        %5582 = vmatprep.subr.bf16.mxu0 0
        %5583 = vmatpush1.bf16.msra.mxu0 0
        %5584 = vmatprep.subr.bf16.mxu0 0
        %5585 = vmatpush1.bf16.msra.mxu0 0
        %5586 = vmatprep.subr.bf16.mxu0 0
        %5587 = vmatpush1.bf16.msra.mxu0 0
        %5588 = vmatprep.subr.bf16.mxu0 0
        %5589 = vmatpush1.bf16.msra.mxu0 0
        %5590 = vmatprep.subr.bf16.mxu0 0
        %5591 = vmatpush1.bf16.msra.mxu0 0
        %5592 = vmatprep.subr.bf16.mxu0 0
        %5593 = vmatpush1.bf16.msra.mxu0 0
        %5594 = vmatprep.subr.bf16.mxu0 0
        %5595 = vmatpush1.bf16.msra.mxu0 0
        %5596 = vmatprep.subr.bf16.mxu0 0
        %5597 = vmatpush1.bf16.msra.mxu0 0
        %5598 = vmatprep.mubr.bf16.mxu0 0
        %5599 = vmatmul.mubr.bf16.gmra.mrb[0].mxu0 %v3548
        %v5600 = vpop.f32.mrb[0].mxu0
        %v5601 = vadd.f32 0.0, %v5600
        %v5602 = vpop.f32.mrb[0].mxu0
        %v5603 = vpop.f32.mrb[0].mxu0
        %v5604 = vadd.f32 0.0, %v5603
        %v5605 = vpop.f32.mrb[0].mxu0
        %5606 = vmatprep.mubr.bf16.mxu0 0
        %5607 = vmatmul.mubr.bf16.gmra.mrb[0].mxu0 %v3551
        %v5608 = vpop.f32.mrb[0].mxu0
        %v5609 = vadd.f32 0.0, %v5608
        %v5610 = vpop.f32.mrb[0].mxu0
        %v5611 = vpop.f32.mrb[0].mxu0
        %v5612 = vadd.f32 0.0, %v5611
        %v5613 = vpop.f32.mrb[0].mxu0
        %5614 = vmatprep.mubr.bf16.mxu0 0
        %5615 = vmatmul.mubr.bf16.gmra.mrb[0].mxu0 %v3554
        %v5616 = vpop.f32.mrb[0].mxu0
        %v5617 = vadd.f32 0.0, %v5616
        %v5618 = vpop.f32.mrb[0].mxu0
        %v5619 = vpop.f32.mrb[0].mxu0
        %v5620 = vadd.f32 0.0, %v5619
        %v5621 = vpop.f32.mrb[0].mxu0
        %5622 = vmatprep.mubr.bf16.mxu0 0
        %5623 = vmatmul.mubr.bf16.gmra.mrb[0].mxu0 %v3557
        %v5624 = vpop.f32.mrb[0].mxu0
        %v5625 = vadd.f32 0.0, %v5624
        %v5626 = vpop.f32.mrb[0].mxu0
        %v5627 = vpop.f32.mrb[0].mxu0
        %v5628 = vadd.f32 0.0, %v5627
        %v5629 = vpop.f32.mrb[0].mxu0
        %5630 = vdwg.mxu0
        %5631 = vmatprep.subr.bf16.mxu0 0
        %5632 = vmatpush1.bf16.msra.mxu0 %v3458
        %5633 = vmatprep.subr.bf16.mxu0 0
        %5634 = vmatpush1.bf16.msra.mxu0 %v3459
        %5635 = vmatprep.subr.bf16.mxu0 0
        %5636 = vmatpush1.bf16.msra.mxu0 %v3460
        %5637 = vmatprep.subr.bf16.mxu0 0
        %5638 = vmatpush1.bf16.msra.mxu0 %v3461
        %5639 = vmatprep.subr.bf16.mxu0 0
        %5640 = vmatpush1.bf16.msra.mxu0 0
        %5641 = vmatprep.subr.bf16.mxu0 0
        %5642 = vmatpush1.bf16.msra.mxu0 0
        %5643 = vmatprep.subr.bf16.mxu0 0
        %5644 = vmatpush1.bf16.msra.mxu0 0
        %5645 = vmatprep.subr.bf16.mxu0 0
        %5646 = vmatpush1.bf16.msra.mxu0 0
        %5647 = vmatprep.subr.bf16.mxu0 0
        %5648 = vmatpush1.bf16.msra.mxu0 0
        %5649 = vmatprep.subr.bf16.mxu0 0
        %5650 = vmatpush1.bf16.msra.mxu0 0
        %5651 = vmatprep.subr.bf16.mxu0 0
        %5652 = vmatpush1.bf16.msra.mxu0 0
        %5653 = vmatprep.subr.bf16.mxu0 0
        %5654 = vmatpush1.bf16.msra.mxu0 0
        %5655 = vmatprep.subr.bf16.mxu0 0
        %5656 = vmatpush1.bf16.msra.mxu0 0
        %5657 = vmatprep.subr.bf16.mxu0 0
        %5658 = vmatpush1.bf16.msra.mxu0 0
        %5659 = vmatprep.subr.bf16.mxu0 0
        %5660 = vmatpush1.bf16.msra.mxu0 0
        %5661 = vmatprep.subr.bf16.mxu0 0
        %5662 = vmatpush1.bf16.msra.mxu0 0
        %5663 = vmatprep.mubr.bf16.mxu0 0
        %5664 = vmatmul.mubr.bf16.gmra.mrb[0].mxu0 %v3645
        %v5665 = vpop.f32.mrb[0].mxu0
        %v5666 = vadd.f32 %v5601, %v5665
        %v5667 = vpop.f32.mrb[0].mxu0
        %v5668 = vpop.f32.mrb[0].mxu0
        %v5669 = vadd.f32 %v5604, %v5668
        %v5670 = vpop.f32.mrb[0].mxu0
        %5671 = vmatprep.mubr.bf16.mxu0 0
        %5672 = vmatmul.mubr.bf16.gmra.mrb[0].mxu0 %v3648
        %v5673 = vpop.f32.mrb[0].mxu0
        %v5674 = vadd.f32 %v5609, %v5673
        %v5675 = vpop.f32.mrb[0].mxu0
        %v5676 = vpop.f32.mrb[0].mxu0
        %v5677 = vadd.f32 %v5612, %v5676
        %v5678 = vpop.f32.mrb[0].mxu0
        %5679 = vmatprep.mubr.bf16.mxu0 0
        %5680 = vmatmul.mubr.bf16.gmra.mrb[0].mxu0 %v3651
        %v5681 = vpop.f32.mrb[0].mxu0
        %v5682 = vadd.f32 %v5617, %v5681
        %v5683 = vpop.f32.mrb[0].mxu0
        %v5684 = vpop.f32.mrb[0].mxu0
        %v5685 = vadd.f32 %v5620, %v5684
        %v5686 = vpop.f32.mrb[0].mxu0
        %5687 = vmatprep.mubr.bf16.mxu0 0
        %5688 = vmatmul.mubr.bf16.gmra.mrb[0].mxu0 %v3654
        %v5689 = vpop.f32.mrb[0].mxu0
        %v5690 = vadd.f32 %v5625, %v5689
        %v5691 = vpop.f32.mrb[0].mxu0
        %v5692 = vpop.f32.mrb[0].mxu0
        %v5693 = vadd.f32 %v5628, %v5692
        %v5694 = vpop.f32.mrb[0].mxu0
        %5695 = vdwg.mxu0
        %v5704 = vcombine.high %v5666, %v5666
        %v5706 = vunpack.c.l.s4 1966171168
        %v5707 = vunpack.c.0.s8 %v5706
        %v5708 = vlaneseq
        %v5709 = vshrl.u32 %v5708, 7
        %v5710 = vsub.s32 %v5707, %v5709
        %v5711 = vrot.slane %v5666, %v5710
        %v5713 = vunpack.c.l.s4 1966171168
        %v5714 = vunpack.c.0.s8 %v5713
        %v5715 = vlaneseq
        %v5716 = vshrl.u32 %v5715, 7
        %v5717 = vsub.s32 %v5714, %v5716
        %v5718 = vrot.slane %v5704, %v5717
        %v5719 = vcombine.high %v5711, %v5711
        %v5720 = vcombine.high %v5718, %v5718
        %v5722 = vunpack.c.l.s4 1966171168
        %v5723 = vunpack.c.0.s8 %v5722
        %v5724 = vlaneseq
        %v5725 = vshrl.u32 %v5724, 7
        %v5726 = vsub.s32 %v5723, %v5725
        %v5727 = vrot.slane %v5711, %v5726
        %v5729 = vunpack.c.l.s4 1966171168
        %v5730 = vunpack.c.0.s8 %v5729
        %v5731 = vlaneseq
        %v5732 = vshrl.u32 %v5731, 7
        %v5733 = vsub.s32 %v5730, %v5732
        %v5734 = vrot.slane %v5718, %v5733
        %v5736 = vunpack.c.l.s4 1966171168
        %v5737 = vunpack.c.0.s8 %v5736
        %v5738 = vlaneseq
        %v5739 = vshrl.u32 %v5738, 7
        %v5740 = vsub.s32 %v5737, %v5739
        %v5741 = vrot.slane %v5719, %v5740
        %v5743 = vunpack.c.l.s4 1966171168
        %v5744 = vunpack.c.0.s8 %v5743
        %v5745 = vlaneseq
        %v5746 = vshrl.u32 %v5745, 7
        %v5747 = vsub.s32 %v5744, %v5746
        %v5748 = vrot.slane %v5720, %v5747
        %v5749 = vcombine.high %v5727, %v5727
        %v5750 = vcombine.high %v5734, %v5734
        %v5751 = vcombine.high %v5741, %v5741
        %v5752 = vcombine.high %v5748, %v5748
        %v5753 = vcombine.high %v5669, %v5669
        %v5755 = vunpack.c.l.s4 1966171168
        %v5756 = vunpack.c.0.s8 %v5755
        %v5757 = vlaneseq
        %v5758 = vshrl.u32 %v5757, 7
        %v5759 = vsub.s32 %v5756, %v5758
        %v5760 = vrot.slane %v5669, %v5759
        %v5762 = vunpack.c.l.s4 1966171168
        %v5763 = vunpack.c.0.s8 %v5762
        %v5764 = vlaneseq
        %v5765 = vshrl.u32 %v5764, 7
        %v5766 = vsub.s32 %v5763, %v5765
        %v5767 = vrot.slane %v5753, %v5766
        %v5768 = vcombine.high %v5760, %v5760
        %v5769 = vcombine.high %v5767, %v5767
        %v5771 = vunpack.c.l.s4 1966171168
        %v5772 = vunpack.c.0.s8 %v5771
        %v5773 = vlaneseq
        %v5774 = vshrl.u32 %v5773, 7
        %v5775 = vsub.s32 %v5772, %v5774
        %v5776 = vrot.slane %v5760, %v5775
        %v5778 = vunpack.c.l.s4 1966171168
        %v5779 = vunpack.c.0.s8 %v5778
        %v5780 = vlaneseq
        %v5781 = vshrl.u32 %v5780, 7
        %v5782 = vsub.s32 %v5779, %v5781
        %v5783 = vrot.slane %v5767, %v5782
        %v5785 = vunpack.c.l.s4 1966171168
        %v5786 = vunpack.c.0.s8 %v5785
        %v5787 = vlaneseq
        %v5788 = vshrl.u32 %v5787, 7
        %v5789 = vsub.s32 %v5786, %v5788
        %v5790 = vrot.slane %v5768, %v5789
        %v5792 = vunpack.c.l.s4 1966171168
        %v5793 = vunpack.c.0.s8 %v5792
        %v5794 = vlaneseq
        %v5795 = vshrl.u32 %v5794, 7
        %v5796 = vsub.s32 %v5793, %v5795
        %v5797 = vrot.slane %v5769, %v5796
        %v5798 = vcombine.high %v5776, %v5776
        %v5799 = vcombine.high %v5783, %v5783
        %v5800 = vcombine.high %v5790, %v5790
        %v5801 = vcombine.high %v5797, %v5797
        %v5802 = vcombine.high %v5674, %v5674
        %v5804 = vunpack.c.l.s4 1966171168
        %v5805 = vunpack.c.0.s8 %v5804
        %v5806 = vlaneseq
        %v5807 = vshrl.u32 %v5806, 7
        %v5808 = vsub.s32 %v5805, %v5807
        %v5809 = vrot.slane %v5674, %v5808
        %v5811 = vunpack.c.l.s4 1966171168
        %v5812 = vunpack.c.0.s8 %v5811
        %v5813 = vlaneseq
        %v5814 = vshrl.u32 %v5813, 7
        %v5815 = vsub.s32 %v5812, %v5814
        %v5816 = vrot.slane %v5802, %v5815
        %v5817 = vcombine.high %v5809, %v5809
        %v5818 = vcombine.high %v5816, %v5816
        %v5820 = vunpack.c.l.s4 1966171168
        %v5821 = vunpack.c.0.s8 %v5820
        %v5822 = vlaneseq
        %v5823 = vshrl.u32 %v5822, 7
        %v5824 = vsub.s32 %v5821, %v5823
        %v5825 = vrot.slane %v5809, %v5824
        %v5827 = vunpack.c.l.s4 1966171168
        %v5828 = vunpack.c.0.s8 %v5827
        %v5829 = vlaneseq
        %v5830 = vshrl.u32 %v5829, 7
        %v5831 = vsub.s32 %v5828, %v5830
        %v5832 = vrot.slane %v5816, %v5831
        %v5834 = vunpack.c.l.s4 1966171168
        %v5835 = vunpack.c.0.s8 %v5834
        %v5836 = vlaneseq
        %v5837 = vshrl.u32 %v5836, 7
        %v5838 = vsub.s32 %v5835, %v5837
        %v5839 = vrot.slane %v5817, %v5838
        %v5841 = vunpack.c.l.s4 1966171168
        %v5842 = vunpack.c.0.s8 %v5841
        %v5843 = vlaneseq
        %v5844 = vshrl.u32 %v5843, 7
        %v5845 = vsub.s32 %v5842, %v5844
        %v5846 = vrot.slane %v5818, %v5845
        %v5847 = vcombine.high %v5825, %v5825
        %v5848 = vcombine.high %v5832, %v5832
        %v5849 = vcombine.high %v5839, %v5839
        %v5850 = vcombine.high %v5846, %v5846
        %v5851 = vcombine.high %v5677, %v5677
        %v5853 = vunpack.c.l.s4 1966171168
        %v5854 = vunpack.c.0.s8 %v5853
        %v5855 = vlaneseq
        %v5856 = vshrl.u32 %v5855, 7
        %v5857 = vsub.s32 %v5854, %v5856
        %v5858 = vrot.slane %v5677, %v5857
        %v5860 = vunpack.c.l.s4 1966171168
        %v5861 = vunpack.c.0.s8 %v5860
        %v5862 = vlaneseq
        %v5863 = vshrl.u32 %v5862, 7
        %v5864 = vsub.s32 %v5861, %v5863
        %v5865 = vrot.slane %v5851, %v5864
        %v5866 = vcombine.high %v5858, %v5858
        %v5867 = vcombine.high %v5865, %v5865
        %v5869 = vunpack.c.l.s4 1966171168
        %v5870 = vunpack.c.0.s8 %v5869
        %v5871 = vlaneseq
        %v5872 = vshrl.u32 %v5871, 7
        %v5873 = vsub.s32 %v5870, %v5872
        %v5874 = vrot.slane %v5858, %v5873
        %v5876 = vunpack.c.l.s4 1966171168
        %v5877 = vunpack.c.0.s8 %v5876
        %v5878 = vlaneseq
        %v5879 = vshrl.u32 %v5878, 7
        %v5880 = vsub.s32 %v5877, %v5879
        %v5881 = vrot.slane %v5865, %v5880
        %v5883 = vunpack.c.l.s4 1966171168
        %v5884 = vunpack.c.0.s8 %v5883
        %v5885 = vlaneseq
        %v5886 = vshrl.u32 %v5885, 7
        %v5887 = vsub.s32 %v5884, %v5886
        %v5888 = vrot.slane %v5866, %v5887
        %v5890 = vunpack.c.l.s4 1966171168
        %v5891 = vunpack.c.0.s8 %v5890
        %v5892 = vlaneseq
        %v5893 = vshrl.u32 %v5892, 7
        %v5894 = vsub.s32 %v5891, %v5893
        %v5895 = vrot.slane %v5867, %v5894
        %v5896 = vcombine.high %v5874, %v5874
        %v5897 = vcombine.high %v5881, %v5881
        %v5898 = vcombine.high %v5888, %v5888
        %v5899 = vcombine.high %v5895, %v5895
        %v5900 = vcombine.high %v5682, %v5682
        %v5902 = vunpack.c.l.s4 1966171168
        %v5903 = vunpack.c.0.s8 %v5902
        %v5904 = vlaneseq
        %v5905 = vshrl.u32 %v5904, 7
        %v5906 = vsub.s32 %v5903, %v5905
        %v5907 = vrot.slane %v5682, %v5906
        %v5909 = vunpack.c.l.s4 1966171168
        %v5910 = vunpack.c.0.s8 %v5909
        %v5911 = vlaneseq
        %v5912 = vshrl.u32 %v5911, 7
        %v5913 = vsub.s32 %v5910, %v5912
        %v5914 = vrot.slane %v5900, %v5913
        %v5915 = vcombine.high %v5907, %v5907
        %v5916 = vcombine.high %v5914, %v5914
        %v5918 = vunpack.c.l.s4 1966171168
        %v5919 = vunpack.c.0.s8 %v5918
        %v5920 = vlaneseq
        %v5921 = vshrl.u32 %v5920, 7
        %v5922 = vsub.s32 %v5919, %v5921
        %v5923 = vrot.slane %v5907, %v5922
        %v5925 = vunpack.c.l.s4 1966171168
        %v5926 = vunpack.c.0.s8 %v5925
        %v5927 = vlaneseq
        %v5928 = vshrl.u32 %v5927, 7
        %v5929 = vsub.s32 %v5926, %v5928
        %v5930 = vrot.slane %v5914, %v5929
        %v5932 = vunpack.c.l.s4 1966171168
        %v5933 = vunpack.c.0.s8 %v5932
        %v5934 = vlaneseq
        %v5935 = vshrl.u32 %v5934, 7
        %v5936 = vsub.s32 %v5933, %v5935
        %v5937 = vrot.slane %v5915, %v5936
        %v5939 = vunpack.c.l.s4 1966171168
        %v5940 = vunpack.c.0.s8 %v5939
        %v5941 = vlaneseq
        %v5942 = vshrl.u32 %v5941, 7
        %v5943 = vsub.s32 %v5940, %v5942
        %v5944 = vrot.slane %v5916, %v5943
        %v5945 = vcombine.high %v5923, %v5923
        %v5946 = vcombine.high %v5930, %v5930
        %v5947 = vcombine.high %v5937, %v5937
        %v5948 = vcombine.high %v5944, %v5944
        %v5949 = vcombine.high %v5685, %v5685
        %v5951 = vunpack.c.l.s4 1966171168
        %v5952 = vunpack.c.0.s8 %v5951
        %v5953 = vlaneseq
        %v5954 = vshrl.u32 %v5953, 7
        %v5955 = vsub.s32 %v5952, %v5954
        %v5956 = vrot.slane %v5685, %v5955
        %v5958 = vunpack.c.l.s4 1966171168
        %v5959 = vunpack.c.0.s8 %v5958
        %v5960 = vlaneseq
        %v5961 = vshrl.u32 %v5960, 7
        %v5962 = vsub.s32 %v5959, %v5961
        %v5963 = vrot.slane %v5949, %v5962
        %v5964 = vcombine.high %v5956, %v5956
        %v5965 = vcombine.high %v5963, %v5963
        %v5967 = vunpack.c.l.s4 1966171168
        %v5968 = vunpack.c.0.s8 %v5967
        %v5969 = vlaneseq
        %v5970 = vshrl.u32 %v5969, 7
        %v5971 = vsub.s32 %v5968, %v5970
        %v5972 = vrot.slane %v5956, %v5971
        %v5974 = vunpack.c.l.s4 1966171168
        %v5975 = vunpack.c.0.s8 %v5974
        %v5976 = vlaneseq
        %v5977 = vshrl.u32 %v5976, 7
        %v5978 = vsub.s32 %v5975, %v5977
        %v5979 = vrot.slane %v5963, %v5978
        %v5981 = vunpack.c.l.s4 1966171168
        %v5982 = vunpack.c.0.s8 %v5981
        %v5983 = vlaneseq
        %v5984 = vshrl.u32 %v5983, 7
        %v5985 = vsub.s32 %v5982, %v5984
        %v5986 = vrot.slane %v5964, %v5985
        %v5988 = vunpack.c.l.s4 1966171168
        %v5989 = vunpack.c.0.s8 %v5988
        %v5990 = vlaneseq
        %v5991 = vshrl.u32 %v5990, 7
        %v5992 = vsub.s32 %v5989, %v5991
        %v5993 = vrot.slane %v5965, %v5992
        %v5994 = vcombine.high %v5972, %v5972
        %v5995 = vcombine.high %v5979, %v5979
        %v5996 = vcombine.high %v5986, %v5986
        %v5997 = vcombine.high %v5993, %v5993
        %v5998 = vcombine.high %v5690, %v5690
        %v6000 = vunpack.c.l.s4 1966171168
        %v6001 = vunpack.c.0.s8 %v6000
        %v6002 = vlaneseq
        %v6003 = vshrl.u32 %v6002, 7
        %v6004 = vsub.s32 %v6001, %v6003
        %v6005 = vrot.slane %v5690, %v6004
        %v6007 = vunpack.c.l.s4 1966171168
        %v6008 = vunpack.c.0.s8 %v6007
        %v6009 = vlaneseq
        %v6010 = vshrl.u32 %v6009, 7
        %v6011 = vsub.s32 %v6008, %v6010
        %v6012 = vrot.slane %v5998, %v6011
        %v6013 = vcombine.high %v6005, %v6005
        %v6014 = vcombine.high %v6012, %v6012
        %v6016 = vunpack.c.l.s4 1966171168
        %v6017 = vunpack.c.0.s8 %v6016
        %v6018 = vlaneseq
        %v6019 = vshrl.u32 %v6018, 7
        %v6020 = vsub.s32 %v6017, %v6019
        %v6021 = vrot.slane %v6005, %v6020
        %v6023 = vunpack.c.l.s4 1966171168
        %v6024 = vunpack.c.0.s8 %v6023
        %v6025 = vlaneseq
        %v6026 = vshrl.u32 %v6025, 7
        %v6027 = vsub.s32 %v6024, %v6026
        %v6028 = vrot.slane %v6012, %v6027
        %v6030 = vunpack.c.l.s4 1966171168
        %v6031 = vunpack.c.0.s8 %v6030
        %v6032 = vlaneseq
        %v6033 = vshrl.u32 %v6032, 7
        %v6034 = vsub.s32 %v6031, %v6033
        %v6035 = vrot.slane %v6013, %v6034
        %v6037 = vunpack.c.l.s4 1966171168
        %v6038 = vunpack.c.0.s8 %v6037
        %v6039 = vlaneseq
        %v6040 = vshrl.u32 %v6039, 7
        %v6041 = vsub.s32 %v6038, %v6040
        %v6042 = vrot.slane %v6014, %v6041
        %v6043 = vcombine.high %v6021, %v6021
        %v6044 = vcombine.high %v6028, %v6028
        %v6045 = vcombine.high %v6035, %v6035
        %v6046 = vcombine.high %v6042, %v6042
        %v6047 = vcombine.high %v5693, %v5693
        %v6049 = vunpack.c.l.s4 1966171168
        %v6050 = vunpack.c.0.s8 %v6049
        %v6051 = vlaneseq
        %v6052 = vshrl.u32 %v6051, 7
        %v6053 = vsub.s32 %v6050, %v6052
        %v6054 = vrot.slane %v5693, %v6053
        %v6056 = vunpack.c.l.s4 1966171168
        %v6057 = vunpack.c.0.s8 %v6056
        %v6058 = vlaneseq
        %v6059 = vshrl.u32 %v6058, 7
        %v6060 = vsub.s32 %v6057, %v6059
        %v6061 = vrot.slane %v6047, %v6060
        %v6062 = vcombine.high %v6054, %v6054
        %v6063 = vcombine.high %v6061, %v6061
        %v6065 = vunpack.c.l.s4 1966171168
        %v6066 = vunpack.c.0.s8 %v6065
        %v6067 = vlaneseq
        %v6068 = vshrl.u32 %v6067, 7
        %v6069 = vsub.s32 %v6066, %v6068
        %v6070 = vrot.slane %v6054, %v6069
        %v6072 = vunpack.c.l.s4 1966171168
        %v6073 = vunpack.c.0.s8 %v6072
        %v6074 = vlaneseq
        %v6075 = vshrl.u32 %v6074, 7
        %v6076 = vsub.s32 %v6073, %v6075
        %v6077 = vrot.slane %v6061, %v6076
        %v6079 = vunpack.c.l.s4 1966171168
        %v6080 = vunpack.c.0.s8 %v6079
        %v6081 = vlaneseq
        %v6082 = vshrl.u32 %v6081, 7
        %v6083 = vsub.s32 %v6080, %v6082
        %v6084 = vrot.slane %v6062, %v6083
        %v6086 = vunpack.c.l.s4 1966171168
        %v6087 = vunpack.c.0.s8 %v6086
        %v6088 = vlaneseq
        %v6089 = vshrl.u32 %v6088, 7
        %v6090 = vsub.s32 %v6087, %v6089
        %v6091 = vrot.slane %v6063, %v6090
        %v6092 = vcombine.high %v6070, %v6070
        %v6093 = vcombine.high %v6077, %v6077
        %v6094 = vcombine.high %v6084, %v6084
        %v6095 = vcombine.high %v6091, %v6091
        %6160 = vst.msk [vmem:[%s577 + $0x3] sm:$0x1] %vm4185, %v5727
        %6161 = vst.msk [vmem:[%s577 + $0xb] sm:$0x1] %vm4185, %v5741
        %6162 = vst.msk [vmem:[%s577 + $0x13] sm:$0x1] %vm4185, %v5749
        %6163 = vst.msk [vmem:[%s577 + $0x1b] sm:$0x1] %vm4185, %v5751
        %6164 = vst.msk [vmem:[%s577 + $0x23] sm:$0x1] %vm4185, %v5734
        %6165 = vst.msk [vmem:[%s577 + $0x2b] sm:$0x1] %vm4185, %v5748
        %6166 = vst.msk [vmem:[%s577 + $0x33] sm:$0x1] %vm4185, %v5750
        %6167 = vst.msk [vmem:[%s577 + $0x3b] sm:$0x1] %vm4185, %v5752
        %6168 = vst.msk [vmem:[%s577 + $0x43] sm:$0x1] %vm4185, %v5776
        %6169 = vst.msk [vmem:[%s577 + $0x4b] sm:$0x1] %vm4185, %v5790
        %6170 = vst.msk [vmem:[%s577 + $0x53] sm:$0x1] %vm4185, %v5798
        %6171 = vst.msk [vmem:[%s577 + $0x5b] sm:$0x1] %vm4185, %v5800
        %6172 = vst.msk [vmem:[%s577 + $0x63] sm:$0x1] %vm4185, %v5783
        %6173 = vst.msk [vmem:[%s577 + $0x6b] sm:$0x1] %vm4185, %v5797
        %6174 = vst.msk [vmem:[%s577 + $0x73] sm:$0x1] %vm4185, %v5799
        %6175 = vst.msk [vmem:[%s577 + $0x7b] sm:$0x1] %vm4185, %v5801
        %6176 = vst.msk [vmem:[%s577 + $0x83] sm:$0x1] %vm4185, %v5825
        %6177 = vst.msk [vmem:[%s577 + $0x8b] sm:$0x1] %vm4185, %v5839
        %6178 = vst.msk [vmem:[%s577 + $0x93] sm:$0x1] %vm4185, %v5847
        %6179 = vst.msk [vmem:[%s577 + $0x9b] sm:$0x1] %vm4185, %v5849
        %6180 = vst.msk [vmem:[%s577 + $0xa3] sm:$0x1] %vm4185, %v5832
        %6181 = vst.msk [vmem:[%s577 + $0xab] sm:$0x1] %vm4185, %v5846
        %6182 = vst.msk [vmem:[%s577 + $0xb3] sm:$0x1] %vm4185, %v5848
        %6183 = vst.msk [vmem:[%s577 + $0xbb] sm:$0x1] %vm4185, %v5850
        %6184 = vst.msk [vmem:[%s577 + $0xc3] sm:$0x1] %vm4185, %v5874
        %6185 = vst.msk [vmem:[%s577 + $0xcb] sm:$0x1] %vm4185, %v5888
        %6186 = vst.msk [vmem:[%s577 + $0xd3] sm:$0x1] %vm4185, %v5896
        %6187 = vst.msk [vmem:[%s577 + $0xdb] sm:$0x1] %vm4185, %v5898
        %6188 = vst.msk [vmem:[%s577 + $0xe3] sm:$0x1] %vm4185, %v5881
        %6189 = vst.msk [vmem:[%s577 + $0xeb] sm:$0x1] %vm4185, %v5895
        %6190 = vst.msk [vmem:[%s577 + $0xf3] sm:$0x1] %vm4185, %v5897
        %6191 = vst.msk [vmem:[%s577 + $0xfb] sm:$0x1] %vm4185, %v5899
        %6192 = vst.msk [vmem:[%s577 + $0x103] sm:$0x1] %vm4185, %v5923
        %6193 = vst.msk [vmem:[%s577 + $0x10b] sm:$0x1] %vm4185, %v5937
        %6194 = vst.msk [vmem:[%s577 + $0x113] sm:$0x1] %vm4185, %v5945
        %6195 = vst.msk [vmem:[%s577 + $0x11b] sm:$0x1] %vm4185, %v5947
        %6196 = vst.msk [vmem:[%s577 + $0x123] sm:$0x1] %vm4185, %v5930
        %6197 = vst.msk [vmem:[%s577 + $0x12b] sm:$0x1] %vm4185, %v5944
        %6198 = vst.msk [vmem:[%s577 + $0x133] sm:$0x1] %vm4185, %v5946
        %6199 = vst.msk [vmem:[%s577 + $0x13b] sm:$0x1] %vm4185, %v5948
        %6200 = vst.msk [vmem:[%s577 + $0x143] sm:$0x1] %vm4185, %v5972
        %6201 = vst.msk [vmem:[%s577 + $0x14b] sm:$0x1] %vm4185, %v5986
        %6202 = vst.msk [vmem:[%s577 + $0x153] sm:$0x1] %vm4185, %v5994
        %6203 = vst.msk [vmem:[%s577 + $0x15b] sm:$0x1] %vm4185, %v5996
        %6204 = vst.msk [vmem:[%s577 + $0x163] sm:$0x1] %vm4185, %v5979
        %6205 = vst.msk [vmem:[%s577 + $0x16b] sm:$0x1] %vm4185, %v5993
        %6206 = vst.msk [vmem:[%s577 + $0x173] sm:$0x1] %vm4185, %v5995
        %6207 = vst.msk [vmem:[%s577 + $0x17b] sm:$0x1] %vm4185, %v5997
        %6208 = vst.msk [vmem:[%s577 + $0x183] sm:$0x1] %vm4185, %v6021
        %6209 = vst.msk [vmem:[%s577 + $0x18b] sm:$0x1] %vm4185, %v6035
        %6210 = vst.msk [vmem:[%s577 + $0x193] sm:$0x1] %vm4185, %v6043
        %6211 = vst.msk [vmem:[%s577 + $0x19b] sm:$0x1] %vm4185, %v6045
        %6212 = vst.msk [vmem:[%s577 + $0x1a3] sm:$0x1] %vm4185, %v6028
        %6213 = vst.msk [vmem:[%s577 + $0x1ab] sm:$0x1] %vm4185, %v6042
        %6214 = vst.msk [vmem:[%s577 + $0x1b3] sm:$0x1] %vm4185, %v6044
        %6215 = vst.msk [vmem:[%s577 + $0x1bb] sm:$0x1] %vm4185, %v6046
        %6216 = vst.msk [vmem:[%s577 + $0x1c3] sm:$0x1] %vm4185, %v6070
        %6217 = vst.msk [vmem:[%s577 + $0x1cb] sm:$0x1] %vm4185, %v6084
        %6218 = vst.msk [vmem:[%s577 + $0x1d3] sm:$0x1] %vm4185, %v6092
        %6219 = vst.msk [vmem:[%s577 + $0x1db] sm:$0x1] %vm4185, %v6094
        %6220 = vst.msk [vmem:[%s577 + $0x1e3] sm:$0x1] %vm4185, %v6077
        %6221 = vst.msk [vmem:[%s577 + $0x1eb] sm:$0x1] %vm4185, %v6091
        %6222 = vst.msk [vmem:[%s577 + $0x1f3] sm:$0x1] %vm4185, %v6093
        %6223 = vst.msk [vmem:[%s577 + $0x1fb] sm:$0x1] %vm4185, %v6095
        %6224 = vmatprep.subr.bf16.mxu0 0
        %6225 = vmatpush1.bf16.msra.mxu0 %v3494
        %6226 = vmatprep.subr.bf16.mxu0 0
        %6227 = vmatpush1.bf16.msra.mxu0 %v3495
        %6228 = vmatprep.subr.bf16.mxu0 0
        %6229 = vmatpush1.bf16.msra.mxu0 %v3496
        %6230 = vmatprep.subr.bf16.mxu0 0
        %6231 = vmatpush1.bf16.msra.mxu0 %v3497
        %6232 = vmatprep.subr.bf16.mxu0 0
        %6233 = vmatpush1.bf16.msra.mxu0 0
        %6234 = vmatprep.subr.bf16.mxu0 0
        %6235 = vmatpush1.bf16.msra.mxu0 0
        %6236 = vmatprep.subr.bf16.mxu0 0
        %6237 = vmatpush1.bf16.msra.mxu0 0
        %6238 = vmatprep.subr.bf16.mxu0 0
        %6239 = vmatpush1.bf16.msra.mxu0 0
        %6240 = vmatprep.subr.bf16.mxu0 0
        %6241 = vmatpush1.bf16.msra.mxu0 0
        %6242 = vmatprep.subr.bf16.mxu0 0
        %6243 = vmatpush1.bf16.msra.mxu0 0
        %6244 = vmatprep.subr.bf16.mxu0 0
        %6245 = vmatpush1.bf16.msra.mxu0 0
        %6246 = vmatprep.subr.bf16.mxu0 0
        %6247 = vmatpush1.bf16.msra.mxu0 0
        %6248 = vmatprep.subr.bf16.mxu0 0
        %6249 = vmatpush1.bf16.msra.mxu0 0
        %6250 = vmatprep.subr.bf16.mxu0 0
        %6251 = vmatpush1.bf16.msra.mxu0 0
        %6252 = vmatprep.subr.bf16.mxu0 0
        %6253 = vmatpush1.bf16.msra.mxu0 0
        %6254 = vmatprep.subr.bf16.mxu0 0
        %6255 = vmatpush1.bf16.msra.mxu0 0
        %6256 = vmatprep.mubr.bf16.mxu0 0
        %6257 = vmatmul.mubr.bf16.gmra.mrb[0].mxu0 %v3548
        %v6258 = vpop.f32.mrb[0].mxu0
        %v6259 = vadd.f32 0.0, %v6258
        %v6260 = vpop.f32.mrb[0].mxu0
        %v6261 = vpop.f32.mrb[0].mxu0
        %v6262 = vadd.f32 0.0, %v6261
        %v6263 = vpop.f32.mrb[0].mxu0
        %6264 = vmatprep.mubr.bf16.mxu0 0
        %6265 = vmatmul.mubr.bf16.gmra.mrb[0].mxu0 %v3551
        %v6266 = vpop.f32.mrb[0].mxu0
        %v6267 = vadd.f32 0.0, %v6266
        %v6268 = vpop.f32.mrb[0].mxu0
        %v6269 = vpop.f32.mrb[0].mxu0
        %v6270 = vadd.f32 0.0, %v6269
        %v6271 = vpop.f32.mrb[0].mxu0
        %6272 = vmatprep.mubr.bf16.mxu0 0
        %6273 = vmatmul.mubr.bf16.gmra.mrb[0].mxu0 %v3554
        %v6274 = vpop.f32.mrb[0].mxu0
        %v6275 = vadd.f32 0.0, %v6274
        %v6276 = vpop.f32.mrb[0].mxu0
        %v6277 = vpop.f32.mrb[0].mxu0
        %v6278 = vadd.f32 0.0, %v6277
        %v6279 = vpop.f32.mrb[0].mxu0
        %6280 = vmatprep.mubr.bf16.mxu0 0
        %6281 = vmatmul.mubr.bf16.gmra.mrb[0].mxu0 %v3557
        %v6282 = vpop.f32.mrb[0].mxu0
        %v6283 = vadd.f32 0.0, %v6282
        %v6284 = vpop.f32.mrb[0].mxu0
        %v6285 = vpop.f32.mrb[0].mxu0
        %v6286 = vadd.f32 0.0, %v6285
        %v6287 = vpop.f32.mrb[0].mxu0
        %6288 = vdwg.mxu0
        %6289 = vmatprep.subr.bf16.mxu0 0
        %6290 = vmatpush1.bf16.msra.mxu0 %v3462
        %6291 = vmatprep.subr.bf16.mxu0 0
        %6292 = vmatpush1.bf16.msra.mxu0 %v3463
        %6293 = vmatprep.subr.bf16.mxu0 0
        %6294 = vmatpush1.bf16.msra.mxu0 %v3464
        %6295 = vmatprep.subr.bf16.mxu0 0
        %6296 = vmatpush1.bf16.msra.mxu0 %v3465
        %6297 = vmatprep.subr.bf16.mxu0 0
        %6298 = vmatpush1.bf16.msra.mxu0 0
        %6299 = vmatprep.subr.bf16.mxu0 0
        %6300 = vmatpush1.bf16.msra.mxu0 0
        %6301 = vmatprep.subr.bf16.mxu0 0
        %6302 = vmatpush1.bf16.msra.mxu0 0
        %6303 = vmatprep.subr.bf16.mxu0 0
        %6304 = vmatpush1.bf16.msra.mxu0 0
        %6305 = vmatprep.subr.bf16.mxu0 0
        %6306 = vmatpush1.bf16.msra.mxu0 0
        %6307 = vmatprep.subr.bf16.mxu0 0
        %6308 = vmatpush1.bf16.msra.mxu0 0
        %6309 = vmatprep.subr.bf16.mxu0 0
        %6310 = vmatpush1.bf16.msra.mxu0 0
        %6311 = vmatprep.subr.bf16.mxu0 0
        %6312 = vmatpush1.bf16.msra.mxu0 0
        %6313 = vmatprep.subr.bf16.mxu0 0
        %6314 = vmatpush1.bf16.msra.mxu0 0
        %6315 = vmatprep.subr.bf16.mxu0 0
        %6316 = vmatpush1.bf16.msra.mxu0 0
        %6317 = vmatprep.subr.bf16.mxu0 0
        %6318 = vmatpush1.bf16.msra.mxu0 0
        %6319 = vmatprep.subr.bf16.mxu0 0
        %6320 = vmatpush1.bf16.msra.mxu0 0
        %6321 = vmatprep.mubr.bf16.mxu0 0
        %6322 = vmatmul.mubr.bf16.gmra.mrb[0].mxu0 %v3645
        %v6323 = vpop.f32.mrb[0].mxu0
        %v6324 = vadd.f32 %v6259, %v6323
        %v6325 = vpop.f32.mrb[0].mxu0
        %v6326 = vpop.f32.mrb[0].mxu0
        %v6327 = vadd.f32 %v6262, %v6326
        %v6328 = vpop.f32.mrb[0].mxu0
        %6329 = vmatprep.mubr.bf16.mxu0 0
        %6330 = vmatmul.mubr.bf16.gmra.mrb[0].mxu0 %v3648
        %v6331 = vpop.f32.mrb[0].mxu0
        %v6332 = vadd.f32 %v6267, %v6331
        %v6333 = vpop.f32.mrb[0].mxu0
        %v6334 = vpop.f32.mrb[0].mxu0
        %v6335 = vadd.f32 %v6270, %v6334
        %v6336 = vpop.f32.mrb[0].mxu0
        %6337 = vmatprep.mubr.bf16.mxu0 0
        %6338 = vmatmul.mubr.bf16.gmra.mrb[0].mxu0 %v3651
        %v6339 = vpop.f32.mrb[0].mxu0
        %v6340 = vadd.f32 %v6275, %v6339
        %v6341 = vpop.f32.mrb[0].mxu0
        %v6342 = vpop.f32.mrb[0].mxu0
        %v6343 = vadd.f32 %v6278, %v6342
        %v6344 = vpop.f32.mrb[0].mxu0
        %6345 = vmatprep.mubr.bf16.mxu0 0
        %6346 = vmatmul.mubr.bf16.gmra.mrb[0].mxu0 %v3654
        %v6347 = vpop.f32.mrb[0].mxu0
        %v6348 = vadd.f32 %v6283, %v6347
        %v6349 = vpop.f32.mrb[0].mxu0
        %v6350 = vpop.f32.mrb[0].mxu0
        %v6351 = vadd.f32 %v6286, %v6350
        %v6352 = vpop.f32.mrb[0].mxu0
        %6353 = vdwg.mxu0
        %v6362 = vcombine.high %v6324, %v6324
        %v6364 = vunpack.c.l.s4 1966171168
        %v6365 = vunpack.c.0.s8 %v6364
        %v6366 = vlaneseq
        %v6367 = vshrl.u32 %v6366, 7
        %v6368 = vsub.s32 %v6365, %v6367
        %v6369 = vrot.slane %v6324, %v6368
        %v6371 = vunpack.c.l.s4 1966171168
        %v6372 = vunpack.c.0.s8 %v6371
        %v6373 = vlaneseq
        %v6374 = vshrl.u32 %v6373, 7
        %v6375 = vsub.s32 %v6372, %v6374
        %v6376 = vrot.slane %v6362, %v6375
        %v6377 = vcombine.high %v6369, %v6369
        %v6378 = vcombine.high %v6376, %v6376
        %v6380 = vunpack.c.l.s4 1966171168
        %v6381 = vunpack.c.0.s8 %v6380
        %v6382 = vlaneseq
        %v6383 = vshrl.u32 %v6382, 7
        %v6384 = vsub.s32 %v6381, %v6383
        %v6385 = vrot.slane %v6369, %v6384
        %v6387 = vunpack.c.l.s4 1966171168
        %v6388 = vunpack.c.0.s8 %v6387
        %v6389 = vlaneseq
        %v6390 = vshrl.u32 %v6389, 7
        %v6391 = vsub.s32 %v6388, %v6390
        %v6392 = vrot.slane %v6376, %v6391
        %v6394 = vunpack.c.l.s4 1966171168
        %v6395 = vunpack.c.0.s8 %v6394
        %v6396 = vlaneseq
        %v6397 = vshrl.u32 %v6396, 7
        %v6398 = vsub.s32 %v6395, %v6397
        %v6399 = vrot.slane %v6377, %v6398
        %v6401 = vunpack.c.l.s4 1966171168
        %v6402 = vunpack.c.0.s8 %v6401
        %v6403 = vlaneseq
        %v6404 = vshrl.u32 %v6403, 7
        %v6405 = vsub.s32 %v6402, %v6404
        %v6406 = vrot.slane %v6378, %v6405
        %v6407 = vcombine.high %v6385, %v6385
        %v6408 = vcombine.high %v6392, %v6392
        %v6409 = vcombine.high %v6399, %v6399
        %v6410 = vcombine.high %v6406, %v6406
        %v6411 = vcombine.high %v6327, %v6327
        %v6413 = vunpack.c.l.s4 1966171168
        %v6414 = vunpack.c.0.s8 %v6413
        %v6415 = vlaneseq
        %v6416 = vshrl.u32 %v6415, 7
        %v6417 = vsub.s32 %v6414, %v6416
        %v6418 = vrot.slane %v6327, %v6417
        %v6420 = vunpack.c.l.s4 1966171168
        %v6421 = vunpack.c.0.s8 %v6420
        %v6422 = vlaneseq
        %v6423 = vshrl.u32 %v6422, 7
        %v6424 = vsub.s32 %v6421, %v6423
        %v6425 = vrot.slane %v6411, %v6424
        %v6426 = vcombine.high %v6418, %v6418
        %v6427 = vcombine.high %v6425, %v6425
        %v6429 = vunpack.c.l.s4 1966171168
        %v6430 = vunpack.c.0.s8 %v6429
        %v6431 = vlaneseq
        %v6432 = vshrl.u32 %v6431, 7
        %v6433 = vsub.s32 %v6430, %v6432
        %v6434 = vrot.slane %v6418, %v6433
        %v6436 = vunpack.c.l.s4 1966171168
        %v6437 = vunpack.c.0.s8 %v6436
        %v6438 = vlaneseq
        %v6439 = vshrl.u32 %v6438, 7
        %v6440 = vsub.s32 %v6437, %v6439
        %v6441 = vrot.slane %v6425, %v6440
        %v6443 = vunpack.c.l.s4 1966171168
        %v6444 = vunpack.c.0.s8 %v6443
        %v6445 = vlaneseq
        %v6446 = vshrl.u32 %v6445, 7
        %v6447 = vsub.s32 %v6444, %v6446
        %v6448 = vrot.slane %v6426, %v6447
        %v6450 = vunpack.c.l.s4 1966171168
        %v6451 = vunpack.c.0.s8 %v6450
        %v6452 = vlaneseq
        %v6453 = vshrl.u32 %v6452, 7
        %v6454 = vsub.s32 %v6451, %v6453
        %v6455 = vrot.slane %v6427, %v6454
        %v6456 = vcombine.high %v6434, %v6434
        %v6457 = vcombine.high %v6441, %v6441
        %v6458 = vcombine.high %v6448, %v6448
        %v6459 = vcombine.high %v6455, %v6455
        %v6460 = vcombine.high %v6332, %v6332
        %v6462 = vunpack.c.l.s4 1966171168
        %v6463 = vunpack.c.0.s8 %v6462
        %v6464 = vlaneseq
        %v6465 = vshrl.u32 %v6464, 7
        %v6466 = vsub.s32 %v6463, %v6465
        %v6467 = vrot.slane %v6332, %v6466
        %v6469 = vunpack.c.l.s4 1966171168
        %v6470 = vunpack.c.0.s8 %v6469
        %v6471 = vlaneseq
        %v6472 = vshrl.u32 %v6471, 7
        %v6473 = vsub.s32 %v6470, %v6472
        %v6474 = vrot.slane %v6460, %v6473
        %v6475 = vcombine.high %v6467, %v6467
        %v6476 = vcombine.high %v6474, %v6474
        %v6478 = vunpack.c.l.s4 1966171168
        %v6479 = vunpack.c.0.s8 %v6478
        %v6480 = vlaneseq
        %v6481 = vshrl.u32 %v6480, 7
        %v6482 = vsub.s32 %v6479, %v6481
        %v6483 = vrot.slane %v6467, %v6482
        %v6485 = vunpack.c.l.s4 1966171168
        %v6486 = vunpack.c.0.s8 %v6485
        %v6487 = vlaneseq
        %v6488 = vshrl.u32 %v6487, 7
        %v6489 = vsub.s32 %v6486, %v6488
        %v6490 = vrot.slane %v6474, %v6489
        %v6492 = vunpack.c.l.s4 1966171168
        %v6493 = vunpack.c.0.s8 %v6492
        %v6494 = vlaneseq
        %v6495 = vshrl.u32 %v6494, 7
        %v6496 = vsub.s32 %v6493, %v6495
        %v6497 = vrot.slane %v6475, %v6496
        %v6499 = vunpack.c.l.s4 1966171168
        %v6500 = vunpack.c.0.s8 %v6499
        %v6501 = vlaneseq
        %v6502 = vshrl.u32 %v6501, 7
        %v6503 = vsub.s32 %v6500, %v6502
        %v6504 = vrot.slane %v6476, %v6503
        %v6505 = vcombine.high %v6483, %v6483
        %v6506 = vcombine.high %v6490, %v6490
        %v6507 = vcombine.high %v6497, %v6497
        %v6508 = vcombine.high %v6504, %v6504
        %v6509 = vcombine.high %v6335, %v6335
        %v6511 = vunpack.c.l.s4 1966171168
        %v6512 = vunpack.c.0.s8 %v6511
        %v6513 = vlaneseq
        %v6514 = vshrl.u32 %v6513, 7
        %v6515 = vsub.s32 %v6512, %v6514
        %v6516 = vrot.slane %v6335, %v6515
        %v6518 = vunpack.c.l.s4 1966171168
        %v6519 = vunpack.c.0.s8 %v6518
        %v6520 = vlaneseq
        %v6521 = vshrl.u32 %v6520, 7
        %v6522 = vsub.s32 %v6519, %v6521
        %v6523 = vrot.slane %v6509, %v6522
        %v6524 = vcombine.high %v6516, %v6516
        %v6525 = vcombine.high %v6523, %v6523
        %v6527 = vunpack.c.l.s4 1966171168
        %v6528 = vunpack.c.0.s8 %v6527
        %v6529 = vlaneseq
        %v6530 = vshrl.u32 %v6529, 7
        %v6531 = vsub.s32 %v6528, %v6530
        %v6532 = vrot.slane %v6516, %v6531
        %v6534 = vunpack.c.l.s4 1966171168
        %v6535 = vunpack.c.0.s8 %v6534
        %v6536 = vlaneseq
        %v6537 = vshrl.u32 %v6536, 7
        %v6538 = vsub.s32 %v6535, %v6537
        %v6539 = vrot.slane %v6523, %v6538
        %v6541 = vunpack.c.l.s4 1966171168
        %v6542 = vunpack.c.0.s8 %v6541
        %v6543 = vlaneseq
        %v6544 = vshrl.u32 %v6543, 7
        %v6545 = vsub.s32 %v6542, %v6544
        %v6546 = vrot.slane %v6524, %v6545
        %v6548 = vunpack.c.l.s4 1966171168
        %v6549 = vunpack.c.0.s8 %v6548
        %v6550 = vlaneseq
        %v6551 = vshrl.u32 %v6550, 7
        %v6552 = vsub.s32 %v6549, %v6551
        %v6553 = vrot.slane %v6525, %v6552
        %v6554 = vcombine.high %v6532, %v6532
        %v6555 = vcombine.high %v6539, %v6539
        %v6556 = vcombine.high %v6546, %v6546
        %v6557 = vcombine.high %v6553, %v6553
        %v6558 = vcombine.high %v6340, %v6340
        %v6560 = vunpack.c.l.s4 1966171168
        %v6561 = vunpack.c.0.s8 %v6560
        %v6562 = vlaneseq
        %v6563 = vshrl.u32 %v6562, 7
        %v6564 = vsub.s32 %v6561, %v6563
        %v6565 = vrot.slane %v6340, %v6564
        %v6567 = vunpack.c.l.s4 1966171168
        %v6568 = vunpack.c.0.s8 %v6567
        %v6569 = vlaneseq
        %v6570 = vshrl.u32 %v6569, 7
        %v6571 = vsub.s32 %v6568, %v6570
        %v6572 = vrot.slane %v6558, %v6571
        %v6573 = vcombine.high %v6565, %v6565
        %v6574 = vcombine.high %v6572, %v6572
        %v6576 = vunpack.c.l.s4 1966171168
        %v6577 = vunpack.c.0.s8 %v6576
        %v6578 = vlaneseq
        %v6579 = vshrl.u32 %v6578, 7
        %v6580 = vsub.s32 %v6577, %v6579
        %v6581 = vrot.slane %v6565, %v6580
        %v6583 = vunpack.c.l.s4 1966171168
        %v6584 = vunpack.c.0.s8 %v6583
        %v6585 = vlaneseq
        %v6586 = vshrl.u32 %v6585, 7
        %v6587 = vsub.s32 %v6584, %v6586
        %v6588 = vrot.slane %v6572, %v6587
        %v6590 = vunpack.c.l.s4 1966171168
        %v6591 = vunpack.c.0.s8 %v6590
        %v6592 = vlaneseq
        %v6593 = vshrl.u32 %v6592, 7
        %v6594 = vsub.s32 %v6591, %v6593
        %v6595 = vrot.slane %v6573, %v6594
        %v6597 = vunpack.c.l.s4 1966171168
        %v6598 = vunpack.c.0.s8 %v6597
        %v6599 = vlaneseq
        %v6600 = vshrl.u32 %v6599, 7
        %v6601 = vsub.s32 %v6598, %v6600
        %v6602 = vrot.slane %v6574, %v6601
        %v6603 = vcombine.high %v6581, %v6581
        %v6604 = vcombine.high %v6588, %v6588
        %v6605 = vcombine.high %v6595, %v6595
        %v6606 = vcombine.high %v6602, %v6602
        %v6607 = vcombine.high %v6343, %v6343
        %v6609 = vunpack.c.l.s4 1966171168
        %v6610 = vunpack.c.0.s8 %v6609
        %v6611 = vlaneseq
        %v6612 = vshrl.u32 %v6611, 7
        %v6613 = vsub.s32 %v6610, %v6612
        %v6614 = vrot.slane %v6343, %v6613
        %v6616 = vunpack.c.l.s4 1966171168
        %v6617 = vunpack.c.0.s8 %v6616
        %v6618 = vlaneseq
        %v6619 = vshrl.u32 %v6618, 7
        %v6620 = vsub.s32 %v6617, %v6619
        %v6621 = vrot.slane %v6607, %v6620
        %v6622 = vcombine.high %v6614, %v6614
        %v6623 = vcombine.high %v6621, %v6621
        %v6625 = vunpack.c.l.s4 1966171168
        %v6626 = vunpack.c.0.s8 %v6625
        %v6627 = vlaneseq
        %v6628 = vshrl.u32 %v6627, 7
        %v6629 = vsub.s32 %v6626, %v6628
        %v6630 = vrot.slane %v6614, %v6629
        %v6632 = vunpack.c.l.s4 1966171168
        %v6633 = vunpack.c.0.s8 %v6632
        %v6634 = vlaneseq
        %v6635 = vshrl.u32 %v6634, 7
        %v6636 = vsub.s32 %v6633, %v6635
        %v6637 = vrot.slane %v6621, %v6636
        %v6639 = vunpack.c.l.s4 1966171168
        %v6640 = vunpack.c.0.s8 %v6639
        %v6641 = vlaneseq
        %v6642 = vshrl.u32 %v6641, 7
        %v6643 = vsub.s32 %v6640, %v6642
        %v6644 = vrot.slane %v6622, %v6643
        %v6646 = vunpack.c.l.s4 1966171168
        %v6647 = vunpack.c.0.s8 %v6646
        %v6648 = vlaneseq
        %v6649 = vshrl.u32 %v6648, 7
        %v6650 = vsub.s32 %v6647, %v6649
        %v6651 = vrot.slane %v6623, %v6650
        %v6652 = vcombine.high %v6630, %v6630
        %v6653 = vcombine.high %v6637, %v6637
        %v6654 = vcombine.high %v6644, %v6644
        %v6655 = vcombine.high %v6651, %v6651
        %v6656 = vcombine.high %v6348, %v6348
        %v6658 = vunpack.c.l.s4 1966171168
        %v6659 = vunpack.c.0.s8 %v6658
        %v6660 = vlaneseq
        %v6661 = vshrl.u32 %v6660, 7
        %v6662 = vsub.s32 %v6659, %v6661
        %v6663 = vrot.slane %v6348, %v6662
        %v6665 = vunpack.c.l.s4 1966171168
        %v6666 = vunpack.c.0.s8 %v6665
        %v6667 = vlaneseq
        %v6668 = vshrl.u32 %v6667, 7
        %v6669 = vsub.s32 %v6666, %v6668
        %v6670 = vrot.slane %v6656, %v6669
        %v6671 = vcombine.high %v6663, %v6663
        %v6672 = vcombine.high %v6670, %v6670
        %v6674 = vunpack.c.l.s4 1966171168
        %v6675 = vunpack.c.0.s8 %v6674
        %v6676 = vlaneseq
        %v6677 = vshrl.u32 %v6676, 7
        %v6678 = vsub.s32 %v6675, %v6677
        %v6679 = vrot.slane %v6663, %v6678
        %v6681 = vunpack.c.l.s4 1966171168
        %v6682 = vunpack.c.0.s8 %v6681
        %v6683 = vlaneseq
        %v6684 = vshrl.u32 %v6683, 7
        %v6685 = vsub.s32 %v6682, %v6684
        %v6686 = vrot.slane %v6670, %v6685
        %v6688 = vunpack.c.l.s4 1966171168
        %v6689 = vunpack.c.0.s8 %v6688
        %v6690 = vlaneseq
        %v6691 = vshrl.u32 %v6690, 7
        %v6692 = vsub.s32 %v6689, %v6691
        %v6693 = vrot.slane %v6671, %v6692
        %v6695 = vunpack.c.l.s4 1966171168
        %v6696 = vunpack.c.0.s8 %v6695
        %v6697 = vlaneseq
        %v6698 = vshrl.u32 %v6697, 7
        %v6699 = vsub.s32 %v6696, %v6698
        %v6700 = vrot.slane %v6672, %v6699
        %v6701 = vcombine.high %v6679, %v6679
        %v6702 = vcombine.high %v6686, %v6686
        %v6703 = vcombine.high %v6693, %v6693
        %v6704 = vcombine.high %v6700, %v6700
        %v6705 = vcombine.high %v6351, %v6351
        %v6707 = vunpack.c.l.s4 1966171168
        %v6708 = vunpack.c.0.s8 %v6707
        %v6709 = vlaneseq
        %v6710 = vshrl.u32 %v6709, 7
        %v6711 = vsub.s32 %v6708, %v6710
        %v6712 = vrot.slane %v6351, %v6711
        %v6714 = vunpack.c.l.s4 1966171168
        %v6715 = vunpack.c.0.s8 %v6714
        %v6716 = vlaneseq
        %v6717 = vshrl.u32 %v6716, 7
        %v6718 = vsub.s32 %v6715, %v6717
        %v6719 = vrot.slane %v6705, %v6718
        %v6720 = vcombine.high %v6712, %v6712
        %v6721 = vcombine.high %v6719, %v6719
        %v6723 = vunpack.c.l.s4 1966171168
        %v6724 = vunpack.c.0.s8 %v6723
        %v6725 = vlaneseq
        %v6726 = vshrl.u32 %v6725, 7
        %v6727 = vsub.s32 %v6724, %v6726
        %v6728 = vrot.slane %v6712, %v6727
        %v6730 = vunpack.c.l.s4 1966171168
        %v6731 = vunpack.c.0.s8 %v6730
        %v6732 = vlaneseq
        %v6733 = vshrl.u32 %v6732, 7
        %v6734 = vsub.s32 %v6731, %v6733
        %v6735 = vrot.slane %v6719, %v6734
        %v6737 = vunpack.c.l.s4 1966171168
        %v6738 = vunpack.c.0.s8 %v6737
        %v6739 = vlaneseq
        %v6740 = vshrl.u32 %v6739, 7
        %v6741 = vsub.s32 %v6738, %v6740
        %v6742 = vrot.slane %v6720, %v6741
        %v6744 = vunpack.c.l.s4 1966171168
        %v6745 = vunpack.c.0.s8 %v6744
        %v6746 = vlaneseq
        %v6747 = vshrl.u32 %v6746, 7
        %v6748 = vsub.s32 %v6745, %v6747
        %v6749 = vrot.slane %v6721, %v6748
        %v6750 = vcombine.high %v6728, %v6728
        %v6751 = vcombine.high %v6735, %v6735
        %v6752 = vcombine.high %v6742, %v6742
        %v6753 = vcombine.high %v6749, %v6749
        %6818 = vst.msk [vmem:[%s577 + $0x4] sm:$0x1] %vm4185, %v6385
        %6819 = vst.msk [vmem:[%s577 + $0xc] sm:$0x1] %vm4185, %v6399
        %6820 = vst.msk [vmem:[%s577 + $0x14] sm:$0x1] %vm4185, %v6407
        %6821 = vst.msk [vmem:[%s577 + $0x1c] sm:$0x1] %vm4185, %v6409
        %6822 = vst.msk [vmem:[%s577 + $0x24] sm:$0x1] %vm4185, %v6392
        %6823 = vst.msk [vmem:[%s577 + $0x2c] sm:$0x1] %vm4185, %v6406
        %6824 = vst.msk [vmem:[%s577 + $0x34] sm:$0x1] %vm4185, %v6408
        %6825 = vst.msk [vmem:[%s577 + $0x3c] sm:$0x1] %vm4185, %v6410
        %6826 = vst.msk [vmem:[%s577 + $0x44] sm:$0x1] %vm4185, %v6434
        %6827 = vst.msk [vmem:[%s577 + $0x4c] sm:$0x1] %vm4185, %v6448
        %6828 = vst.msk [vmem:[%s577 + $0x54] sm:$0x1] %vm4185, %v6456
        %6829 = vst.msk [vmem:[%s577 + $0x5c] sm:$0x1] %vm4185, %v6458
        %6830 = vst.msk [vmem:[%s577 + $0x64] sm:$0x1] %vm4185, %v6441
        %6831 = vst.msk [vmem:[%s577 + $0x6c] sm:$0x1] %vm4185, %v6455
        %6832 = vst.msk [vmem:[%s577 + $0x74] sm:$0x1] %vm4185, %v6457
        %6833 = vst.msk [vmem:[%s577 + $0x7c] sm:$0x1] %vm4185, %v6459
        %6834 = vst.msk [vmem:[%s577 + $0x84] sm:$0x1] %vm4185, %v6483
        %6835 = vst.msk [vmem:[%s577 + $0x8c] sm:$0x1] %vm4185, %v6497
        %6836 = vst.msk [vmem:[%s577 + $0x94] sm:$0x1] %vm4185, %v6505
        %6837 = vst.msk [vmem:[%s577 + $0x9c] sm:$0x1] %vm4185, %v6507
        %6838 = vst.msk [vmem:[%s577 + $0xa4] sm:$0x1] %vm4185, %v6490
        %6839 = vst.msk [vmem:[%s577 + $0xac] sm:$0x1] %vm4185, %v6504
        %6840 = vst.msk [vmem:[%s577 + $0xb4] sm:$0x1] %vm4185, %v6506
        %6841 = vst.msk [vmem:[%s577 + $0xbc] sm:$0x1] %vm4185, %v6508
        %6842 = vst.msk [vmem:[%s577 + $0xc4] sm:$0x1] %vm4185, %v6532
        %6843 = vst.msk [vmem:[%s577 + $0xcc] sm:$0x1] %vm4185, %v6546
        %6844 = vst.msk [vmem:[%s577 + $0xd4] sm:$0x1] %vm4185, %v6554
        %6845 = vst.msk [vmem:[%s577 + $0xdc] sm:$0x1] %vm4185, %v6556
        %6846 = vst.msk [vmem:[%s577 + $0xe4] sm:$0x1] %vm4185, %v6539
        %6847 = vst.msk [vmem:[%s577 + $0xec] sm:$0x1] %vm4185, %v6553
        %6848 = vst.msk [vmem:[%s577 + $0xf4] sm:$0x1] %vm4185, %v6555
        %6849 = vst.msk [vmem:[%s577 + $0xfc] sm:$0x1] %vm4185, %v6557
        %6850 = vst.msk [vmem:[%s577 + $0x104] sm:$0x1] %vm4185, %v6581
        %6851 = vst.msk [vmem:[%s577 + $0x10c] sm:$0x1] %vm4185, %v6595
        %6852 = vst.msk [vmem:[%s577 + $0x114] sm:$0x1] %vm4185, %v6603
        %6853 = vst.msk [vmem:[%s577 + $0x11c] sm:$0x1] %vm4185, %v6605
        %6854 = vst.msk [vmem:[%s577 + $0x124] sm:$0x1] %vm4185, %v6588
        %6855 = vst.msk [vmem:[%s577 + $0x12c] sm:$0x1] %vm4185, %v6602
        %6856 = vst.msk [vmem:[%s577 + $0x134] sm:$0x1] %vm4185, %v6604
        %6857 = vst.msk [vmem:[%s577 + $0x13c] sm:$0x1] %vm4185, %v6606
        %6858 = vst.msk [vmem:[%s577 + $0x144] sm:$0x1] %vm4185, %v6630
        %6859 = vst.msk [vmem:[%s577 + $0x14c] sm:$0x1] %vm4185, %v6644
        %6860 = vst.msk [vmem:[%s577 + $0x154] sm:$0x1] %vm4185, %v6652
        %6861 = vst.msk [vmem:[%s577 + $0x15c] sm:$0x1] %vm4185, %v6654
        %6862 = vst.msk [vmem:[%s577 + $0x164] sm:$0x1] %vm4185, %v6637
        %6863 = vst.msk [vmem:[%s577 + $0x16c] sm:$0x1] %vm4185, %v6651
        %6864 = vst.msk [vmem:[%s577 + $0x174] sm:$0x1] %vm4185, %v6653
        %6865 = vst.msk [vmem:[%s577 + $0x17c] sm:$0x1] %vm4185, %v6655
        %6866 = vst.msk [vmem:[%s577 + $0x184] sm:$0x1] %vm4185, %v6679
        %6867 = vst.msk [vmem:[%s577 + $0x18c] sm:$0x1] %vm4185, %v6693
        %6868 = vst.msk [vmem:[%s577 + $0x194] sm:$0x1] %vm4185, %v6701
        %6869 = vst.msk [vmem:[%s577 + $0x19c] sm:$0x1] %vm4185, %v6703
        %6870 = vst.msk [vmem:[%s577 + $0x1a4] sm:$0x1] %vm4185, %v6686
        %6871 = vst.msk [vmem:[%s577 + $0x1ac] sm:$0x1] %vm4185, %v6700
        %6872 = vst.msk [vmem:[%s577 + $0x1b4] sm:$0x1] %vm4185, %v6702
        %6873 = vst.msk [vmem:[%s577 + $0x1bc] sm:$0x1] %vm4185, %v6704
        %6874 = vst.msk [vmem:[%s577 + $0x1c4] sm:$0x1] %vm4185, %v6728
        %6875 = vst.msk [vmem:[%s577 + $0x1cc] sm:$0x1] %vm4185, %v6742
        %6876 = vst.msk [vmem:[%s577 + $0x1d4] sm:$0x1] %vm4185, %v6750
        %6877 = vst.msk [vmem:[%s577 + $0x1dc] sm:$0x1] %vm4185, %v6752
        %6878 = vst.msk [vmem:[%s577 + $0x1e4] sm:$0x1] %vm4185, %v6735
        %6879 = vst.msk [vmem:[%s577 + $0x1ec] sm:$0x1] %vm4185, %v6749
        %6880 = vst.msk [vmem:[%s577 + $0x1f4] sm:$0x1] %vm4185, %v6751
        %6881 = vst.msk [vmem:[%s577 + $0x1fc] sm:$0x1] %vm4185, %v6753
        %6882 = vmatprep.subr.bf16.mxu0 0
        %6883 = vmatpush1.bf16.msra.mxu0 %v3498
        %6884 = vmatprep.subr.bf16.mxu0 0
        %6885 = vmatpush1.bf16.msra.mxu0 %v3499
        %6886 = vmatprep.subr.bf16.mxu0 0
        %6887 = vmatpush1.bf16.msra.mxu0 %v3500
        %6888 = vmatprep.subr.bf16.mxu0 0
        %6889 = vmatpush1.bf16.msra.mxu0 %v3501
        %6890 = vmatprep.subr.bf16.mxu0 0
        %6891 = vmatpush1.bf16.msra.mxu0 0
        %6892 = vmatprep.subr.bf16.mxu0 0
        %6893 = vmatpush1.bf16.msra.mxu0 0
        %6894 = vmatprep.subr.bf16.mxu0 0
        %6895 = vmatpush1.bf16.msra.mxu0 0
        %6896 = vmatprep.subr.bf16.mxu0 0
        %6897 = vmatpush1.bf16.msra.mxu0 0
        %6898 = vmatprep.subr.bf16.mxu0 0
        %6899 = vmatpush1.bf16.msra.mxu0 0
        %6900 = vmatprep.subr.bf16.mxu0 0
        %6901 = vmatpush1.bf16.msra.mxu0 0
        %6902 = vmatprep.subr.bf16.mxu0 0
        %6903 = vmatpush1.bf16.msra.mxu0 0
        %6904 = vmatprep.subr.bf16.mxu0 0
        %6905 = vmatpush1.bf16.msra.mxu0 0
        %6906 = vmatprep.subr.bf16.mxu0 0
        %6907 = vmatpush1.bf16.msra.mxu0 0
        %6908 = vmatprep.subr.bf16.mxu0 0
        %6909 = vmatpush1.bf16.msra.mxu0 0
        %6910 = vmatprep.subr.bf16.mxu0 0
        %6911 = vmatpush1.bf16.msra.mxu0 0
        %6912 = vmatprep.subr.bf16.mxu0 0
        %6913 = vmatpush1.bf16.msra.mxu0 0
        %6914 = vmatprep.mubr.bf16.mxu0 0
        %6915 = vmatmul.mubr.bf16.gmra.mrb[0].mxu0 %v3548
        %v6916 = vpop.f32.mrb[0].mxu0
        %v6917 = vadd.f32 0.0, %v6916
        %v6918 = vpop.f32.mrb[0].mxu0
        %v6919 = vpop.f32.mrb[0].mxu0
        %v6920 = vadd.f32 0.0, %v6919
        %v6921 = vpop.f32.mrb[0].mxu0
        %6922 = vmatprep.mubr.bf16.mxu0 0
        %6923 = vmatmul.mubr.bf16.gmra.mrb[0].mxu0 %v3551
        %v6924 = vpop.f32.mrb[0].mxu0
        %v6925 = vadd.f32 0.0, %v6924
        %v6926 = vpop.f32.mrb[0].mxu0
        %v6927 = vpop.f32.mrb[0].mxu0
        %v6928 = vadd.f32 0.0, %v6927
        %v6929 = vpop.f32.mrb[0].mxu0
        %6930 = vmatprep.mubr.bf16.mxu0 0
        %6931 = vmatmul.mubr.bf16.gmra.mrb[0].mxu0 %v3554
        %v6932 = vpop.f32.mrb[0].mxu0
        %v6933 = vadd.f32 0.0, %v6932
        %v6934 = vpop.f32.mrb[0].mxu0
        %v6935 = vpop.f32.mrb[0].mxu0
        %v6936 = vadd.f32 0.0, %v6935
        %v6937 = vpop.f32.mrb[0].mxu0
        %6938 = vmatprep.mubr.bf16.mxu0 0
        %6939 = vmatmul.mubr.bf16.gmra.mrb[0].mxu0 %v3557
        %v6940 = vpop.f32.mrb[0].mxu0
        %v6941 = vadd.f32 0.0, %v6940
        %v6942 = vpop.f32.mrb[0].mxu0
        %v6943 = vpop.f32.mrb[0].mxu0
        %v6944 = vadd.f32 0.0, %v6943
        %v6945 = vpop.f32.mrb[0].mxu0
        %6946 = vdwg.mxu0
        %6947 = vmatprep.subr.bf16.mxu0 0
        %6948 = vmatpush1.bf16.msra.mxu0 %v3466
        %6949 = vmatprep.subr.bf16.mxu0 0
        %6950 = vmatpush1.bf16.msra.mxu0 %v3467
        %6951 = vmatprep.subr.bf16.mxu0 0
        %6952 = vmatpush1.bf16.msra.mxu0 %v3468
        %6953 = vmatprep.subr.bf16.mxu0 0
        %6954 = vmatpush1.bf16.msra.mxu0 %v3469
        %6955 = vmatprep.subr.bf16.mxu0 0
        %6956 = vmatpush1.bf16.msra.mxu0 0
        %6957 = vmatprep.subr.bf16.mxu0 0
        %6958 = vmatpush1.bf16.msra.mxu0 0
        %6959 = vmatprep.subr.bf16.mxu0 0
        %6960 = vmatpush1.bf16.msra.mxu0 0
        %6961 = vmatprep.subr.bf16.mxu0 0
        %6962 = vmatpush1.bf16.msra.mxu0 0
        %6963 = vmatprep.subr.bf16.mxu0 0
        %6964 = vmatpush1.bf16.msra.mxu0 0
        %6965 = vmatprep.subr.bf16.mxu0 0
        %6966 = vmatpush1.bf16.msra.mxu0 0
        %6967 = vmatprep.subr.bf16.mxu0 0
        %6968 = vmatpush1.bf16.msra.mxu0 0
        %6969 = vmatprep.subr.bf16.mxu0 0
        %6970 = vmatpush1.bf16.msra.mxu0 0
        %6971 = vmatprep.subr.bf16.mxu0 0
        %6972 = vmatpush1.bf16.msra.mxu0 0
        %6973 = vmatprep.subr.bf16.mxu0 0
        %6974 = vmatpush1.bf16.msra.mxu0 0
        %6975 = vmatprep.subr.bf16.mxu0 0
        %6976 = vmatpush1.bf16.msra.mxu0 0
        %6977 = vmatprep.subr.bf16.mxu0 0
        %6978 = vmatpush1.bf16.msra.mxu0 0
        %6979 = vmatprep.mubr.bf16.mxu0 0
        %6980 = vmatmul.mubr.bf16.gmra.mrb[0].mxu0 %v3645
        %v6981 = vpop.f32.mrb[0].mxu0
        %v6982 = vadd.f32 %v6917, %v6981
        %v6983 = vpop.f32.mrb[0].mxu0
        %v6984 = vpop.f32.mrb[0].mxu0
        %v6985 = vadd.f32 %v6920, %v6984
        %v6986 = vpop.f32.mrb[0].mxu0
        %6987 = vmatprep.mubr.bf16.mxu0 0
        %6988 = vmatmul.mubr.bf16.gmra.mrb[0].mxu0 %v3648
        %v6989 = vpop.f32.mrb[0].mxu0
        %v6990 = vadd.f32 %v6925, %v6989
        %v6991 = vpop.f32.mrb[0].mxu0
        %v6992 = vpop.f32.mrb[0].mxu0
        %v6993 = vadd.f32 %v6928, %v6992
        %v6994 = vpop.f32.mrb[0].mxu0
        %6995 = vmatprep.mubr.bf16.mxu0 0
        %6996 = vmatmul.mubr.bf16.gmra.mrb[0].mxu0 %v3651
        %v6997 = vpop.f32.mrb[0].mxu0
        %v6998 = vadd.f32 %v6933, %v6997
        %v6999 = vpop.f32.mrb[0].mxu0
        %v7000 = vpop.f32.mrb[0].mxu0
        %v7001 = vadd.f32 %v6936, %v7000
        %v7002 = vpop.f32.mrb[0].mxu0
        %7003 = vmatprep.mubr.bf16.mxu0 0
        %7004 = vmatmul.mubr.bf16.gmra.mrb[0].mxu0 %v3654
        %v7005 = vpop.f32.mrb[0].mxu0
        %v7006 = vadd.f32 %v6941, %v7005
        %v7007 = vpop.f32.mrb[0].mxu0
        %v7008 = vpop.f32.mrb[0].mxu0
        %v7009 = vadd.f32 %v6944, %v7008
        %v7010 = vpop.f32.mrb[0].mxu0
        %7011 = vdwg.mxu0
        %v7020 = vcombine.high %v6982, %v6982
        %v7022 = vunpack.c.l.s4 1966171168
        %v7023 = vunpack.c.0.s8 %v7022
        %v7024 = vlaneseq
        %v7025 = vshrl.u32 %v7024, 7
        %v7026 = vsub.s32 %v7023, %v7025
        %v7027 = vrot.slane %v6982, %v7026
        %v7029 = vunpack.c.l.s4 1966171168
        %v7030 = vunpack.c.0.s8 %v7029
        %v7031 = vlaneseq
        %v7032 = vshrl.u32 %v7031, 7
        %v7033 = vsub.s32 %v7030, %v7032
        %v7034 = vrot.slane %v7020, %v7033
        %v7035 = vcombine.high %v7027, %v7027
        %v7036 = vcombine.high %v7034, %v7034
        %v7038 = vunpack.c.l.s4 1966171168
        %v7039 = vunpack.c.0.s8 %v7038
        %v7040 = vlaneseq
        %v7041 = vshrl.u32 %v7040, 7
        %v7042 = vsub.s32 %v7039, %v7041
        %v7043 = vrot.slane %v7027, %v7042
        %v7045 = vunpack.c.l.s4 1966171168
        %v7046 = vunpack.c.0.s8 %v7045
        %v7047 = vlaneseq
        %v7048 = vshrl.u32 %v7047, 7
        %v7049 = vsub.s32 %v7046, %v7048
        %v7050 = vrot.slane %v7034, %v7049
        %v7052 = vunpack.c.l.s4 1966171168
        %v7053 = vunpack.c.0.s8 %v7052
        %v7054 = vlaneseq
        %v7055 = vshrl.u32 %v7054, 7
        %v7056 = vsub.s32 %v7053, %v7055
        %v7057 = vrot.slane %v7035, %v7056
        %v7059 = vunpack.c.l.s4 1966171168
        %v7060 = vunpack.c.0.s8 %v7059
        %v7061 = vlaneseq
        %v7062 = vshrl.u32 %v7061, 7
        %v7063 = vsub.s32 %v7060, %v7062
        %v7064 = vrot.slane %v7036, %v7063
        %v7065 = vcombine.high %v7043, %v7043
        %v7066 = vcombine.high %v7050, %v7050
        %v7067 = vcombine.high %v7057, %v7057
        %v7068 = vcombine.high %v7064, %v7064
        %v7069 = vcombine.high %v6985, %v6985
        %v7071 = vunpack.c.l.s4 1966171168
        %v7072 = vunpack.c.0.s8 %v7071
        %v7073 = vlaneseq
        %v7074 = vshrl.u32 %v7073, 7
        %v7075 = vsub.s32 %v7072, %v7074
        %v7076 = vrot.slane %v6985, %v7075
        %v7078 = vunpack.c.l.s4 1966171168
        %v7079 = vunpack.c.0.s8 %v7078
        %v7080 = vlaneseq
        %v7081 = vshrl.u32 %v7080, 7
        %v7082 = vsub.s32 %v7079, %v7081
        %v7083 = vrot.slane %v7069, %v7082
        %v7084 = vcombine.high %v7076, %v7076
        %v7085 = vcombine.high %v7083, %v7083
        %v7087 = vunpack.c.l.s4 1966171168
        %v7088 = vunpack.c.0.s8 %v7087
        %v7089 = vlaneseq
        %v7090 = vshrl.u32 %v7089, 7
        %v7091 = vsub.s32 %v7088, %v7090
        %v7092 = vrot.slane %v7076, %v7091
        %v7094 = vunpack.c.l.s4 1966171168
        %v7095 = vunpack.c.0.s8 %v7094
        %v7096 = vlaneseq
        %v7097 = vshrl.u32 %v7096, 7
        %v7098 = vsub.s32 %v7095, %v7097
        %v7099 = vrot.slane %v7083, %v7098
        %v7101 = vunpack.c.l.s4 1966171168
        %v7102 = vunpack.c.0.s8 %v7101
        %v7103 = vlaneseq
        %v7104 = vshrl.u32 %v7103, 7
        %v7105 = vsub.s32 %v7102, %v7104
        %v7106 = vrot.slane %v7084, %v7105
        %v7108 = vunpack.c.l.s4 1966171168
        %v7109 = vunpack.c.0.s8 %v7108
        %v7110 = vlaneseq
        %v7111 = vshrl.u32 %v7110, 7
        %v7112 = vsub.s32 %v7109, %v7111
        %v7113 = vrot.slane %v7085, %v7112
        %v7114 = vcombine.high %v7092, %v7092
        %v7115 = vcombine.high %v7099, %v7099
        %v7116 = vcombine.high %v7106, %v7106
        %v7117 = vcombine.high %v7113, %v7113
        %v7118 = vcombine.high %v6990, %v6990
        %v7120 = vunpack.c.l.s4 1966171168
        %v7121 = vunpack.c.0.s8 %v7120
        %v7122 = vlaneseq
        %v7123 = vshrl.u32 %v7122, 7
        %v7124 = vsub.s32 %v7121, %v7123
        %v7125 = vrot.slane %v6990, %v7124
        %v7127 = vunpack.c.l.s4 1966171168
        %v7128 = vunpack.c.0.s8 %v7127
        %v7129 = vlaneseq
        %v7130 = vshrl.u32 %v7129, 7
        %v7131 = vsub.s32 %v7128, %v7130
        %v7132 = vrot.slane %v7118, %v7131
        %v7133 = vcombine.high %v7125, %v7125
        %v7134 = vcombine.high %v7132, %v7132
        %v7136 = vunpack.c.l.s4 1966171168
        %v7137 = vunpack.c.0.s8 %v7136
        %v7138 = vlaneseq
        %v7139 = vshrl.u32 %v7138, 7
        %v7140 = vsub.s32 %v7137, %v7139
        %v7141 = vrot.slane %v7125, %v7140
        %v7143 = vunpack.c.l.s4 1966171168
        %v7144 = vunpack.c.0.s8 %v7143
        %v7145 = vlaneseq
        %v7146 = vshrl.u32 %v7145, 7
        %v7147 = vsub.s32 %v7144, %v7146
        %v7148 = vrot.slane %v7132, %v7147
        %v7150 = vunpack.c.l.s4 1966171168
        %v7151 = vunpack.c.0.s8 %v7150
        %v7152 = vlaneseq
        %v7153 = vshrl.u32 %v7152, 7
        %v7154 = vsub.s32 %v7151, %v7153
        %v7155 = vrot.slane %v7133, %v7154
        %v7157 = vunpack.c.l.s4 1966171168
        %v7158 = vunpack.c.0.s8 %v7157
        %v7159 = vlaneseq
        %v7160 = vshrl.u32 %v7159, 7
        %v7161 = vsub.s32 %v7158, %v7160
        %v7162 = vrot.slane %v7134, %v7161
        %v7163 = vcombine.high %v7141, %v7141
        %v7164 = vcombine.high %v7148, %v7148
        %v7165 = vcombine.high %v7155, %v7155
        %v7166 = vcombine.high %v7162, %v7162
        %v7167 = vcombine.high %v6993, %v6993
        %v7169 = vunpack.c.l.s4 1966171168
        %v7170 = vunpack.c.0.s8 %v7169
        %v7171 = vlaneseq
        %v7172 = vshrl.u32 %v7171, 7
        %v7173 = vsub.s32 %v7170, %v7172
        %v7174 = vrot.slane %v6993, %v7173
        %v7176 = vunpack.c.l.s4 1966171168
        %v7177 = vunpack.c.0.s8 %v7176
        %v7178 = vlaneseq
        %v7179 = vshrl.u32 %v7178, 7
        %v7180 = vsub.s32 %v7177, %v7179
        %v7181 = vrot.slane %v7167, %v7180
        %v7182 = vcombine.high %v7174, %v7174
        %v7183 = vcombine.high %v7181, %v7181
        %v7185 = vunpack.c.l.s4 1966171168
        %v7186 = vunpack.c.0.s8 %v7185
        %v7187 = vlaneseq
        %v7188 = vshrl.u32 %v7187, 7
        %v7189 = vsub.s32 %v7186, %v7188
        %v7190 = vrot.slane %v7174, %v7189
        %v7192 = vunpack.c.l.s4 1966171168
        %v7193 = vunpack.c.0.s8 %v7192
        %v7194 = vlaneseq
        %v7195 = vshrl.u32 %v7194, 7
        %v7196 = vsub.s32 %v7193, %v7195
        %v7197 = vrot.slane %v7181, %v7196
        %v7199 = vunpack.c.l.s4 1966171168
        %v7200 = vunpack.c.0.s8 %v7199
        %v7201 = vlaneseq
        %v7202 = vshrl.u32 %v7201, 7
        %v7203 = vsub.s32 %v7200, %v7202
        %v7204 = vrot.slane %v7182, %v7203
        %v7206 = vunpack.c.l.s4 1966171168
        %v7207 = vunpack.c.0.s8 %v7206
        %v7208 = vlaneseq
        %v7209 = vshrl.u32 %v7208, 7
        %v7210 = vsub.s32 %v7207, %v7209
        %v7211 = vrot.slane %v7183, %v7210
        %v7212 = vcombine.high %v7190, %v7190
        %v7213 = vcombine.high %v7197, %v7197
        %v7214 = vcombine.high %v7204, %v7204
        %v7215 = vcombine.high %v7211, %v7211
        %v7216 = vcombine.high %v6998, %v6998
        %v7218 = vunpack.c.l.s4 1966171168
        %v7219 = vunpack.c.0.s8 %v7218
        %v7220 = vlaneseq
        %v7221 = vshrl.u32 %v7220, 7
        %v7222 = vsub.s32 %v7219, %v7221
        %v7223 = vrot.slane %v6998, %v7222
        %v7225 = vunpack.c.l.s4 1966171168
        %v7226 = vunpack.c.0.s8 %v7225
        %v7227 = vlaneseq
        %v7228 = vshrl.u32 %v7227, 7
        %v7229 = vsub.s32 %v7226, %v7228
        %v7230 = vrot.slane %v7216, %v7229
        %v7231 = vcombine.high %v7223, %v7223
        %v7232 = vcombine.high %v7230, %v7230
        %v7234 = vunpack.c.l.s4 1966171168
        %v7235 = vunpack.c.0.s8 %v7234
        %v7236 = vlaneseq
        %v7237 = vshrl.u32 %v7236, 7
        %v7238 = vsub.s32 %v7235, %v7237
        %v7239 = vrot.slane %v7223, %v7238
        %v7241 = vunpack.c.l.s4 1966171168
        %v7242 = vunpack.c.0.s8 %v7241
        %v7243 = vlaneseq
        %v7244 = vshrl.u32 %v7243, 7
        %v7245 = vsub.s32 %v7242, %v7244
        %v7246 = vrot.slane %v7230, %v7245
        %v7248 = vunpack.c.l.s4 1966171168
        %v7249 = vunpack.c.0.s8 %v7248
        %v7250 = vlaneseq
        %v7251 = vshrl.u32 %v7250, 7
        %v7252 = vsub.s32 %v7249, %v7251
        %v7253 = vrot.slane %v7231, %v7252
        %v7255 = vunpack.c.l.s4 1966171168
        %v7256 = vunpack.c.0.s8 %v7255
        %v7257 = vlaneseq
        %v7258 = vshrl.u32 %v7257, 7
        %v7259 = vsub.s32 %v7256, %v7258
        %v7260 = vrot.slane %v7232, %v7259
        %v7261 = vcombine.high %v7239, %v7239
        %v7262 = vcombine.high %v7246, %v7246
        %v7263 = vcombine.high %v7253, %v7253
        %v7264 = vcombine.high %v7260, %v7260
        %v7265 = vcombine.high %v7001, %v7001
        %v7267 = vunpack.c.l.s4 1966171168
        %v7268 = vunpack.c.0.s8 %v7267
        %v7269 = vlaneseq
        %v7270 = vshrl.u32 %v7269, 7
        %v7271 = vsub.s32 %v7268, %v7270
        %v7272 = vrot.slane %v7001, %v7271
        %v7274 = vunpack.c.l.s4 1966171168
        %v7275 = vunpack.c.0.s8 %v7274
        %v7276 = vlaneseq
        %v7277 = vshrl.u32 %v7276, 7
        %v7278 = vsub.s32 %v7275, %v7277
        %v7279 = vrot.slane %v7265, %v7278
        %v7280 = vcombine.high %v7272, %v7272
        %v7281 = vcombine.high %v7279, %v7279
        %v7283 = vunpack.c.l.s4 1966171168
        %v7284 = vunpack.c.0.s8 %v7283
        %v7285 = vlaneseq
        %v7286 = vshrl.u32 %v7285, 7
        %v7287 = vsub.s32 %v7284, %v7286
        %v7288 = vrot.slane %v7272, %v7287
        %v7290 = vunpack.c.l.s4 1966171168
        %v7291 = vunpack.c.0.s8 %v7290
        %v7292 = vlaneseq
        %v7293 = vshrl.u32 %v7292, 7
        %v7294 = vsub.s32 %v7291, %v7293
        %v7295 = vrot.slane %v7279, %v7294
        %v7297 = vunpack.c.l.s4 1966171168
        %v7298 = vunpack.c.0.s8 %v7297
        %v7299 = vlaneseq
        %v7300 = vshrl.u32 %v7299, 7
        %v7301 = vsub.s32 %v7298, %v7300
        %v7302 = vrot.slane %v7280, %v7301
        %v7304 = vunpack.c.l.s4 1966171168
        %v7305 = vunpack.c.0.s8 %v7304
        %v7306 = vlaneseq
        %v7307 = vshrl.u32 %v7306, 7
        %v7308 = vsub.s32 %v7305, %v7307
        %v7309 = vrot.slane %v7281, %v7308
        %v7310 = vcombine.high %v7288, %v7288
        %v7311 = vcombine.high %v7295, %v7295
        %v7312 = vcombine.high %v7302, %v7302
        %v7313 = vcombine.high %v7309, %v7309
        %v7314 = vcombine.high %v7006, %v7006
        %v7316 = vunpack.c.l.s4 1966171168
        %v7317 = vunpack.c.0.s8 %v7316
        %v7318 = vlaneseq
        %v7319 = vshrl.u32 %v7318, 7
        %v7320 = vsub.s32 %v7317, %v7319
        %v7321 = vrot.slane %v7006, %v7320
        %v7323 = vunpack.c.l.s4 1966171168
        %v7324 = vunpack.c.0.s8 %v7323
        %v7325 = vlaneseq
        %v7326 = vshrl.u32 %v7325, 7
        %v7327 = vsub.s32 %v7324, %v7326
        %v7328 = vrot.slane %v7314, %v7327
        %v7329 = vcombine.high %v7321, %v7321
        %v7330 = vcombine.high %v7328, %v7328
        %v7332 = vunpack.c.l.s4 1966171168
        %v7333 = vunpack.c.0.s8 %v7332
        %v7334 = vlaneseq
        %v7335 = vshrl.u32 %v7334, 7
        %v7336 = vsub.s32 %v7333, %v7335
        %v7337 = vrot.slane %v7321, %v7336
        %v7339 = vunpack.c.l.s4 1966171168
        %v7340 = vunpack.c.0.s8 %v7339
        %v7341 = vlaneseq
        %v7342 = vshrl.u32 %v7341, 7
        %v7343 = vsub.s32 %v7340, %v7342
        %v7344 = vrot.slane %v7328, %v7343
        %v7346 = vunpack.c.l.s4 1966171168
        %v7347 = vunpack.c.0.s8 %v7346
        %v7348 = vlaneseq
        %v7349 = vshrl.u32 %v7348, 7
        %v7350 = vsub.s32 %v7347, %v7349
        %v7351 = vrot.slane %v7329, %v7350
        %v7353 = vunpack.c.l.s4 1966171168
        %v7354 = vunpack.c.0.s8 %v7353
        %v7355 = vlaneseq
        %v7356 = vshrl.u32 %v7355, 7
        %v7357 = vsub.s32 %v7354, %v7356
        %v7358 = vrot.slane %v7330, %v7357
        %v7359 = vcombine.high %v7337, %v7337
        %v7360 = vcombine.high %v7344, %v7344
        %v7361 = vcombine.high %v7351, %v7351
        %v7362 = vcombine.high %v7358, %v7358
        %v7363 = vcombine.high %v7009, %v7009
        %v7365 = vunpack.c.l.s4 1966171168
        %v7366 = vunpack.c.0.s8 %v7365
        %v7367 = vlaneseq
        %v7368 = vshrl.u32 %v7367, 7
        %v7369 = vsub.s32 %v7366, %v7368
        %v7370 = vrot.slane %v7009, %v7369
        %v7372 = vunpack.c.l.s4 1966171168
        %v7373 = vunpack.c.0.s8 %v7372
        %v7374 = vlaneseq
        %v7375 = vshrl.u32 %v7374, 7
        %v7376 = vsub.s32 %v7373, %v7375
        %v7377 = vrot.slane %v7363, %v7376
        %v7378 = vcombine.high %v7370, %v7370
        %v7379 = vcombine.high %v7377, %v7377
        %v7381 = vunpack.c.l.s4 1966171168
        %v7382 = vunpack.c.0.s8 %v7381
        %v7383 = vlaneseq
        %v7384 = vshrl.u32 %v7383, 7
        %v7385 = vsub.s32 %v7382, %v7384
        %v7386 = vrot.slane %v7370, %v7385
        %v7388 = vunpack.c.l.s4 1966171168
        %v7389 = vunpack.c.0.s8 %v7388
        %v7390 = vlaneseq
        %v7391 = vshrl.u32 %v7390, 7
        %v7392 = vsub.s32 %v7389, %v7391
        %v7393 = vrot.slane %v7377, %v7392
        %v7395 = vunpack.c.l.s4 1966171168
        %v7396 = vunpack.c.0.s8 %v7395
        %v7397 = vlaneseq
        %v7398 = vshrl.u32 %v7397, 7
        %v7399 = vsub.s32 %v7396, %v7398
        %v7400 = vrot.slane %v7378, %v7399
        %v7402 = vunpack.c.l.s4 1966171168
        %v7403 = vunpack.c.0.s8 %v7402
        %v7404 = vlaneseq
        %v7405 = vshrl.u32 %v7404, 7
        %v7406 = vsub.s32 %v7403, %v7405
        %v7407 = vrot.slane %v7379, %v7406
        %v7408 = vcombine.high %v7386, %v7386
        %v7409 = vcombine.high %v7393, %v7393
        %v7410 = vcombine.high %v7400, %v7400
        %v7411 = vcombine.high %v7407, %v7407
        %7476 = vst.msk [vmem:[%s577 + $0x5] sm:$0x1] %vm4185, %v7043
        %7477 = vst.msk [vmem:[%s577 + $0xd] sm:$0x1] %vm4185, %v7057
        %7478 = vst.msk [vmem:[%s577 + $0x15] sm:$0x1] %vm4185, %v7065
        %7479 = vst.msk [vmem:[%s577 + $0x1d] sm:$0x1] %vm4185, %v7067
        %7480 = vst.msk [vmem:[%s577 + $0x25] sm:$0x1] %vm4185, %v7050
        %7481 = vst.msk [vmem:[%s577 + $0x2d] sm:$0x1] %vm4185, %v7064
        %7482 = vst.msk [vmem:[%s577 + $0x35] sm:$0x1] %vm4185, %v7066
        %7483 = vst.msk [vmem:[%s577 + $0x3d] sm:$0x1] %vm4185, %v7068
        %7484 = vst.msk [vmem:[%s577 + $0x45] sm:$0x1] %vm4185, %v7092
        %7485 = vst.msk [vmem:[%s577 + $0x4d] sm:$0x1] %vm4185, %v7106
        %7486 = vst.msk [vmem:[%s577 + $0x55] sm:$0x1] %vm4185, %v7114
        %7487 = vst.msk [vmem:[%s577 + $0x5d] sm:$0x1] %vm4185, %v7116
        %7488 = vst.msk [vmem:[%s577 + $0x65] sm:$0x1] %vm4185, %v7099
        %7489 = vst.msk [vmem:[%s577 + $0x6d] sm:$0x1] %vm4185, %v7113
        %7490 = vst.msk [vmem:[%s577 + $0x75] sm:$0x1] %vm4185, %v7115
        %7491 = vst.msk [vmem:[%s577 + $0x7d] sm:$0x1] %vm4185, %v7117
        %7492 = vst.msk [vmem:[%s577 + $0x85] sm:$0x1] %vm4185, %v7141
        %7493 = vst.msk [vmem:[%s577 + $0x8d] sm:$0x1] %vm4185, %v7155
        %7494 = vst.msk [vmem:[%s577 + $0x95] sm:$0x1] %vm4185, %v7163
        %7495 = vst.msk [vmem:[%s577 + $0x9d] sm:$0x1] %vm4185, %v7165
        %7496 = vst.msk [vmem:[%s577 + $0xa5] sm:$0x1] %vm4185, %v7148
        %7497 = vst.msk [vmem:[%s577 + $0xad] sm:$0x1] %vm4185, %v7162
        %7498 = vst.msk [vmem:[%s577 + $0xb5] sm:$0x1] %vm4185, %v7164
        %7499 = vst.msk [vmem:[%s577 + $0xbd] sm:$0x1] %vm4185, %v7166
        %7500 = vst.msk [vmem:[%s577 + $0xc5] sm:$0x1] %vm4185, %v7190
        %7501 = vst.msk [vmem:[%s577 + $0xcd] sm:$0x1] %vm4185, %v7204
        %7502 = vst.msk [vmem:[%s577 + $0xd5] sm:$0x1] %vm4185, %v7212
        %7503 = vst.msk [vmem:[%s577 + $0xdd] sm:$0x1] %vm4185, %v7214
        %7504 = vst.msk [vmem:[%s577 + $0xe5] sm:$0x1] %vm4185, %v7197
        %7505 = vst.msk [vmem:[%s577 + $0xed] sm:$0x1] %vm4185, %v7211
        %7506 = vst.msk [vmem:[%s577 + $0xf5] sm:$0x1] %vm4185, %v7213
        %7507 = vst.msk [vmem:[%s577 + $0xfd] sm:$0x1] %vm4185, %v7215
        %7508 = vst.msk [vmem:[%s577 + $0x105] sm:$0x1] %vm4185, %v7239
        %7509 = vst.msk [vmem:[%s577 + $0x10d] sm:$0x1] %vm4185, %v7253
        %7510 = vst.msk [vmem:[%s577 + $0x115] sm:$0x1] %vm4185, %v7261
        %7511 = vst.msk [vmem:[%s577 + $0x11d] sm:$0x1] %vm4185, %v7263
        %7512 = vst.msk [vmem:[%s577 + $0x125] sm:$0x1] %vm4185, %v7246
        %7513 = vst.msk [vmem:[%s577 + $0x12d] sm:$0x1] %vm4185, %v7260
        %7514 = vst.msk [vmem:[%s577 + $0x135] sm:$0x1] %vm4185, %v7262
        %7515 = vst.msk [vmem:[%s577 + $0x13d] sm:$0x1] %vm4185, %v7264
        %7516 = vst.msk [vmem:[%s577 + $0x145] sm:$0x1] %vm4185, %v7288
        %7517 = vst.msk [vmem:[%s577 + $0x14d] sm:$0x1] %vm4185, %v7302
        %7518 = vst.msk [vmem:[%s577 + $0x155] sm:$0x1] %vm4185, %v7310
        %7519 = vst.msk [vmem:[%s577 + $0x15d] sm:$0x1] %vm4185, %v7312
        %7520 = vst.msk [vmem:[%s577 + $0x165] sm:$0x1] %vm4185, %v7295
        %7521 = vst.msk [vmem:[%s577 + $0x16d] sm:$0x1] %vm4185, %v7309
        %7522 = vst.msk [vmem:[%s577 + $0x175] sm:$0x1] %vm4185, %v7311
        %7523 = vst.msk [vmem:[%s577 + $0x17d] sm:$0x1] %vm4185, %v7313
        %7524 = vst.msk [vmem:[%s577 + $0x185] sm:$0x1] %vm4185, %v7337
        %7525 = vst.msk [vmem:[%s577 + $0x18d] sm:$0x1] %vm4185, %v7351
        %7526 = vst.msk [vmem:[%s577 + $0x195] sm:$0x1] %vm4185, %v7359
        %7527 = vst.msk [vmem:[%s577 + $0x19d] sm:$0x1] %vm4185, %v7361
        %7528 = vst.msk [vmem:[%s577 + $0x1a5] sm:$0x1] %vm4185, %v7344
        %7529 = vst.msk [vmem:[%s577 + $0x1ad] sm:$0x1] %vm4185, %v7358
        %7530 = vst.msk [vmem:[%s577 + $0x1b5] sm:$0x1] %vm4185, %v7360
        %7531 = vst.msk [vmem:[%s577 + $0x1bd] sm:$0x1] %vm4185, %v7362
        %7532 = vst.msk [vmem:[%s577 + $0x1c5] sm:$0x1] %vm4185, %v7386
        %7533 = vst.msk [vmem:[%s577 + $0x1cd] sm:$0x1] %vm4185, %v7400
        %7534 = vst.msk [vmem:[%s577 + $0x1d5] sm:$0x1] %vm4185, %v7408
        %7535 = vst.msk [vmem:[%s577 + $0x1dd] sm:$0x1] %vm4185, %v7410
        %7536 = vst.msk [vmem:[%s577 + $0x1e5] sm:$0x1] %vm4185, %v7393
        %7537 = vst.msk [vmem:[%s577 + $0x1ed] sm:$0x1] %vm4185, %v7407
        %7538 = vst.msk [vmem:[%s577 + $0x1f5] sm:$0x1] %vm4185, %v7409
        %7539 = vst.msk [vmem:[%s577 + $0x1fd] sm:$0x1] %vm4185, %v7411
        %7540 = vmatprep.subr.bf16.mxu0 0
        %7541 = vmatpush1.bf16.msra.mxu0 %v3502
        %7542 = vmatprep.subr.bf16.mxu0 0
        %7543 = vmatpush1.bf16.msra.mxu0 %v3503
        %7544 = vmatprep.subr.bf16.mxu0 0
        %7545 = vmatpush1.bf16.msra.mxu0 %v3504
        %7546 = vmatprep.subr.bf16.mxu0 0
        %7547 = vmatpush1.bf16.msra.mxu0 %v3505
        %7548 = vmatprep.subr.bf16.mxu0 0
        %7549 = vmatpush1.bf16.msra.mxu0 0
        %7550 = vmatprep.subr.bf16.mxu0 0
        %7551 = vmatpush1.bf16.msra.mxu0 0
        %7552 = vmatprep.subr.bf16.mxu0 0
        %7553 = vmatpush1.bf16.msra.mxu0 0
        %7554 = vmatprep.subr.bf16.mxu0 0
        %7555 = vmatpush1.bf16.msra.mxu0 0
        %7556 = vmatprep.subr.bf16.mxu0 0
        %7557 = vmatpush1.bf16.msra.mxu0 0
        %7558 = vmatprep.subr.bf16.mxu0 0
        %7559 = vmatpush1.bf16.msra.mxu0 0
        %7560 = vmatprep.subr.bf16.mxu0 0
        %7561 = vmatpush1.bf16.msra.mxu0 0
        %7562 = vmatprep.subr.bf16.mxu0 0
        %7563 = vmatpush1.bf16.msra.mxu0 0
        %7564 = vmatprep.subr.bf16.mxu0 0
        %7565 = vmatpush1.bf16.msra.mxu0 0
        %7566 = vmatprep.subr.bf16.mxu0 0
        %7567 = vmatpush1.bf16.msra.mxu0 0
        %7568 = vmatprep.subr.bf16.mxu0 0
        %7569 = vmatpush1.bf16.msra.mxu0 0
        %7570 = vmatprep.subr.bf16.mxu0 0
        %7571 = vmatpush1.bf16.msra.mxu0 0
        %7572 = vmatprep.mubr.bf16.mxu0 0
        %7573 = vmatmul.mubr.bf16.gmra.mrb[0].mxu0 %v3548
        %v7574 = vpop.f32.mrb[0].mxu0
        %v7575 = vadd.f32 0.0, %v7574
        %v7576 = vpop.f32.mrb[0].mxu0
        %v7577 = vpop.f32.mrb[0].mxu0
        %v7578 = vadd.f32 0.0, %v7577
        %v7579 = vpop.f32.mrb[0].mxu0
        %7580 = vmatprep.mubr.bf16.mxu0 0
        %7581 = vmatmul.mubr.bf16.gmra.mrb[0].mxu0 %v3551
        %v7582 = vpop.f32.mrb[0].mxu0
        %v7583 = vadd.f32 0.0, %v7582
        %v7584 = vpop.f32.mrb[0].mxu0
        %v7585 = vpop.f32.mrb[0].mxu0
        %v7586 = vadd.f32 0.0, %v7585
        %v7587 = vpop.f32.mrb[0].mxu0
        %7588 = vmatprep.mubr.bf16.mxu0 0
        %7589 = vmatmul.mubr.bf16.gmra.mrb[0].mxu0 %v3554
        %v7590 = vpop.f32.mrb[0].mxu0
        %v7591 = vadd.f32 0.0, %v7590
        %v7592 = vpop.f32.mrb[0].mxu0
        %v7593 = vpop.f32.mrb[0].mxu0
        %v7594 = vadd.f32 0.0, %v7593
        %v7595 = vpop.f32.mrb[0].mxu0
        %7596 = vmatprep.mubr.bf16.mxu0 0
        %7597 = vmatmul.mubr.bf16.gmra.mrb[0].mxu0 %v3557
        %v7598 = vpop.f32.mrb[0].mxu0
        %v7599 = vadd.f32 0.0, %v7598
        %v7600 = vpop.f32.mrb[0].mxu0
        %v7601 = vpop.f32.mrb[0].mxu0
        %v7602 = vadd.f32 0.0, %v7601
        %v7603 = vpop.f32.mrb[0].mxu0
        %7604 = vdwg.mxu0
        %7605 = vmatprep.subr.bf16.mxu0 0
        %7606 = vmatpush1.bf16.msra.mxu0 %v3470
        %7607 = vmatprep.subr.bf16.mxu0 0
        %7608 = vmatpush1.bf16.msra.mxu0 %v3471
        %7609 = vmatprep.subr.bf16.mxu0 0
        %7610 = vmatpush1.bf16.msra.mxu0 %v3472
        %7611 = vmatprep.subr.bf16.mxu0 0
        %7612 = vmatpush1.bf16.msra.mxu0 %v3473
        %7613 = vmatprep.subr.bf16.mxu0 0
        %7614 = vmatpush1.bf16.msra.mxu0 0
        %7615 = vmatprep.subr.bf16.mxu0 0
        %7616 = vmatpush1.bf16.msra.mxu0 0
        %7617 = vmatprep.subr.bf16.mxu0 0
        %7618 = vmatpush1.bf16.msra.mxu0 0
        %7619 = vmatprep.subr.bf16.mxu0 0
        %7620 = vmatpush1.bf16.msra.mxu0 0
        %7621 = vmatprep.subr.bf16.mxu0 0
        %7622 = vmatpush1.bf16.msra.mxu0 0
        %7623 = vmatprep.subr.bf16.mxu0 0
        %7624 = vmatpush1.bf16.msra.mxu0 0
        %7625 = vmatprep.subr.bf16.mxu0 0
        %7626 = vmatpush1.bf16.msra.mxu0 0
        %7627 = vmatprep.subr.bf16.mxu0 0
        %7628 = vmatpush1.bf16.msra.mxu0 0
        %7629 = vmatprep.subr.bf16.mxu0 0
        %7630 = vmatpush1.bf16.msra.mxu0 0
        %7631 = vmatprep.subr.bf16.mxu0 0
        %7632 = vmatpush1.bf16.msra.mxu0 0
        %7633 = vmatprep.subr.bf16.mxu0 0
        %7634 = vmatpush1.bf16.msra.mxu0 0
        %7635 = vmatprep.subr.bf16.mxu0 0
        %7636 = vmatpush1.bf16.msra.mxu0 0
        %7637 = vmatprep.mubr.bf16.mxu0 0
        %7638 = vmatmul.mubr.bf16.gmra.mrb[0].mxu0 %v3645
        %v7639 = vpop.f32.mrb[0].mxu0
        %v7640 = vadd.f32 %v7575, %v7639
        %v7641 = vpop.f32.mrb[0].mxu0
        %v7642 = vpop.f32.mrb[0].mxu0
        %v7643 = vadd.f32 %v7578, %v7642
        %v7644 = vpop.f32.mrb[0].mxu0
        %7645 = vmatprep.mubr.bf16.mxu0 0
        %7646 = vmatmul.mubr.bf16.gmra.mrb[0].mxu0 %v3648
        %v7647 = vpop.f32.mrb[0].mxu0
        %v7648 = vadd.f32 %v7583, %v7647
        %v7649 = vpop.f32.mrb[0].mxu0
        %v7650 = vpop.f32.mrb[0].mxu0
        %v7651 = vadd.f32 %v7586, %v7650
        %v7652 = vpop.f32.mrb[0].mxu0
        %7653 = vmatprep.mubr.bf16.mxu0 0
        %7654 = vmatmul.mubr.bf16.gmra.mrb[0].mxu0 %v3651
        %v7655 = vpop.f32.mrb[0].mxu0
        %v7656 = vadd.f32 %v7591, %v7655
        %v7657 = vpop.f32.mrb[0].mxu0
        %v7658 = vpop.f32.mrb[0].mxu0
        %v7659 = vadd.f32 %v7594, %v7658
        %v7660 = vpop.f32.mrb[0].mxu0
        %7661 = vmatprep.mubr.bf16.mxu0 0
        %7662 = vmatmul.mubr.bf16.gmra.mrb[0].mxu0 %v3654
        %v7663 = vpop.f32.mrb[0].mxu0
        %v7664 = vadd.f32 %v7599, %v7663
        %v7665 = vpop.f32.mrb[0].mxu0
        %v7666 = vpop.f32.mrb[0].mxu0
        %v7667 = vadd.f32 %v7602, %v7666
        %v7668 = vpop.f32.mrb[0].mxu0
        %7669 = vdwg.mxu0
        %v7678 = vcombine.high %v7640, %v7640
        %v7680 = vunpack.c.l.s4 1966171168
        %v7681 = vunpack.c.0.s8 %v7680
        %v7682 = vlaneseq
        %v7683 = vshrl.u32 %v7682, 7
        %v7684 = vsub.s32 %v7681, %v7683
        %v7685 = vrot.slane %v7640, %v7684
        %v7687 = vunpack.c.l.s4 1966171168
        %v7688 = vunpack.c.0.s8 %v7687
        %v7689 = vlaneseq
        %v7690 = vshrl.u32 %v7689, 7
        %v7691 = vsub.s32 %v7688, %v7690
        %v7692 = vrot.slane %v7678, %v7691
        %v7693 = vcombine.high %v7685, %v7685
        %v7694 = vcombine.high %v7692, %v7692
        %v7696 = vunpack.c.l.s4 1966171168
        %v7697 = vunpack.c.0.s8 %v7696
        %v7698 = vlaneseq
        %v7699 = vshrl.u32 %v7698, 7
        %v7700 = vsub.s32 %v7697, %v7699
        %v7701 = vrot.slane %v7685, %v7700
        %v7703 = vunpack.c.l.s4 1966171168
        %v7704 = vunpack.c.0.s8 %v7703
        %v7705 = vlaneseq
        %v7706 = vshrl.u32 %v7705, 7
        %v7707 = vsub.s32 %v7704, %v7706
        %v7708 = vrot.slane %v7692, %v7707
        %v7710 = vunpack.c.l.s4 1966171168
        %v7711 = vunpack.c.0.s8 %v7710
        %v7712 = vlaneseq
        %v7713 = vshrl.u32 %v7712, 7
        %v7714 = vsub.s32 %v7711, %v7713
        %v7715 = vrot.slane %v7693, %v7714
        %v7717 = vunpack.c.l.s4 1966171168
        %v7718 = vunpack.c.0.s8 %v7717
        %v7719 = vlaneseq
        %v7720 = vshrl.u32 %v7719, 7
        %v7721 = vsub.s32 %v7718, %v7720
        %v7722 = vrot.slane %v7694, %v7721
        %v7723 = vcombine.high %v7701, %v7701
        %v7724 = vcombine.high %v7708, %v7708
        %v7725 = vcombine.high %v7715, %v7715
        %v7726 = vcombine.high %v7722, %v7722
        %v7727 = vcombine.high %v7643, %v7643
        %v7729 = vunpack.c.l.s4 1966171168
        %v7730 = vunpack.c.0.s8 %v7729
        %v7731 = vlaneseq
        %v7732 = vshrl.u32 %v7731, 7
        %v7733 = vsub.s32 %v7730, %v7732
        %v7734 = vrot.slane %v7643, %v7733
        %v7736 = vunpack.c.l.s4 1966171168
        %v7737 = vunpack.c.0.s8 %v7736
        %v7738 = vlaneseq
        %v7739 = vshrl.u32 %v7738, 7
        %v7740 = vsub.s32 %v7737, %v7739
        %v7741 = vrot.slane %v7727, %v7740
        %v7742 = vcombine.high %v7734, %v7734
        %v7743 = vcombine.high %v7741, %v7741
        %v7745 = vunpack.c.l.s4 1966171168
        %v7746 = vunpack.c.0.s8 %v7745
        %v7747 = vlaneseq
        %v7748 = vshrl.u32 %v7747, 7
        %v7749 = vsub.s32 %v7746, %v7748
        %v7750 = vrot.slane %v7734, %v7749
        %v7752 = vunpack.c.l.s4 1966171168
        %v7753 = vunpack.c.0.s8 %v7752
        %v7754 = vlaneseq
        %v7755 = vshrl.u32 %v7754, 7
        %v7756 = vsub.s32 %v7753, %v7755
        %v7757 = vrot.slane %v7741, %v7756
        %v7759 = vunpack.c.l.s4 1966171168
        %v7760 = vunpack.c.0.s8 %v7759
        %v7761 = vlaneseq
        %v7762 = vshrl.u32 %v7761, 7
        %v7763 = vsub.s32 %v7760, %v7762
        %v7764 = vrot.slane %v7742, %v7763
        %v7766 = vunpack.c.l.s4 1966171168
        %v7767 = vunpack.c.0.s8 %v7766
        %v7768 = vlaneseq
        %v7769 = vshrl.u32 %v7768, 7
        %v7770 = vsub.s32 %v7767, %v7769
        %v7771 = vrot.slane %v7743, %v7770
        %v7772 = vcombine.high %v7750, %v7750
        %v7773 = vcombine.high %v7757, %v7757
        %v7774 = vcombine.high %v7764, %v7764
        %v7775 = vcombine.high %v7771, %v7771
        %v7776 = vcombine.high %v7648, %v7648
        %v7778 = vunpack.c.l.s4 1966171168
        %v7779 = vunpack.c.0.s8 %v7778
        %v7780 = vlaneseq
        %v7781 = vshrl.u32 %v7780, 7
        %v7782 = vsub.s32 %v7779, %v7781
        %v7783 = vrot.slane %v7648, %v7782
        %v7785 = vunpack.c.l.s4 1966171168
        %v7786 = vunpack.c.0.s8 %v7785
        %v7787 = vlaneseq
        %v7788 = vshrl.u32 %v7787, 7
        %v7789 = vsub.s32 %v7786, %v7788
        %v7790 = vrot.slane %v7776, %v7789
        %v7791 = vcombine.high %v7783, %v7783
        %v7792 = vcombine.high %v7790, %v7790
        %v7794 = vunpack.c.l.s4 1966171168
        %v7795 = vunpack.c.0.s8 %v7794
        %v7796 = vlaneseq
        %v7797 = vshrl.u32 %v7796, 7
        %v7798 = vsub.s32 %v7795, %v7797
        %v7799 = vrot.slane %v7783, %v7798
        %v7801 = vunpack.c.l.s4 1966171168
        %v7802 = vunpack.c.0.s8 %v7801
        %v7803 = vlaneseq
        %v7804 = vshrl.u32 %v7803, 7
        %v7805 = vsub.s32 %v7802, %v7804
        %v7806 = vrot.slane %v7790, %v7805
        %v7808 = vunpack.c.l.s4 1966171168
        %v7809 = vunpack.c.0.s8 %v7808
        %v7810 = vlaneseq
        %v7811 = vshrl.u32 %v7810, 7
        %v7812 = vsub.s32 %v7809, %v7811
        %v7813 = vrot.slane %v7791, %v7812
        %v7815 = vunpack.c.l.s4 1966171168
        %v7816 = vunpack.c.0.s8 %v7815
        %v7817 = vlaneseq
        %v7818 = vshrl.u32 %v7817, 7
        %v7819 = vsub.s32 %v7816, %v7818
        %v7820 = vrot.slane %v7792, %v7819
        %v7821 = vcombine.high %v7799, %v7799
        %v7822 = vcombine.high %v7806, %v7806
        %v7823 = vcombine.high %v7813, %v7813
        %v7824 = vcombine.high %v7820, %v7820
        %v7825 = vcombine.high %v7651, %v7651
        %v7827 = vunpack.c.l.s4 1966171168
        %v7828 = vunpack.c.0.s8 %v7827
        %v7829 = vlaneseq
        %v7830 = vshrl.u32 %v7829, 7
        %v7831 = vsub.s32 %v7828, %v7830
        %v7832 = vrot.slane %v7651, %v7831
        %v7834 = vunpack.c.l.s4 1966171168
        %v7835 = vunpack.c.0.s8 %v7834
        %v7836 = vlaneseq
        %v7837 = vshrl.u32 %v7836, 7
        %v7838 = vsub.s32 %v7835, %v7837
        %v7839 = vrot.slane %v7825, %v7838
        %v7840 = vcombine.high %v7832, %v7832
        %v7841 = vcombine.high %v7839, %v7839
        %v7843 = vunpack.c.l.s4 1966171168
        %v7844 = vunpack.c.0.s8 %v7843
        %v7845 = vlaneseq
        %v7846 = vshrl.u32 %v7845, 7
        %v7847 = vsub.s32 %v7844, %v7846
        %v7848 = vrot.slane %v7832, %v7847
        %v7850 = vunpack.c.l.s4 1966171168
        %v7851 = vunpack.c.0.s8 %v7850
        %v7852 = vlaneseq
        %v7853 = vshrl.u32 %v7852, 7
        %v7854 = vsub.s32 %v7851, %v7853
        %v7855 = vrot.slane %v7839, %v7854
        %v7857 = vunpack.c.l.s4 1966171168
        %v7858 = vunpack.c.0.s8 %v7857
        %v7859 = vlaneseq
        %v7860 = vshrl.u32 %v7859, 7
        %v7861 = vsub.s32 %v7858, %v7860
        %v7862 = vrot.slane %v7840, %v7861
        %v7864 = vunpack.c.l.s4 1966171168
        %v7865 = vunpack.c.0.s8 %v7864
        %v7866 = vlaneseq
        %v7867 = vshrl.u32 %v7866, 7
        %v7868 = vsub.s32 %v7865, %v7867
        %v7869 = vrot.slane %v7841, %v7868
        %v7870 = vcombine.high %v7848, %v7848
        %v7871 = vcombine.high %v7855, %v7855
        %v7872 = vcombine.high %v7862, %v7862
        %v7873 = vcombine.high %v7869, %v7869
        %v7874 = vcombine.high %v7656, %v7656
        %v7876 = vunpack.c.l.s4 1966171168
        %v7877 = vunpack.c.0.s8 %v7876
        %v7878 = vlaneseq
        %v7879 = vshrl.u32 %v7878, 7
        %v7880 = vsub.s32 %v7877, %v7879
        %v7881 = vrot.slane %v7656, %v7880
        %v7883 = vunpack.c.l.s4 1966171168
        %v7884 = vunpack.c.0.s8 %v7883
        %v7885 = vlaneseq
        %v7886 = vshrl.u32 %v7885, 7
        %v7887 = vsub.s32 %v7884, %v7886
        %v7888 = vrot.slane %v7874, %v7887
        %v7889 = vcombine.high %v7881, %v7881
        %v7890 = vcombine.high %v7888, %v7888
        %v7892 = vunpack.c.l.s4 1966171168
        %v7893 = vunpack.c.0.s8 %v7892
        %v7894 = vlaneseq
        %v7895 = vshrl.u32 %v7894, 7
        %v7896 = vsub.s32 %v7893, %v7895
        %v7897 = vrot.slane %v7881, %v7896
        %v7899 = vunpack.c.l.s4 1966171168
        %v7900 = vunpack.c.0.s8 %v7899
        %v7901 = vlaneseq
        %v7902 = vshrl.u32 %v7901, 7
        %v7903 = vsub.s32 %v7900, %v7902
        %v7904 = vrot.slane %v7888, %v7903
        %v7906 = vunpack.c.l.s4 1966171168
        %v7907 = vunpack.c.0.s8 %v7906
        %v7908 = vlaneseq
        %v7909 = vshrl.u32 %v7908, 7
        %v7910 = vsub.s32 %v7907, %v7909
        %v7911 = vrot.slane %v7889, %v7910
        %v7913 = vunpack.c.l.s4 1966171168
        %v7914 = vunpack.c.0.s8 %v7913
        %v7915 = vlaneseq
        %v7916 = vshrl.u32 %v7915, 7
        %v7917 = vsub.s32 %v7914, %v7916
        %v7918 = vrot.slane %v7890, %v7917
        %v7919 = vcombine.high %v7897, %v7897
        %v7920 = vcombine.high %v7904, %v7904
        %v7921 = vcombine.high %v7911, %v7911
        %v7922 = vcombine.high %v7918, %v7918
        %v7923 = vcombine.high %v7659, %v7659
        %v7925 = vunpack.c.l.s4 1966171168
        %v7926 = vunpack.c.0.s8 %v7925
        %v7927 = vlaneseq
        %v7928 = vshrl.u32 %v7927, 7
        %v7929 = vsub.s32 %v7926, %v7928
        %v7930 = vrot.slane %v7659, %v7929
        %v7932 = vunpack.c.l.s4 1966171168
        %v7933 = vunpack.c.0.s8 %v7932
        %v7934 = vlaneseq
        %v7935 = vshrl.u32 %v7934, 7
        %v7936 = vsub.s32 %v7933, %v7935
        %v7937 = vrot.slane %v7923, %v7936
        %v7938 = vcombine.high %v7930, %v7930
        %v7939 = vcombine.high %v7937, %v7937
        %v7941 = vunpack.c.l.s4 1966171168
        %v7942 = vunpack.c.0.s8 %v7941
        %v7943 = vlaneseq
        %v7944 = vshrl.u32 %v7943, 7
        %v7945 = vsub.s32 %v7942, %v7944
        %v7946 = vrot.slane %v7930, %v7945
        %v7948 = vunpack.c.l.s4 1966171168
        %v7949 = vunpack.c.0.s8 %v7948
        %v7950 = vlaneseq
        %v7951 = vshrl.u32 %v7950, 7
        %v7952 = vsub.s32 %v7949, %v7951
        %v7953 = vrot.slane %v7937, %v7952
        %v7955 = vunpack.c.l.s4 1966171168
        %v7956 = vunpack.c.0.s8 %v7955
        %v7957 = vlaneseq
        %v7958 = vshrl.u32 %v7957, 7
        %v7959 = vsub.s32 %v7956, %v7958
        %v7960 = vrot.slane %v7938, %v7959
        %v7962 = vunpack.c.l.s4 1966171168
        %v7963 = vunpack.c.0.s8 %v7962
        %v7964 = vlaneseq
        %v7965 = vshrl.u32 %v7964, 7
        %v7966 = vsub.s32 %v7963, %v7965
        %v7967 = vrot.slane %v7939, %v7966
        %v7968 = vcombine.high %v7946, %v7946
        %v7969 = vcombine.high %v7953, %v7953
        %v7970 = vcombine.high %v7960, %v7960
        %v7971 = vcombine.high %v7967, %v7967
        %v7972 = vcombine.high %v7664, %v7664
        %v7974 = vunpack.c.l.s4 1966171168
        %v7975 = vunpack.c.0.s8 %v7974
        %v7976 = vlaneseq
        %v7977 = vshrl.u32 %v7976, 7
        %v7978 = vsub.s32 %v7975, %v7977
        %v7979 = vrot.slane %v7664, %v7978
        %v7981 = vunpack.c.l.s4 1966171168
        %v7982 = vunpack.c.0.s8 %v7981
        %v7983 = vlaneseq
        %v7984 = vshrl.u32 %v7983, 7
        %v7985 = vsub.s32 %v7982, %v7984
        %v7986 = vrot.slane %v7972, %v7985
        %v7987 = vcombine.high %v7979, %v7979
        %v7988 = vcombine.high %v7986, %v7986
        %v7990 = vunpack.c.l.s4 1966171168
        %v7991 = vunpack.c.0.s8 %v7990
        %v7992 = vlaneseq
        %v7993 = vshrl.u32 %v7992, 7
        %v7994 = vsub.s32 %v7991, %v7993
        %v7995 = vrot.slane %v7979, %v7994
        %v7997 = vunpack.c.l.s4 1966171168
        %v7998 = vunpack.c.0.s8 %v7997
        %v7999 = vlaneseq
        %v8000 = vshrl.u32 %v7999, 7
        %v8001 = vsub.s32 %v7998, %v8000
        %v8002 = vrot.slane %v7986, %v8001
        %v8004 = vunpack.c.l.s4 1966171168
        %v8005 = vunpack.c.0.s8 %v8004
        %v8006 = vlaneseq
        %v8007 = vshrl.u32 %v8006, 7
        %v8008 = vsub.s32 %v8005, %v8007
        %v8009 = vrot.slane %v7987, %v8008
        %v8011 = vunpack.c.l.s4 1966171168
        %v8012 = vunpack.c.0.s8 %v8011
        %v8013 = vlaneseq
        %v8014 = vshrl.u32 %v8013, 7
        %v8015 = vsub.s32 %v8012, %v8014
        %v8016 = vrot.slane %v7988, %v8015
        %v8017 = vcombine.high %v7995, %v7995
        %v8018 = vcombine.high %v8002, %v8002
        %v8019 = vcombine.high %v8009, %v8009
        %v8020 = vcombine.high %v8016, %v8016
        %v8021 = vcombine.high %v7667, %v7667
        %v8023 = vunpack.c.l.s4 1966171168
        %v8024 = vunpack.c.0.s8 %v8023
        %v8025 = vlaneseq
        %v8026 = vshrl.u32 %v8025, 7
        %v8027 = vsub.s32 %v8024, %v8026
        %v8028 = vrot.slane %v7667, %v8027
        %v8030 = vunpack.c.l.s4 1966171168
        %v8031 = vunpack.c.0.s8 %v8030
        %v8032 = vlaneseq
        %v8033 = vshrl.u32 %v8032, 7
        %v8034 = vsub.s32 %v8031, %v8033
        %v8035 = vrot.slane %v8021, %v8034
        %v8036 = vcombine.high %v8028, %v8028
        %v8037 = vcombine.high %v8035, %v8035
        %v8039 = vunpack.c.l.s4 1966171168
        %v8040 = vunpack.c.0.s8 %v8039
        %v8041 = vlaneseq
        %v8042 = vshrl.u32 %v8041, 7
        %v8043 = vsub.s32 %v8040, %v8042
        %v8044 = vrot.slane %v8028, %v8043
        %v8046 = vunpack.c.l.s4 1966171168
        %v8047 = vunpack.c.0.s8 %v8046
        %v8048 = vlaneseq
        %v8049 = vshrl.u32 %v8048, 7
        %v8050 = vsub.s32 %v8047, %v8049
        %v8051 = vrot.slane %v8035, %v8050
        %v8053 = vunpack.c.l.s4 1966171168
        %v8054 = vunpack.c.0.s8 %v8053
        %v8055 = vlaneseq
        %v8056 = vshrl.u32 %v8055, 7
        %v8057 = vsub.s32 %v8054, %v8056
        %v8058 = vrot.slane %v8036, %v8057
        %v8060 = vunpack.c.l.s4 1966171168
        %v8061 = vunpack.c.0.s8 %v8060
        %v8062 = vlaneseq
        %v8063 = vshrl.u32 %v8062, 7
        %v8064 = vsub.s32 %v8061, %v8063
        %v8065 = vrot.slane %v8037, %v8064
        %v8066 = vcombine.high %v8044, %v8044
        %v8067 = vcombine.high %v8051, %v8051
        %v8068 = vcombine.high %v8058, %v8058
        %v8069 = vcombine.high %v8065, %v8065
        %8134 = vst.msk [vmem:[%s577 + $0x6] sm:$0x1] %vm4185, %v7701
        %8135 = vst.msk [vmem:[%s577 + $0xe] sm:$0x1] %vm4185, %v7715
        %8136 = vst.msk [vmem:[%s577 + $0x16] sm:$0x1] %vm4185, %v7723
        %8137 = vst.msk [vmem:[%s577 + $0x1e] sm:$0x1] %vm4185, %v7725
        %8138 = vst.msk [vmem:[%s577 + $0x26] sm:$0x1] %vm4185, %v7708
        %8139 = vst.msk [vmem:[%s577 + $0x2e] sm:$0x1] %vm4185, %v7722
        %8140 = vst.msk [vmem:[%s577 + $0x36] sm:$0x1] %vm4185, %v7724
        %8141 = vst.msk [vmem:[%s577 + $0x3e] sm:$0x1] %vm4185, %v7726
        %8142 = vst.msk [vmem:[%s577 + $0x46] sm:$0x1] %vm4185, %v7750
        %8143 = vst.msk [vmem:[%s577 + $0x4e] sm:$0x1] %vm4185, %v7764
        %8144 = vst.msk [vmem:[%s577 + $0x56] sm:$0x1] %vm4185, %v7772
        %8145 = vst.msk [vmem:[%s577 + $0x5e] sm:$0x1] %vm4185, %v7774
        %8146 = vst.msk [vmem:[%s577 + $0x66] sm:$0x1] %vm4185, %v7757
        %8147 = vst.msk [vmem:[%s577 + $0x6e] sm:$0x1] %vm4185, %v7771
        %8148 = vst.msk [vmem:[%s577 + $0x76] sm:$0x1] %vm4185, %v7773
        %8149 = vst.msk [vmem:[%s577 + $0x7e] sm:$0x1] %vm4185, %v7775
        %8150 = vst.msk [vmem:[%s577 + $0x86] sm:$0x1] %vm4185, %v7799
        %8151 = vst.msk [vmem:[%s577 + $0x8e] sm:$0x1] %vm4185, %v7813
        %8152 = vst.msk [vmem:[%s577 + $0x96] sm:$0x1] %vm4185, %v7821
        %8153 = vst.msk [vmem:[%s577 + $0x9e] sm:$0x1] %vm4185, %v7823
        %8154 = vst.msk [vmem:[%s577 + $0xa6] sm:$0x1] %vm4185, %v7806
        %8155 = vst.msk [vmem:[%s577 + $0xae] sm:$0x1] %vm4185, %v7820
        %8156 = vst.msk [vmem:[%s577 + $0xb6] sm:$0x1] %vm4185, %v7822
        %8157 = vst.msk [vmem:[%s577 + $0xbe] sm:$0x1] %vm4185, %v7824
        %8158 = vst.msk [vmem:[%s577 + $0xc6] sm:$0x1] %vm4185, %v7848
        %8159 = vst.msk [vmem:[%s577 + $0xce] sm:$0x1] %vm4185, %v7862
        %8160 = vst.msk [vmem:[%s577 + $0xd6] sm:$0x1] %vm4185, %v7870
        %8161 = vst.msk [vmem:[%s577 + $0xde] sm:$0x1] %vm4185, %v7872
        %8162 = vst.msk [vmem:[%s577 + $0xe6] sm:$0x1] %vm4185, %v7855
        %8163 = vst.msk [vmem:[%s577 + $0xee] sm:$0x1] %vm4185, %v7869
        %8164 = vst.msk [vmem:[%s577 + $0xf6] sm:$0x1] %vm4185, %v7871
        %8165 = vst.msk [vmem:[%s577 + $0xfe] sm:$0x1] %vm4185, %v7873
        %8166 = vst.msk [vmem:[%s577 + $0x106] sm:$0x1] %vm4185, %v7897
        %8167 = vst.msk [vmem:[%s577 + $0x10e] sm:$0x1] %vm4185, %v7911
        %8168 = vst.msk [vmem:[%s577 + $0x116] sm:$0x1] %vm4185, %v7919
        %8169 = vst.msk [vmem:[%s577 + $0x11e] sm:$0x1] %vm4185, %v7921
        %8170 = vst.msk [vmem:[%s577 + $0x126] sm:$0x1] %vm4185, %v7904
        %8171 = vst.msk [vmem:[%s577 + $0x12e] sm:$0x1] %vm4185, %v7918
        %8172 = vst.msk [vmem:[%s577 + $0x136] sm:$0x1] %vm4185, %v7920
        %8173 = vst.msk [vmem:[%s577 + $0x13e] sm:$0x1] %vm4185, %v7922
        %8174 = vst.msk [vmem:[%s577 + $0x146] sm:$0x1] %vm4185, %v7946
        %8175 = vst.msk [vmem:[%s577 + $0x14e] sm:$0x1] %vm4185, %v7960
        %8176 = vst.msk [vmem:[%s577 + $0x156] sm:$0x1] %vm4185, %v7968
        %8177 = vst.msk [vmem:[%s577 + $0x15e] sm:$0x1] %vm4185, %v7970
        %8178 = vst.msk [vmem:[%s577 + $0x166] sm:$0x1] %vm4185, %v7953
        %8179 = vst.msk [vmem:[%s577 + $0x16e] sm:$0x1] %vm4185, %v7967
        %8180 = vst.msk [vmem:[%s577 + $0x176] sm:$0x1] %vm4185, %v7969
        %8181 = vst.msk [vmem:[%s577 + $0x17e] sm:$0x1] %vm4185, %v7971
        %8182 = vst.msk [vmem:[%s577 + $0x186] sm:$0x1] %vm4185, %v7995
        %8183 = vst.msk [vmem:[%s577 + $0x18e] sm:$0x1] %vm4185, %v8009
        %8184 = vst.msk [vmem:[%s577 + $0x196] sm:$0x1] %vm4185, %v8017
        %8185 = vst.msk [vmem:[%s577 + $0x19e] sm:$0x1] %vm4185, %v8019
        %8186 = vst.msk [vmem:[%s577 + $0x1a6] sm:$0x1] %vm4185, %v8002
        %8187 = vst.msk [vmem:[%s577 + $0x1ae] sm:$0x1] %vm4185, %v8016
        %8188 = vst.msk [vmem:[%s577 + $0x1b6] sm:$0x1] %vm4185, %v8018
        %8189 = vst.msk [vmem:[%s577 + $0x1be] sm:$0x1] %vm4185, %v8020
        %8190 = vst.msk [vmem:[%s577 + $0x1c6] sm:$0x1] %vm4185, %v8044
        %8191 = vst.msk [vmem:[%s577 + $0x1ce] sm:$0x1] %vm4185, %v8058
        %8192 = vst.msk [vmem:[%s577 + $0x1d6] sm:$0x1] %vm4185, %v8066
        %8193 = vst.msk [vmem:[%s577 + $0x1de] sm:$0x1] %vm4185, %v8068
        %8194 = vst.msk [vmem:[%s577 + $0x1e6] sm:$0x1] %vm4185, %v8051
        %8195 = vst.msk [vmem:[%s577 + $0x1ee] sm:$0x1] %vm4185, %v8065
        %8196 = vst.msk [vmem:[%s577 + $0x1f6] sm:$0x1] %vm4185, %v8067
        %8197 = vst.msk [vmem:[%s577 + $0x1fe] sm:$0x1] %vm4185, %v8069
        %8198 = vmatprep.subr.bf16.mxu0 0
        %8199 = vmatpush1.bf16.msra.mxu0 %v3506
        %8200 = vmatprep.subr.bf16.mxu0 0
        %8201 = vmatpush1.bf16.msra.mxu0 %v3507
        %8202 = vmatprep.subr.bf16.mxu0 0
        %8203 = vmatpush1.bf16.msra.mxu0 %v3508
        %8204 = vmatprep.subr.bf16.mxu0 0
        %8205 = vmatpush1.bf16.msra.mxu0 %v3509
        %8206 = vmatprep.subr.bf16.mxu0 0
        %8207 = vmatpush1.bf16.msra.mxu0 0
        %8208 = vmatprep.subr.bf16.mxu0 0
        %8209 = vmatpush1.bf16.msra.mxu0 0
        %8210 = vmatprep.subr.bf16.mxu0 0
        %8211 = vmatpush1.bf16.msra.mxu0 0
        %8212 = vmatprep.subr.bf16.mxu0 0
        %8213 = vmatpush1.bf16.msra.mxu0 0
        %8214 = vmatprep.subr.bf16.mxu0 0
        %8215 = vmatpush1.bf16.msra.mxu0 0
        %8216 = vmatprep.subr.bf16.mxu0 0
        %8217 = vmatpush1.bf16.msra.mxu0 0
        %8218 = vmatprep.subr.bf16.mxu0 0
        %8219 = vmatpush1.bf16.msra.mxu0 0
        %8220 = vmatprep.subr.bf16.mxu0 0
        %8221 = vmatpush1.bf16.msra.mxu0 0
        %8222 = vmatprep.subr.bf16.mxu0 0
        %8223 = vmatpush1.bf16.msra.mxu0 0
        %8224 = vmatprep.subr.bf16.mxu0 0
        %8225 = vmatpush1.bf16.msra.mxu0 0
        %8226 = vmatprep.subr.bf16.mxu0 0
        %8227 = vmatpush1.bf16.msra.mxu0 0
        %8228 = vmatprep.subr.bf16.mxu0 0
        %8229 = vmatpush1.bf16.msra.mxu0 0
        %8230 = vmatprep.mubr.bf16.mxu0 0
        %8231 = vmatmul.mubr.bf16.gmra.mrb[0].mxu0 %v3548
        %v8232 = vpop.f32.mrb[0].mxu0
        %v8233 = vadd.f32 0.0, %v8232
        %v8234 = vpop.f32.mrb[0].mxu0
        %v8235 = vpop.f32.mrb[0].mxu0
        %v8236 = vadd.f32 0.0, %v8235
        %v8237 = vpop.f32.mrb[0].mxu0
        %8238 = vmatprep.mubr.bf16.mxu0 0
        %8239 = vmatmul.mubr.bf16.gmra.mrb[0].mxu0 %v3551
        %v8240 = vpop.f32.mrb[0].mxu0
        %v8241 = vadd.f32 0.0, %v8240
        %v8242 = vpop.f32.mrb[0].mxu0
        %v8243 = vpop.f32.mrb[0].mxu0
        %v8244 = vadd.f32 0.0, %v8243
        %v8245 = vpop.f32.mrb[0].mxu0
        %8246 = vmatprep.mubr.bf16.mxu0 0
        %8247 = vmatmul.mubr.bf16.gmra.mrb[0].mxu0 %v3554
        %v8248 = vpop.f32.mrb[0].mxu0
        %v8249 = vadd.f32 0.0, %v8248
        %v8250 = vpop.f32.mrb[0].mxu0
        %v8251 = vpop.f32.mrb[0].mxu0
        %v8252 = vadd.f32 0.0, %v8251
        %v8253 = vpop.f32.mrb[0].mxu0
        %8254 = vmatprep.mubr.bf16.mxu0 0
        %8255 = vmatmul.mubr.bf16.gmra.mrb[0].mxu0 %v3557
        %v8256 = vpop.f32.mrb[0].mxu0
        %v8257 = vadd.f32 0.0, %v8256
        %v8258 = vpop.f32.mrb[0].mxu0
        %v8259 = vpop.f32.mrb[0].mxu0
        %v8260 = vadd.f32 0.0, %v8259
        %v8261 = vpop.f32.mrb[0].mxu0
        %8262 = vdwg.mxu0
        %8263 = vmatprep.subr.bf16.mxu0 0
        %8264 = vmatpush1.bf16.msra.mxu0 %v3474
        %8265 = vmatprep.subr.bf16.mxu0 0
        %8266 = vmatpush1.bf16.msra.mxu0 %v3475
        %8267 = vmatprep.subr.bf16.mxu0 0
        %8268 = vmatpush1.bf16.msra.mxu0 %v3476
        %8269 = vmatprep.subr.bf16.mxu0 0
        %8270 = vmatpush1.bf16.msra.mxu0 %v3477
        %8271 = vmatprep.subr.bf16.mxu0 0
        %8272 = vmatpush1.bf16.msra.mxu0 0
        %8273 = vmatprep.subr.bf16.mxu0 0
        %8274 = vmatpush1.bf16.msra.mxu0 0
        %8275 = vmatprep.subr.bf16.mxu0 0
        %8276 = vmatpush1.bf16.msra.mxu0 0
        %8277 = vmatprep.subr.bf16.mxu0 0
        %8278 = vmatpush1.bf16.msra.mxu0 0
        %8279 = vmatprep.subr.bf16.mxu0 0
        %8280 = vmatpush1.bf16.msra.mxu0 0
        %8281 = vmatprep.subr.bf16.mxu0 0
        %8282 = vmatpush1.bf16.msra.mxu0 0
        %8283 = vmatprep.subr.bf16.mxu0 0
        %8284 = vmatpush1.bf16.msra.mxu0 0
        %8285 = vmatprep.subr.bf16.mxu0 0
        %8286 = vmatpush1.bf16.msra.mxu0 0
        %8287 = vmatprep.subr.bf16.mxu0 0
        %8288 = vmatpush1.bf16.msra.mxu0 0
        %8289 = vmatprep.subr.bf16.mxu0 0
        %8290 = vmatpush1.bf16.msra.mxu0 0
        %8291 = vmatprep.subr.bf16.mxu0 0
        %8292 = vmatpush1.bf16.msra.mxu0 0
        %8293 = vmatprep.subr.bf16.mxu0 0
        %8294 = vmatpush1.bf16.msra.mxu0 0
        %8295 = vmatprep.mubr.bf16.mxu0 0
        %8296 = vmatmul.mubr.bf16.gmra.mrb[0].mxu0 %v3645
        %v8297 = vpop.f32.mrb[0].mxu0
        %v8298 = vadd.f32 %v8233, %v8297
        %v8299 = vpop.f32.mrb[0].mxu0
        %v8300 = vpop.f32.mrb[0].mxu0
        %v8301 = vadd.f32 %v8236, %v8300
        %v8302 = vpop.f32.mrb[0].mxu0
        %8303 = vmatprep.mubr.bf16.mxu0 0
        %8304 = vmatmul.mubr.bf16.gmra.mrb[0].mxu0 %v3648
        %v8305 = vpop.f32.mrb[0].mxu0
        %v8306 = vadd.f32 %v8241, %v8305
        %v8307 = vpop.f32.mrb[0].mxu0
        %v8308 = vpop.f32.mrb[0].mxu0
        %v8309 = vadd.f32 %v8244, %v8308
        %v8310 = vpop.f32.mrb[0].mxu0
        %8311 = vmatprep.mubr.bf16.mxu0 0
        %8312 = vmatmul.mubr.bf16.gmra.mrb[0].mxu0 %v3651
        %v8313 = vpop.f32.mrb[0].mxu0
        %v8314 = vadd.f32 %v8249, %v8313
        %v8315 = vpop.f32.mrb[0].mxu0
        %v8316 = vpop.f32.mrb[0].mxu0
        %v8317 = vadd.f32 %v8252, %v8316
        %v8318 = vpop.f32.mrb[0].mxu0
        %8319 = vmatprep.mubr.bf16.mxu0 0
        %8320 = vmatmul.mubr.bf16.gmra.mrb[0].mxu0 %v3654
        %v8321 = vpop.f32.mrb[0].mxu0
        %v8322 = vadd.f32 %v8257, %v8321
        %v8323 = vpop.f32.mrb[0].mxu0
        %v8324 = vpop.f32.mrb[0].mxu0
        %v8325 = vadd.f32 %v8260, %v8324
        %v8326 = vpop.f32.mrb[0].mxu0
        %8327 = vdwg.mxu0
        %v8336 = vcombine.high %v8298, %v8298
        %v8338 = vunpack.c.l.s4 1966171168
        %v8339 = vunpack.c.0.s8 %v8338
        %v8340 = vlaneseq
        %v8341 = vshrl.u32 %v8340, 7
        %v8342 = vsub.s32 %v8339, %v8341
        %v8343 = vrot.slane %v8298, %v8342
        %v8345 = vunpack.c.l.s4 1966171168
        %v8346 = vunpack.c.0.s8 %v8345
        %v8347 = vlaneseq
        %v8348 = vshrl.u32 %v8347, 7
        %v8349 = vsub.s32 %v8346, %v8348
        %v8350 = vrot.slane %v8336, %v8349
        %v8351 = vcombine.high %v8343, %v8343
        %v8352 = vcombine.high %v8350, %v8350
        %v8354 = vunpack.c.l.s4 1966171168
        %v8355 = vunpack.c.0.s8 %v8354
        %v8356 = vlaneseq
        %v8357 = vshrl.u32 %v8356, 7
        %v8358 = vsub.s32 %v8355, %v8357
        %v8359 = vrot.slane %v8343, %v8358
        %v8361 = vunpack.c.l.s4 1966171168
        %v8362 = vunpack.c.0.s8 %v8361
        %v8363 = vlaneseq
        %v8364 = vshrl.u32 %v8363, 7
        %v8365 = vsub.s32 %v8362, %v8364
        %v8366 = vrot.slane %v8350, %v8365
        %v8368 = vunpack.c.l.s4 1966171168
        %v8369 = vunpack.c.0.s8 %v8368
        %v8370 = vlaneseq
        %v8371 = vshrl.u32 %v8370, 7
        %v8372 = vsub.s32 %v8369, %v8371
        %v8373 = vrot.slane %v8351, %v8372
        %v8375 = vunpack.c.l.s4 1966171168
        %v8376 = vunpack.c.0.s8 %v8375
        %v8377 = vlaneseq
        %v8378 = vshrl.u32 %v8377, 7
        %v8379 = vsub.s32 %v8376, %v8378
        %v8380 = vrot.slane %v8352, %v8379
        %v8381 = vcombine.high %v8359, %v8359
        %v8382 = vcombine.high %v8366, %v8366
        %v8383 = vcombine.high %v8373, %v8373
        %v8384 = vcombine.high %v8380, %v8380
        %v8385 = vcombine.high %v8301, %v8301
        %v8387 = vunpack.c.l.s4 1966171168
        %v8388 = vunpack.c.0.s8 %v8387
        %v8389 = vlaneseq
        %v8390 = vshrl.u32 %v8389, 7
        %v8391 = vsub.s32 %v8388, %v8390
        %v8392 = vrot.slane %v8301, %v8391
        %v8394 = vunpack.c.l.s4 1966171168
        %v8395 = vunpack.c.0.s8 %v8394
        %v8396 = vlaneseq
        %v8397 = vshrl.u32 %v8396, 7
        %v8398 = vsub.s32 %v8395, %v8397
        %v8399 = vrot.slane %v8385, %v8398
        %v8400 = vcombine.high %v8392, %v8392
        %v8401 = vcombine.high %v8399, %v8399
        %v8403 = vunpack.c.l.s4 1966171168
        %v8404 = vunpack.c.0.s8 %v8403
        %v8405 = vlaneseq
        %v8406 = vshrl.u32 %v8405, 7
        %v8407 = vsub.s32 %v8404, %v8406
        %v8408 = vrot.slane %v8392, %v8407
        %v8410 = vunpack.c.l.s4 1966171168
        %v8411 = vunpack.c.0.s8 %v8410
        %v8412 = vlaneseq
        %v8413 = vshrl.u32 %v8412, 7
        %v8414 = vsub.s32 %v8411, %v8413
        %v8415 = vrot.slane %v8399, %v8414
        %v8417 = vunpack.c.l.s4 1966171168
        %v8418 = vunpack.c.0.s8 %v8417
        %v8419 = vlaneseq
        %v8420 = vshrl.u32 %v8419, 7
        %v8421 = vsub.s32 %v8418, %v8420
        %v8422 = vrot.slane %v8400, %v8421
        %v8424 = vunpack.c.l.s4 1966171168
        %v8425 = vunpack.c.0.s8 %v8424
        %v8426 = vlaneseq
        %v8427 = vshrl.u32 %v8426, 7
        %v8428 = vsub.s32 %v8425, %v8427
        %v8429 = vrot.slane %v8401, %v8428
        %v8430 = vcombine.high %v8408, %v8408
        %v8431 = vcombine.high %v8415, %v8415
        %v8432 = vcombine.high %v8422, %v8422
        %v8433 = vcombine.high %v8429, %v8429
        %v8434 = vcombine.high %v8306, %v8306
        %v8436 = vunpack.c.l.s4 1966171168
        %v8437 = vunpack.c.0.s8 %v8436
        %v8438 = vlaneseq
        %v8439 = vshrl.u32 %v8438, 7
        %v8440 = vsub.s32 %v8437, %v8439
        %v8441 = vrot.slane %v8306, %v8440
        %v8443 = vunpack.c.l.s4 1966171168
        %v8444 = vunpack.c.0.s8 %v8443
        %v8445 = vlaneseq
        %v8446 = vshrl.u32 %v8445, 7
        %v8447 = vsub.s32 %v8444, %v8446
        %v8448 = vrot.slane %v8434, %v8447
        %v8449 = vcombine.high %v8441, %v8441
        %v8450 = vcombine.high %v8448, %v8448
        %v8452 = vunpack.c.l.s4 1966171168
        %v8453 = vunpack.c.0.s8 %v8452
        %v8454 = vlaneseq
        %v8455 = vshrl.u32 %v8454, 7
        %v8456 = vsub.s32 %v8453, %v8455
        %v8457 = vrot.slane %v8441, %v8456
        %v8459 = vunpack.c.l.s4 1966171168
        %v8460 = vunpack.c.0.s8 %v8459
        %v8461 = vlaneseq
        %v8462 = vshrl.u32 %v8461, 7
        %v8463 = vsub.s32 %v8460, %v8462
        %v8464 = vrot.slane %v8448, %v8463
        %v8466 = vunpack.c.l.s4 1966171168
        %v8467 = vunpack.c.0.s8 %v8466
        %v8468 = vlaneseq
        %v8469 = vshrl.u32 %v8468, 7
        %v8470 = vsub.s32 %v8467, %v8469
        %v8471 = vrot.slane %v8449, %v8470
        %v8473 = vunpack.c.l.s4 1966171168
        %v8474 = vunpack.c.0.s8 %v8473
        %v8475 = vlaneseq
        %v8476 = vshrl.u32 %v8475, 7
        %v8477 = vsub.s32 %v8474, %v8476
        %v8478 = vrot.slane %v8450, %v8477
        %v8479 = vcombine.high %v8457, %v8457
        %v8480 = vcombine.high %v8464, %v8464
        %v8481 = vcombine.high %v8471, %v8471
        %v8482 = vcombine.high %v8478, %v8478
        %v8483 = vcombine.high %v8309, %v8309
        %v8485 = vunpack.c.l.s4 1966171168
        %v8486 = vunpack.c.0.s8 %v8485
        %v8487 = vlaneseq
        %v8488 = vshrl.u32 %v8487, 7
        %v8489 = vsub.s32 %v8486, %v8488
        %v8490 = vrot.slane %v8309, %v8489
        %v8492 = vunpack.c.l.s4 1966171168
        %v8493 = vunpack.c.0.s8 %v8492
        %v8494 = vlaneseq
        %v8495 = vshrl.u32 %v8494, 7
        %v8496 = vsub.s32 %v8493, %v8495
        %v8497 = vrot.slane %v8483, %v8496
        %v8498 = vcombine.high %v8490, %v8490
        %v8499 = vcombine.high %v8497, %v8497
        %v8501 = vunpack.c.l.s4 1966171168
        %v8502 = vunpack.c.0.s8 %v8501
        %v8503 = vlaneseq
        %v8504 = vshrl.u32 %v8503, 7
        %v8505 = vsub.s32 %v8502, %v8504
        %v8506 = vrot.slane %v8490, %v8505
        %v8508 = vunpack.c.l.s4 1966171168
        %v8509 = vunpack.c.0.s8 %v8508
        %v8510 = vlaneseq
        %v8511 = vshrl.u32 %v8510, 7
        %v8512 = vsub.s32 %v8509, %v8511
        %v8513 = vrot.slane %v8497, %v8512
        %v8515 = vunpack.c.l.s4 1966171168
        %v8516 = vunpack.c.0.s8 %v8515
        %v8517 = vlaneseq
        %v8518 = vshrl.u32 %v8517, 7
        %v8519 = vsub.s32 %v8516, %v8518
        %v8520 = vrot.slane %v8498, %v8519
        %v8522 = vunpack.c.l.s4 1966171168
        %v8523 = vunpack.c.0.s8 %v8522
        %v8524 = vlaneseq
        %v8525 = vshrl.u32 %v8524, 7
        %v8526 = vsub.s32 %v8523, %v8525
        %v8527 = vrot.slane %v8499, %v8526
        %v8528 = vcombine.high %v8506, %v8506
        %v8529 = vcombine.high %v8513, %v8513
        %v8530 = vcombine.high %v8520, %v8520
        %v8531 = vcombine.high %v8527, %v8527
        %v8532 = vcombine.high %v8314, %v8314
        %v8534 = vunpack.c.l.s4 1966171168
        %v8535 = vunpack.c.0.s8 %v8534
        %v8536 = vlaneseq
        %v8537 = vshrl.u32 %v8536, 7
        %v8538 = vsub.s32 %v8535, %v8537
        %v8539 = vrot.slane %v8314, %v8538
        %v8541 = vunpack.c.l.s4 1966171168
        %v8542 = vunpack.c.0.s8 %v8541
        %v8543 = vlaneseq
        %v8544 = vshrl.u32 %v8543, 7
        %v8545 = vsub.s32 %v8542, %v8544
        %v8546 = vrot.slane %v8532, %v8545
        %v8547 = vcombine.high %v8539, %v8539
        %v8548 = vcombine.high %v8546, %v8546
        %v8550 = vunpack.c.l.s4 1966171168
        %v8551 = vunpack.c.0.s8 %v8550
        %v8552 = vlaneseq
        %v8553 = vshrl.u32 %v8552, 7
        %v8554 = vsub.s32 %v8551, %v8553
        %v8555 = vrot.slane %v8539, %v8554
        %v8557 = vunpack.c.l.s4 1966171168
        %v8558 = vunpack.c.0.s8 %v8557
        %v8559 = vlaneseq
        %v8560 = vshrl.u32 %v8559, 7
        %v8561 = vsub.s32 %v8558, %v8560
        %v8562 = vrot.slane %v8546, %v8561
        %v8564 = vunpack.c.l.s4 1966171168
        %v8565 = vunpack.c.0.s8 %v8564
        %v8566 = vlaneseq
        %v8567 = vshrl.u32 %v8566, 7
        %v8568 = vsub.s32 %v8565, %v8567
        %v8569 = vrot.slane %v8547, %v8568
        %v8571 = vunpack.c.l.s4 1966171168
        %v8572 = vunpack.c.0.s8 %v8571
        %v8573 = vlaneseq
        %v8574 = vshrl.u32 %v8573, 7
        %v8575 = vsub.s32 %v8572, %v8574
        %v8576 = vrot.slane %v8548, %v8575
        %v8577 = vcombine.high %v8555, %v8555
        %v8578 = vcombine.high %v8562, %v8562
        %v8579 = vcombine.high %v8569, %v8569
        %v8580 = vcombine.high %v8576, %v8576
        %v8581 = vcombine.high %v8317, %v8317
        %v8583 = vunpack.c.l.s4 1966171168
        %v8584 = vunpack.c.0.s8 %v8583
        %v8585 = vlaneseq
        %v8586 = vshrl.u32 %v8585, 7
        %v8587 = vsub.s32 %v8584, %v8586
        %v8588 = vrot.slane %v8317, %v8587
        %v8590 = vunpack.c.l.s4 1966171168
        %v8591 = vunpack.c.0.s8 %v8590
        %v8592 = vlaneseq
        %v8593 = vshrl.u32 %v8592, 7
        %v8594 = vsub.s32 %v8591, %v8593
        %v8595 = vrot.slane %v8581, %v8594
        %v8596 = vcombine.high %v8588, %v8588
        %v8597 = vcombine.high %v8595, %v8595
        %v8599 = vunpack.c.l.s4 1966171168
        %v8600 = vunpack.c.0.s8 %v8599
        %v8601 = vlaneseq
        %v8602 = vshrl.u32 %v8601, 7
        %v8603 = vsub.s32 %v8600, %v8602
        %v8604 = vrot.slane %v8588, %v8603
        %v8606 = vunpack.c.l.s4 1966171168
        %v8607 = vunpack.c.0.s8 %v8606
        %v8608 = vlaneseq
        %v8609 = vshrl.u32 %v8608, 7
        %v8610 = vsub.s32 %v8607, %v8609
        %v8611 = vrot.slane %v8595, %v8610
        %v8613 = vunpack.c.l.s4 1966171168
        %v8614 = vunpack.c.0.s8 %v8613
        %v8615 = vlaneseq
        %v8616 = vshrl.u32 %v8615, 7
        %v8617 = vsub.s32 %v8614, %v8616
        %v8618 = vrot.slane %v8596, %v8617
        %v8620 = vunpack.c.l.s4 1966171168
        %v8621 = vunpack.c.0.s8 %v8620
        %v8622 = vlaneseq
        %v8623 = vshrl.u32 %v8622, 7
        %v8624 = vsub.s32 %v8621, %v8623
        %v8625 = vrot.slane %v8597, %v8624
        %v8626 = vcombine.high %v8604, %v8604
        %v8627 = vcombine.high %v8611, %v8611
        %v8628 = vcombine.high %v8618, %v8618
        %v8629 = vcombine.high %v8625, %v8625
        %v8630 = vcombine.high %v8322, %v8322
        %v8632 = vunpack.c.l.s4 1966171168
        %v8633 = vunpack.c.0.s8 %v8632
        %v8634 = vlaneseq
        %v8635 = vshrl.u32 %v8634, 7
        %v8636 = vsub.s32 %v8633, %v8635
        %v8637 = vrot.slane %v8322, %v8636
        %v8639 = vunpack.c.l.s4 1966171168
        %v8640 = vunpack.c.0.s8 %v8639
        %v8641 = vlaneseq
        %v8642 = vshrl.u32 %v8641, 7
        %v8643 = vsub.s32 %v8640, %v8642
        %v8644 = vrot.slane %v8630, %v8643
        %v8645 = vcombine.high %v8637, %v8637
        %v8646 = vcombine.high %v8644, %v8644
        %v8648 = vunpack.c.l.s4 1966171168
        %v8649 = vunpack.c.0.s8 %v8648
        %v8650 = vlaneseq
        %v8651 = vshrl.u32 %v8650, 7
        %v8652 = vsub.s32 %v8649, %v8651
        %v8653 = vrot.slane %v8637, %v8652
        %v8655 = vunpack.c.l.s4 1966171168
        %v8656 = vunpack.c.0.s8 %v8655
        %v8657 = vlaneseq
        %v8658 = vshrl.u32 %v8657, 7
        %v8659 = vsub.s32 %v8656, %v8658
        %v8660 = vrot.slane %v8644, %v8659
        %v8662 = vunpack.c.l.s4 1966171168
        %v8663 = vunpack.c.0.s8 %v8662
        %v8664 = vlaneseq
        %v8665 = vshrl.u32 %v8664, 7
        %v8666 = vsub.s32 %v8663, %v8665
        %v8667 = vrot.slane %v8645, %v8666
        %v8669 = vunpack.c.l.s4 1966171168
        %v8670 = vunpack.c.0.s8 %v8669
        %v8671 = vlaneseq
        %v8672 = vshrl.u32 %v8671, 7
        %v8673 = vsub.s32 %v8670, %v8672
        %v8674 = vrot.slane %v8646, %v8673
        %v8675 = vcombine.high %v8653, %v8653
        %v8676 = vcombine.high %v8660, %v8660
        %v8677 = vcombine.high %v8667, %v8667
        %v8678 = vcombine.high %v8674, %v8674
        %v8679 = vcombine.high %v8325, %v8325
        %v8681 = vunpack.c.l.s4 1966171168
        %v8682 = vunpack.c.0.s8 %v8681
        %v8683 = vlaneseq
        %v8684 = vshrl.u32 %v8683, 7
        %v8685 = vsub.s32 %v8682, %v8684
        %v8686 = vrot.slane %v8325, %v8685
        %v8688 = vunpack.c.l.s4 1966171168
        %v8689 = vunpack.c.0.s8 %v8688
        %v8690 = vlaneseq
        %v8691 = vshrl.u32 %v8690, 7
        %v8692 = vsub.s32 %v8689, %v8691
        %v8693 = vrot.slane %v8679, %v8692
        %v8694 = vcombine.high %v8686, %v8686
        %v8695 = vcombine.high %v8693, %v8693
        %v8697 = vunpack.c.l.s4 1966171168
        %v8698 = vunpack.c.0.s8 %v8697
        %v8699 = vlaneseq
        %v8700 = vshrl.u32 %v8699, 7
        %v8701 = vsub.s32 %v8698, %v8700
        %v8702 = vrot.slane %v8686, %v8701
        %v8704 = vunpack.c.l.s4 1966171168
        %v8705 = vunpack.c.0.s8 %v8704
        %v8706 = vlaneseq
        %v8707 = vshrl.u32 %v8706, 7
        %v8708 = vsub.s32 %v8705, %v8707
        %v8709 = vrot.slane %v8693, %v8708
        %v8711 = vunpack.c.l.s4 1966171168
        %v8712 = vunpack.c.0.s8 %v8711
        %v8713 = vlaneseq
        %v8714 = vshrl.u32 %v8713, 7
        %v8715 = vsub.s32 %v8712, %v8714
        %v8716 = vrot.slane %v8694, %v8715
        %v8718 = vunpack.c.l.s4 1966171168
        %v8719 = vunpack.c.0.s8 %v8718
        %v8720 = vlaneseq
        %v8721 = vshrl.u32 %v8720, 7
        %v8722 = vsub.s32 %v8719, %v8721
        %v8723 = vrot.slane %v8695, %v8722
        %v8724 = vcombine.high %v8702, %v8702
        %v8725 = vcombine.high %v8709, %v8709
        %v8726 = vcombine.high %v8716, %v8716
        %v8727 = vcombine.high %v8723, %v8723
        %8792 = vst.msk [vmem:[%s577 + $0x7] sm:$0x1] %vm4185, %v8359
        %8793 = vst.msk [vmem:[%s577 + $0xf] sm:$0x1] %vm4185, %v8373
        %8794 = vst.msk [vmem:[%s577 + $0x17] sm:$0x1] %vm4185, %v8381
        %8795 = vst.msk [vmem:[%s577 + $0x1f] sm:$0x1] %vm4185, %v8383
        %8796 = vst.msk [vmem:[%s577 + $0x27] sm:$0x1] %vm4185, %v8366
        %8797 = vst.msk [vmem:[%s577 + $0x2f] sm:$0x1] %vm4185, %v8380
        %8798 = vst.msk [vmem:[%s577 + $0x37] sm:$0x1] %vm4185, %v8382
        %8799 = vst.msk [vmem:[%s577 + $0x3f] sm:$0x1] %vm4185, %v8384
        %8800 = vst.msk [vmem:[%s577 + $0x47] sm:$0x1] %vm4185, %v8408
        %8801 = vst.msk [vmem:[%s577 + $0x4f] sm:$0x1] %vm4185, %v8422
        %8802 = vst.msk [vmem:[%s577 + $0x57] sm:$0x1] %vm4185, %v8430
        %8803 = vst.msk [vmem:[%s577 + $0x5f] sm:$0x1] %vm4185, %v8432
        %8804 = vst.msk [vmem:[%s577 + $0x67] sm:$0x1] %vm4185, %v8415
        %8805 = vst.msk [vmem:[%s577 + $0x6f] sm:$0x1] %vm4185, %v8429
        %8806 = vst.msk [vmem:[%s577 + $0x77] sm:$0x1] %vm4185, %v8431
        %8807 = vst.msk [vmem:[%s577 + $0x7f] sm:$0x1] %vm4185, %v8433
        %8808 = vst.msk [vmem:[%s577 + $0x87] sm:$0x1] %vm4185, %v8457
        %8809 = vst.msk [vmem:[%s577 + $0x8f] sm:$0x1] %vm4185, %v8471
        %8810 = vst.msk [vmem:[%s577 + $0x97] sm:$0x1] %vm4185, %v8479
        %8811 = vst.msk [vmem:[%s577 + $0x9f] sm:$0x1] %vm4185, %v8481
        %8812 = vst.msk [vmem:[%s577 + $0xa7] sm:$0x1] %vm4185, %v8464
        %8813 = vst.msk [vmem:[%s577 + $0xaf] sm:$0x1] %vm4185, %v8478
        %8814 = vst.msk [vmem:[%s577 + $0xb7] sm:$0x1] %vm4185, %v8480
        %8815 = vst.msk [vmem:[%s577 + $0xbf] sm:$0x1] %vm4185, %v8482
        %8816 = vst.msk [vmem:[%s577 + $0xc7] sm:$0x1] %vm4185, %v8506
        %8817 = vst.msk [vmem:[%s577 + $0xcf] sm:$0x1] %vm4185, %v8520
        %8818 = vst.msk [vmem:[%s577 + $0xd7] sm:$0x1] %vm4185, %v8528
        %8819 = vst.msk [vmem:[%s577 + $0xdf] sm:$0x1] %vm4185, %v8530
        %8820 = vst.msk [vmem:[%s577 + $0xe7] sm:$0x1] %vm4185, %v8513
        %8821 = vst.msk [vmem:[%s577 + $0xef] sm:$0x1] %vm4185, %v8527
        %8822 = vst.msk [vmem:[%s577 + $0xf7] sm:$0x1] %vm4185, %v8529
        %8823 = vst.msk [vmem:[%s577 + $0xff] sm:$0x1] %vm4185, %v8531
        %8824 = vst.msk [vmem:[%s577 + $0x107] sm:$0x1] %vm4185, %v8555
        %8825 = vst.msk [vmem:[%s577 + $0x10f] sm:$0x1] %vm4185, %v8569
        %8826 = vst.msk [vmem:[%s577 + $0x117] sm:$0x1] %vm4185, %v8577
        %8827 = vst.msk [vmem:[%s577 + $0x11f] sm:$0x1] %vm4185, %v8579
        %8828 = vst.msk [vmem:[%s577 + $0x127] sm:$0x1] %vm4185, %v8562
        %8829 = vst.msk [vmem:[%s577 + $0x12f] sm:$0x1] %vm4185, %v8576
        %8830 = vst.msk [vmem:[%s577 + $0x137] sm:$0x1] %vm4185, %v8578
        %8831 = vst.msk [vmem:[%s577 + $0x13f] sm:$0x1] %vm4185, %v8580
        %8832 = vst.msk [vmem:[%s577 + $0x147] sm:$0x1] %vm4185, %v8604
        %8833 = vst.msk [vmem:[%s577 + $0x14f] sm:$0x1] %vm4185, %v8618
        %8834 = vst.msk [vmem:[%s577 + $0x157] sm:$0x1] %vm4185, %v8626
        %8835 = vst.msk [vmem:[%s577 + $0x15f] sm:$0x1] %vm4185, %v8628
        %8836 = vst.msk [vmem:[%s577 + $0x167] sm:$0x1] %vm4185, %v8611
        %8837 = vst.msk [vmem:[%s577 + $0x16f] sm:$0x1] %vm4185, %v8625
        %8838 = vst.msk [vmem:[%s577 + $0x177] sm:$0x1] %vm4185, %v8627
        %8839 = vst.msk [vmem:[%s577 + $0x17f] sm:$0x1] %vm4185, %v8629
        %8840 = vst.msk [vmem:[%s577 + $0x187] sm:$0x1] %vm4185, %v8653
        %8841 = vst.msk [vmem:[%s577 + $0x18f] sm:$0x1] %vm4185, %v8667
        %8842 = vst.msk [vmem:[%s577 + $0x197] sm:$0x1] %vm4185, %v8675
        %8843 = vst.msk [vmem:[%s577 + $0x19f] sm:$0x1] %vm4185, %v8677
        %8844 = vst.msk [vmem:[%s577 + $0x1a7] sm:$0x1] %vm4185, %v8660
        %8845 = vst.msk [vmem:[%s577 + $0x1af] sm:$0x1] %vm4185, %v8674
        %8846 = vst.msk [vmem:[%s577 + $0x1b7] sm:$0x1] %vm4185, %v8676
        %8847 = vst.msk [vmem:[%s577 + $0x1bf] sm:$0x1] %vm4185, %v8678
        %8848 = vst.msk [vmem:[%s577 + $0x1c7] sm:$0x1] %vm4185, %v8702
        %8849 = vst.msk [vmem:[%s577 + $0x1cf] sm:$0x1] %vm4185, %v8716
        %8850 = vst.msk [vmem:[%s577 + $0x1d7] sm:$0x1] %vm4185, %v8724
        %8851 = vst.msk [vmem:[%s577 + $0x1df] sm:$0x1] %vm4185, %v8726
        %8852 = vst.msk [vmem:[%s577 + $0x1e7] sm:$0x1] %vm4185, %v8709
        %8853 = vst.msk [vmem:[%s577 + $0x1ef] sm:$0x1] %vm4185, %v8723
        %8854 = vst.msk [vmem:[%s577 + $0x1f7] sm:$0x1] %vm4185, %v8725
        %8855 = vst.msk [vmem:[%s577 + $0x1ff] sm:$0x1] %vm4185, %v8727
        %s8856 = sand.u32 %s194, 1
        %s8857 = sand.u32 %s194, 1
        %s8858 = smul.addr %s8857, 512
        %s8859 = scalar_lea.vmem [#allocation3], %s8858
        // Predicated region
        $region87: #{patch_merging_forward.1} parent=81 // pred_check
          %p8860 = pneg %p204
        $region88: #{patch_merging_forward.1} parent=81 // pred_check_branch
          %8862 = sbr.rel (%p8860) target = $region90
        $region89: #{patch_merging_forward.1} parent=81 // pred_region
          %s8863 = smul.addr %s22, 192
          %s8864 = sadd.s32 %s23, %s8863
          %s8865 = smul.addr %s8864, 8
          %s8866 = scalar_lea.vmem %s7, %s8865
          // Predicated region
          $region91: #{patch_merging_forward.1} parent=89 // pred_check
            _
          $region92: #{patch_merging_forward.1} parent=89 // pred_check_branch
            %8868 = sbr.rel (0) target = $region94
          $region93: #{patch_merging_forward.1} parent=89 // pred_region
            // Predicated region
            $region95: #{patch_merging_forward.1} parent=93 // pred_check
              _
            $region96: #{patch_merging_forward.1} parent=93 // pred_check_branch
              %8870 = sbr.rel (0) target = $region98
            $region97: #{patch_merging_forward.1} parent=93 // pred_region
              // Predicated region
              $region110: #{patch_merging_forward.1} parent=97 // pred_check
                _
              $region111: #{patch_merging_forward.1} parent=97 // pred_check_branch
                %9011 = sbr.rel (0) target = $region113
              $region112: #{patch_merging_forward.1} parent=97 // pred_region
                loop: start=0, step=1, limit=1
                $region114: #{patch_merging_forward.1} parent=112 // loop_pre_header
                  _
                $region115: #{patch_merging_forward.1} parent=112 // loop_header
                  %s9013 = sphi 0, %s9017
                  %p9014 = scmp.ge.s32.totalorder %s9013, 1
                  %s9018 = sphi %s8859, %s8859
                  %s9019 = sphi %s8866, %s8866
                $region116: #{patch_merging_forward.1} parent=112 // loop_header_branch
                  %9016 = sbr.rel (%p9014) target = $region120
                $region117: #{patch_merging_forward.1} parent=112 // loop_body
                  %v9020 = vld [vmem:[%s9018] sm:$0xff]
                  %9021 = vst [vmem:[%s9019] sm:$0xff] %v9020
                  %v9022 = vld [vmem:[%s9018 + $0x8] sm:$0xff]
                  %9023 = vst [vmem:[%s9019 + $0x18] sm:$0xff] %v9022
                  %v9024 = vld [vmem:[%s9018 + $0x10] sm:$0xff]
                  %9025 = vst [vmem:[%s9019 + $0x30] sm:$0xff] %v9024
                  %v9026 = vld [vmem:[%s9018 + $0x18] sm:$0xff]
                  %9027 = vst [vmem:[%s9019 + $0x48] sm:$0xff] %v9026
                  %v9028 = vld [vmem:[%s9018 + $0x20] sm:$0xff]
                  %9029 = vst [vmem:[%s9019 + $0x60] sm:$0xff] %v9028
                  %v9030 = vld [vmem:[%s9018 + $0x28] sm:$0xff]
                  %9031 = vst [vmem:[%s9019 + $0x78] sm:$0xff] %v9030
                  %v9032 = vld [vmem:[%s9018 + $0x30] sm:$0xff]
                  %9033 = vst [vmem:[%s9019 + $0x90] sm:$0xff] %v9032
                  %v9034 = vld [vmem:[%s9018 + $0x38] sm:$0xff]
                  %9035 = vst [vmem:[%s9019 + $0xa8] sm:$0xff] %v9034
                  %v9036 = vld [vmem:[%s9018 + $0x40] sm:$0xff]
                  %9037 = vst [vmem:[%s9019 + $0xc0] sm:$0xff] %v9036
                  %v9038 = vld [vmem:[%s9018 + $0x48] sm:$0xff]
                  %9039 = vst [vmem:[%s9019 + $0xd8] sm:$0xff] %v9038
                  %v9040 = vld [vmem:[%s9018 + $0x50] sm:$0xff]
                  %9041 = vst [vmem:[%s9019 + $0xf0] sm:$0xff] %v9040
                  %v9042 = vld [vmem:[%s9018 + $0x58] sm:$0xff]
                  %9043 = vst [vmem:[%s9019 + $0x108] sm:$0xff] %v9042
                  %v9044 = vld [vmem:[%s9018 + $0x60] sm:$0xff]
                  %9045 = vst [vmem:[%s9019 + $0x120] sm:$0xff] %v9044
                  %v9046 = vld [vmem:[%s9018 + $0x68] sm:$0xff]
                  %9047 = vst [vmem:[%s9019 + $0x138] sm:$0xff] %v9046
                  %v9048 = vld [vmem:[%s9018 + $0x70] sm:$0xff]
                  %9049 = vst [vmem:[%s9019 + $0x150] sm:$0xff] %v9048
                  %v9050 = vld [vmem:[%s9018 + $0x78] sm:$0xff]
                  %9051 = vst [vmem:[%s9019 + $0x168] sm:$0xff] %v9050
                  %v9052 = vld [vmem:[%s9018 + $0x80] sm:$0xff]
                  %9053 = vst [vmem:[%s9019 + $0x180] sm:$0xff] %v9052
                  %v9054 = vld [vmem:[%s9018 + $0x88] sm:$0xff]
                  %9055 = vst [vmem:[%s9019 + $0x198] sm:$0xff] %v9054
                  %v9056 = vld [vmem:[%s9018 + $0x90] sm:$0xff]
                  %9057 = vst [vmem:[%s9019 + $0x1b0] sm:$0xff] %v9056
                  %v9058 = vld [vmem:[%s9018 + $0x98] sm:$0xff]
                  %9059 = vst [vmem:[%s9019 + $0x1c8] sm:$0xff] %v9058
                  %v9060 = vld [vmem:[%s9018 + $0xa0] sm:$0xff]
                  %9061 = vst [vmem:[%s9019 + $0x1e0] sm:$0xff] %v9060
                  %v9062 = vld [vmem:[%s9018 + $0xa8] sm:$0xff]
                  %9063 = vst [vmem:[%s9019 + $0x1f8] sm:$0xff] %v9062
                  %v9064 = vld [vmem:[%s9018 + $0xb0] sm:$0xff]
                  %9065 = vst [vmem:[%s9019 + $0x210] sm:$0xff] %v9064
                  %v9066 = vld [vmem:[%s9018 + $0xb8] sm:$0xff]
                  %9067 = vst [vmem:[%s9019 + $0x228] sm:$0xff] %v9066
                  %v9068 = vld [vmem:[%s9018 + $0xc0] sm:$0xff]
                  %9069 = vst [vmem:[%s9019 + $0x240] sm:$0xff] %v9068
                  %v9070 = vld [vmem:[%s9018 + $0xc8] sm:$0xff]
                  %9071 = vst [vmem:[%s9019 + $0x258] sm:$0xff] %v9070
                  %v9072 = vld [vmem:[%s9018 + $0xd0] sm:$0xff]
                  %9073 = vst [vmem:[%s9019 + $0x270] sm:$0xff] %v9072
                  %v9074 = vld [vmem:[%s9018 + $0xd8] sm:$0xff]
                  %9075 = vst [vmem:[%s9019 + $0x288] sm:$0xff] %v9074
                  %v9076 = vld [vmem:[%s9018 + $0xe0] sm:$0xff]
                  %9077 = vst [vmem:[%s9019 + $0x2a0] sm:$0xff] %v9076
                  %v9078 = vld [vmem:[%s9018 + $0xe8] sm:$0xff]
                  %9079 = vst [vmem:[%s9019 + $0x2b8] sm:$0xff] %v9078
                  %v9080 = vld [vmem:[%s9018 + $0xf0] sm:$0xff]
                  %9081 = vst [vmem:[%s9019 + $0x2d0] sm:$0xff] %v9080
                  %v9082 = vld [vmem:[%s9018 + $0xf8] sm:$0xff]
                  %9083 = vst [vmem:[%s9019 + $0x2e8] sm:$0xff] %v9082
                  %v9084 = vld [vmem:[%s9018 + $0x100] sm:$0xff]
                  %9085 = vst [vmem:[%s9019 + $0x300] sm:$0xff] %v9084
                  %v9086 = vld [vmem:[%s9018 + $0x108] sm:$0xff]
                  %9087 = vst [vmem:[%s9019 + $0x318] sm:$0xff] %v9086
                  %v9088 = vld [vmem:[%s9018 + $0x110] sm:$0xff]
                  %9089 = vst [vmem:[%s9019 + $0x330] sm:$0xff] %v9088
                  %v9090 = vld [vmem:[%s9018 + $0x118] sm:$0xff]
                  %9091 = vst [vmem:[%s9019 + $0x348] sm:$0xff] %v9090
                  %v9092 = vld [vmem:[%s9018 + $0x120] sm:$0xff]
                  %9093 = vst [vmem:[%s9019 + $0x360] sm:$0xff] %v9092
                  %v9094 = vld [vmem:[%s9018 + $0x128] sm:$0xff]
                  %9095 = vst [vmem:[%s9019 + $0x378] sm:$0xff] %v9094
                  %v9096 = vld [vmem:[%s9018 + $0x130] sm:$0xff]
                  %9097 = vst [vmem:[%s9019 + $0x390] sm:$0xff] %v9096
                  %v9098 = vld [vmem:[%s9018 + $0x138] sm:$0xff]
                  %9099 = vst [vmem:[%s9019 + $0x3a8] sm:$0xff] %v9098
                  %v9100 = vld [vmem:[%s9018 + $0x140] sm:$0xff]
                  %9101 = vst [vmem:[%s9019 + $0x3c0] sm:$0xff] %v9100
                  %v9102 = vld [vmem:[%s9018 + $0x148] sm:$0xff]
                  %9103 = vst [vmem:[%s9019 + $0x3d8] sm:$0xff] %v9102
                  %v9104 = vld [vmem:[%s9018 + $0x150] sm:$0xff]
                  %9105 = vst [vmem:[%s9019 + $0x3f0] sm:$0xff] %v9104
                  %v9106 = vld [vmem:[%s9018 + $0x158] sm:$0xff]
                  %9107 = vst [vmem:[%s9019 + $0x408] sm:$0xff] %v9106
                  %v9108 = vld [vmem:[%s9018 + $0x160] sm:$0xff]
                  %9109 = vst [vmem:[%s9019 + $0x420] sm:$0xff] %v9108
                  %v9110 = vld [vmem:[%s9018 + $0x168] sm:$0xff]
                  %9111 = vst [vmem:[%s9019 + $0x438] sm:$0xff] %v9110
                  %v9112 = vld [vmem:[%s9018 + $0x170] sm:$0xff]
                  %9113 = vst [vmem:[%s9019 + $0x450] sm:$0xff] %v9112
                  %v9114 = vld [vmem:[%s9018 + $0x178] sm:$0xff]
                  %9115 = vst [vmem:[%s9019 + $0x468] sm:$0xff] %v9114
                  %v9116 = vld [vmem:[%s9018 + $0x180] sm:$0xff]
                  %9117 = vst [vmem:[%s9019 + $0x480] sm:$0xff] %v9116
                  %v9118 = vld [vmem:[%s9018 + $0x188] sm:$0xff]
                  %9119 = vst [vmem:[%s9019 + $0x498] sm:$0xff] %v9118
                  %v9120 = vld [vmem:[%s9018 + $0x190] sm:$0xff]
                  %9121 = vst [vmem:[%s9019 + $0x4b0] sm:$0xff] %v9120
                  %v9122 = vld [vmem:[%s9018 + $0x198] sm:$0xff]
                  %9123 = vst [vmem:[%s9019 + $0x4c8] sm:$0xff] %v9122
                  %v9124 = vld [vmem:[%s9018 + $0x1a0] sm:$0xff]
                  %9125 = vst [vmem:[%s9019 + $0x4e0] sm:$0xff] %v9124
                  %v9126 = vld [vmem:[%s9018 + $0x1a8] sm:$0xff]
                  %9127 = vst [vmem:[%s9019 + $0x4f8] sm:$0xff] %v9126
                  %v9128 = vld [vmem:[%s9018 + $0x1b0] sm:$0xff]
                  %9129 = vst [vmem:[%s9019 + $0x510] sm:$0xff] %v9128
                  %v9130 = vld [vmem:[%s9018 + $0x1b8] sm:$0xff]
                  %9131 = vst [vmem:[%s9019 + $0x528] sm:$0xff] %v9130
                  %v9132 = vld [vmem:[%s9018 + $0x1c0] sm:$0xff]
                  %9133 = vst [vmem:[%s9019 + $0x540] sm:$0xff] %v9132
                  %v9134 = vld [vmem:[%s9018 + $0x1c8] sm:$0xff]
                  %9135 = vst [vmem:[%s9019 + $0x558] sm:$0xff] %v9134
                  %v9136 = vld [vmem:[%s9018 + $0x1d0] sm:$0xff]
                  %9137 = vst [vmem:[%s9019 + $0x570] sm:$0xff] %v9136
                  %v9138 = vld [vmem:[%s9018 + $0x1d8] sm:$0xff]
                  %9139 = vst [vmem:[%s9019 + $0x588] sm:$0xff] %v9138
                  %v9140 = vld [vmem:[%s9018 + $0x1e0] sm:$0xff]
                  %9141 = vst [vmem:[%s9019 + $0x5a0] sm:$0xff] %v9140
                  %v9142 = vld [vmem:[%s9018 + $0x1e8] sm:$0xff]
                  %9143 = vst [vmem:[%s9019 + $0x5b8] sm:$0xff] %v9142
                  %v9144 = vld [vmem:[%s9018 + $0x1f0] sm:$0xff]
                  %9145 = vst [vmem:[%s9019 + $0x5d0] sm:$0xff] %v9144
                  %v9146 = vld [vmem:[%s9018 + $0x1f8] sm:$0xff]
                  %9147 = vst [vmem:[%s9019 + $0x5e8] sm:$0xff] %v9146
                $region118: #{patch_merging_forward.1} parent=112 // loop_footer
                  %s9017 = sadd.s32 1, %s9013
                $region119: #{patch_merging_forward.1} parent=112 // loop_footer_branch
                  %9012 = sbr.rel target = $region115
                $region120: #{patch_merging_forward.1} parent=112 // loop_exit
                  _
              $region113: #{patch_merging_forward.1} parent=97 // pred_fallthru
                _
              // Predicated region
              $region121: #{patch_merging_forward.1} parent=97 // pred_check
                _
              $region122: #{patch_merging_forward.1} parent=97 // pred_check_branch
                %9149 = sbr.rel target = $region124
              $region123: #{patch_merging_forward.1} parent=97 // pred_region
                _
              $region124: #{patch_merging_forward.1} parent=97 // pred_fallthru
                _
            $region98: #{patch_merging_forward.1} parent=93 // pred_fallthru
              _
            // Predicated region
            $region99: #{patch_merging_forward.1} parent=93 // pred_check
              _
            $region100: #{patch_merging_forward.1} parent=93 // pred_check_branch
              %8872 = sbr.rel target = $region102
            $region101: #{patch_merging_forward.1} parent=93 // pred_region
              loop: start=0, step=1, limit=1
              $region103: #{patch_merging_forward.1} parent=101 // loop_pre_header
                _
              $region104: #{patch_merging_forward.1} parent=101 // loop_header
                %s8875 = sphi 0, %s8879
                %p8876 = scmp.ge.s32.totalorder %s8875, 1
                %s8880 = sphi %s8859, %s8859
                %s8881 = sphi %s8866, %s8866
              $region105: #{patch_merging_forward.1} parent=101 // loop_header_branch
                %8878 = sbr.rel (%p8876) target = $region109
              $region106: #{patch_merging_forward.1} parent=101 // loop_body
                %v8882 = vld [vmem:[%s8880] sm:$0xff]
                %8883 = vst [vmem:[%s8881] sm:$0xff] %v8882
                %v8884 = vld [vmem:[%s8880 + $0x8] sm:$0xff]
                %8885 = vst [vmem:[%s8881 + $0x18] sm:$0xff] %v8884
                %v8886 = vld [vmem:[%s8880 + $0x10] sm:$0xff]
                %8887 = vst [vmem:[%s8881 + $0x30] sm:$0xff] %v8886
                %v8888 = vld [vmem:[%s8880 + $0x18] sm:$0xff]
                %8889 = vst [vmem:[%s8881 + $0x48] sm:$0xff] %v8888
                %v8890 = vld [vmem:[%s8880 + $0x20] sm:$0xff]
                %8891 = vst [vmem:[%s8881 + $0x60] sm:$0xff] %v8890
                %v8892 = vld [vmem:[%s8880 + $0x28] sm:$0xff]
                %8893 = vst [vmem:[%s8881 + $0x78] sm:$0xff] %v8892
                %v8894 = vld [vmem:[%s8880 + $0x30] sm:$0xff]
                %8895 = vst [vmem:[%s8881 + $0x90] sm:$0xff] %v8894
                %v8896 = vld [vmem:[%s8880 + $0x38] sm:$0xff]
                %8897 = vst [vmem:[%s8881 + $0xa8] sm:$0xff] %v8896
                %v8898 = vld [vmem:[%s8880 + $0x40] sm:$0xff]
                %8899 = vst [vmem:[%s8881 + $0xc0] sm:$0xff] %v8898
                %v8900 = vld [vmem:[%s8880 + $0x48] sm:$0xff]
                %8901 = vst [vmem:[%s8881 + $0xd8] sm:$0xff] %v8900
                %v8902 = vld [vmem:[%s8880 + $0x50] sm:$0xff]
                %8903 = vst [vmem:[%s8881 + $0xf0] sm:$0xff] %v8902
                %v8904 = vld [vmem:[%s8880 + $0x58] sm:$0xff]
                %8905 = vst [vmem:[%s8881 + $0x108] sm:$0xff] %v8904
                %v8906 = vld [vmem:[%s8880 + $0x60] sm:$0xff]
                %8907 = vst [vmem:[%s8881 + $0x120] sm:$0xff] %v8906
                %v8908 = vld [vmem:[%s8880 + $0x68] sm:$0xff]
                %8909 = vst [vmem:[%s8881 + $0x138] sm:$0xff] %v8908
                %v8910 = vld [vmem:[%s8880 + $0x70] sm:$0xff]
                %8911 = vst [vmem:[%s8881 + $0x150] sm:$0xff] %v8910
                %v8912 = vld [vmem:[%s8880 + $0x78] sm:$0xff]
                %8913 = vst [vmem:[%s8881 + $0x168] sm:$0xff] %v8912
                %v8914 = vld [vmem:[%s8880 + $0x80] sm:$0xff]
                %8915 = vst [vmem:[%s8881 + $0x180] sm:$0xff] %v8914
                %v8916 = vld [vmem:[%s8880 + $0x88] sm:$0xff]
                %8917 = vst [vmem:[%s8881 + $0x198] sm:$0xff] %v8916
                %v8918 = vld [vmem:[%s8880 + $0x90] sm:$0xff]
                %8919 = vst [vmem:[%s8881 + $0x1b0] sm:$0xff] %v8918
                %v8920 = vld [vmem:[%s8880 + $0x98] sm:$0xff]
                %8921 = vst [vmem:[%s8881 + $0x1c8] sm:$0xff] %v8920
                %v8922 = vld [vmem:[%s8880 + $0xa0] sm:$0xff]
                %8923 = vst [vmem:[%s8881 + $0x1e0] sm:$0xff] %v8922
                %v8924 = vld [vmem:[%s8880 + $0xa8] sm:$0xff]
                %8925 = vst [vmem:[%s8881 + $0x1f8] sm:$0xff] %v8924
                %v8926 = vld [vmem:[%s8880 + $0xb0] sm:$0xff]
                %8927 = vst [vmem:[%s8881 + $0x210] sm:$0xff] %v8926
                %v8928 = vld [vmem:[%s8880 + $0xb8] sm:$0xff]
                %8929 = vst [vmem:[%s8881 + $0x228] sm:$0xff] %v8928
                %v8930 = vld [vmem:[%s8880 + $0xc0] sm:$0xff]
                %8931 = vst [vmem:[%s8881 + $0x240] sm:$0xff] %v8930
                %v8932 = vld [vmem:[%s8880 + $0xc8] sm:$0xff]
                %8933 = vst [vmem:[%s8881 + $0x258] sm:$0xff] %v8932
                %v8934 = vld [vmem:[%s8880 + $0xd0] sm:$0xff]
                %8935 = vst [vmem:[%s8881 + $0x270] sm:$0xff] %v8934
                %v8936 = vld [vmem:[%s8880 + $0xd8] sm:$0xff]
                %8937 = vst [vmem:[%s8881 + $0x288] sm:$0xff] %v8936
                %v8938 = vld [vmem:[%s8880 + $0xe0] sm:$0xff]
                %8939 = vst [vmem:[%s8881 + $0x2a0] sm:$0xff] %v8938
                %v8940 = vld [vmem:[%s8880 + $0xe8] sm:$0xff]
                %8941 = vst [vmem:[%s8881 + $0x2b8] sm:$0xff] %v8940
                %v8942 = vld [vmem:[%s8880 + $0xf0] sm:$0xff]
                %8943 = vst [vmem:[%s8881 + $0x2d0] sm:$0xff] %v8942
                %v8944 = vld [vmem:[%s8880 + $0xf8] sm:$0xff]
                %8945 = vst [vmem:[%s8881 + $0x2e8] sm:$0xff] %v8944
                %v8946 = vld [vmem:[%s8880 + $0x100] sm:$0xff]
                %8947 = vst [vmem:[%s8881 + $0x300] sm:$0xff] %v8946
                %v8948 = vld [vmem:[%s8880 + $0x108] sm:$0xff]
                %8949 = vst [vmem:[%s8881 + $0x318] sm:$0xff] %v8948
                %v8950 = vld [vmem:[%s8880 + $0x110] sm:$0xff]
                %8951 = vst [vmem:[%s8881 + $0x330] sm:$0xff] %v8950
                %v8952 = vld [vmem:[%s8880 + $0x118] sm:$0xff]
                %8953 = vst [vmem:[%s8881 + $0x348] sm:$0xff] %v8952
                %v8954 = vld [vmem:[%s8880 + $0x120] sm:$0xff]
                %8955 = vst [vmem:[%s8881 + $0x360] sm:$0xff] %v8954
                %v8956 = vld [vmem:[%s8880 + $0x128] sm:$0xff]
                %8957 = vst [vmem:[%s8881 + $0x378] sm:$0xff] %v8956
                %v8958 = vld [vmem:[%s8880 + $0x130] sm:$0xff]
                %8959 = vst [vmem:[%s8881 + $0x390] sm:$0xff] %v8958
                %v8960 = vld [vmem:[%s8880 + $0x138] sm:$0xff]
                %8961 = vst [vmem:[%s8881 + $0x3a8] sm:$0xff] %v8960
                %v8962 = vld [vmem:[%s8880 + $0x140] sm:$0xff]
                %8963 = vst [vmem:[%s8881 + $0x3c0] sm:$0xff] %v8962
                %v8964 = vld [vmem:[%s8880 + $0x148] sm:$0xff]
                %8965 = vst [vmem:[%s8881 + $0x3d8] sm:$0xff] %v8964
                %v8966 = vld [vmem:[%s8880 + $0x150] sm:$0xff]
                %8967 = vst [vmem:[%s8881 + $0x3f0] sm:$0xff] %v8966
                %v8968 = vld [vmem:[%s8880 + $0x158] sm:$0xff]
                %8969 = vst [vmem:[%s8881 + $0x408] sm:$0xff] %v8968
                %v8970 = vld [vmem:[%s8880 + $0x160] sm:$0xff]
                %8971 = vst [vmem:[%s8881 + $0x420] sm:$0xff] %v8970
                %v8972 = vld [vmem:[%s8880 + $0x168] sm:$0xff]
                %8973 = vst [vmem:[%s8881 + $0x438] sm:$0xff] %v8972
                %v8974 = vld [vmem:[%s8880 + $0x170] sm:$0xff]
                %8975 = vst [vmem:[%s8881 + $0x450] sm:$0xff] %v8974
                %v8976 = vld [vmem:[%s8880 + $0x178] sm:$0xff]
                %8977 = vst [vmem:[%s8881 + $0x468] sm:$0xff] %v8976
                %v8978 = vld [vmem:[%s8880 + $0x180] sm:$0xff]
                %8979 = vst [vmem:[%s8881 + $0x480] sm:$0xff] %v8978
                %v8980 = vld [vmem:[%s8880 + $0x188] sm:$0xff]
                %8981 = vst [vmem:[%s8881 + $0x498] sm:$0xff] %v8980
                %v8982 = vld [vmem:[%s8880 + $0x190] sm:$0xff]
                %8983 = vst [vmem:[%s8881 + $0x4b0] sm:$0xff] %v8982
                %v8984 = vld [vmem:[%s8880 + $0x198] sm:$0xff]
                %8985 = vst [vmem:[%s8881 + $0x4c8] sm:$0xff] %v8984
                %v8986 = vld [vmem:[%s8880 + $0x1a0] sm:$0xff]
                %8987 = vst [vmem:[%s8881 + $0x4e0] sm:$0xff] %v8986
                %v8988 = vld [vmem:[%s8880 + $0x1a8] sm:$0xff]
                %8989 = vst [vmem:[%s8881 + $0x4f8] sm:$0xff] %v8988
                %v8990 = vld [vmem:[%s8880 + $0x1b0] sm:$0xff]
                %8991 = vst [vmem:[%s8881 + $0x510] sm:$0xff] %v8990
                %v8992 = vld [vmem:[%s8880 + $0x1b8] sm:$0xff]
                %8993 = vst [vmem:[%s8881 + $0x528] sm:$0xff] %v8992
                %v8994 = vld [vmem:[%s8880 + $0x1c0] sm:$0xff]
                %8995 = vst [vmem:[%s8881 + $0x540] sm:$0xff] %v8994
                %v8996 = vld [vmem:[%s8880 + $0x1c8] sm:$0xff]
                %8997 = vst [vmem:[%s8881 + $0x558] sm:$0xff] %v8996
                %v8998 = vld [vmem:[%s8880 + $0x1d0] sm:$0xff]
                %8999 = vst [vmem:[%s8881 + $0x570] sm:$0xff] %v8998
                %v9000 = vld [vmem:[%s8880 + $0x1d8] sm:$0xff]
                %9001 = vst [vmem:[%s8881 + $0x588] sm:$0xff] %v9000
                %v9002 = vld [vmem:[%s8880 + $0x1e0] sm:$0xff]
                %9003 = vst [vmem:[%s8881 + $0x5a0] sm:$0xff] %v9002
                %v9004 = vld [vmem:[%s8880 + $0x1e8] sm:$0xff]
                %9005 = vst [vmem:[%s8881 + $0x5b8] sm:$0xff] %v9004
                %v9006 = vld [vmem:[%s8880 + $0x1f0] sm:$0xff]
                %9007 = vst [vmem:[%s8881 + $0x5d0] sm:$0xff] %v9006
                %v9008 = vld [vmem:[%s8880 + $0x1f8] sm:$0xff]
                %9009 = vst [vmem:[%s8881 + $0x5e8] sm:$0xff] %v9008
              $region107: #{patch_merging_forward.1} parent=101 // loop_footer
                %s8879 = sadd.s32 1, %s8875
              $region108: #{patch_merging_forward.1} parent=101 // loop_footer_branch
                %8874 = sbr.rel target = $region104
              $region109: #{patch_merging_forward.1} parent=101 // loop_exit
                _
            $region102: #{patch_merging_forward.1} parent=93 // pred_fallthru
              _
          $region94: #{patch_merging_forward.1} parent=89 // pred_fallthru
            _
          %9150 = vnop
        $region90: #{patch_merging_forward.1} parent=81 // pred_fallthru
          _
      $region82: #{patch_merging_forward.1} parent=5 // pred_fallthru
        _
      %p9151 = scmp.le.s32.totalorder 2, %s13
      // Predicated region
      $region125: #{patch_merging_forward.1} parent=5 // pred_check
        %p9152 = pneg %p9151
      $region126: #{patch_merging_forward.1} parent=5 // pred_check_branch
        %9154 = sbr.rel (%p9152) target = $region128
      $region127: #{patch_merging_forward.1} parent=5 // pred_region
        %s9155 = ssub.s32 %s13, 2
        // Predicated region
        $region129: #{patch_merging_forward.1} parent=127 // pred_check
          %p9156 = pneg %p210
        $region130: #{patch_merging_forward.1} parent=127 // pred_check_branch
          %9158 = sbr.rel (%p9156) target = $region132
        $region131: #{patch_merging_forward.1} parent=127 // pred_region
          %s9159 = sand.u32 %s195, 1
          %s9160 = sand.u32 %s195, 1
          %s9161 = smul.addr %s9160, 512
          %s9162 = scalar_lea.vmem [#allocation3], %s9161
        $region132: #{patch_merging_forward.1} parent=127 // pred_fallthru
          _
      $region128: #{patch_merging_forward.1} parent=5 // pred_fallthru
        _
    $region6: #{patch_merging_forward.1} parent=1 // loop_footer
      %s17 = sadd.s32 1, %s13
    $region7: #{patch_merging_forward.1} parent=1 // loop_footer_branch
      %12 = sbr.rel target = $region3
    $region8: #{patch_merging_forward.1} parent=1 // loop_exit
      _

</llo_original>
